<compile_context>
chip_gen: v5e
topology: v5e:2x2
jax: 0.10.0
libtpu: 0.0.40
codegen_flags: <defaults>
</compile_context>

<pallas_src>
import functools
import math

import jax
import jax.numpy as jnp
from jax import lax
from jax.experimental import pallas as pl
from jax.experimental.pallas import tpu as pltpu


# ----------------------------------------------------------------------------
# Fused Pallas kernel: one (batch, row-band) grid step of the whole block
# ----------------------------------------------------------------------------
def _fused_block_kernel(x_ref, xu_ref, xd_ref, w1_ref, w2_ref,
                        s1_ref, b1_ref, s2_ref, b2_ref, res_ref,
                        o_ref,
                        xpad_ref, acc1_ref, mid_ref, acc2_ref,
                        *, TB, W, Cin, Cmid, Cout, stride, cdt):
    band = pl.program_id(1)
    nb = pl.num_programs(1)

    # ---------------------------------------------------------------- stage 0
    # Zero-padded input band in VMEM (replaces wrapper-side jnp.pad):
    #   xpad[i, j, :] <-> x[r0 - 2 + i, j - 1, :]     (zeros outside the image)
    xpad_ref[...] = jnp.zeros_like(xpad_ref)
    xpad_ref[2:TB + 2, 1:W + 1, :] = x_ref[0]

    @pl.when(band > 0)
    def _():
        xpad_ref[0:2, 1:W + 1, :] = xu_ref[0]            # 2-row halo above

    @pl.when(band < nb - 1)
    def _():
        xpad_ref[TB + 2:TB + 4, 1:W + 1, :] = xd_ref[0]  # 2-row halo below

    # ---------------------------------------------------------------- stage 1
    # conv1 (3x3, pad 1) + bn1 + relu, over TB+2 rows (1-row halo for conv2).
    m1 = (TB + 2) * W
    acc1_ref[...] = jnp.zeros_like(acc1_ref)
    for dy in range(3):
        for dx in range(3):
            patch = xpad_ref[dy:dy + TB + 2, dx:dx + W, :].reshape(m1, Cin)
            acc1_ref[...] += jnp.dot(patch, w1_ref[dy, dx],
                                     preferred_element_type=jnp.float32)
    act1 = jnp.maximum(acc1_ref[...] * s1_ref[...] + b1_ref[...], 0.0)

    #   mid[i, j, :] <-> relu(bn1(conv1(x)))[r0 - 1 + i, j - 1, :]
    # with zeros outside the image (this *is* conv2's / the deconv's padding).
    mid_ref[...] = jnp.zeros_like(mid_ref)
    mid_ref[0:TB + 2, 1:W + 1, :] = act1.reshape(TB + 2, W, Cmid).astype(cdt)

    @pl.when(band == 0)                   # row r0 - 1 lies outside the image
    def _():
        mid_ref[0:1, :, :] = jnp.zeros((1, W + 2, Cmid), cdt)

    @pl.when(band == nb - 1)              # row r0 + TB lies outside the image
    def _():
        mid_ref[TB + 1:TB + 2, :, :] = jnp.zeros((1, W + 2, Cmid), cdt)

    # ---------------------------------------------------------------- stage 2
    m2 = TB * W
    s2 = s2_ref[...]
    b2 = b2_ref[...]

    if stride == 1:
        # conv2 (3x3, pad 1) + bn2 + identity + relu
        acc2_ref[...] = jnp.zeros_like(acc2_ref)
        for dy in range(3):
            for dx in range(3):
                patch = mid_ref[dy:dy + TB, dx:dx + W, :].reshape(m2, Cmid)
                acc2_ref[...] += jnp.dot(patch, w2_ref[dy, dx],
                                         preferred_element_type=jnp.float32)
        y = acc2_ref[...] * s2 + b2
        y = y + res_ref[0].reshape(m2, Cout).astype(jnp.float32)
        o_ref[...] = jnp.maximum(y, 0.0).reshape(1, TB, W, Cout).astype(o_ref.dtype)
    else:
        # ConvTranspose2d(k=3, s=2, p=1, op=1) + bn2 + identity + relu via
        # sub-pixel phase decomposition: out[2r+py, 2c+px] only touches the
        # non-zero taps of the (implicit) zero-dilated input, so each of the 4
        # phases is a short sum of dense (TB*W, Cmid) x (Cmid, Cout) matmuls
        # (9 total -- ~4x fewer MACs than the dilated formulation).
        #   phase (py, px) -> ((mid row off, mid col off, w dy, w dx), ...)
        phase_taps = (
            ((0, 0), ((1, 1, 1, 1),)),
            ((0, 1), ((1, 1, 1, 0), (1, 2, 1, 2))),
            ((1, 0), ((1, 1, 0, 1), (2, 1, 2, 1))),
            ((1, 1), ((1, 1, 0, 0), (1, 2, 0, 2), (2, 1, 2, 0), (2, 2, 2, 2))),
        )
        for (py, px), taps in phase_taps:
            acc2_ref[...] = jnp.zeros_like(acc2_ref)
            for (ro, co, dy, dx) in taps:
                patch = mid_ref[ro:ro + TB, co:co + W, :].reshape(m2, Cmid)
                acc2_ref[...] += jnp.dot(patch, w2_ref[dy, dx],
                                         preferred_element_type=jnp.float32)
            y = (acc2_ref[...] * s2 + b2).reshape(TB, W, Cout)
            y = y + res_ref[0, py, px].astype(jnp.float32)
            o_ref[0, py, px] = jnp.maximum(y, 0.0).astype(o_ref.dtype)


# ----------------------------------------------------------------------------
# Helpers
# ----------------------------------------------------------------------------
def _fold_bn(gamma, beta, mean, var, eps=1e-5):
    scale = gamma / jnp.sqrt(var + eps)
    return scale, beta - mean * scale


def _ceil_to(v, m):
    return -(-v // m) * m


def _padded_bytes(shape, dtype):
    """Conservative VMEM footprint of one buffer (last two dims tile-padded)."""
    s = list(shape)
    if len(s) >= 2:
        s[-1] = _ceil_to(s[-1], 128)
        s[-2] = _ceil_to(s[-2], 16)   # covers bf16 sublane packing too
    return math.prod(s) * jnp.dtype(dtype).itemsize


def _pick_row_block(H, target=64):
    """Largest even row band <= target that divides H (whole image if small)."""
    if H <= target:
        return H
    for tb in range(target, 1, -1):
        if H % tb == 0 and tb % 2 == 0:
            return tb
    return H


# ----------------------------------------------------------------------------
# Public wrapper (NCHW in / NCHW out, matching the PyTorch module)
# ----------------------------------------------------------------------------
def deconv_basic_block(x_nchw, params, stride=1, sample=None,
                       compute_dtype=None, row_block=None):
    """Pallas implementation of DeconvBasicBlock.forward.

    compute_dtype: dtype fed to the MXU (e.g. jnp.bfloat16 on v5e/v6e/v7x);
                   BN affine, residual add and ReLU always run in f32.
    """
    N, Cin, H, W = x_nchw.shape
    cdt = jnp.dtype(compute_dtype) if compute_dtype is not None else jnp.dtype(x_nchw.dtype)

    x = jnp.transpose(x_nchw, (0, 2, 3, 1))             # NCHW -> NHWC
    s1, b1 = _fold_bn(**params["bn1"])
    s2, b2 = _fold_bn(**params["bn2"])

    identity = x if sample is None else sample(x)       # NHWC -> NHWC callable

    w1 = jnp.transpose(params["w1"], (2, 3, 1, 0)).astype(cdt)      # OIHW -> HWIO
    if stride == 1:
        w2 = jnp.transpose(params["w2"], (2, 3, 1, 0)).astype(cdt)
    else:
        # TODO(synk): only stride=2 of deconv3x3 (the value the model uses) is implemented.
        assert stride == 2, "deconv3x3 path implemented for stride=2 only"
        # ConvTranspose2d weight (Cin, Cout, kh, kw): spatial flip -> effective HWIO kernel
        w2 = jnp.transpose(params["w2"][:, :, ::-1, ::-1], (2, 3, 0, 1)).astype(cdt)

    Cmid = w1.shape[-1]
    Cout = w2.shape[-1]

    # Row-band tiling (2-row halo each side).
    TB = int(row_block) if row_block is not None else _pick_row_block(H)
    assert H % 2 == 0 and TB % 2 == 0 and H % TB == 0, (
        f"need even H divisible by an even row block, got H={H}, TB={TB}")
    NB = H // TB
    half = TB // 2

    xc = x.astype(cdt)
    s1v = s1.reshape(1, Cmid).astype(jnp.float32)
    b1v = b1.reshape(1, Cmid).astype(jnp.float32)
    s2v = s2.reshape(1, Cout).astype(jnp.float32)
    b2v = b2.reshape(1, Cout).astype(jnp.float32)

    if stride == 1:
        assert identity.shape == (N, H, W, Cout), identity.shape
        res = identity
        res_block = (1, TB, W, Cout)
        out_block = (1, TB, W, Cout)
        out_shape = jax.ShapeDtypeStruct((N, H, W, Cout), x.dtype)
        res_spec = pl.BlockSpec(res_block, lambda n, b: (n, b, 0, 0))
        out_spec = pl.BlockSpec(out_block, lambda n, b: (n, b, 0, 0))
    else:
        assert identity.shape == (N, 2 * H, 2 * W, Cout), identity.shape
        # Phase-separate the residual: res[n, py, px, r, c] = identity[n, 2r+py, 2c+px]
        res = identity.reshape(N, H, 2, W, 2, Cout).transpose(0, 2, 4, 1, 3, 5)
        res_block = (1, 2, 2, TB, W, Cout)
        out_block = (1, 2, 2, TB, W, Cout)
        out_shape = jax.ShapeDtypeStruct((N, 2, 2, H, W, Cout), x.dtype)
        res_spec = pl.BlockSpec(res_block, lambda n, b: (n, 0, 0, b, 0, 0))
        out_spec = pl.BlockSpec(out_block, lambda n, b: (n, 0, 0, b, 0, 0))

    in_specs = [
        # current row band + 2-row halos above/below (pipelined, tiny extra DMA)
        pl.BlockSpec((1, TB, W, Cin), lambda n, b: (n, b, 0, 0)),
        pl.BlockSpec((1, 2, W, Cin),
                     lambda n, b: (n, jnp.maximum(b * half - 1, 0), 0, 0)),
        pl.BlockSpec((1, 2, W, Cin),
                     lambda n, b: (n, jnp.minimum((b + 1) * half, H // 2 - 1), 0, 0)),
        pl.BlockSpec((3, 3, Cin, Cmid), lambda n, b: (0, 0, 0, 0)),
        pl.BlockSpec((3, 3, Cmid, Cout), lambda n, b: (0, 0, 0, 0)),
        pl.BlockSpec((1, Cmid), lambda n, b: (0, 0)),
        pl.BlockSpec((1, Cmid), lambda n, b: (0, 0)),
        pl.BlockSpec((1, Cout), lambda n, b: (0, 0)),
        pl.BlockSpec((1, Cout), lambda n, b: (0, 0)),
        res_spec,
    ]

    scratch_shapes = [
        pltpu.VMEM((TB + 4, W + 2, Cin), cdt),            # zero-padded input band
        pltpu.VMEM(((TB + 2) * W, Cmid), jnp.float32),    # conv1 accumulator
        pltpu.VMEM((TB + 2, W + 2, Cmid), cdt),           # padded intermediate (VMEM only)
        pltpu.VMEM((TB * W, Cout), jnp.float32),          # conv2 / phase accumulator
    ]

    # Size the scoped VMEM limit to the tile working set (double-buffered blocks
    # + scratch + headroom), capped below the smallest physical VMEM (v7x, 64 MiB).
    block_bytes = (
        _padded_bytes((1, TB, W, Cin), cdt)
        + 2 * _padded_bytes((1, 2, W, Cin), cdt)
        + _padded_bytes((3, 3, Cin, Cmid), cdt)
        + _padded_bytes((3, 3, Cmid, Cout), cdt)
        + 4 * _padded_bytes((1, max(Cmid, Cout)), jnp.float32)
        + _padded_bytes(res_block, res.dtype)
        + _padded_bytes(out_block, x.dtype)
    )
    scratch_bytes = (
        _padded_bytes((TB + 4, W + 2, Cin), cdt)
        + _padded_bytes(((TB + 2) * W, Cmid), jnp.float32)
        + _padded_bytes((TB + 2, W + 2, Cmid), cdt)
        + _padded_bytes((TB * W, Cout), jnp.float32)
    )
    vmem_limit = int(min(60 * 2**20,
                         max(16 * 2**20, 2 * block_bytes + scratch_bytes + (4 << 20))))

    kernel = functools.partial(_fused_block_kernel, TB=TB, W=W, Cin=Cin,
                               Cmid=Cmid, Cout=Cout, stride=stride, cdt=cdt)

    out = pl.pallas_call(
        kernel,
        out_shape=out_shape,
        grid=(N, NB),
        in_specs=in_specs,
        out_specs=out_spec,
        scratch_shapes=scratch_shapes,
        compiler_params=pltpu.CompilerParams(
            dimension_semantics=("parallel", "parallel"),
            vmem_limit_bytes=vmem_limit),
    )(xc, xc, xc, w1, w2, s1v, b1v, s2v, b2v, res)

    if stride == 1:
        return jnp.transpose(out, (0, 3, 1, 2))            # NHWC -> NCHW
    # (N, py, px, H, W, C) phases -> NCHW (N, C, 2H, 2W) in the single transpose
    # the wrapper needs anyway (no extra interleaving pass over HBM).
    return out.transpose(0, 5, 3, 1, 4, 2).reshape(N, Cout, 2 * H, 2 * W)


# ----------------------------------------------------------------------------
# Parameter setup + pure-JAX reference (verification only)
# ----------------------------------------------------------------------------
def init_params(key, inplanes, planes):
    ks = jax.random.split(key, 4)

    def bn(k):
        kg, kb, km, kv = jax.random.split(k, 4)
        return dict(
            gamma=jax.random.normal(kg, (planes,), jnp.float32) * 0.1 + 1.0,
            beta=jax.random.normal(kb, (planes,), jnp.float32) * 0.1,
            mean=jax.random.normal(km, (planes,), jnp.float32) * 0.1,
            var=jnp.abs(jax.random.normal(kv, (planes,), jnp.float32)) * 0.1 + 1.0,
        )

    return dict(
        # conv1: nn.Conv2d(inplanes, planes, 3, padding=1, bias=False) -> OIHW
        w1=jax.random.normal(ks[0], (planes, inplanes, 3, 3), jnp.float32) * 0.1,
        # conv2: Conv2d(planes, planes, 3) (stride==1) or ConvTranspose2d(...) (stride>1)
        w2=jax.random.normal(ks[1], (planes, planes, 3, 3), jnp.float32) * 0.1,
        bn1=bn(ks[2]),
        bn2=bn(ks[3]),
    )


def reference_block(x_nchw, params, stride=1, sample=None):
    x = jnp.transpose(x_nchw, (0, 2, 3, 1))
    dn = ("NHWC", "HWIO", "NHWC")
    s1, b1 = _fold_bn(**params["bn1"])
    s2, b2 = _fold_bn(**params["bn2"])
    identity = x if sample is None else sample(x)

    w1 = jnp.transpose(params["w1"], (2, 3, 1, 0))
    out = lax.conv_general_dilated(x, w1, (1, 1), ((1, 1), (1, 1)),
                                   dimension_numbers=dn)
    out = jnp.maximum(out * s1 + b1, 0.0)

    if stride == 1:
        w2 = jnp.transpose(params["w2"], (2, 3, 1, 0))
        out = lax.conv_general_dilated(out, w2, (1, 1), ((1, 1), (1, 1)),
                                       dimension_numbers=dn)
    else:
        w2 = jnp.transpose(params["w2"][:, :, ::-1, ::-1], (2, 3, 0, 1))
        out = lax.conv_general_dilated(out, w2, (1, 1), ((1, 2), (1, 2)),
                                       lhs_dilation=(stride, stride),
                                       dimension_numbers=dn)
    out = jnp.maximum(out * s2 + b2 + identity, 0.0)
    return jnp.transpose(out, (0, 3, 1, 2))


# ----------------------------------------------------------------------------
if __name__ == "__main__":
    key = jax.random.PRNGKey(0)
    k_x, k_p = jax.random.split(key)

    N, C, H, W = 2, 4, 16, 16
    x = jax.random.normal(k_x, (N, C, H, W), jnp.float32)
    params = init_params(k_p, inplanes=C, planes=C)

    # --- stride=1 (second conv is conv3x3), identity = x -----------------------
    y = jax.block_until_ready(deconv_basic_block(x, params, stride=1))
    y_ref = reference_block(x, params, stride=1)
    assert y.shape == (N, C, H, W)
    assert jnp.allclose(y, y_ref, atol=1e-4, rtol=1e-4), "stride=1 mismatch"

    # same, forcing 2 row-bands per image (exercises halo / band-edge handling)
    y_t = jax.block_until_ready(deconv_basic_block(x, params, stride=1, row_block=8))
    assert jnp.allclose(y_t, y_ref, atol=1e-4, rtol=1e-4), "stride=1 tiled mismatch"

    # --- stride=2 (ConvTranspose2d k=3 s=2 p=1 op=1), identity = sample(x) -----
    def sample_fn(xh):                       # NHWC -> NHWC nearest-neighbour x2
        return jnp.repeat(jnp.repeat(xh, 2, axis=1), 2, axis=2)

    y2 = jax.block_until_ready(
        deconv_basic_block(x, params, stride=2, sample=sample_fn))
    y2_ref = reference_block(x, params, stride=2, sample=sample_fn)
    assert y2.shape == (N, C, 2 * H, 2 * W)
    assert jnp.allclose(y2, y2_ref, atol=1e-4, rtol=1e-4), "stride=2 mismatch"

    y2_t = jax.block_until_ready(
        deconv_basic_block(x, params, stride=2, sample=sample_fn, row_block=8))
    assert jnp.allclose(y2_t, y2_ref, atol=1e-4, rtol=1e-4), "stride=2 tiled mismatch"

    # --- bf16 MXU operands (production setting on v5e/v6e/v7x) -----------------
    y2_bf16 = jax.block_until_ready(
        deconv_basic_block(x, params, stride=2, sample=sample_fn,
                           compute_dtype=jnp.bfloat16))
    assert jnp.allclose(y2_bf16, y2_ref, atol=1e-1, rtol=1e-1), "bf16 mismatch"

    print("KERNEL_OK")
</pallas_src>

<mosaic_0001>
module attributes {stable_mosaic.version = 11 : i64} {
  func.func @_fused_block_kernel(%arg0: i32, %arg1: i32, %arg2: memref<1x16x16x4xf32, #tpu.memory_space<vmem>>, %arg3: memref<1x2x16x4xf32, #tpu.memory_space<vmem>>, %arg4: memref<1x2x16x4xf32, #tpu.memory_space<vmem>>, %arg5: memref<3x3x4x4xf32, #tpu.memory_space<vmem>>, %arg6: memref<3x3x4x4xf32, #tpu.memory_space<vmem>>, %arg7: memref<1x4xf32, #tpu.memory_space<vmem>>, %arg8: memref<1x4xf32, #tpu.memory_space<vmem>>, %arg9: memref<1x4xf32, #tpu.memory_space<vmem>>, %arg10: memref<1x4xf32, #tpu.memory_space<vmem>>, %arg11: memref<1x16x16x4xf32, #tpu.memory_space<vmem>>, %arg12: memref<1x16x16x4xf32, #tpu.memory_space<vmem>>, %arg13: memref<20x18x4xf32, #tpu.memory_space<vmem>>, %arg14: memref<288x4xf32, #tpu.memory_space<vmem>>, %arg15: memref<18x18x4xf32, #tpu.memory_space<vmem>>, %arg16: memref<256x4xf32, #tpu.memory_space<vmem>>) attributes {dimension_semantics = [#tpu.dimension_semantics<parallel>, #tpu.dimension_semantics<parallel>], iteration_bounds = array<i64: 2, 1>, scalar_prefetch = 0 : i64, scratch_operands = 4 : i64, tpu.core_type = #tpu.core_type<tc>, window_params = [{transform_indices = @transform_0, window_bounds = array<i64: 1, 16, 16, 4>}, {transform_indices = @transform_1, window_bounds = array<i64: 1, 2, 16, 4>}, {transform_indices = @transform_2, window_bounds = array<i64: 1, 2, 16, 4>}, {pipeline_mode = #tpu.pipeline_mode<synchronous>, transform_indices = @transform_3, window_bounds = array<i64: 3, 3, 4, 4>}, {pipeline_mode = #tpu.pipeline_mode<synchronous>, transform_indices = @transform_4, window_bounds = array<i64: 3, 3, 4, 4>}, {pipeline_mode = #tpu.pipeline_mode<synchronous>, transform_indices = @transform_5, window_bounds = array<i64: 1, 4>}, {pipeline_mode = #tpu.pipeline_mode<synchronous>, transform_indices = @transform_6, window_bounds = array<i64: 1, 4>}, {pipeline_mode = #tpu.pipeline_mode<synchronous>, transform_indices = @transform_7, window_bounds = array<i64: 1, 4>}, {pipeline_mode = #tpu.pipeline_mode<synchronous>, transform_indices = @transform_8, window_bounds = array<i64: 1, 4>}, {transform_indices = @transform_9, window_bounds = array<i64: 1, 16, 16, 4>}, {transform_indices = @transform_10, window_bounds = array<i64: 1, 16, 16, 4>}]} {
    %cst = arith.constant 0.000000e+00 : f32
    %0 = vector.broadcast %cst : f32 to vector<20x18x4xf32>
    %c0 = arith.constant 0 : index
    %c0_0 = arith.constant 0 : index
    %c0_1 = arith.constant 0 : index
    %1 = vector.load %arg13[%c0, %c0_0, %c0_1] : memref<20x18x4xf32, #tpu.memory_space<vmem>>, vector<20x18x4xf32>
    tpu.vector_store %arg13[%c0, %c0_0, %c0_1], %0 {strides = array<i32>} : memref<20x18x4xf32, #tpu.memory_space<vmem>>, vector<20x18x4xf32>,
    %c0_2 = arith.constant 0 : index
    %c0_3 = arith.constant 0 : index
    %c0_4 = arith.constant 0 : index
    %c0_5 = arith.constant 0 : index
    %2 = vector.load %arg2[%c0_2, %c0_3, %c0_4, %c0_5] : memref<1x16x16x4xf32, #tpu.memory_space<vmem>>, vector<1x16x16x4xf32>
    %3 = vector.shape_cast %2 : vector<1x16x16x4xf32> to vector<16x16x4xf32>
    %c2 = arith.constant 2 : index
    %c1 = arith.constant 1 : index
    %c0_6 = arith.constant 0 : index
    %4 = vector.load %arg13[%c2, %c1, %c0_6] : memref<20x18x4xf32, #tpu.memory_space<vmem>>, vector<16x16x4xf32>
    tpu.vector_store %arg13[%c2, %c1, %c0_6], %3 {strides = array<i32>} : memref<20x18x4xf32, #tpu.memory_space<vmem>>, vector<16x16x4xf32>,
    %c0_i32 = arith.constant 0 : i32
    %5 = arith.cmpi sgt, %arg1, %c0_i32 : i32
    %6 = arith.extui %5 : i1 to i32
    %c0_i32_7 = arith.constant 0 : i32
    %7 = arith.cmpi ne, %6, %c0_i32_7 : i32
    scf.if %7 {
      %c0_265 = arith.constant 0 : index
      %c0_266 = arith.constant 0 : index
      %c0_267 = arith.constant 0 : index
      %c0_268 = arith.constant 0 : index
      %193 = vector.load %arg3[%c0_265, %c0_266, %c0_267, %c0_268] : memref<1x2x16x4xf32, #tpu.memory_space<vmem>>, vector<1x2x16x4xf32>
      %194 = vector.shape_cast %193 : vector<1x2x16x4xf32> to vector<2x16x4xf32>
      %c0_269 = arith.constant 0 : index
      %c1_270 = arith.constant 1 : index
      %c0_271 = arith.constant 0 : index
      %195 = vector.load %arg13[%c0_269, %c1_270, %c0_271] : memref<20x18x4xf32, #tpu.memory_space<vmem>>, vector<2x16x4xf32>
      tpu.vector_store %arg13[%c0_269, %c1_270, %c0_271], %194 {strides = array<i32>} : memref<20x18x4xf32, #tpu.memory_space<vmem>>, vector<2x16x4xf32>,
    } else {
    }
    %c0_i32_8 = arith.constant 0 : i32
    %8 = arith.cmpi slt, %arg1, %c0_i32_8 : i32
    %9 = arith.extui %8 : i1 to i32
    %c0_i32_9 = arith.constant 0 : i32
    %10 = arith.cmpi ne, %9, %c0_i32_9 : i32
    scf.if %10 {
      %c0_265 = arith.constant 0 : index
      %c0_266 = arith.constant 0 : index
      %c0_267 = arith.constant 0 : index
      %c0_268 = arith.constant 0 : index
      %193 = vector.load %arg4[%c0_265, %c0_266, %c0_267, %c0_268] : memref<1x2x16x4xf32, #tpu.memory_space<vmem>>, vector<1x2x16x4xf32>
      %194 = vector.shape_cast %193 : vector<1x2x16x4xf32> to vector<2x16x4xf32>
      %c18 = arith.constant 18 : index
      %c1_269 = arith.constant 1 : index
      %c0_270 = arith.constant 0 : index
      %195 = vector.load %arg13[%c18, %c1_269, %c0_270] : memref<20x18x4xf32, #tpu.memory_space<vmem>>, vector<2x16x4xf32>
      tpu.vector_store %arg13[%c18, %c1_269, %c0_270], %194 {strides = array<i32>} : memref<20x18x4xf32, #tpu.memory_space<vmem>>, vector<2x16x4xf32>,
    } else {
    }
    %cst_10 = arith.constant 0.000000e+00 : f32
    %11 = vector.broadcast %cst_10 : f32 to vector<288x4xf32>
    %c0_11 = arith.constant 0 : index
    %c0_12 = arith.constant 0 : index
    %12 = vector.load %arg14[%c0_11, %c0_12] : memref<288x4xf32, #tpu.memory_space<vmem>>, vector<288x4xf32>
    tpu.vector_store %arg14[%c0_11, %c0_12], %11 {strides = array<i32>} : memref<288x4xf32, #tpu.memory_space<vmem>>, vector<288x4xf32>,
    %c0_13 = arith.constant 0 : index
    %c0_14 = arith.constant 0 : index
    %c0_15 = arith.constant 0 : index
    %13 = vector.load %arg13[%c0_13, %c0_14, %c0_15] : memref<20x18x4xf32, #tpu.memory_space<vmem>>, vector<18x16x4xf32>
    %14 = vector.shape_cast %13 : vector<18x16x4xf32> to vector<288x4xf32>
    %c0_16 = arith.constant 0 : index
    %c0_17 = arith.constant 0 : index
    %15 = vector.load %arg14[%c0_16, %c0_17] : memref<288x4xf32, #tpu.memory_space<vmem>>, vector<288x4xf32>
    %c0_18 = arith.constant 0 : index
    %c0_19 = arith.constant 0 : index
    %c0_20 = arith.constant 0 : index
    %c0_21 = arith.constant 0 : index
    %16 = vector.load %arg5[%c0_18, %c0_19, %c0_20, %c0_21] : memref<3x3x4x4xf32, #tpu.memory_space<vmem>>, vector<1x1x4x4xf32>
    %17 = vector.shape_cast %16 : vector<1x1x4x4xf32> to vector<4x4xf32>
    %cst_22 = arith.constant dense<0.000000e+00> : vector<288x4xf32>
    %18 = tpu.matmul %14, %17, %cst_22 {dimension_numbers = #tpu.dot_dimension_numbers<[1], [0], [0], [1], [0, 0, 1, 1], [], []>} : vector<288x4xf32>, vector<4x4xf32>, vector<288x4xf32> -> vector<288x4xf32>
    %19 = arith.addf %15, %18 : vector<288x4xf32>
    %c0_23 = arith.constant 0 : index
    %c0_24 = arith.constant 0 : index
    %20 = vector.load %arg14[%c0_23, %c0_24] : memref<288x4xf32, #tpu.memory_space<vmem>>, vector<288x4xf32>
    tpu.vector_store %arg14[%c0_23, %c0_24], %19 {strides = array<i32>} : memref<288x4xf32, #tpu.memory_space<vmem>>, vector<288x4xf32>,
    %c0_25 = arith.constant 0 : index
    %c1_26 = arith.constant 1 : index
    %c0_27 = arith.constant 0 : index
    %21 = vector.load %arg13[%c0_25, %c1_26, %c0_27] : memref<20x18x4xf32, #tpu.memory_space<vmem>>, vector<18x16x4xf32>
    %22 = vector.shape_cast %21 : vector<18x16x4xf32> to vector<288x4xf32>
    %c0_28 = arith.constant 0 : index
    %c0_29 = arith.constant 0 : index
    %23 = vector.load %arg14[%c0_28, %c0_29] : memref<288x4xf32, #tpu.memory_space<vmem>>, vector<288x4xf32>
    %c0_30 = arith.constant 0 : index
    %c1_31 = arith.constant 1 : index
    %c0_32 = arith.constant 0 : index
    %c0_33 = arith.constant 0 : index
    %24 = vector.load %arg5[%c0_30, %c1_31, %c0_32, %c0_33] : memref<3x3x4x4xf32, #tpu.memory_space<vmem>>, vector<1x1x4x4xf32>
    %25 = vector.shape_cast %24 : vector<1x1x4x4xf32> to vector<4x4xf32>
    %cst_34 = arith.constant dense<0.000000e+00> : vector<288x4xf32>
    %26 = tpu.matmul %22, %25, %cst_34 {dimension_numbers = #tpu.dot_dimension_numbers<[1], [0], [0], [1], [0, 0, 1, 1], [], []>} : vector<288x4xf32>, vector<4x4xf32>, vector<288x4xf32> -> vector<288x4xf32>
    %27 = arith.addf %23, %26 : vector<288x4xf32>
    %c0_35 = arith.constant 0 : index
    %c0_36 = arith.constant 0 : index
    %28 = vector.load %arg14[%c0_35, %c0_36] : memref<288x4xf32, #tpu.memory_space<vmem>>, vector<288x4xf32>
    tpu.vector_store %arg14[%c0_35, %c0_36], %27 {strides = array<i32>} : memref<288x4xf32, #tpu.memory_space<vmem>>, vector<288x4xf32>,
    %c0_37 = arith.constant 0 : index
    %c2_38 = arith.constant 2 : index
    %c0_39 = arith.constant 0 : index
    %29 = vector.load %arg13[%c0_37, %c2_38, %c0_39] : memref<20x18x4xf32, #tpu.memory_space<vmem>>, vector<18x16x4xf32>
    %30 = vector.shape_cast %29 : vector<18x16x4xf32> to vector<288x4xf32>
    %c0_40 = arith.constant 0 : index
    %c0_41 = arith.constant 0 : index
    %31 = vector.load %arg14[%c0_40, %c0_41] : memref<288x4xf32, #tpu.memory_space<vmem>>, vector<288x4xf32>
    %c0_42 = arith.constant 0 : index
    %c2_43 = arith.constant 2 : index
    %c0_44 = arith.constant 0 : index
    %c0_45 = arith.constant 0 : index
    %32 = vector.load %arg5[%c0_42, %c2_43, %c0_44, %c0_45] : memref<3x3x4x4xf32, #tpu.memory_space<vmem>>, vector<1x1x4x4xf32>
    %33 = vector.shape_cast %32 : vector<1x1x4x4xf32> to vector<4x4xf32>
    %cst_46 = arith.constant dense<0.000000e+00> : vector<288x4xf32>
    %34 = tpu.matmul %30, %33, %cst_46 {dimension_numbers = #tpu.dot_dimension_numbers<[1], [0], [0], [1], [0, 0, 1, 1], [], []>} : vector<288x4xf32>, vector<4x4xf32>, vector<288x4xf32> -> vector<288x4xf32>
    %35 = arith.addf %31, %34 : vector<288x4xf32>
    %c0_47 = arith.constant 0 : index
    %c0_48 = arith.constant 0 : index
    %36 = vector.load %arg14[%c0_47, %c0_48] : memref<288x4xf32, #tpu.memory_space<vmem>>, vector<288x4xf32>
    tpu.vector_store %arg14[%c0_47, %c0_48], %35 {strides = array<i32>} : memref<288x4xf32, #tpu.memory_space<vmem>>, vector<288x4xf32>,
    %c1_49 = arith.constant 1 : index
    %c0_50 = arith.constant 0 : index
    %c0_51 = arith.constant 0 : index
    %37 = vector.load %arg13[%c1_49, %c0_50, %c0_51] : memref<20x18x4xf32, #tpu.memory_space<vmem>>, vector<18x16x4xf32>
    %38 = vector.shape_cast %37 : vector<18x16x4xf32> to vector<288x4xf32>
    %c0_52 = arith.constant 0 : index
    %c0_53 = arith.constant 0 : index
    %39 = vector.load %arg14[%c0_52, %c0_53] : memref<288x4xf32, #tpu.memory_space<vmem>>, vector<288x4xf32>
    %c1_54 = arith.constant 1 : index
    %c0_55 = arith.constant 0 : index
    %c0_56 = arith.constant 0 : index
    %c0_57 = arith.constant 0 : index
    %40 = vector.load %arg5[%c1_54, %c0_55, %c0_56, %c0_57] : memref<3x3x4x4xf32, #tpu.memory_space<vmem>>, vector<1x1x4x4xf32>
    %41 = vector.shape_cast %40 : vector<1x1x4x4xf32> to vector<4x4xf32>
    %cst_58 = arith.constant dense<0.000000e+00> : vector<288x4xf32>
    %42 = tpu.matmul %38, %41, %cst_58 {dimension_numbers = #tpu.dot_dimension_numbers<[1], [0], [0], [1], [0, 0, 1, 1], [], []>} : vector<288x4xf32>, vector<4x4xf32>, vector<288x4xf32> -> vector<288x4xf32>
    %43 = arith.addf %39, %42 : vector<288x4xf32>
    %c0_59 = arith.constant 0 : index
    %c0_60 = arith.constant 0 : index
    %44 = vector.load %arg14[%c0_59, %c0_60] : memref<288x4xf32, #tpu.memory_space<vmem>>, vector<288x4xf32>
    tpu.vector_store %arg14[%c0_59, %c0_60], %43 {strides = array<i32>} : memref<288x4xf32, #tpu.memory_space<vmem>>, vector<288x4xf32>,
    %c1_61 = arith.constant 1 : index
    %c1_62 = arith.constant 1 : index
    %c0_63 = arith.constant 0 : index
    %45 = vector.load %arg13[%c1_61, %c1_62, %c0_63] : memref<20x18x4xf32, #tpu.memory_space<vmem>>, vector<18x16x4xf32>
    %46 = vector.shape_cast %45 : vector<18x16x4xf32> to vector<288x4xf32>
    %c0_64 = arith.constant 0 : index
    %c0_65 = arith.constant 0 : index
    %47 = vector.load %arg14[%c0_64, %c0_65] : memref<288x4xf32, #tpu.memory_space<vmem>>, vector<288x4xf32>
    %c1_66 = arith.constant 1 : index
    %c1_67 = arith.constant 1 : index
    %c0_68 = arith.constant 0 : index
    %c0_69 = arith.constant 0 : index
    %48 = vector.load %arg5[%c1_66, %c1_67, %c0_68, %c0_69] : memref<3x3x4x4xf32, #tpu.memory_space<vmem>>, vector<1x1x4x4xf32>
    %49 = vector.shape_cast %48 : vector<1x1x4x4xf32> to vector<4x4xf32>
    %cst_70 = arith.constant dense<0.000000e+00> : vector<288x4xf32>
    %50 = tpu.matmul %46, %49, %cst_70 {dimension_numbers = #tpu.dot_dimension_numbers<[1], [0], [0], [1], [0, 0, 1, 1], [], []>} : vector<288x4xf32>, vector<4x4xf32>, vector<288x4xf32> -> vector<288x4xf32>
    %51 = arith.addf %47, %50 : vector<288x4xf32>
    %c0_71 = arith.constant 0 : index
    %c0_72 = arith.constant 0 : index
    %52 = vector.load %arg14[%c0_71, %c0_72] : memref<288x4xf32, #tpu.memory_space<vmem>>, vector<288x4xf32>
    tpu.vector_store %arg14[%c0_71, %c0_72], %51 {strides = array<i32>} : memref<288x4xf32, #tpu.memory_space<vmem>>, vector<288x4xf32>,
    %c1_73 = arith.constant 1 : index
    %c2_74 = arith.constant 2 : index
    %c0_75 = arith.constant 0 : index
    %53 = vector.load %arg13[%c1_73, %c2_74, %c0_75] : memref<20x18x4xf32, #tpu.memory_space<vmem>>, vector<18x16x4xf32>
    %54 = vector.shape_cast %53 : vector<18x16x4xf32> to vector<288x4xf32>
    %c0_76 = arith.constant 0 : index
    %c0_77 = arith.constant 0 : index
    %55 = vector.load %arg14[%c0_76, %c0_77] : memref<288x4xf32, #tpu.memory_space<vmem>>, vector<288x4xf32>
    %c1_78 = arith.constant 1 : index
    %c2_79 = arith.constant 2 : index
    %c0_80 = arith.constant 0 : index
    %c0_81 = arith.constant 0 : index
    %56 = vector.load %arg5[%c1_78, %c2_79, %c0_80, %c0_81] : memref<3x3x4x4xf32, #tpu.memory_space<vmem>>, vector<1x1x4x4xf32>
    %57 = vector.shape_cast %56 : vector<1x1x4x4xf32> to vector<4x4xf32>
    %cst_82 = arith.constant dense<0.000000e+00> : vector<288x4xf32>
    %58 = tpu.matmul %54, %57, %cst_82 {dimension_numbers = #tpu.dot_dimension_numbers<[1], [0], [0], [1], [0, 0, 1, 1], [], []>} : vector<288x4xf32>, vector<4x4xf32>, vector<288x4xf32> -> vector<288x4xf32>
    %59 = arith.addf %55, %58 : vector<288x4xf32>
    %c0_83 = arith.constant 0 : index
    %c0_84 = arith.constant 0 : index
    %60 = vector.load %arg14[%c0_83, %c0_84] : memref<288x4xf32, #tpu.memory_space<vmem>>, vector<288x4xf32>
    tpu.vector_store %arg14[%c0_83, %c0_84], %59 {strides = array<i32>} : memref<288x4xf32, #tpu.memory_space<vmem>>, vector<288x4xf32>,
    %c2_85 = arith.constant 2 : index
    %c0_86 = arith.constant 0 : index
    %c0_87 = arith.constant 0 : index
    %61 = vector.load %arg13[%c2_85, %c0_86, %c0_87] : memref<20x18x4xf32, #tpu.memory_space<vmem>>, vector<18x16x4xf32>
    %62 = vector.shape_cast %61 : vector<18x16x4xf32> to vector<288x4xf32>
    %c0_88 = arith.constant 0 : index
    %c0_89 = arith.constant 0 : index
    %63 = vector.load %arg14[%c0_88, %c0_89] : memref<288x4xf32, #tpu.memory_space<vmem>>, vector<288x4xf32>
    %c2_90 = arith.constant 2 : index
    %c0_91 = arith.constant 0 : index
    %c0_92 = arith.constant 0 : index
    %c0_93 = arith.constant 0 : index
    %64 = vector.load %arg5[%c2_90, %c0_91, %c0_92, %c0_93] : memref<3x3x4x4xf32, #tpu.memory_space<vmem>>, vector<1x1x4x4xf32>
    %65 = vector.shape_cast %64 : vector<1x1x4x4xf32> to vector<4x4xf32>
    %cst_94 = arith.constant dense<0.000000e+00> : vector<288x4xf32>
    %66 = tpu.matmul %62, %65, %cst_94 {dimension_numbers = #tpu.dot_dimension_numbers<[1], [0], [0], [1], [0, 0, 1, 1], [], []>} : vector<288x4xf32>, vector<4x4xf32>, vector<288x4xf32> -> vector<288x4xf32>
    %67 = arith.addf %63, %66 : vector<288x4xf32>
    %c0_95 = arith.constant 0 : index
    %c0_96 = arith.constant 0 : index
    %68 = vector.load %arg14[%c0_95, %c0_96] : memref<288x4xf32, #tpu.memory_space<vmem>>, vector<288x4xf32>
    tpu.vector_store %arg14[%c0_95, %c0_96], %67 {strides = array<i32>} : memref<288x4xf32, #tpu.memory_space<vmem>>, vector<288x4xf32>,
    %c2_97 = arith.constant 2 : index
    %c1_98 = arith.constant 1 : index
    %c0_99 = arith.constant 0 : index
    %69 = vector.load %arg13[%c2_97, %c1_98, %c0_99] : memref<20x18x4xf32, #tpu.memory_space<vmem>>, vector<18x16x4xf32>
    %70 = vector.shape_cast %69 : vector<18x16x4xf32> to vector<288x4xf32>
    %c0_100 = arith.constant 0 : index
    %c0_101 = arith.constant 0 : index
    %71 = vector.load %arg14[%c0_100, %c0_101] : memref<288x4xf32, #tpu.memory_space<vmem>>, vector<288x4xf32>
    %c2_102 = arith.constant 2 : index
    %c1_103 = arith.constant 1 : index
    %c0_104 = arith.constant 0 : index
    %c0_105 = arith.constant 0 : index
    %72 = vector.load %arg5[%c2_102, %c1_103, %c0_104, %c0_105] : memref<3x3x4x4xf32, #tpu.memory_space<vmem>>, vector<1x1x4x4xf32>
    %73 = vector.shape_cast %72 : vector<1x1x4x4xf32> to vector<4x4xf32>
    %cst_106 = arith.constant dense<0.000000e+00> : vector<288x4xf32>
    %74 = tpu.matmul %70, %73, %cst_106 {dimension_numbers = #tpu.dot_dimension_numbers<[1], [0], [0], [1], [0, 0, 1, 1], [], []>} : vector<288x4xf32>, vector<4x4xf32>, vector<288x4xf32> -> vector<288x4xf32>
    %75 = arith.addf %71, %74 : vector<288x4xf32>
    %c0_107 = arith.constant 0 : index
    %c0_108 = arith.constant 0 : index
    %76 = vector.load %arg14[%c0_107, %c0_108] : memref<288x4xf32, #tpu.memory_space<vmem>>, vector<288x4xf32>
    tpu.vector_store %arg14[%c0_107, %c0_108], %75 {strides = array<i32>} : memref<288x4xf32, #tpu.memory_space<vmem>>, vector<288x4xf32>,
    %c2_109 = arith.constant 2 : index
    %c2_110 = arith.constant 2 : index
    %c0_111 = arith.constant 0 : index
    %77 = vector.load %arg13[%c2_109, %c2_110, %c0_111] : memref<20x18x4xf32, #tpu.memory_space<vmem>>, vector<18x16x4xf32>
    %78 = vector.shape_cast %77 : vector<18x16x4xf32> to vector<288x4xf32>
    %c0_112 = arith.constant 0 : index
    %c0_113 = arith.constant 0 : index
    %79 = vector.load %arg14[%c0_112, %c0_113] : memref<288x4xf32, #tpu.memory_space<vmem>>, vector<288x4xf32>
    %c2_114 = arith.constant 2 : index
    %c2_115 = arith.constant 2 : index
    %c0_116 = arith.constant 0 : index
    %c0_117 = arith.constant 0 : index
    %80 = vector.load %arg5[%c2_114, %c2_115, %c0_116, %c0_117] : memref<3x3x4x4xf32, #tpu.memory_space<vmem>>, vector<1x1x4x4xf32>
    %81 = vector.shape_cast %80 : vector<1x1x4x4xf32> to vector<4x4xf32>
    %cst_118 = arith.constant dense<0.000000e+00> : vector<288x4xf32>
    %82 = tpu.matmul %78, %81, %cst_118 {dimension_numbers = #tpu.dot_dimension_numbers<[1], [0], [0], [1], [0, 0, 1, 1], [], []>} : vector<288x4xf32>, vector<4x4xf32>, vector<288x4xf32> -> vector<288x4xf32>
    %83 = arith.addf %79, %82 : vector<288x4xf32>
    %c0_119 = arith.constant 0 : index
    %c0_120 = arith.constant 0 : index
    %84 = vector.load %arg14[%c0_119, %c0_120] : memref<288x4xf32, #tpu.memory_space<vmem>>, vector<288x4xf32>
    tpu.vector_store %arg14[%c0_119, %c0_120], %83 {strides = array<i32>} : memref<288x4xf32, #tpu.memory_space<vmem>>, vector<288x4xf32>,
    %c0_121 = arith.constant 0 : index
    %c0_122 = arith.constant 0 : index
    %85 = vector.load %arg14[%c0_121, %c0_122] : memref<288x4xf32, #tpu.memory_space<vmem>>, vector<288x4xf32>
    %c0_123 = arith.constant 0 : index
    %c0_124 = arith.constant 0 : index
    %86 = vector.load %arg7[%c0_123, %c0_124] : memref<1x4xf32, #tpu.memory_space<vmem>>, vector<1x4xf32>
    %87 = vector.broadcast %86 : vector<1x4xf32> to vector<288x4xf32>
    %88 = arith.mulf %85, %87 : vector<288x4xf32>
    %c0_125 = arith.constant 0 : index
    %c0_126 = arith.constant 0 : index
    %89 = vector.load %arg8[%c0_125, %c0_126] : memref<1x4xf32, #tpu.memory_space<vmem>>, vector<1x4xf32>
    %90 = vector.broadcast %89 : vector<1x4xf32> to vector<288x4xf32>
    %91 = arith.addf %88, %90 : vector<288x4xf32>
    %cst_127 = arith.constant 0.000000e+00 : f32
    %92 = vector.broadcast %cst_127 : f32 to vector<288x4xf32>
    %93 = arith.maximumf %91, %92 : vector<288x4xf32>
    %cst_128 = arith.constant 0.000000e+00 : f32
    %94 = vector.broadcast %cst_128 : f32 to vector<18x18x4xf32>
    %c0_129 = arith.constant 0 : index
    %c0_130 = arith.constant 0 : index
    %c0_131 = arith.constant 0 : index
    %95 = vector.load %arg15[%c0_129, %c0_130, %c0_131] : memref<18x18x4xf32, #tpu.memory_space<vmem>>, vector<18x18x4xf32>
    tpu.vector_store %arg15[%c0_129, %c0_130, %c0_131], %94 {strides = array<i32>} : memref<18x18x4xf32, #tpu.memory_space<vmem>>, vector<18x18x4xf32>,
    %96 = vector.shape_cast %93 : vector<288x4xf32> to vector<18x16x4xf32>
    %c0_132 = arith.constant 0 : index
    %c1_133 = arith.constant 1 : index
    %c0_134 = arith.constant 0 : index
    %97 = vector.load %arg15[%c0_132, %c1_133, %c0_134] : memref<18x18x4xf32, #tpu.memory_space<vmem>>, vector<18x16x4xf32>
    tpu.vector_store %arg15[%c0_132, %c1_133, %c0_134], %96 {strides = array<i32>} : memref<18x18x4xf32, #tpu.memory_space<vmem>>, vector<18x16x4xf32>,
    %c0_i32_135 = arith.constant 0 : i32
    %98 = arith.cmpi eq, %arg1, %c0_i32_135 : i32
    %99 = arith.extui %98 : i1 to i32
    %c0_i32_136 = arith.constant 0 : i32
    %100 = arith.cmpi ne, %99, %c0_i32_136 : i32
    scf.if %100 {
      %cst_265 = arith.constant 0.000000e+00 : f32
      %193 = vector.broadcast %cst_265 : f32 to vector<1x18x4xf32>
      %c0_266 = arith.constant 0 : index
      %c0_267 = arith.constant 0 : index
      %c0_268 = arith.constant 0 : index
      %194 = vector.load %arg15[%c0_266, %c0_267, %c0_268] : memref<18x18x4xf32, #tpu.memory_space<vmem>>, vector<1x18x4xf32>
      tpu.vector_store %arg15[%c0_266, %c0_267, %c0_268], %193 {strides = array<i32>} : memref<18x18x4xf32, #tpu.memory_space<vmem>>, vector<1x18x4xf32>,
    } else {
    }
    %c0_i32_137 = arith.constant 0 : i32
    %101 = arith.cmpi eq, %arg1, %c0_i32_137 : i32
    %102 = arith.extui %101 : i1 to i32
    %c0_i32_138 = arith.constant 0 : i32
    %103 = arith.cmpi ne, %102, %c0_i32_138 : i32
    scf.if %103 {
      %cst_265 = arith.constant 0.000000e+00 : f32
      %193 = vector.broadcast %cst_265 : f32 to vector<1x18x4xf32>
      %c17 = arith.constant 17 : index
      %c0_266 = arith.constant 0 : index
      %c0_267 = arith.constant 0 : index
      %194 = vector.load %arg15[%c17, %c0_266, %c0_267] : memref<18x18x4xf32, #tpu.memory_space<vmem>>, vector<1x18x4xf32>
      tpu.vector_store %arg15[%c17, %c0_266, %c0_267], %193 {strides = array<i32>} : memref<18x18x4xf32, #tpu.memory_space<vmem>>, vector<1x18x4xf32>,
    } else {
    }
    %c0_139 = arith.constant 0 : index
    %c0_140 = arith.constant 0 : index
    %104 = vector.load %arg9[%c0_139, %c0_140] : memref<1x4xf32, #tpu.memory_space<vmem>>, vector<1x4xf32>
    %c0_141 = arith.constant 0 : index
    %c0_142 = arith.constant 0 : index
    %105 = vector.load %arg10[%c0_141, %c0_142] : memref<1x4xf32, #tpu.memory_space<vmem>>, vector<1x4xf32>
    %cst_143 = arith.constant 0.000000e+00 : f32
    %106 = vector.broadcast %cst_143 : f32 to vector<256x4xf32>
    %c0_144 = arith.constant 0 : index
    %c0_145 = arith.constant 0 : index
    %107 = vector.load %arg16[%c0_144, %c0_145] : memref<256x4xf32, #tpu.memory_space<vmem>>, vector<256x4xf32>
    tpu.vector_store %arg16[%c0_144, %c0_145], %106 {strides = array<i32>} : memref<256x4xf32, #tpu.memory_space<vmem>>, vector<256x4xf32>,
    %c0_146 = arith.constant 0 : index
    %c0_147 = arith.constant 0 : index
    %c0_148 = arith.constant 0 : index
    %108 = vector.load %arg15[%c0_146, %c0_147, %c0_148] : memref<18x18x4xf32, #tpu.memory_space<vmem>>, vector<16x16x4xf32>
    %109 = vector.shape_cast %108 : vector<16x16x4xf32> to vector<256x4xf32>
    %c0_149 = arith.constant 0 : index
    %c0_150 = arith.constant 0 : index
    %110 = vector.load %arg16[%c0_149, %c0_150] : memref<256x4xf32, #tpu.memory_space<vmem>>, vector<256x4xf32>
    %c0_151 = arith.constant 0 : index
    %c0_152 = arith.constant 0 : index
    %c0_153 = arith.constant 0 : index
    %c0_154 = arith.constant 0 : index
    %111 = vector.load %arg6[%c0_151, %c0_152, %c0_153, %c0_154] : memref<3x3x4x4xf32, #tpu.memory_space<vmem>>, vector<1x1x4x4xf32>
    %112 = vector.shape_cast %111 : vector<1x1x4x4xf32> to vector<4x4xf32>
    %cst_155 = arith.constant dense<0.000000e+00> : vector<256x4xf32>
    %113 = tpu.matmul %109, %112, %cst_155 {dimension_numbers = #tpu.dot_dimension_numbers<[1], [0], [0], [1], [0, 0, 1, 1], [], []>} : vector<256x4xf32>, vector<4x4xf32>, vector<256x4xf32> -> vector<256x4xf32>
    %114 = arith.addf %110, %113 : vector<256x4xf32>
    %c0_156 = arith.constant 0 : index
    %c0_157 = arith.constant 0 : index
    %115 = vector.load %arg16[%c0_156, %c0_157] : memref<256x4xf32, #tpu.memory_space<vmem>>, vector<256x4xf32>
    tpu.vector_store %arg16[%c0_156, %c0_157], %114 {strides = array<i32>} : memref<256x4xf32, #tpu.memory_space<vmem>>, vector<256x4xf32>,
    %c0_158 = arith.constant 0 : index
    %c1_159 = arith.constant 1 : index
    %c0_160 = arith.constant 0 : index
    %116 = vector.load %arg15[%c0_158, %c1_159, %c0_160] : memref<18x18x4xf32, #tpu.memory_space<vmem>>, vector<16x16x4xf32>
    %117 = vector.shape_cast %116 : vector<16x16x4xf32> to vector<256x4xf32>
    %c0_161 = arith.constant 0 : index
    %c0_162 = arith.constant 0 : index
    %118 = vector.load %arg16[%c0_161, %c0_162] : memref<256x4xf32, #tpu.memory_space<vmem>>, vector<256x4xf32>
    %c0_163 = arith.constant 0 : index
    %c1_164 = arith.constant 1 : index
    %c0_165 = arith.constant 0 : index
    %c0_166 = arith.constant 0 : index
    %119 = vector.load %arg6[%c0_163, %c1_164, %c0_165, %c0_166] : memref<3x3x4x4xf32, #tpu.memory_space<vmem>>, vector<1x1x4x4xf32>
    %120 = vector.shape_cast %119 : vector<1x1x4x4xf32> to vector<4x4xf32>
    %cst_167 = arith.constant dense<0.000000e+00> : vector<256x4xf32>
    %121 = tpu.matmul %117, %120, %cst_167 {dimension_numbers = #tpu.dot_dimension_numbers<[1], [0], [0], [1], [0, 0, 1, 1], [], []>} : vector<256x4xf32>, vector<4x4xf32>, vector<256x4xf32> -> vector<256x4xf32>
    %122 = arith.addf %118, %121 : vector<256x4xf32>
    %c0_168 = arith.constant 0 : index
    %c0_169 = arith.constant 0 : index
    %123 = vector.load %arg16[%c0_168, %c0_169] : memref<256x4xf32, #tpu.memory_space<vmem>>, vector<256x4xf32>
    tpu.vector_store %arg16[%c0_168, %c0_169], %122 {strides = array<i32>} : memref<256x4xf32, #tpu.memory_space<vmem>>, vector<256x4xf32>,
    %c0_170 = arith.constant 0 : index
    %c2_171 = arith.constant 2 : index
    %c0_172 = arith.constant 0 : index
    %124 = vector.load %arg15[%c0_170, %c2_171, %c0_172] : memref<18x18x4xf32, #tpu.memory_space<vmem>>, vector<16x16x4xf32>
    %125 = vector.shape_cast %124 : vector<16x16x4xf32> to vector<256x4xf32>
    %c0_173 = arith.constant 0 : index
    %c0_174 = arith.constant 0 : index
    %126 = vector.load %arg16[%c0_173, %c0_174] : memref<256x4xf32, #tpu.memory_space<vmem>>, vector<256x4xf32>
    %c0_175 = arith.constant 0 : index
    %c2_176 = arith.constant 2 : index
    %c0_177 = arith.constant 0 : index
    %c0_178 = arith.constant 0 : index
    %127 = vector.load %arg6[%c0_175, %c2_176, %c0_177, %c0_178] : memref<3x3x4x4xf32, #tpu.memory_space<vmem>>, vector<1x1x4x4xf32>
    %128 = vector.shape_cast %127 : vector<1x1x4x4xf32> to vector<4x4xf32>
    %cst_179 = arith.constant dense<0.000000e+00> : vector<256x4xf32>
    %129 = tpu.matmul %125, %128, %cst_179 {dimension_numbers = #tpu.dot_dimension_numbers<[1], [0], [0], [1], [0, 0, 1, 1], [], []>} : vector<256x4xf32>, vector<4x4xf32>, vector<256x4xf32> -> vector<256x4xf32>
    %130 = arith.addf %126, %129 : vector<256x4xf32>
    %c0_180 = arith.constant 0 : index
    %c0_181 = arith.constant 0 : index
    %131 = vector.load %arg16[%c0_180, %c0_181] : memref<256x4xf32, #tpu.memory_space<vmem>>, vector<256x4xf32>
    tpu.vector_store %arg16[%c0_180, %c0_181], %130 {strides = array<i32>} : memref<256x4xf32, #tpu.memory_space<vmem>>, vector<256x4xf32>,
    %c1_182 = arith.constant 1 : index
    %c0_183 = arith.constant 0 : index
    %c0_184 = arith.constant 0 : index
    %132 = vector.load %arg15[%c1_182, %c0_183, %c0_184] : memref<18x18x4xf32, #tpu.memory_space<vmem>>, vector<16x16x4xf32>
    %133 = vector.shape_cast %132 : vector<16x16x4xf32> to vector<256x4xf32>
    %c0_185 = arith.constant 0 : index
    %c0_186 = arith.constant 0 : index
    %134 = vector.load %arg16[%c0_185, %c0_186] : memref<256x4xf32, #tpu.memory_space<vmem>>, vector<256x4xf32>
    %c1_187 = arith.constant 1 : index
    %c0_188 = arith.constant 0 : index
    %c0_189 = arith.constant 0 : index
    %c0_190 = arith.constant 0 : index
    %135 = vector.load %arg6[%c1_187, %c0_188, %c0_189, %c0_190] : memref<3x3x4x4xf32, #tpu.memory_space<vmem>>, vector<1x1x4x4xf32>
    %136 = vector.shape_cast %135 : vector<1x1x4x4xf32> to vector<4x4xf32>
    %cst_191 = arith.constant dense<0.000000e+00> : vector<256x4xf32>
    %137 = tpu.matmul %133, %136, %cst_191 {dimension_numbers = #tpu.dot_dimension_numbers<[1], [0], [0], [1], [0, 0, 1, 1], [], []>} : vector<256x4xf32>, vector<4x4xf32>, vector<256x4xf32> -> vector<256x4xf32>
    %138 = arith.addf %134, %137 : vector<256x4xf32>
    %c0_192 = arith.constant 0 : index
    %c0_193 = arith.constant 0 : index
    %139 = vector.load %arg16[%c0_192, %c0_193] : memref<256x4xf32, #tpu.memory_space<vmem>>, vector<256x4xf32>
    tpu.vector_store %arg16[%c0_192, %c0_193], %138 {strides = array<i32>} : memref<256x4xf32, #tpu.memory_space<vmem>>, vector<256x4xf32>,
    %c1_194 = arith.constant 1 : index
    %c1_195 = arith.constant 1 : index
    %c0_196 = arith.constant 0 : index
    %140 = vector.load %arg15[%c1_194, %c1_195, %c0_196] : memref<18x18x4xf32, #tpu.memory_space<vmem>>, vector<16x16x4xf32>
    %141 = vector.shape_cast %140 : vector<16x16x4xf32> to vector<256x4xf32>
    %c0_197 = arith.constant 0 : index
    %c0_198 = arith.constant 0 : index
    %142 = vector.load %arg16[%c0_197, %c0_198] : memref<256x4xf32, #tpu.memory_space<vmem>>, vector<256x4xf32>
    %c1_199 = arith.constant 1 : index
    %c1_200 = arith.constant 1 : index
    %c0_201 = arith.constant 0 : index
    %c0_202 = arith.constant 0 : index
    %143 = vector.load %arg6[%c1_199, %c1_200, %c0_201, %c0_202] : memref<3x3x4x4xf32, #tpu.memory_space<vmem>>, vector<1x1x4x4xf32>
    %144 = vector.shape_cast %143 : vector<1x1x4x4xf32> to vector<4x4xf32>
    %cst_203 = arith.constant dense<0.000000e+00> : vector<256x4xf32>
    %145 = tpu.matmul %141, %144, %cst_203 {dimension_numbers = #tpu.dot_dimension_numbers<[1], [0], [0], [1], [0, 0, 1, 1], [], []>} : vector<256x4xf32>, vector<4x4xf32>, vector<256x4xf32> -> vector<256x4xf32>
    %146 = arith.addf %142, %145 : vector<256x4xf32>
    %c0_204 = arith.constant 0 : index
    %c0_205 = arith.constant 0 : index
    %147 = vector.load %arg16[%c0_204, %c0_205] : memref<256x4xf32, #tpu.memory_space<vmem>>, vector<256x4xf32>
    tpu.vector_store %arg16[%c0_204, %c0_205], %146 {strides = array<i32>} : memref<256x4xf32, #tpu.memory_space<vmem>>, vector<256x4xf32>,
    %c1_206 = arith.constant 1 : index
    %c2_207 = arith.constant 2 : index
    %c0_208 = arith.constant 0 : index
    %148 = vector.load %arg15[%c1_206, %c2_207, %c0_208] : memref<18x18x4xf32, #tpu.memory_space<vmem>>, vector<16x16x4xf32>
    %149 = vector.shape_cast %148 : vector<16x16x4xf32> to vector<256x4xf32>
    %c0_209 = arith.constant 0 : index
    %c0_210 = arith.constant 0 : index
    %150 = vector.load %arg16[%c0_209, %c0_210] : memref<256x4xf32, #tpu.memory_space<vmem>>, vector<256x4xf32>
    %c1_211 = arith.constant 1 : index
    %c2_212 = arith.constant 2 : index
    %c0_213 = arith.constant 0 : index
    %c0_214 = arith.constant 0 : index
    %151 = vector.load %arg6[%c1_211, %c2_212, %c0_213, %c0_214] : memref<3x3x4x4xf32, #tpu.memory_space<vmem>>, vector<1x1x4x4xf32>
    %152 = vector.shape_cast %151 : vector<1x1x4x4xf32> to vector<4x4xf32>
    %cst_215 = arith.constant dense<0.000000e+00> : vector<256x4xf32>
    %153 = tpu.matmul %149, %152, %cst_215 {dimension_numbers = #tpu.dot_dimension_numbers<[1], [0], [0], [1], [0, 0, 1, 1], [], []>} : vector<256x4xf32>, vector<4x4xf32>, vector<256x4xf32> -> vector<256x4xf32>
    %154 = arith.addf %150, %153 : vector<256x4xf32>
    %c0_216 = arith.constant 0 : index
    %c0_217 = arith.constant 0 : index
    %155 = vector.load %arg16[%c0_216, %c0_217] : memref<256x4xf32, #tpu.memory_space<vmem>>, vector<256x4xf32>
    tpu.vector_store %arg16[%c0_216, %c0_217], %154 {strides = array<i32>} : memref<256x4xf32, #tpu.memory_space<vmem>>, vector<256x4xf32>,
    %c2_218 = arith.constant 2 : index
    %c0_219 = arith.constant 0 : index
    %c0_220 = arith.constant 0 : index
    %156 = vector.load %arg15[%c2_218, %c0_219, %c0_220] : memref<18x18x4xf32, #tpu.memory_space<vmem>>, vector<16x16x4xf32>
    %157 = vector.shape_cast %156 : vector<16x16x4xf32> to vector<256x4xf32>
    %c0_221 = arith.constant 0 : index
    %c0_222 = arith.constant 0 : index
    %158 = vector.load %arg16[%c0_221, %c0_222] : memref<256x4xf32, #tpu.memory_space<vmem>>, vector<256x4xf32>
    %c2_223 = arith.constant 2 : index
    %c0_224 = arith.constant 0 : index
    %c0_225 = arith.constant 0 : index
    %c0_226 = arith.constant 0 : index
    %159 = vector.load %arg6[%c2_223, %c0_224, %c0_225, %c0_226] : memref<3x3x4x4xf32, #tpu.memory_space<vmem>>, vector<1x1x4x4xf32>
    %160 = vector.shape_cast %159 : vector<1x1x4x4xf32> to vector<4x4xf32>
    %cst_227 = arith.constant dense<0.000000e+00> : vector<256x4xf32>
    %161 = tpu.matmul %157, %160, %cst_227 {dimension_numbers = #tpu.dot_dimension_numbers<[1], [0], [0], [1], [0, 0, 1, 1], [], []>} : vector<256x4xf32>, vector<4x4xf32>, vector<256x4xf32> -> vector<256x4xf32>
    %162 = arith.addf %158, %161 : vector<256x4xf32>
    %c0_228 = arith.constant 0 : index
    %c0_229 = arith.constant 0 : index
    %163 = vector.load %arg16[%c0_228, %c0_229] : memref<256x4xf32, #tpu.memory_space<vmem>>, vector<256x4xf32>
    tpu.vector_store %arg16[%c0_228, %c0_229], %162 {strides = array<i32>} : memref<256x4xf32, #tpu.memory_space<vmem>>, vector<256x4xf32>,
    %c2_230 = arith.constant 2 : index
    %c1_231 = arith.constant 1 : index
    %c0_232 = arith.constant 0 : index
    %164 = vector.load %arg15[%c2_230, %c1_231, %c0_232] : memref<18x18x4xf32, #tpu.memory_space<vmem>>, vector<16x16x4xf32>
    %165 = vector.shape_cast %164 : vector<16x16x4xf32> to vector<256x4xf32>
    %c0_233 = arith.constant 0 : index
    %c0_234 = arith.constant 0 : index
    %166 = vector.load %arg16[%c0_233, %c0_234] : memref<256x4xf32, #tpu.memory_space<vmem>>, vector<256x4xf32>
    %c2_235 = arith.constant 2 : index
    %c1_236 = arith.constant 1 : index
    %c0_237 = arith.constant 0 : index
    %c0_238 = arith.constant 0 : index
    %167 = vector.load %arg6[%c2_235, %c1_236, %c0_237, %c0_238] : memref<3x3x4x4xf32, #tpu.memory_space<vmem>>, vector<1x1x4x4xf32>
    %168 = vector.shape_cast %167 : vector<1x1x4x4xf32> to vector<4x4xf32>
    %cst_239 = arith.constant dense<0.000000e+00> : vector<256x4xf32>
    %169 = tpu.matmul %165, %168, %cst_239 {dimension_numbers = #tpu.dot_dimension_numbers<[1], [0], [0], [1], [0, 0, 1, 1], [], []>} : vector<256x4xf32>, vector<4x4xf32>, vector<256x4xf32> -> vector<256x4xf32>
    %170 = arith.addf %166, %169 : vector<256x4xf32>
    %c0_240 = arith.constant 0 : index
    %c0_241 = arith.constant 0 : index
    %171 = vector.load %arg16[%c0_240, %c0_241] : memref<256x4xf32, #tpu.memory_space<vmem>>, vector<256x4xf32>
    tpu.vector_store %arg16[%c0_240, %c0_241], %170 {strides = array<i32>} : memref<256x4xf32, #tpu.memory_space<vmem>>, vector<256x4xf32>,
    %c2_242 = arith.constant 2 : index
    %c2_243 = arith.constant 2 : index
    %c0_244 = arith.constant 0 : index
    %172 = vector.load %arg15[%c2_242, %c2_243, %c0_244] : memref<18x18x4xf32, #tpu.memory_space<vmem>>, vector<16x16x4xf32>
    %173 = vector.shape_cast %172 : vector<16x16x4xf32> to vector<256x4xf32>
    %c0_245 = arith.constant 0 : index
    %c0_246 = arith.constant 0 : index
    %174 = vector.load %arg16[%c0_245, %c0_246] : memref<256x4xf32, #tpu.memory_space<vmem>>, vector<256x4xf32>
    %c2_247 = arith.constant 2 : index
    %c2_248 = arith.constant 2 : index
    %c0_249 = arith.constant 0 : index
    %c0_250 = arith.constant 0 : index
    %175 = vector.load %arg6[%c2_247, %c2_248, %c0_249, %c0_250] : memref<3x3x4x4xf32, #tpu.memory_space<vmem>>, vector<1x1x4x4xf32>
    %176 = vector.shape_cast %175 : vector<1x1x4x4xf32> to vector<4x4xf32>
    %cst_251 = arith.constant dense<0.000000e+00> : vector<256x4xf32>
    %177 = tpu.matmul %173, %176, %cst_251 {dimension_numbers = #tpu.dot_dimension_numbers<[1], [0], [0], [1], [0, 0, 1, 1], [], []>} : vector<256x4xf32>, vector<4x4xf32>, vector<256x4xf32> -> vector<256x4xf32>
    %178 = arith.addf %174, %177 : vector<256x4xf32>
    %c0_252 = arith.constant 0 : index
    %c0_253 = arith.constant 0 : index
    %179 = vector.load %arg16[%c0_252, %c0_253] : memref<256x4xf32, #tpu.memory_space<vmem>>, vector<256x4xf32>
    tpu.vector_store %arg16[%c0_252, %c0_253], %178 {strides = array<i32>} : memref<256x4xf32, #tpu.memory_space<vmem>>, vector<256x4xf32>,
    %c0_254 = arith.constant 0 : index
    %c0_255 = arith.constant 0 : index
    %180 = vector.load %arg16[%c0_254, %c0_255] : memref<256x4xf32, #tpu.memory_space<vmem>>, vector<256x4xf32>
    %181 = vector.broadcast %104 : vector<1x4xf32> to vector<256x4xf32>
    %182 = arith.mulf %180, %181 : vector<256x4xf32>
    %183 = vector.broadcast %105 : vector<1x4xf32> to vector<256x4xf32>
    %184 = arith.addf %182, %183 : vector<256x4xf32>
    %c0_256 = arith.constant 0 : index
    %c0_257 = arith.constant 0 : index
    %c0_258 = arith.constant 0 : index
    %c0_259 = arith.constant 0 : index
    %185 = vector.load %arg11[%c0_256, %c0_257, %c0_258, %c0_259] : memref<1x16x16x4xf32, #tpu.memory_space<vmem>>, vector<1x16x16x4xf32>
    %186 = vector.shape_cast %185 : vector<1x16x16x4xf32> to vector<16x16x4xf32>
    %187 = vector.shape_cast %186 : vector<16x16x4xf32> to vector<256x4xf32>
    %188 = arith.addf %184, %187 : vector<256x4xf32>
    %cst_260 = arith.constant 0.000000e+00 : f32
    %189 = vector.broadcast %cst_260 : f32 to vector<256x4xf32>
    %190 = arith.maximumf %188, %189 : vector<256x4xf32>
    %191 = vector.shape_cast %190 : vector<256x4xf32> to vector<1x16x16x4xf32>
    %c0_261 = arith.constant 0 : index
    %c0_262 = arith.constant 0 : index
    %c0_263 = arith.constant 0 : index
    %c0_264 = arith.constant 0 : index
    %192 = vector.load %arg12[%c0_261, %c0_262, %c0_263, %c0_264] : memref<1x16x16x4xf32, #tpu.memory_space<vmem>>, vector<1x16x16x4xf32>
    tpu.vector_store %arg12[%c0_261, %c0_262, %c0_263, %c0_264], %191 {strides = array<i32>} : memref<1x16x16x4xf32, #tpu.memory_space<vmem>>, vector<1x16x16x4xf32>,
    return
  }
  func.func @transform_0(%arg0: i32, %arg1: i32) -> (i32, i32, i32, i32) {
    %c0_i32 = arith.constant 0 : i32
    %c0_i32_0 = arith.constant 0 : i32
    %c0_i32_1 = arith.constant 0 : i32
    return %arg0, %arg1, %c0_i32, %c0_i32_0 : i32, i32, i32, i32
  }
  func.func @transform_1(%arg0: i32, %arg1: i32) -> (i32, i32, i32, i32) {
    %c8_i32 = arith.constant 8 : i32
    %0 = arith.muli %arg1, %c8_i32 : i32
    %c1_i32 = arith.constant 1 : i32
    %1 = arith.subi %0, %c1_i32 : i32
    %c0_i32 = arith.constant 0 : i32
    %2 = arith.maxsi %1, %c0_i32 : i32
    %c0_i32_0 = arith.constant 0 : i32
    %c0_i32_1 = arith.constant 0 : i32
    %c0_i32_2 = arith.constant 0 : i32
    return %arg0, %2, %c0_i32_0, %c0_i32_1 : i32, i32, i32, i32
  }
  func.func @transform_2(%arg0: i32, %arg1: i32) -> (i32, i32, i32, i32) {
    %c1_i32 = arith.constant 1 : i32
    %0 = arith.addi %arg1, %c1_i32 : i32
    %c8_i32 = arith.constant 8 : i32
    %1 = arith.muli %0, %c8_i32 : i32
    %c7_i32 = arith.constant 7 : i32
    %2 = arith.minsi %1, %c7_i32 : i32
    %c0_i32 = arith.constant 0 : i32
    %c0_i32_0 = arith.constant 0 : i32
    %c0_i32_1 = arith.constant 0 : i32
    return %arg0, %2, %c0_i32, %c0_i32_0 : i32, i32, i32, i32
  }
  func.func @transform_3(%arg0: i32, %arg1: i32) -> (i32, i32, i32, i32) {
    %c0_i32 = arith.constant 0 : i32
    %c0_i32_0 = arith.constant 0 : i32
    %c0_i32_1 = arith.constant 0 : i32
    %c0_i32_2 = arith.constant 0 : i32
    %c0_i32_3 = arith.constant 0 : i32
    return %c0_i32, %c0_i32_0, %c0_i32_1, %c0_i32_2 : i32, i32, i32, i32
  }
  func.func @transform_4(%arg0: i32, %arg1: i32) -> (i32, i32, i32, i32) {
    %c0_i32 = arith.constant 0 : i32
    %c0_i32_0 = arith.constant 0 : i32
    %c0_i32_1 = arith.constant 0 : i32
    %c0_i32_2 = arith.constant 0 : i32
    %c0_i32_3 = arith.constant 0 : i32
    return %c0_i32, %c0_i32_0, %c0_i32_1, %c0_i32_2 : i32, i32, i32, i32
  }
  func.func @transform_5(%arg0: i32, %arg1: i32) -> (i32, i32) {
    %c0_i32 = arith.constant 0 : i32
    %c0_i32_0 = arith.constant 0 : i32
    %c0_i32_1 = arith.constant 0 : i32
    return %c0_i32, %c0_i32_0 : i32, i32
  }
  func.func @transform_6(%arg0: i32, %arg1: i32) -> (i32, i32) {
    %c0_i32 = arith.constant 0 : i32
    %c0_i32_0 = arith.constant 0 : i32
    %c0_i32_1 = arith.constant 0 : i32
    return %c0_i32, %c0_i32_0 : i32, i32
  }
  func.func @transform_7(%arg0: i32, %arg1: i32) -> (i32, i32) {
    %c0_i32 = arith.constant 0 : i32
    %c0_i32_0 = arith.constant 0 : i32
    %c0_i32_1 = arith.constant 0 : i32
    return %c0_i32, %c0_i32_0 : i32, i32
  }
  func.func @transform_8(%arg0: i32, %arg1: i32) -> (i32, i32) {
    %c0_i32 = arith.constant 0 : i32
    %c0_i32_0 = arith.constant 0 : i32
    %c0_i32_1 = arith.constant 0 : i32
    return %c0_i32, %c0_i32_0 : i32, i32
  }
  func.func @transform_9(%arg0: i32, %arg1: i32) -> (i32, i32, i32, i32) {
    %c0_i32 = arith.constant 0 : i32
    %c0_i32_0 = arith.constant 0 : i32
    %c0_i32_1 = arith.constant 0 : i32
    return %arg0, %arg1, %c0_i32, %c0_i32_0 : i32, i32, i32, i32
  }
  func.func @transform_10(%arg0: i32, %arg1: i32) -> (i32, i32, i32, i32) {
    %c0_i32 = arith.constant 0 : i32
    %c0_i32_0 = arith.constant 0 : i32
    %c0_i32_1 = arith.constant 0 : i32
    return %arg0, %arg1, %c0_i32, %c0_i32_0 : i32, i32, i32, i32
  }
}

</mosaic_0001>

<llo_original>
// kernel: tpu_custom_call.1
$region0: #{tpu_custom_call.1}
  #allocation0 [shape = 'u32[]', space=smem, size = 0x4, offset = 0x4, fixed_abs, tag = 'smem constant byte address 0x4 - core index']
  #allocation1 [shape = 'u32[72,128]{1,0:T(1,128)}', space=vmem, size = 0x9000, scoped, tag = 'internal scratch']
  #allocation2 [shape = 'f32[20,18,4]{2,1,0:T(8,128)}', space=vmem, size = 0x3c000, scoped, tag = 'scratch operand']
  #allocation3 [shape = 'f32[288,4]{1,0:T(8,128)}', space=vmem, size = 0x24000, scoped, tag = 'scratch operand']
  #allocation4 [shape = 'f32[18,18,4]{2,1,0:T(8,128)}', space=vmem, size = 0x36000, scoped, tag = 'scratch operand']
  #allocation5 [shape = 'f32[256,4]{1,0:T(8,128)}', space=vmem, size = 0x20000, scoped, tag = 'scratch operand']
  %s0 = inlined_call_operand.vmem [shape: f32[2,16,16,4], index: 0, kind: input, shape index: {}]
  %s1 = inlined_call_operand.vmem [shape: f32[2,16,16,4], index: 1, kind: input, shape index: {}]
  %s2 = inlined_call_operand.vmem [shape: f32[2,16,16,4], index: 2, kind: input, shape index: {}]
  %s3 = inlined_call_operand.vmem [shape: f32[3,3,4,4], index: 3, kind: input, shape index: {}]
  %s4 = inlined_call_operand.vmem [shape: f32[3,3,4,4], index: 4, kind: input, shape index: {}]
  %s5 = inlined_call_operand.vmem [shape: f32[1,4], index: 5, kind: input, shape index: {}]
  %s6 = inlined_call_operand.vmem [shape: f32[1,4], index: 6, kind: input, shape index: {}]
  %s7 = inlined_call_operand.vmem [shape: f32[1,4], index: 7, kind: input, shape index: {}]
  %s8 = inlined_call_operand.vmem [shape: f32[1,4], index: 8, kind: input, shape index: {}]
  %s9 = inlined_call_operand.vmem [shape: f32[2,16,16,4], index: 9, kind: input, shape index: {}]
  %s10 = inlined_call_operand.vmem [shape: f32[2,16,16,4], index: 10, kind: output, shape index: {}]
  %s11 = sld [smem:[#allocation0]]
  $region85: #{tpu_custom_call.1} parent=0
    _
  %s13 = ssub.s32 1, %s11
  %s14 = scalar_select 0, %s13, %s11
  loop: start=0, step=1, limit=4
  $region2: #{tpu_custom_call.1} parent=0 // loop_pre_header
    _
  $region3: #{tpu_custom_call.1} parent=0 // loop_header
    %s16 = sphi 0, %s20
    %p17 = scmp.ge.s32.totalorder %s16, 4
    %s23 = sphi 0, %s35
    %s24 = sphi 0, %s31
    %s25 = sphi 0, %s23
    %s26 = sphi 0, %s24
    %s27 = sphi 0, %s25
    %s28 = sphi 0, %s26
    %s40 = sphi 0, %s42
    %s43 = sphi 0, %s40
    %s44 = sphi 0, %s43
    %s60 = sphi 0, %s44
    %s76 = sphi 0, %s78
    %s79 = sphi 0, %s76
    %s80 = sphi 0, %s79
    %s96 = sphi 0, %s80
    %s112 = sphi 0, %s114
    %s115 = sphi 0, %s112
    %s116 = sphi 0, %s115
    %s132 = sphi 0, %s116
    %s136 = sphi 0, %s136
    %s138 = sphi 0, %s136
    %s139 = sphi 0, %s138
    %s153 = sphi 0, %s139
    %s157 = sphi 0, %s157
    %s159 = sphi 0, %s157
    %s160 = sphi 0, %s159
    %s174 = sphi 0, %s160
    %s178 = sphi 0, %s178
    %s180 = sphi 0, %s178
    %s181 = sphi 0, %s180
    %s195 = sphi 0, %s181
    %s199 = sphi 0, %s199
    %s201 = sphi 0, %s199
    %s202 = sphi 0, %s201
    %s216 = sphi 0, %s202
    %s220 = sphi 0, %s220
    %s222 = sphi 0, %s220
    %s223 = sphi 0, %s222
    %s237 = sphi 0, %s223
    %s241 = sphi 0, %s241
    %s243 = sphi 0, %s241
    %s244 = sphi 0, %s243
    %s258 = sphi 0, %s244
    %s266 = sphi 0, %s268
    %s269 = sphi 0, %s266
    %s270 = sphi 0, %s269
    %s286 = sphi 0, %s270
    %s294 = sphi 0, %s296
    %s297 = sphi 0, %s294
    %s298 = sphi 0, %s297
    %s314 = sphi 0, %s298
  $region4: #{tpu_custom_call.1} parent=0 // loop_header_branch
    %19 = sbr.rel (%p17) target = $region8
  $region5: #{tpu_custom_call.1} parent=0 // loop_body
    %s21 = ssub.s32 %s16, 1
    %s22 = ssub.s32 %s16, 2
    %s29 = sadd.s32 1, %s24
    %p30 = scmp.ge.s32.totalorder %s29, 1
    %s31 = scalar_select %p30, 0, %s29
    %s32 = sadd.s32 1, %s23
    %s33 = scalar_select %p30, %s32, %s23
    %p34 = scmp.ge.s32.totalorder %s33, 2
    %s35 = scalar_select %p34, 0, %s33
    %s36 = ssub.s32 %s23, %s35
    %s37 = ssub.s32 %s24, %s31
    %s38 = sor.u32 %s36, %s37
    %p39 = scmp.eq.s32.totalorder %s38, 0
    %s41 = sadd.s32 %s40, 1
    %s42 = scalar_select %p39, %s40, %s41
    %p45 = pneg %p39
    %p46 = scmp.eq.s32.totalorder %s16, 1
    %p47 = por %p45, %p46
    %p48 = scmp.ne.s32.totalorder %s40, %s43
    %p49 = scmp.eq.s32.totalorder %s16, 0
    %p50 = por %p48, %p49
    %p51 = scmp.ne.s32.totalorder %s40, %s43
    %p52 = scmp.eq.s32.totalorder %s21, 1
    %p53 = por %p51, %p52
    %p54 = scmp.ne.s32.totalorder %s43, %s44
    %p55 = scmp.eq.s32.totalorder %s21, 0
    %p56 = por %p54, %p55
    %p57 = scmp.ne.s32.totalorder %s43, %s44
    %p58 = scmp.eq.s32.totalorder %s22, 1
    %p59 = por %p57, %p58
    %p61 = scmp.ne.s32.totalorder %s44, %s60
    %p62 = scmp.eq.s32.totalorder %s22, 0
    %p63 = por %p61, %p62
    %s64 = smul.u32 %s24, 8
    %s65 = ssub.s32 %s64, 1
    %p66 = scmp.gt.s32.totalorder %s65, 0
    %s67 = scalar_select %p66, %s65, 0
    %s68 = smul.u32 %s31, 8
    %s69 = ssub.s32 %s68, 1
    %p70 = scmp.gt.s32.totalorder %s69, 0
    %s71 = scalar_select %p70, %s69, 0
    %s72 = ssub.s32 %s23, %s35
    %s73 = ssub.s32 %s67, %s71
    %s74 = sor.u32 %s72, %s73
    %p75 = scmp.eq.s32.totalorder %s74, 0
    %s77 = sadd.s32 %s76, 1
    %s78 = scalar_select %p75, %s76, %s77
    %p81 = pneg %p75
    %p82 = scmp.eq.s32.totalorder %s16, 1
    %p83 = por %p81, %p82
    %p84 = scmp.ne.s32.totalorder %s76, %s79
    %p85 = scmp.eq.s32.totalorder %s16, 0
    %p86 = por %p84, %p85
    %p87 = scmp.ne.s32.totalorder %s76, %s79
    %p88 = scmp.eq.s32.totalorder %s21, 1
    %p89 = por %p87, %p88
    %p90 = scmp.ne.s32.totalorder %s79, %s80
    %p91 = scmp.eq.s32.totalorder %s21, 0
    %p92 = por %p90, %p91
    %p93 = scmp.ne.s32.totalorder %s79, %s80
    %p94 = scmp.eq.s32.totalorder %s22, 1
    %p95 = por %p93, %p94
    %p97 = scmp.ne.s32.totalorder %s80, %s96
    %p98 = scmp.eq.s32.totalorder %s22, 0
    %p99 = por %p97, %p98
    %s100 = sadd.s32 %s24, 1
    %s101 = smul.u32 %s100, 8
    %p102 = scmp.lt.s32.totalorder %s101, 7
    %s103 = scalar_select %p102, %s101, 7
    %s104 = sadd.s32 %s31, 1
    %s105 = smul.u32 %s104, 8
    %p106 = scmp.lt.s32.totalorder %s105, 7
    %s107 = scalar_select %p106, %s105, 7
    %s108 = ssub.s32 %s23, %s35
    %s109 = ssub.s32 %s103, %s107
    %s110 = sor.u32 %s108, %s109
    %p111 = scmp.eq.s32.totalorder %s110, 0
    %s113 = sadd.s32 %s112, 1
    %s114 = scalar_select %p111, %s112, %s113
    %p117 = pneg %p111
    %p118 = scmp.eq.s32.totalorder %s16, 1
    %p119 = por %p117, %p118
    %p120 = scmp.ne.s32.totalorder %s112, %s115
    %p121 = scmp.eq.s32.totalorder %s16, 0
    %p122 = por %p120, %p121
    %p123 = scmp.ne.s32.totalorder %s112, %s115
    %p124 = scmp.eq.s32.totalorder %s21, 1
    %p125 = por %p123, %p124
    %p126 = scmp.ne.s32.totalorder %s115, %s116
    %p127 = scmp.eq.s32.totalorder %s21, 0
    %p128 = por %p126, %p127
    %p129 = scmp.ne.s32.totalorder %s115, %s116
    %p130 = scmp.eq.s32.totalorder %s22, 1
    %p131 = por %p129, %p130
    %p133 = scmp.ne.s32.totalorder %s116, %s132
    %p134 = scmp.eq.s32.totalorder %s22, 0
    %p135 = por %p133, %p134
    %s137 = sadd.s32 %s136, 1
    %p140 = scmp.eq.s32.totalorder %s16, 1
    %p141 = scmp.ne.s32.totalorder %s136, %s138
    %p142 = scmp.eq.s32.totalorder %s16, 0
    %p143 = por %p141, %p142
    %p144 = scmp.ne.s32.totalorder %s136, %s138
    %p145 = scmp.eq.s32.totalorder %s21, 1
    %p146 = por %p144, %p145
    %p147 = scmp.ne.s32.totalorder %s138, %s139
    %p148 = scmp.eq.s32.totalorder %s21, 0
    %p149 = por %p147, %p148
    %p150 = scmp.ne.s32.totalorder %s138, %s139
    %p151 = scmp.eq.s32.totalorder %s22, 1
    %p152 = por %p150, %p151
    %p154 = scmp.ne.s32.totalorder %s139, %s153
    %p155 = scmp.eq.s32.totalorder %s22, 0
    %p156 = por %p154, %p155
    %s158 = sadd.s32 %s157, 1
    %p161 = scmp.eq.s32.totalorder %s16, 1
    %p162 = scmp.ne.s32.totalorder %s157, %s159
    %p163 = scmp.eq.s32.totalorder %s16, 0
    %p164 = por %p162, %p163
    %p165 = scmp.ne.s32.totalorder %s157, %s159
    %p166 = scmp.eq.s32.totalorder %s21, 1
    %p167 = por %p165, %p166
    %p168 = scmp.ne.s32.totalorder %s159, %s160
    %p169 = scmp.eq.s32.totalorder %s21, 0
    %p170 = por %p168, %p169
    %p171 = scmp.ne.s32.totalorder %s159, %s160
    %p172 = scmp.eq.s32.totalorder %s22, 1
    %p173 = por %p171, %p172
    %p175 = scmp.ne.s32.totalorder %s160, %s174
    %p176 = scmp.eq.s32.totalorder %s22, 0
    %p177 = por %p175, %p176
    %s179 = sadd.s32 %s178, 1
    %p182 = scmp.eq.s32.totalorder %s16, 1
    %p183 = scmp.ne.s32.totalorder %s178, %s180
    %p184 = scmp.eq.s32.totalorder %s16, 0
    %p185 = por %p183, %p184
    %p186 = scmp.ne.s32.totalorder %s178, %s180
    %p187 = scmp.eq.s32.totalorder %s21, 1
    %p188 = por %p186, %p187
    %p189 = scmp.ne.s32.totalorder %s180, %s181
    %p190 = scmp.eq.s32.totalorder %s21, 0
    %p191 = por %p189, %p190
    %p192 = scmp.ne.s32.totalorder %s180, %s181
    %p193 = scmp.eq.s32.totalorder %s22, 1
    %p194 = por %p192, %p193
    %p196 = scmp.ne.s32.totalorder %s181, %s195
    %p197 = scmp.eq.s32.totalorder %s22, 0
    %p198 = por %p196, %p197
    %s200 = sadd.s32 %s199, 1
    %p203 = scmp.eq.s32.totalorder %s16, 1
    %p204 = scmp.ne.s32.totalorder %s199, %s201
    %p205 = scmp.eq.s32.totalorder %s16, 0
    %p206 = por %p204, %p205
    %p207 = scmp.ne.s32.totalorder %s199, %s201
    %p208 = scmp.eq.s32.totalorder %s21, 1
    %p209 = por %p207, %p208
    %p210 = scmp.ne.s32.totalorder %s201, %s202
    %p211 = scmp.eq.s32.totalorder %s21, 0
    %p212 = por %p210, %p211
    %p213 = scmp.ne.s32.totalorder %s201, %s202
    %p214 = scmp.eq.s32.totalorder %s22, 1
    %p215 = por %p213, %p214
    %p217 = scmp.ne.s32.totalorder %s202, %s216
    %p218 = scmp.eq.s32.totalorder %s22, 0
    %p219 = por %p217, %p218
    %s221 = sadd.s32 %s220, 1
    %p224 = scmp.eq.s32.totalorder %s16, 1
    %p225 = scmp.ne.s32.totalorder %s220, %s222
    %p226 = scmp.eq.s32.totalorder %s16, 0
    %p227 = por %p225, %p226
    %p228 = scmp.ne.s32.totalorder %s220, %s222
    %p229 = scmp.eq.s32.totalorder %s21, 1
    %p230 = por %p228, %p229
    %p231 = scmp.ne.s32.totalorder %s222, %s223
    %p232 = scmp.eq.s32.totalorder %s21, 0
    %p233 = por %p231, %p232
    %p234 = scmp.ne.s32.totalorder %s222, %s223
    %p235 = scmp.eq.s32.totalorder %s22, 1
    %p236 = por %p234, %p235
    %p238 = scmp.ne.s32.totalorder %s223, %s237
    %p239 = scmp.eq.s32.totalorder %s22, 0
    %p240 = por %p238, %p239
    %s242 = sadd.s32 %s241, 1
    %p245 = scmp.eq.s32.totalorder %s16, 1
    %p246 = scmp.ne.s32.totalorder %s241, %s243
    %p247 = scmp.eq.s32.totalorder %s16, 0
    %p248 = por %p246, %p247
    %p249 = scmp.ne.s32.totalorder %s241, %s243
    %p250 = scmp.eq.s32.totalorder %s21, 1
    %p251 = por %p249, %p250
    %p252 = scmp.ne.s32.totalorder %s243, %s244
    %p253 = scmp.eq.s32.totalorder %s21, 0
    %p254 = por %p252, %p253
    %p255 = scmp.ne.s32.totalorder %s243, %s244
    %p256 = scmp.eq.s32.totalorder %s22, 1
    %p257 = por %p255, %p256
    %p259 = scmp.ne.s32.totalorder %s244, %s258
    %p260 = scmp.eq.s32.totalorder %s22, 0
    %p261 = por %p259, %p260
    %s262 = ssub.s32 %s23, %s35
    %s263 = ssub.s32 %s24, %s31
    %s264 = sor.u32 %s262, %s263
    %p265 = scmp.eq.s32.totalorder %s264, 0
    %s267 = sadd.s32 %s266, 1
    %s268 = scalar_select %p265, %s266, %s267
    %p271 = pneg %p265
    %p272 = scmp.eq.s32.totalorder %s16, 1
    %p273 = por %p271, %p272
    %p274 = scmp.ne.s32.totalorder %s266, %s269
    %p275 = scmp.eq.s32.totalorder %s16, 0
    %p276 = por %p274, %p275
    %p277 = scmp.ne.s32.totalorder %s266, %s269
    %p278 = scmp.eq.s32.totalorder %s21, 1
    %p279 = por %p277, %p278
    %p280 = scmp.ne.s32.totalorder %s269, %s270
    %p281 = scmp.eq.s32.totalorder %s21, 0
    %p282 = por %p280, %p281
    %p283 = scmp.ne.s32.totalorder %s269, %s270
    %p284 = scmp.eq.s32.totalorder %s22, 1
    %p285 = por %p283, %p284
    %p287 = scmp.ne.s32.totalorder %s270, %s286
    %p288 = scmp.eq.s32.totalorder %s22, 0
    %p289 = por %p287, %p288
    %s290 = ssub.s32 %s23, %s35
    %s291 = ssub.s32 %s24, %s31
    %s292 = sor.u32 %s290, %s291
    %p293 = scmp.eq.s32.totalorder %s292, 0
    %s295 = sadd.s32 %s294, 1
    %s296 = scalar_select %p293, %s294, %s295
    %p299 = pneg %p293
    %p300 = scmp.eq.s32.totalorder %s16, 1
    %p301 = por %p299, %p300
    %p302 = scmp.ne.s32.totalorder %s294, %s297
    %p303 = scmp.eq.s32.totalorder %s16, 0
    %p304 = por %p302, %p303
    %p305 = scmp.ne.s32.totalorder %s294, %s297
    %p306 = scmp.eq.s32.totalorder %s21, 1
    %p307 = por %p305, %p306
    %p308 = scmp.ne.s32.totalorder %s297, %s298
    %p309 = scmp.eq.s32.totalorder %s21, 0
    %p310 = por %p308, %p309
    %p311 = scmp.ne.s32.totalorder %s297, %s298
    %p312 = scmp.eq.s32.totalorder %s22, 1
    %p313 = por %p311, %p312
    %p315 = scmp.ne.s32.totalorder %s298, %s314
    %p316 = scmp.eq.s32.totalorder %s22, 0
    %p317 = por %p315, %p316
    %p318 = scmp.le.s32.totalorder 1, %s16
    %p319 = scmp.lt.s32.totalorder %s16, 3
    %p320 = pnand %p318, %p319
    %p321 = pneg %p320
    // Predicated region
    $region9: #{tpu_custom_call.1} parent=5 // pred_check
      _
    $region10: #{tpu_custom_call.1} parent=5 // pred_check_branch
      %323 = sbr.rel (%p320) target = $region12
    $region11: #{tpu_custom_call.1} parent=5 // pred_region
      %s324 = ssub.s32 %s16, 1
      // Predicated region
      $region13: #{tpu_custom_call.1} parent=11 // pred_check
        %p325 = pneg %p149
      $region14: #{tpu_custom_call.1} parent=11 // pred_check_branch
        %327 = sbr.rel (%p325) target = $region16
      $region15: #{tpu_custom_call.1} parent=11 // pred_region
        _
      $region16: #{tpu_custom_call.1} parent=11 // pred_fallthru
        _
      // Predicated region
      $region17: #{tpu_custom_call.1} parent=11 // pred_check
        %p328 = pneg %p170
      $region18: #{tpu_custom_call.1} parent=11 // pred_check_branch
        %330 = sbr.rel (%p328) target = $region20
      $region19: #{tpu_custom_call.1} parent=11 // pred_region
        _
      $region20: #{tpu_custom_call.1} parent=11 // pred_fallthru
        _
      // Predicated region
      $region21: #{tpu_custom_call.1} parent=11 // pred_check
        %p331 = pneg %p191
      $region22: #{tpu_custom_call.1} parent=11 // pred_check_branch
        %333 = sbr.rel (%p331) target = $region24
      $region23: #{tpu_custom_call.1} parent=11 // pred_region
        _
      $region24: #{tpu_custom_call.1} parent=11 // pred_fallthru
        _
      // Predicated region
      $region25: #{tpu_custom_call.1} parent=11 // pred_check
        %p334 = pneg %p212
      $region26: #{tpu_custom_call.1} parent=11 // pred_check_branch
        %336 = sbr.rel (%p334) target = $region28
      $region27: #{tpu_custom_call.1} parent=11 // pred_region
        _
      $region28: #{tpu_custom_call.1} parent=11 // pred_fallthru
        _
      // Predicated region
      $region29: #{tpu_custom_call.1} parent=11 // pred_check
        %p337 = pneg %p233
      $region30: #{tpu_custom_call.1} parent=11 // pred_check_branch
        %339 = sbr.rel (%p337) target = $region32
      $region31: #{tpu_custom_call.1} parent=11 // pred_region
        _
      $region32: #{tpu_custom_call.1} parent=11 // pred_fallthru
        _
      // Predicated region
      $region33: #{tpu_custom_call.1} parent=11 // pred_check
        %p340 = pneg %p254
      $region34: #{tpu_custom_call.1} parent=11 // pred_check_branch
        %342 = sbr.rel (%p340) target = $region36
      $region35: #{tpu_custom_call.1} parent=11 // pred_region
        _
      $region36: #{tpu_custom_call.1} parent=11 // pred_fallthru
        _
    $region12: #{tpu_custom_call.1} parent=5 // pred_fallthru
      _
    %p343 = scmp.lt.s32.totalorder %s16, 2
    // Predicated region
    $region37: #{tpu_custom_call.1} parent=5 // pred_check
      %p344 = pneg %p343
    $region38: #{tpu_custom_call.1} parent=5 // pred_check_branch
      %346 = sbr.rel (%p344) target = $region40
    $region39: #{tpu_custom_call.1} parent=5 // pred_region
      // Predicated region
      $region41: #{tpu_custom_call.1} parent=39 // pred_check
        %p347 = pneg %p50
      $region42: #{tpu_custom_call.1} parent=39 // pred_check_branch
        %349 = sbr.rel (%p347) target = $region44
      $region43: #{tpu_custom_call.1} parent=39 // pred_region
        %s350 = smul.u32 16, %s24
        %p351 = scmp.lt.s32.totalorder %s23, 1
        %s352 = scalar_select %p351, %s23, 1
        %p353 = scmp.lt.s32.totalorder %s350, 15
        %s354 = scalar_select %p353, %s350, 15
        %s355 = smul.addr %s354, 2
        %s356 = smul.addr %s352, 32
        %s357 = sadd.s32 %s355, %s356
        %s358 = smul.addr %s357, 8
        %s359 = scalar_lea.vmem %s0, %s358
        %s360 = smul.u32 16, %s24
      $region44: #{tpu_custom_call.1} parent=39 // pred_fallthru
        _
      // Predicated region
      $region45: #{tpu_custom_call.1} parent=39 // pred_check
        %p361 = pneg %p86
      $region46: #{tpu_custom_call.1} parent=39 // pred_check_branch
        %363 = sbr.rel (%p361) target = $region48
      $region47: #{tpu_custom_call.1} parent=39 // pred_region
        %s364 = smul.u32 %s24, 8
        %s365 = ssub.s32 %s364, 1
        %p366 = scmp.gt.s32.totalorder %s365, 0
        %s367 = scalar_select %p366, %s365, 0
        %s368 = smul.u32 2, %s367
        %p369 = scmp.lt.s32.totalorder %s23, 1
        %s370 = scalar_select %p369, %s23, 1
        %p371 = scmp.lt.s32.totalorder %s368, 15
        %s372 = scalar_select %p371, %s368, 15
        %s373 = smul.addr %s372, 2
        %s374 = smul.addr %s370, 32
        %s375 = sadd.s32 %s373, %s374
        %s376 = smul.addr %s375, 8
        %s377 = scalar_lea.vmem %s1, %s376
        %s378 = smul.u32 %s24, 8
        %s379 = ssub.s32 %s378, 1
        %p380 = scmp.gt.s32.totalorder %s379, 0
        %s381 = scalar_select %p380, %s379, 0
        %s382 = smul.u32 2, %s381
      $region48: #{tpu_custom_call.1} parent=39 // pred_fallthru
        _
      // Predicated region
      $region49: #{tpu_custom_call.1} parent=39 // pred_check
        %p383 = pneg %p122
      $region50: #{tpu_custom_call.1} parent=39 // pred_check_branch
        %385 = sbr.rel (%p383) target = $region52
      $region51: #{tpu_custom_call.1} parent=39 // pred_region
        %s386 = sadd.s32 %s24, 1
        %s387 = smul.u32 %s386, 8
        %p388 = scmp.lt.s32.totalorder %s387, 7
        %s389 = scalar_select %p388, %s387, 7
        %s390 = smul.u32 2, %s389
        %p391 = scmp.lt.s32.totalorder %s23, 1
        %s392 = scalar_select %p391, %s23, 1
        %p393 = scmp.lt.s32.totalorder %s390, 15
        %s394 = scalar_select %p393, %s390, 15
        %s395 = smul.addr %s394, 2
        %s396 = smul.addr %s392, 32
        %s397 = sadd.s32 %s395, %s396
        %s398 = smul.addr %s397, 8
        %s399 = scalar_lea.vmem %s2, %s398
        %s400 = sadd.s32 %s24, 1
        %s401 = smul.u32 %s400, 8
        %p402 = scmp.lt.s32.totalorder %s401, 7
        %s403 = scalar_select %p402, %s401, 7
        %s404 = smul.u32 2, %s403
      $region52: #{tpu_custom_call.1} parent=39 // pred_fallthru
        _
      // Predicated region
      $region53: #{tpu_custom_call.1} parent=39 // pred_check
        %p405 = pneg %p276
      $region54: #{tpu_custom_call.1} parent=39 // pred_check_branch
        %407 = sbr.rel (%p405) target = $region56
      $region55: #{tpu_custom_call.1} parent=39 // pred_region
        %s408 = smul.u32 16, %s24
        %p409 = scmp.lt.s32.totalorder %s23, 1
        %s410 = scalar_select %p409, %s23, 1
        %p411 = scmp.lt.s32.totalorder %s408, 15
        %s412 = scalar_select %p411, %s408, 15
        %s413 = smul.addr %s412, 2
        %s414 = smul.addr %s410, 32
        %s415 = sadd.s32 %s413, %s414
        %s416 = smul.addr %s415, 8
        %s417 = scalar_lea.vmem %s9, %s416
        %s418 = smul.u32 16, %s24
      $region56: #{tpu_custom_call.1} parent=39 // pred_fallthru
        _
    $region40: #{tpu_custom_call.1} parent=5 // pred_fallthru
      _
    %p419 = scmp.le.s32.totalorder 1, %s16
    %p420 = scmp.lt.s32.totalorder %s16, 3
    %p421 = pnand %p419, %p420
    %p422 = pneg %p421
    // Predicated region
    $region57: #{tpu_custom_call.1} parent=5 // pred_check
      _
    $region58: #{tpu_custom_call.1} parent=5 // pred_check_branch
      %424 = sbr.rel (%p421) target = $region60
    $region59: #{tpu_custom_call.1} parent=5 // pred_region
      %s425 = ssub.s32 %s16, 1
      %s426 = smul.u32 16, %s26
      %p427 = scmp.lt.s32.totalorder %s25, 1
      %s428 = scalar_select %p427, %s25, 1
      %p429 = scmp.lt.s32.totalorder %s426, 15
      %s430 = scalar_select %p429, %s426, 15
      %s431 = smul.addr %s430, 2
      %s432 = smul.addr %s428, 32
      %s433 = sadd.s32 %s431, %s432
      %s434 = smul.addr %s433, 8
      %s435 = scalar_lea.vmem %s0, %s434
      %p436 = pneg %p56
      %p437 = pneg %p53
      %s438 = smul.u32 %s26, 8
      %s439 = ssub.s32 %s438, 1
      %p440 = scmp.gt.s32.totalorder %s439, 0
      %s441 = scalar_select %p440, %s439, 0
      %s442 = smul.u32 2, %s441
      %p443 = scmp.lt.s32.totalorder %s25, 1
      %s444 = scalar_select %p443, %s25, 1
      %p445 = scmp.lt.s32.totalorder %s442, 15
      %s446 = scalar_select %p445, %s442, 15
      %s447 = smul.addr %s446, 2
      %s448 = smul.addr %s444, 32
      %s449 = sadd.s32 %s447, %s448
      %s450 = smul.addr %s449, 8
      %s451 = scalar_lea.vmem %s1, %s450
      %p452 = pneg %p92
      %p453 = pneg %p89
      %s454 = sadd.s32 %s26, 1
      %s455 = smul.u32 %s454, 8
      %p456 = scmp.lt.s32.totalorder %s455, 7
      %s457 = scalar_select %p456, %s455, 7
      %s458 = smul.u32 2, %s457
      %p459 = scmp.lt.s32.totalorder %s25, 1
      %s460 = scalar_select %p459, %s25, 1
      %p461 = scmp.lt.s32.totalorder %s458, 15
      %s462 = scalar_select %p461, %s458, 15
      %s463 = smul.addr %s462, 2
      %s464 = smul.addr %s460, 32
      %s465 = sadd.s32 %s463, %s464
      %s466 = smul.addr %s465, 8
      %s467 = scalar_lea.vmem %s2, %s466
      %p468 = pneg %p128
      %p469 = pneg %p125
      %p470 = pneg %p149
      %p471 = pneg %p146
      %p472 = pneg %p170
      %p473 = pneg %p167
      %p474 = pneg %p191
      %p475 = pneg %p188
      %p476 = pneg %p212
      %p477 = pneg %p209
      %p478 = pneg %p233
      %p479 = pneg %p230
      %p480 = pneg %p254
      %p481 = pneg %p251
      %s482 = smul.u32 16, %s26
      %p483 = scmp.lt.s32.totalorder %s25, 1
      %s484 = scalar_select %p483, %s25, 1
      %p485 = scmp.lt.s32.totalorder %s482, 15
      %s486 = scalar_select %p485, %s482, 15
      %s487 = smul.addr %s486, 2
      %s488 = smul.addr %s484, 32
      %s489 = sadd.s32 %s487, %s488
      %s490 = smul.addr %s489, 8
      %s491 = scalar_lea.vmem %s9, %s490
      %p492 = pneg %p282
      %p493 = pneg %p279
      %p494 = pneg %p310
      %p495 = pneg %p307
      %s496 = smul.u32 16, %s26
      %p497 = scmp.lt.s32.totalorder %s25, 1
      %s498 = scalar_select %p497, %s25, 1
      %p499 = scmp.lt.s32.totalorder %s496, 15
      %s500 = scalar_select %p499, %s496, 15
      %s501 = smul.addr %s500, 2
      %s502 = smul.addr %s498, 32
      %s503 = sadd.s32 %s501, %s502
      %s504 = smul.addr %s503, 8
      %s505 = scalar_lea.vmem %s10, %s504
      %s506 = smul.u32 16, %s26
      %p507 = scmp.lt.s32.totalorder %s25, 1
      %s508 = scalar_select %p507, %s25, 1
      %p509 = scmp.lt.s32.totalorder %s506, 15
      %s510 = scalar_select %p509, %s506, 15
      %s511 = smul.addr %s510, 2
      %s512 = smul.addr %s508, 32
      %s513 = sadd.s32 %s511, %s512
      %s514 = smul.addr %s513, 8
      %s515 = scalar_lea.vmem %s0, %s514
      %s516 = smul.u32 16, %s26
      %s517 = smul.u32 %s26, 8
      %s518 = ssub.s32 %s517, 1
      %p519 = scmp.gt.s32.totalorder %s518, 0
      %s520 = scalar_select %p519, %s518, 0
      %s521 = smul.u32 2, %s520
      %p522 = scmp.lt.s32.totalorder %s25, 1
      %s523 = scalar_select %p522, %s25, 1
      %p524 = scmp.lt.s32.totalorder %s521, 15
      %s525 = scalar_select %p524, %s521, 15
      %s526 = smul.addr %s525, 2
      %s527 = smul.addr %s523, 32
      %s528 = sadd.s32 %s526, %s527
      %s529 = smul.addr %s528, 8
      %s530 = scalar_lea.vmem %s1, %s529
      %s531 = smul.u32 %s26, 8
      %s532 = ssub.s32 %s531, 1
      %p533 = scmp.gt.s32.totalorder %s532, 0
      %s534 = scalar_select %p533, %s532, 0
      %s535 = smul.u32 2, %s534
      %s536 = sadd.s32 %s26, 1
      %s537 = smul.u32 %s536, 8
      %p538 = scmp.lt.s32.totalorder %s537, 7
      %s539 = scalar_select %p538, %s537, 7
      %s540 = smul.u32 2, %s539
      %p541 = scmp.lt.s32.totalorder %s25, 1
      %s542 = scalar_select %p541, %s25, 1
      %p543 = scmp.lt.s32.totalorder %s540, 15
      %s544 = scalar_select %p543, %s540, 15
      %s545 = smul.addr %s544, 2
      %s546 = smul.addr %s542, 32
      %s547 = sadd.s32 %s545, %s546
      %s548 = smul.addr %s547, 8
      %s549 = scalar_lea.vmem %s2, %s548
      %s550 = sadd.s32 %s26, 1
      %s551 = smul.u32 %s550, 8
      %p552 = scmp.lt.s32.totalorder %s551, 7
      %s553 = scalar_select %p552, %s551, 7
      %s554 = smul.u32 2, %s553
      %s555 = smul.u32 16, %s26
      %p556 = scmp.lt.s32.totalorder %s25, 1
      %s557 = scalar_select %p556, %s25, 1
      %p558 = scmp.lt.s32.totalorder %s555, 15
      %s559 = scalar_select %p558, %s555, 15
      %s560 = smul.addr %s559, 2
      %s561 = smul.addr %s557, 32
      %s562 = sadd.s32 %s560, %s561
      %s563 = smul.addr %s562, 8
      %s564 = scalar_lea.vmem %s9, %s563
      %s565 = smul.u32 16, %s26
      %s566 = smul.u32 16, %s26
      %p567 = scmp.lt.s32.totalorder %s25, 1
      %s568 = scalar_select %p567, %s25, 1
      %p569 = scmp.lt.s32.totalorder %s566, 15
      %s570 = scalar_select %p569, %s566, 15
      %s571 = smul.addr %s570, 2
      %s572 = smul.addr %s568, 32
      %s573 = sadd.s32 %s571, %s572
      %s574 = smul.addr %s573, 8
      %s575 = scalar_lea.vmem %s10, %s574
      %s576 = smul.u32 16, %s26
      %vm577 = vcmask 31744
      %578 = vst.msk [vmem:[#allocation2] sm:$0xff] %vm577, 0.0
      %579 = vst.msk [vmem:[#allocation2 + $0x8] sm:$0xff] %vm577, 0.0
      %vm580 = vcmask 25600
      %581 = vst.msk [vmem:[#allocation2 + $0x10] sm:$0x3] %vm580, 0.0
      %582 = vst.msk [vmem:[#allocation2 + $0x18] sm:$0xff] %vm577, 0.0
      %583 = vst.msk [vmem:[#allocation2 + $0x20] sm:$0xff] %vm577, 0.0
      %584 = vst.msk [vmem:[#allocation2 + $0x28] sm:$0x3] %vm580, 0.0
      %585 = vst.msk [vmem:[#allocation2 + $0x30] sm:$0xff] %vm577, 0.0
      %586 = vst.msk [vmem:[#allocation2 + $0x38] sm:$0xff] %vm577, 0.0
      %587 = vst.msk [vmem:[#allocation2 + $0x40] sm:$0x3] %vm580, 0.0
      %588 = vst.msk [vmem:[#allocation2 + $0x48] sm:$0xff] %vm577, 0.0
      %589 = vst.msk [vmem:[#allocation2 + $0x50] sm:$0xff] %vm577, 0.0
      %590 = vst.msk [vmem:[#allocation2 + $0x58] sm:$0x3] %vm580, 0.0
      %591 = vst.msk [vmem:[#allocation2 + $0x60] sm:$0xff] %vm577, 0.0
      %592 = vst.msk [vmem:[#allocation2 + $0x68] sm:$0xff] %vm577, 0.0
      %593 = vst.msk [vmem:[#allocation2 + $0x70] sm:$0x3] %vm580, 0.0
      %594 = vst.msk [vmem:[#allocation2 + $0x78] sm:$0xff] %vm577, 0.0
      %595 = vst.msk [vmem:[#allocation2 + $0x80] sm:$0xff] %vm577, 0.0
      %596 = vst.msk [vmem:[#allocation2 + $0x88] sm:$0x3] %vm580, 0.0
      %597 = vst.msk [vmem:[#allocation2 + $0x90] sm:$0xff] %vm577, 0.0
      %598 = vst.msk [vmem:[#allocation2 + $0x98] sm:$0xff] %vm577, 0.0
      %599 = vst.msk [vmem:[#allocation2 + $0xa0] sm:$0x3] %vm580, 0.0
      %600 = vst.msk [vmem:[#allocation2 + $0xa8] sm:$0xff] %vm577, 0.0
      %601 = vst.msk [vmem:[#allocation2 + $0xb0] sm:$0xff] %vm577, 0.0
      %602 = vst.msk [vmem:[#allocation2 + $0xb8] sm:$0x3] %vm580, 0.0
      %603 = vst.msk [vmem:[#allocation2 + $0xc0] sm:$0xff] %vm577, 0.0
      %604 = vst.msk [vmem:[#allocation2 + $0xc8] sm:$0xff] %vm577, 0.0
      %605 = vst.msk [vmem:[#allocation2 + $0xd0] sm:$0x3] %vm580, 0.0
      %606 = vst.msk [vmem:[#allocation2 + $0xd8] sm:$0xff] %vm577, 0.0
      %607 = vst.msk [vmem:[#allocation2 + $0xe0] sm:$0xff] %vm577, 0.0
      %608 = vst.msk [vmem:[#allocation2 + $0xe8] sm:$0x3] %vm580, 0.0
      %609 = vst.msk [vmem:[#allocation2 + $0xf0] sm:$0xff] %vm577, 0.0
      %610 = vst.msk [vmem:[#allocation2 + $0xf8] sm:$0xff] %vm577, 0.0
      %611 = vst.msk [vmem:[#allocation2 + $0x100] sm:$0x3] %vm580, 0.0
      %612 = vst.msk [vmem:[#allocation2 + $0x108] sm:$0xff] %vm577, 0.0
      %613 = vst.msk [vmem:[#allocation2 + $0x110] sm:$0xff] %vm577, 0.0
      %614 = vst.msk [vmem:[#allocation2 + $0x118] sm:$0x3] %vm580, 0.0
      %615 = vst.msk [vmem:[#allocation2 + $0x120] sm:$0xff] %vm577, 0.0
      %616 = vst.msk [vmem:[#allocation2 + $0x128] sm:$0xff] %vm577, 0.0
      %617 = vst.msk [vmem:[#allocation2 + $0x130] sm:$0x3] %vm580, 0.0
      %618 = vst.msk [vmem:[#allocation2 + $0x138] sm:$0xff] %vm577, 0.0
      %619 = vst.msk [vmem:[#allocation2 + $0x140] sm:$0xff] %vm577, 0.0
      %620 = vst.msk [vmem:[#allocation2 + $0x148] sm:$0x3] %vm580, 0.0
      %621 = vst.msk [vmem:[#allocation2 + $0x150] sm:$0xff] %vm577, 0.0
      %622 = vst.msk [vmem:[#allocation2 + $0x158] sm:$0xff] %vm577, 0.0
      %623 = vst.msk [vmem:[#allocation2 + $0x160] sm:$0x3] %vm580, 0.0
      %624 = vst.msk [vmem:[#allocation2 + $0x168] sm:$0xff] %vm577, 0.0
      %625 = vst.msk [vmem:[#allocation2 + $0x170] sm:$0xff] %vm577, 0.0
      %626 = vst.msk [vmem:[#allocation2 + $0x178] sm:$0x3] %vm580, 0.0
      %627 = vst.msk [vmem:[#allocation2 + $0x180] sm:$0xff] %vm577, 0.0
      %628 = vst.msk [vmem:[#allocation2 + $0x188] sm:$0xff] %vm577, 0.0
      %629 = vst.msk [vmem:[#allocation2 + $0x190] sm:$0x3] %vm580, 0.0
      %630 = vst.msk [vmem:[#allocation2 + $0x198] sm:$0xff] %vm577, 0.0
      %631 = vst.msk [vmem:[#allocation2 + $0x1a0] sm:$0xff] %vm577, 0.0
      %632 = vst.msk [vmem:[#allocation2 + $0x1a8] sm:$0x3] %vm580, 0.0
      %633 = vst.msk [vmem:[#allocation2 + $0x1b0] sm:$0xff] %vm577, 0.0
      %634 = vst.msk [vmem:[#allocation2 + $0x1b8] sm:$0xff] %vm577, 0.0
      %635 = vst.msk [vmem:[#allocation2 + $0x1c0] sm:$0x3] %vm580, 0.0
      %636 = vst.msk [vmem:[#allocation2 + $0x1c8] sm:$0xff] %vm577, 0.0
      %637 = vst.msk [vmem:[#allocation2 + $0x1d0] sm:$0xff] %vm577, 0.0
      %638 = vst.msk [vmem:[#allocation2 + $0x1d8] sm:$0x3] %vm580, 0.0
      %v639 = vld [vmem:[%s515] sm:$0xff]
      %v640 = vld [vmem:[%s515 + $0x8] sm:$0xff]
      %v641 = vld [vmem:[%s515 + $0x10] sm:$0xff]
      %v642 = vld [vmem:[%s515 + $0x18] sm:$0xff]
      %v643 = vld [vmem:[%s515 + $0x20] sm:$0xff]
      %v644 = vld [vmem:[%s515 + $0x28] sm:$0xff]
      %v645 = vld [vmem:[%s515 + $0x30] sm:$0xff]
      %v646 = vld [vmem:[%s515 + $0x38] sm:$0xff]
      %v647 = vld [vmem:[%s515 + $0x40] sm:$0xff]
      %v648 = vld [vmem:[%s515 + $0x48] sm:$0xff]
      %v649 = vld [vmem:[%s515 + $0x50] sm:$0xff]
      %v650 = vld [vmem:[%s515 + $0x58] sm:$0xff]
      %v651 = vld [vmem:[%s515 + $0x60] sm:$0xff]
      %v652 = vld [vmem:[%s515 + $0x68] sm:$0xff]
      %v653 = vld [vmem:[%s515 + $0x70] sm:$0xff]
      %v654 = vld [vmem:[%s515 + $0x78] sm:$0xff]
      %v655 = vld [vmem:[%s515 + $0x80] sm:$0xff]
      %v656 = vld [vmem:[%s515 + $0x88] sm:$0xff]
      %v657 = vld [vmem:[%s515 + $0x90] sm:$0xff]
      %v658 = vld [vmem:[%s515 + $0x98] sm:$0xff]
      %v659 = vld [vmem:[%s515 + $0xa0] sm:$0xff]
      %v660 = vld [vmem:[%s515 + $0xa8] sm:$0xff]
      %v661 = vld [vmem:[%s515 + $0xb0] sm:$0xff]
      %v662 = vld [vmem:[%s515 + $0xb8] sm:$0xff]
      %v663 = vld [vmem:[%s515 + $0xc0] sm:$0xff]
      %v664 = vld [vmem:[%s515 + $0xc8] sm:$0xff]
      %v665 = vld [vmem:[%s515 + $0xd0] sm:$0xff]
      %v666 = vld [vmem:[%s515 + $0xd8] sm:$0xff]
      %v667 = vld [vmem:[%s515 + $0xe0] sm:$0xff]
      %v668 = vld [vmem:[%s515 + $0xe8] sm:$0xff]
      %v669 = vld [vmem:[%s515 + $0xf0] sm:$0xff]
      %v670 = vld [vmem:[%s515 + $0xf8] sm:$0xff]
      %s671 = scalar_lea.vmem [#allocation2], 48
      %672 = vst.msk [vmem:[%s671 + $0x1] sm:$0xff] %vm577, %v639
      %673 = vst.msk [vmem:[%s671 + $0x9] sm:$0xff] %vm577, %v640
      %674 = vst.msk [vmem:[%s671 + $0x19] sm:$0xff] %vm577, %v641
      %675 = vst.msk [vmem:[%s671 + $0x21] sm:$0xff] %vm577, %v642
      %676 = vst.msk [vmem:[%s671 + $0x31] sm:$0xff] %vm577, %v643
      %677 = vst.msk [vmem:[%s671 + $0x39] sm:$0xff] %vm577, %v644
      %678 = vst.msk [vmem:[%s671 + $0x49] sm:$0xff] %vm577, %v645
      %679 = vst.msk [vmem:[%s671 + $0x51] sm:$0xff] %vm577, %v646
      %680 = vst.msk [vmem:[%s671 + $0x61] sm:$0xff] %vm577, %v647
      %681 = vst.msk [vmem:[%s671 + $0x69] sm:$0xff] %vm577, %v648
      %682 = vst.msk [vmem:[%s671 + $0x79] sm:$0xff] %vm577, %v649
      %683 = vst.msk [vmem:[%s671 + $0x81] sm:$0xff] %vm577, %v650
      %684 = vst.msk [vmem:[%s671 + $0x91] sm:$0xff] %vm577, %v651
      %685 = vst.msk [vmem:[%s671 + $0x99] sm:$0xff] %vm577, %v652
      %686 = vst.msk [vmem:[%s671 + $0xa9] sm:$0xff] %vm577, %v653
      %687 = vst.msk [vmem:[%s671 + $0xb1] sm:$0xff] %vm577, %v654
      %688 = vst.msk [vmem:[%s671 + $0xc1] sm:$0xff] %vm577, %v655
      %689 = vst.msk [vmem:[%s671 + $0xc9] sm:$0xff] %vm577, %v656
      %690 = vst.msk [vmem:[%s671 + $0xd9] sm:$0xff] %vm577, %v657
      %691 = vst.msk [vmem:[%s671 + $0xe1] sm:$0xff] %vm577, %v658
      %692 = vst.msk [vmem:[%s671 + $0xf1] sm:$0xff] %vm577, %v659
      %693 = vst.msk [vmem:[%s671 + $0xf9] sm:$0xff] %vm577, %v660
      %694 = vst.msk [vmem:[%s671 + $0x109] sm:$0xff] %vm577, %v661
      %695 = vst.msk [vmem:[%s671 + $0x111] sm:$0xff] %vm577, %v662
      %696 = vst.msk [vmem:[%s671 + $0x121] sm:$0xff] %vm577, %v663
      %697 = vst.msk [vmem:[%s671 + $0x129] sm:$0xff] %vm577, %v664
      %698 = vst.msk [vmem:[%s671 + $0x139] sm:$0xff] %vm577, %v665
      %699 = vst.msk [vmem:[%s671 + $0x141] sm:$0xff] %vm577, %v666
      %700 = vst.msk [vmem:[%s671 + $0x151] sm:$0xff] %vm577, %v667
      %701 = vst.msk [vmem:[%s671 + $0x159] sm:$0xff] %vm577, %v668
      %702 = vst.msk [vmem:[%s671 + $0x169] sm:$0xff] %vm577, %v669
      %703 = vst.msk [vmem:[%s671 + $0x171] sm:$0xff] %vm577, %v670
      %p704 = scmp.gt.s32.totalorder %s26, 0
      // Predicated region
      $region61: #{tpu_custom_call.1} parent=59 // pred_check
        %p705 = pneg %p704
      $region62: #{tpu_custom_call.1} parent=59 // pred_check_branch
        %707 = sbr.rel (%p705) target = $region64
      $region63: #{tpu_custom_call.1} parent=59 // pred_region
        %v708 = vld [vmem:[%s530] sm:$0xff]
        %v709 = vld [vmem:[%s530 + $0x8] sm:$0xff]
        %v710 = vld [vmem:[%s530 + $0x10] sm:$0xff]
        %v711 = vld [vmem:[%s530 + $0x18] sm:$0xff]
        %712 = vst.msk [vmem:[#allocation2 + $0x1] sm:$0xff] %vm577, %v708
        %713 = vst.msk [vmem:[#allocation2 + $0x9] sm:$0xff] %vm577, %v709
        %714 = vst.msk [vmem:[#allocation2 + $0x19] sm:$0xff] %vm577, %v710
        %715 = vst.msk [vmem:[#allocation2 + $0x21] sm:$0xff] %vm577, %v711
      $region64: #{tpu_custom_call.1} parent=59 // pred_fallthru
        _
      %p716 = scmp.lt.s32.totalorder %s26, 0
      // Predicated region
      $region65: #{tpu_custom_call.1} parent=59 // pred_check
        %p717 = pneg %p716
      $region66: #{tpu_custom_call.1} parent=59 // pred_check_branch
        %719 = sbr.rel (%p717) target = $region68
      $region67: #{tpu_custom_call.1} parent=59 // pred_region
        %v720 = vld [vmem:[%s549] sm:$0xff]
        %v721 = vld [vmem:[%s549 + $0x8] sm:$0xff]
        %v722 = vld [vmem:[%s549 + $0x10] sm:$0xff]
        %v723 = vld [vmem:[%s549 + $0x18] sm:$0xff]
        %s724 = scalar_lea.vmem [#allocation2], 432
        %725 = vst.msk [vmem:[%s724 + $0x1] sm:$0xff] %vm577, %v720
        %726 = vst.msk [vmem:[%s724 + $0x9] sm:$0xff] %vm577, %v721
        %727 = vst.msk [vmem:[%s724 + $0x19] sm:$0xff] %vm577, %v722
        %728 = vst.msk [vmem:[%s724 + $0x21] sm:$0xff] %vm577, %v723
      $region68: #{tpu_custom_call.1} parent=59 // pred_fallthru
        _
      %729 = vst.msk [vmem:[#allocation3] sm:$0xff] %vm577, 0.0
      %730 = vst.msk [vmem:[#allocation3 + $0x8] sm:$0xff] %vm577, 0.0
      %731 = vst.msk [vmem:[#allocation3 + $0x10] sm:$0xff] %vm577, 0.0
      %732 = vst.msk [vmem:[#allocation3 + $0x18] sm:$0xff] %vm577, 0.0
      %733 = vst.msk [vmem:[#allocation3 + $0x20] sm:$0xff] %vm577, 0.0
      %734 = vst.msk [vmem:[#allocation3 + $0x28] sm:$0xff] %vm577, 0.0
      %735 = vst.msk [vmem:[#allocation3 + $0x30] sm:$0xff] %vm577, 0.0
      %736 = vst.msk [vmem:[#allocation3 + $0x38] sm:$0xff] %vm577, 0.0
      %737 = vst.msk [vmem:[#allocation3 + $0x40] sm:$0xff] %vm577, 0.0
      %738 = vst.msk [vmem:[#allocation3 + $0x48] sm:$0xff] %vm577, 0.0
      %739 = vst.msk [vmem:[#allocation3 + $0x50] sm:$0xff] %vm577, 0.0
      %740 = vst.msk [vmem:[#allocation3 + $0x58] sm:$0xff] %vm577, 0.0
      %741 = vst.msk [vmem:[#allocation3 + $0x60] sm:$0xff] %vm577, 0.0
      %742 = vst.msk [vmem:[#allocation3 + $0x68] sm:$0xff] %vm577, 0.0
      %743 = vst.msk [vmem:[#allocation3 + $0x70] sm:$0xff] %vm577, 0.0
      %744 = vst.msk [vmem:[#allocation3 + $0x78] sm:$0xff] %vm577, 0.0
      %745 = vst.msk [vmem:[#allocation3 + $0x80] sm:$0xff] %vm577, 0.0
      %746 = vst.msk [vmem:[#allocation3 + $0x88] sm:$0xff] %vm577, 0.0
      %747 = vst.msk [vmem:[#allocation3 + $0x90] sm:$0xff] %vm577, 0.0
      %748 = vst.msk [vmem:[#allocation3 + $0x98] sm:$0xff] %vm577, 0.0
      %749 = vst.msk [vmem:[#allocation3 + $0xa0] sm:$0xff] %vm577, 0.0
      %750 = vst.msk [vmem:[#allocation3 + $0xa8] sm:$0xff] %vm577, 0.0
      %751 = vst.msk [vmem:[#allocation3 + $0xb0] sm:$0xff] %vm577, 0.0
      %752 = vst.msk [vmem:[#allocation3 + $0xb8] sm:$0xff] %vm577, 0.0
      %753 = vst.msk [vmem:[#allocation3 + $0xc0] sm:$0xff] %vm577, 0.0
      %754 = vst.msk [vmem:[#allocation3 + $0xc8] sm:$0xff] %vm577, 0.0
      %755 = vst.msk [vmem:[#allocation3 + $0xd0] sm:$0xff] %vm577, 0.0
      %756 = vst.msk [vmem:[#allocation3 + $0xd8] sm:$0xff] %vm577, 0.0
      %757 = vst.msk [vmem:[#allocation3 + $0xe0] sm:$0xff] %vm577, 0.0
      %758 = vst.msk [vmem:[#allocation3 + $0xe8] sm:$0xff] %vm577, 0.0
      %759 = vst.msk [vmem:[#allocation3 + $0xf0] sm:$0xff] %vm577, 0.0
      %760 = vst.msk [vmem:[#allocation3 + $0xf8] sm:$0xff] %vm577, 0.0
      %761 = vst.msk [vmem:[#allocation3 + $0x100] sm:$0xff] %vm577, 0.0
      %762 = vst.msk [vmem:[#allocation3 + $0x108] sm:$0xff] %vm577, 0.0
      %763 = vst.msk [vmem:[#allocation3 + $0x110] sm:$0xff] %vm577, 0.0
      %764 = vst.msk [vmem:[#allocation3 + $0x118] sm:$0xff] %vm577, 0.0
      %v765 = vld [vmem:[#allocation2] sm:$0xff]
      %v766 = vld [vmem:[#allocation2 + $0x8] sm:$0xff]
      %v767 = vld [vmem:[#allocation2 + $0x18] sm:$0xff]
      %v768 = vld [vmem:[#allocation2 + $0x20] sm:$0xff]
      %v769 = vld [vmem:[#allocation2 + $0x30] sm:$0xff]
      %v770 = vld [vmem:[#allocation2 + $0x38] sm:$0xff]
      %v771 = vld [vmem:[#allocation2 + $0x48] sm:$0xff]
      %v772 = vld [vmem:[#allocation2 + $0x50] sm:$0xff]
      %v773 = vld [vmem:[#allocation2 + $0x60] sm:$0xff]
      %v774 = vld [vmem:[#allocation2 + $0x68] sm:$0xff]
      %v775 = vld [vmem:[#allocation2 + $0x78] sm:$0xff]
      %v776 = vld [vmem:[#allocation2 + $0x80] sm:$0xff]
      %v777 = vld [vmem:[#allocation2 + $0x90] sm:$0xff]
      %v778 = vld [vmem:[#allocation2 + $0x98] sm:$0xff]
      %v779 = vld [vmem:[#allocation2 + $0xa8] sm:$0xff]
      %v780 = vld [vmem:[#allocation2 + $0xb0] sm:$0xff]
      %v781 = vld [vmem:[#allocation2 + $0xc0] sm:$0xff]
      %v782 = vld [vmem:[#allocation2 + $0xc8] sm:$0xff]
      %v783 = vld [vmem:[#allocation2 + $0xd8] sm:$0xff]
      %v784 = vld [vmem:[#allocation2 + $0xe0] sm:$0xff]
      %v785 = vld [vmem:[#allocation2 + $0xf0] sm:$0xff]
      %v786 = vld [vmem:[#allocation2 + $0xf8] sm:$0xff]
      %v787 = vld [vmem:[#allocation2 + $0x108] sm:$0xff]
      %v788 = vld [vmem:[#allocation2 + $0x110] sm:$0xff]
      %v789 = vld [vmem:[#allocation2 + $0x120] sm:$0xff]
      %v790 = vld [vmem:[#allocation2 + $0x128] sm:$0xff]
      %v791 = vld [vmem:[#allocation2 + $0x138] sm:$0xff]
      %v792 = vld [vmem:[#allocation2 + $0x140] sm:$0xff]
      %v793 = vld [vmem:[#allocation2 + $0x150] sm:$0xff]
      %v794 = vld [vmem:[#allocation2 + $0x158] sm:$0xff]
      %v795 = vld [vmem:[#allocation2 + $0x168] sm:$0xff]
      %v796 = vld [vmem:[#allocation2 + $0x170] sm:$0xff]
      %v797 = vld [vmem:[#allocation2 + $0x180] sm:$0xff]
      %v798 = vld [vmem:[#allocation2 + $0x188] sm:$0xff]
      %v799 = vld [vmem:[#allocation2 + $0x198] sm:$0xff]
      %v800 = vld [vmem:[#allocation2 + $0x1a0] sm:$0xff]
      %v801 = vld [vmem:[#allocation3] sm:$0xff]
      %v802 = vld [vmem:[#allocation3 + $0x8] sm:$0xff]
      %v803 = vld [vmem:[#allocation3 + $0x10] sm:$0xff]
      %v804 = vld [vmem:[#allocation3 + $0x18] sm:$0xff]
      %v805 = vld [vmem:[#allocation3 + $0x20] sm:$0xff]
      %v806 = vld [vmem:[#allocation3 + $0x28] sm:$0xff]
      %v807 = vld [vmem:[#allocation3 + $0x30] sm:$0xff]
      %v808 = vld [vmem:[#allocation3 + $0x38] sm:$0xff]
      %v809 = vld [vmem:[#allocation3 + $0x40] sm:$0xff]
      %v810 = vld [vmem:[#allocation3 + $0x48] sm:$0xff]
      %v811 = vld [vmem:[#allocation3 + $0x50] sm:$0xff]
      %v812 = vld [vmem:[#allocation3 + $0x58] sm:$0xff]
      %v813 = vld [vmem:[#allocation3 + $0x60] sm:$0xff]
      %v814 = vld [vmem:[#allocation3 + $0x68] sm:$0xff]
      %v815 = vld [vmem:[#allocation3 + $0x70] sm:$0xff]
      %v816 = vld [vmem:[#allocation3 + $0x78] sm:$0xff]
      %v817 = vld [vmem:[#allocation3 + $0x80] sm:$0xff]
      %v818 = vld [vmem:[#allocation3 + $0x88] sm:$0xff]
      %v819 = vld [vmem:[#allocation3 + $0x90] sm:$0xff]
      %v820 = vld [vmem:[#allocation3 + $0x98] sm:$0xff]
      %v821 = vld [vmem:[#allocation3 + $0xa0] sm:$0xff]
      %v822 = vld [vmem:[#allocation3 + $0xa8] sm:$0xff]
      %v823 = vld [vmem:[#allocation3 + $0xb0] sm:$0xff]
      %v824 = vld [vmem:[#allocation3 + $0xb8] sm:$0xff]
      %v825 = vld [vmem:[#allocation3 + $0xc0] sm:$0xff]
      %v826 = vld [vmem:[#allocation3 + $0xc8] sm:$0xff]
      %v827 = vld [vmem:[#allocation3 + $0xd0] sm:$0xff]
      %v828 = vld [vmem:[#allocation3 + $0xd8] sm:$0xff]
      %v829 = vld [vmem:[#allocation3 + $0xe0] sm:$0xff]
      %v830 = vld [vmem:[#allocation3 + $0xe8] sm:$0xff]
      %v831 = vld [vmem:[#allocation3 + $0xf0] sm:$0xff]
      %v832 = vld [vmem:[#allocation3 + $0xf8] sm:$0xff]
      %v833 = vld [vmem:[#allocation3 + $0x100] sm:$0xff]
      %v834 = vld [vmem:[#allocation3 + $0x108] sm:$0xff]
      %v835 = vld [vmem:[#allocation3 + $0x110] sm:$0xff]
      %v836 = vld [vmem:[#allocation3 + $0x118] sm:$0xff]
      %v837 = vld [vmem:[%s3] sm:$0xf]
      %v839 = vsel %vm577, %v765, 0
      %v842 = vsel %vm577, %v766, 0
      %v845 = vsel %vm577, %v767, 0
      %v848 = vsel %vm577, %v768, 0
      %v851 = vsel %vm577, %v769, 0
      %v854 = vsel %vm577, %v770, 0
      %v857 = vsel %vm577, %v771, 0
      %v860 = vsel %vm577, %v772, 0
      %v863 = vsel %vm577, %v773, 0
      %v866 = vsel %vm577, %v774, 0
      %v869 = vsel %vm577, %v775, 0
      %v872 = vsel %vm577, %v776, 0
      %v875 = vsel %vm577, %v777, 0
      %v878 = vsel %vm577, %v778, 0
      %v881 = vsel %vm577, %v779, 0
      %v884 = vsel %vm577, %v780, 0
      %v887 = vsel %vm577, %v781, 0
      %v890 = vsel %vm577, %v782, 0
      %v893 = vsel %vm577, %v783, 0
      %v896 = vsel %vm577, %v784, 0
      %v899 = vsel %vm577, %v785, 0
      %v902 = vsel %vm577, %v786, 0
      %v905 = vsel %vm577, %v787, 0
      %v908 = vsel %vm577, %v788, 0
      %v911 = vsel %vm577, %v789, 0
      %v914 = vsel %vm577, %v790, 0
      %v917 = vsel %vm577, %v791, 0
      %v920 = vsel %vm577, %v792, 0
      %v923 = vsel %vm577, %v793, 0
      %v926 = vsel %vm577, %v794, 0
      %v929 = vsel %vm577, %v795, 0
      %v932 = vsel %vm577, %v796, 0
      %v935 = vsel %vm577, %v797, 0
      %v938 = vsel %vm577, %v798, 0
      %v941 = vsel %vm577, %v799, 0
      %v944 = vsel %vm577, %v800, 0
      %vm946 = vcmask 1043456
      %v948 = vsel %vm946, %v837, 0
      %950 = vmatpush.msra.mxu0 0.0
      %951 = vmatpush.msra.mxu0 0.0
      %952 = vmatpush.msra.mxu0 0.0
      %953 = vmatpush.msra.mxu0 0.0
      %954 = vmatpush.msra.mxu0 0.0
      %955 = vmatpush.msra.mxu0 0.0
      %956 = vmatpush.msra.mxu0 0.0
      %957 = vmatpush.msra.mxu0 0.0
      %958 = vmatpush.msra.mxu0 0.0
      %959 = vmatpush.msra.mxu0 0.0
      %960 = vmatpush.msra.mxu0 0.0
      %961 = vmatpush.msra.mxu0 0.0
      %962 = vmatpush.msra.mxu0 0.0
      %963 = vmatpush.msra.mxu0 0.0
      %964 = vmatpush.msra.mxu0 0.0
      %965 = vmatpush.msra.mxu0 %v948
      %966 = vmatmul.f32.gmra.mxu0 %v839
      %v967 = vpop.f32.mrf.mxu0
      %v968 = vadd.f32 0.0, %v967
      %969 = vmatmul.f32.gmra.mxu0 %v842
      %v970 = vpop.f32.mrf.mxu0
      %v971 = vadd.f32 0.0, %v970
      %972 = vmatmul.f32.gmra.mxu0 %v845
      %v973 = vpop.f32.mrf.mxu0
      %v974 = vadd.f32 0.0, %v973
      %975 = vmatmul.f32.gmra.mxu0 %v848
      %v976 = vpop.f32.mrf.mxu0
      %v977 = vadd.f32 0.0, %v976
      %978 = vmatmul.f32.gmra.mxu0 %v851
      %v979 = vpop.f32.mrf.mxu0
      %v980 = vadd.f32 0.0, %v979
      %981 = vmatmul.f32.gmra.mxu0 %v854
      %v982 = vpop.f32.mrf.mxu0
      %v983 = vadd.f32 0.0, %v982
      %984 = vmatmul.f32.gmra.mxu0 %v857
      %v985 = vpop.f32.mrf.mxu0
      %v986 = vadd.f32 0.0, %v985
      %987 = vmatmul.f32.gmra.mxu0 %v860
      %v988 = vpop.f32.mrf.mxu0
      %v989 = vadd.f32 0.0, %v988
      %990 = vmatmul.f32.gmra.mxu0 %v863
      %v991 = vpop.f32.mrf.mxu0
      %v992 = vadd.f32 0.0, %v991
      %993 = vmatmul.f32.gmra.mxu0 %v866
      %v994 = vpop.f32.mrf.mxu0
      %v995 = vadd.f32 0.0, %v994
      %996 = vmatmul.f32.gmra.mxu0 %v869
      %v997 = vpop.f32.mrf.mxu0
      %v998 = vadd.f32 0.0, %v997
      %999 = vmatmul.f32.gmra.mxu0 %v872
      %v1000 = vpop.f32.mrf.mxu0
      %v1001 = vadd.f32 0.0, %v1000
      %1002 = vmatmul.f32.gmra.mxu0 %v875
      %v1003 = vpop.f32.mrf.mxu0
      %v1004 = vadd.f32 0.0, %v1003
      %1005 = vmatmul.f32.gmra.mxu0 %v878
      %v1006 = vpop.f32.mrf.mxu0
      %v1007 = vadd.f32 0.0, %v1006
      %1008 = vmatmul.f32.gmra.mxu0 %v881
      %v1009 = vpop.f32.mrf.mxu0
      %v1010 = vadd.f32 0.0, %v1009
      %1011 = vmatmul.f32.gmra.mxu0 %v884
      %v1012 = vpop.f32.mrf.mxu0
      %v1013 = vadd.f32 0.0, %v1012
      %1014 = vmatmul.f32.gmra.mxu0 %v887
      %v1015 = vpop.f32.mrf.mxu0
      %v1016 = vadd.f32 0.0, %v1015
      %1017 = vmatmul.f32.gmra.mxu0 %v890
      %v1018 = vpop.f32.mrf.mxu0
      %v1019 = vadd.f32 0.0, %v1018
      %1020 = vmatmul.f32.gmra.mxu0 %v893
      %v1021 = vpop.f32.mrf.mxu0
      %v1022 = vadd.f32 0.0, %v1021
      %1023 = vmatmul.f32.gmra.mxu0 %v896
      %v1024 = vpop.f32.mrf.mxu0
      %v1025 = vadd.f32 0.0, %v1024
      %1026 = vmatmul.f32.gmra.mxu0 %v899
      %v1027 = vpop.f32.mrf.mxu0
      %v1028 = vadd.f32 0.0, %v1027
      %1029 = vmatmul.f32.gmra.mxu0 %v902
      %v1030 = vpop.f32.mrf.mxu0
      %v1031 = vadd.f32 0.0, %v1030
      %1032 = vmatmul.f32.gmra.mxu0 %v905
      %v1033 = vpop.f32.mrf.mxu0
      %v1034 = vadd.f32 0.0, %v1033
      %1035 = vmatmul.f32.gmra.mxu0 %v908
      %v1036 = vpop.f32.mrf.mxu0
      %v1037 = vadd.f32 0.0, %v1036
      %1038 = vmatmul.f32.gmra.mxu0 %v911
      %v1039 = vpop.f32.mrf.mxu0
      %v1040 = vadd.f32 0.0, %v1039
      %1041 = vmatmul.f32.gmra.mxu0 %v914
      %v1042 = vpop.f32.mrf.mxu0
      %v1043 = vadd.f32 0.0, %v1042
      %1044 = vmatmul.f32.gmra.mxu0 %v917
      %v1045 = vpop.f32.mrf.mxu0
      %v1046 = vadd.f32 0.0, %v1045
      %1047 = vmatmul.f32.gmra.mxu0 %v920
      %v1048 = vpop.f32.mrf.mxu0
      %v1049 = vadd.f32 0.0, %v1048
      %1050 = vmatmul.f32.gmra.mxu0 %v923
      %v1051 = vpop.f32.mrf.mxu0
      %v1052 = vadd.f32 0.0, %v1051
      %1053 = vmatmul.f32.gmra.mxu0 %v926
      %v1054 = vpop.f32.mrf.mxu0
      %v1055 = vadd.f32 0.0, %v1054
      %1056 = vmatmul.f32.gmra.mxu0 %v929
      %v1057 = vpop.f32.mrf.mxu0
      %v1058 = vadd.f32 0.0, %v1057
      %1059 = vmatmul.f32.gmra.mxu0 %v932
      %v1060 = vpop.f32.mrf.mxu0
      %v1061 = vadd.f32 0.0, %v1060
      %1062 = vmatmul.f32.gmra.mxu0 %v935
      %v1063 = vpop.f32.mrf.mxu0
      %v1064 = vadd.f32 0.0, %v1063
      %1065 = vmatmul.f32.gmra.mxu0 %v938
      %v1066 = vpop.f32.mrf.mxu0
      %v1067 = vadd.f32 0.0, %v1066
      %1068 = vmatmul.f32.gmra.mxu0 %v941
      %v1069 = vpop.f32.mrf.mxu0
      %v1070 = vadd.f32 0.0, %v1069
      %1071 = vmatmul.f32.gmra.mxu0 %v944
      %v1072 = vpop.f32.mrf.mxu0
      %v1073 = vadd.f32 0.0, %v1072
      %1074 = vdwg.mxu0
      %v1075 = vadd.f32 %v801, %v968
      %v1076 = vadd.f32 %v802, %v971
      %v1077 = vadd.f32 %v803, %v974
      %v1078 = vadd.f32 %v804, %v977
      %v1079 = vadd.f32 %v805, %v980
      %v1080 = vadd.f32 %v806, %v983
      %v1081 = vadd.f32 %v807, %v986
      %v1082 = vadd.f32 %v808, %v989
      %v1083 = vadd.f32 %v809, %v992
      %v1084 = vadd.f32 %v810, %v995
      %v1085 = vadd.f32 %v811, %v998
      %v1086 = vadd.f32 %v812, %v1001
      %v1087 = vadd.f32 %v813, %v1004
      %v1088 = vadd.f32 %v814, %v1007
      %v1089 = vadd.f32 %v815, %v1010
      %v1090 = vadd.f32 %v816, %v1013
      %v1091 = vadd.f32 %v817, %v1016
      %v1092 = vadd.f32 %v818, %v1019
      %v1093 = vadd.f32 %v819, %v1022
      %v1094 = vadd.f32 %v820, %v1025
      %v1095 = vadd.f32 %v821, %v1028
      %v1096 = vadd.f32 %v822, %v1031
      %v1097 = vadd.f32 %v823, %v1034
      %v1098 = vadd.f32 %v824, %v1037
      %v1099 = vadd.f32 %v825, %v1040
      %v1100 = vadd.f32 %v826, %v1043
      %v1101 = vadd.f32 %v827, %v1046
      %v1102 = vadd.f32 %v828, %v1049
      %v1103 = vadd.f32 %v829, %v1052
      %v1104 = vadd.f32 %v830, %v1055
      %v1105 = vadd.f32 %v831, %v1058
      %v1106 = vadd.f32 %v832, %v1061
      %v1107 = vadd.f32 %v833, %v1064
      %v1108 = vadd.f32 %v834, %v1067
      %v1109 = vadd.f32 %v835, %v1070
      %v1110 = vadd.f32 %v836, %v1073
      %1111 = vst.msk [vmem:[#allocation3] sm:$0xff] %vm577, %v1075
      %1112 = vst.msk [vmem:[#allocation3 + $0x8] sm:$0xff] %vm577, %v1076
      %1113 = vst.msk [vmem:[#allocation3 + $0x10] sm:$0xff] %vm577, %v1077
      %1114 = vst.msk [vmem:[#allocation3 + $0x18] sm:$0xff] %vm577, %v1078
      %1115 = vst.msk [vmem:[#allocation3 + $0x20] sm:$0xff] %vm577, %v1079
      %1116 = vst.msk [vmem:[#allocation3 + $0x28] sm:$0xff] %vm577, %v1080
      %1117 = vst.msk [vmem:[#allocation3 + $0x30] sm:$0xff] %vm577, %v1081
      %1118 = vst.msk [vmem:[#allocation3 + $0x38] sm:$0xff] %vm577, %v1082
      %1119 = vst.msk [vmem:[#allocation3 + $0x40] sm:$0xff] %vm577, %v1083
      %1120 = vst.msk [vmem:[#allocation3 + $0x48] sm:$0xff] %vm577, %v1084
      %1121 = vst.msk [vmem:[#allocation3 + $0x50] sm:$0xff] %vm577, %v1085
      %1122 = vst.msk [vmem:[#allocation3 + $0x58] sm:$0xff] %vm577, %v1086
      %1123 = vst.msk [vmem:[#allocation3 + $0x60] sm:$0xff] %vm577, %v1087
      %1124 = vst.msk [vmem:[#allocation3 + $0x68] sm:$0xff] %vm577, %v1088
      %1125 = vst.msk [vmem:[#allocation3 + $0x70] sm:$0xff] %vm577, %v1089
      %1126 = vst.msk [vmem:[#allocation3 + $0x78] sm:$0xff] %vm577, %v1090
      %1127 = vst.msk [vmem:[#allocation3 + $0x80] sm:$0xff] %vm577, %v1091
      %1128 = vst.msk [vmem:[#allocation3 + $0x88] sm:$0xff] %vm577, %v1092
      %1129 = vst.msk [vmem:[#allocation3 + $0x90] sm:$0xff] %vm577, %v1093
      %1130 = vst.msk [vmem:[#allocation3 + $0x98] sm:$0xff] %vm577, %v1094
      %1131 = vst.msk [vmem:[#allocation3 + $0xa0] sm:$0xff] %vm577, %v1095
      %1132 = vst.msk [vmem:[#allocation3 + $0xa8] sm:$0xff] %vm577, %v1096
      %1133 = vst.msk [vmem:[#allocation3 + $0xb0] sm:$0xff] %vm577, %v1097
      %1134 = vst.msk [vmem:[#allocation3 + $0xb8] sm:$0xff] %vm577, %v1098
      %1135 = vst.msk [vmem:[#allocation3 + $0xc0] sm:$0xff] %vm577, %v1099
      %1136 = vst.msk [vmem:[#allocation3 + $0xc8] sm:$0xff] %vm577, %v1100
      %1137 = vst.msk [vmem:[#allocation3 + $0xd0] sm:$0xff] %vm577, %v1101
      %1138 = vst.msk [vmem:[#allocation3 + $0xd8] sm:$0xff] %vm577, %v1102
      %1139 = vst.msk [vmem:[#allocation3 + $0xe0] sm:$0xff] %vm577, %v1103
      %1140 = vst.msk [vmem:[#allocation3 + $0xe8] sm:$0xff] %vm577, %v1104
      %1141 = vst.msk [vmem:[#allocation3 + $0xf0] sm:$0xff] %vm577, %v1105
      %1142 = vst.msk [vmem:[#allocation3 + $0xf8] sm:$0xff] %vm577, %v1106
      %1143 = vst.msk [vmem:[#allocation3 + $0x100] sm:$0xff] %vm577, %v1107
      %1144 = vst.msk [vmem:[#allocation3 + $0x108] sm:$0xff] %vm577, %v1108
      %1145 = vst.msk [vmem:[#allocation3 + $0x110] sm:$0xff] %vm577, %v1109
      %1146 = vst.msk [vmem:[#allocation3 + $0x118] sm:$0xff] %vm577, %v1110
      %v1147 = vld [vmem:[#allocation2 + $0x1] sm:$0xff]
      %v1148 = vld [vmem:[#allocation2 + $0x9] sm:$0xff]
      %v1149 = vld [vmem:[#allocation2 + $0x19] sm:$0xff]
      %v1150 = vld [vmem:[#allocation2 + $0x21] sm:$0xff]
      %v1151 = vld [vmem:[#allocation2 + $0x31] sm:$0xff]
      %v1152 = vld [vmem:[#allocation2 + $0x39] sm:$0xff]
      %v1153 = vld [vmem:[#allocation2 + $0x49] sm:$0xff]
      %v1154 = vld [vmem:[#allocation2 + $0x51] sm:$0xff]
      %v1155 = vld [vmem:[#allocation2 + $0x61] sm:$0xff]
      %v1156 = vld [vmem:[#allocation2 + $0x69] sm:$0xff]
      %v1157 = vld [vmem:[#allocation2 + $0x79] sm:$0xff]
      %v1158 = vld [vmem:[#allocation2 + $0x81] sm:$0xff]
      %v1159 = vld [vmem:[#allocation2 + $0x91] sm:$0xff]
      %v1160 = vld [vmem:[#allocation2 + $0x99] sm:$0xff]
      %v1161 = vld [vmem:[#allocation2 + $0xa9] sm:$0xff]
      %v1162 = vld [vmem:[#allocation2 + $0xb1] sm:$0xff]
      %v1163 = vld [vmem:[#allocation2 + $0xc1] sm:$0xff]
      %v1164 = vld [vmem:[#allocation2 + $0xc9] sm:$0xff]
      %v1165 = vld [vmem:[#allocation2 + $0xd9] sm:$0xff]
      %v1166 = vld [vmem:[#allocation2 + $0xe1] sm:$0xff]
      %v1167 = vld [vmem:[#allocation2 + $0xf1] sm:$0xff]
      %v1168 = vld [vmem:[#allocation2 + $0xf9] sm:$0xff]
      %v1169 = vld [vmem:[#allocation2 + $0x109] sm:$0xff]
      %v1170 = vld [vmem:[#allocation2 + $0x111] sm:$0xff]
      %v1171 = vld [vmem:[#allocation2 + $0x121] sm:$0xff]
      %v1172 = vld [vmem:[#allocation2 + $0x129] sm:$0xff]
      %v1173 = vld [vmem:[#allocation2 + $0x139] sm:$0xff]
      %v1174 = vld [vmem:[#allocation2 + $0x141] sm:$0xff]
      %v1175 = vld [vmem:[#allocation2 + $0x151] sm:$0xff]
      %v1176 = vld [vmem:[#allocation2 + $0x159] sm:$0xff]
      %v1177 = vld [vmem:[#allocation2 + $0x169] sm:$0xff]
      %v1178 = vld [vmem:[#allocation2 + $0x171] sm:$0xff]
      %v1179 = vld [vmem:[#allocation2 + $0x181] sm:$0xff]
      %v1180 = vld [vmem:[#allocation2 + $0x189] sm:$0xff]
      %v1181 = vld [vmem:[#allocation2 + $0x199] sm:$0xff]
      %v1182 = vld [vmem:[#allocation2 + $0x1a1] sm:$0xff]
      %v1183 = vld [vmem:[#allocation3] sm:$0xff]
      %v1184 = vld [vmem:[#allocation3 + $0x8] sm:$0xff]
      %v1185 = vld [vmem:[#allocation3 + $0x10] sm:$0xff]
      %v1186 = vld [vmem:[#allocation3 + $0x18] sm:$0xff]
      %v1187 = vld [vmem:[#allocation3 + $0x20] sm:$0xff]
      %v1188 = vld [vmem:[#allocation3 + $0x28] sm:$0xff]
      %v1189 = vld [vmem:[#allocation3 + $0x30] sm:$0xff]
      %v1190 = vld [vmem:[#allocation3 + $0x38] sm:$0xff]
      %v1191 = vld [vmem:[#allocation3 + $0x40] sm:$0xff]
      %v1192 = vld [vmem:[#allocation3 + $0x48] sm:$0xff]
      %v1193 = vld [vmem:[#allocation3 + $0x50] sm:$0xff]
      %v1194 = vld [vmem:[#allocation3 + $0x58] sm:$0xff]
      %v1195 = vld [vmem:[#allocation3 + $0x60] sm:$0xff]
      %v1196 = vld [vmem:[#allocation3 + $0x68] sm:$0xff]
      %v1197 = vld [vmem:[#allocation3 + $0x70] sm:$0xff]
      %v1198 = vld [vmem:[#allocation3 + $0x78] sm:$0xff]
      %v1199 = vld [vmem:[#allocation3 + $0x80] sm:$0xff]
      %v1200 = vld [vmem:[#allocation3 + $0x88] sm:$0xff]
      %v1201 = vld [vmem:[#allocation3 + $0x90] sm:$0xff]
      %v1202 = vld [vmem:[#allocation3 + $0x98] sm:$0xff]
      %v1203 = vld [vmem:[#allocation3 + $0xa0] sm:$0xff]
      %v1204 = vld [vmem:[#allocation3 + $0xa8] sm:$0xff]
      %v1205 = vld [vmem:[#allocation3 + $0xb0] sm:$0xff]
      %v1206 = vld [vmem:[#allocation3 + $0xb8] sm:$0xff]
      %v1207 = vld [vmem:[#allocation3 + $0xc0] sm:$0xff]
      %v1208 = vld [vmem:[#allocation3 + $0xc8] sm:$0xff]
      %v1209 = vld [vmem:[#allocation3 + $0xd0] sm:$0xff]
      %v1210 = vld [vmem:[#allocation3 + $0xd8] sm:$0xff]
      %v1211 = vld [vmem:[#allocation3 + $0xe0] sm:$0xff]
      %v1212 = vld [vmem:[#allocation3 + $0xe8] sm:$0xff]
      %v1213 = vld [vmem:[#allocation3 + $0xf0] sm:$0xff]
      %v1214 = vld [vmem:[#allocation3 + $0xf8] sm:$0xff]
      %v1215 = vld [vmem:[#allocation3 + $0x100] sm:$0xff]
      %v1216 = vld [vmem:[#allocation3 + $0x108] sm:$0xff]
      %v1217 = vld [vmem:[#allocation3 + $0x110] sm:$0xff]
      %v1218 = vld [vmem:[#allocation3 + $0x118] sm:$0xff]
      %s1219 = scalar_lea.vmem %s3, 4
      %v1220 = vld [vmem:[%s1219] sm:$0xf]
      %v1222 = vsel %vm577, %v1147, 0
      %v1225 = vsel %vm577, %v1148, 0
      %v1228 = vsel %vm577, %v1149, 0
      %v1231 = vsel %vm577, %v1150, 0
      %v1234 = vsel %vm577, %v1151, 0
      %v1237 = vsel %vm577, %v1152, 0
      %v1240 = vsel %vm577, %v1153, 0
      %v1243 = vsel %vm577, %v1154, 0
      %v1246 = vsel %vm577, %v1155, 0
      %v1249 = vsel %vm577, %v1156, 0
      %v1252 = vsel %vm577, %v1157, 0
      %v1255 = vsel %vm577, %v1158, 0
      %v1258 = vsel %vm577, %v1159, 0
      %v1261 = vsel %vm577, %v1160, 0
      %v1264 = vsel %vm577, %v1161, 0
      %v1267 = vsel %vm577, %v1162, 0
      %v1270 = vsel %vm577, %v1163, 0
      %v1273 = vsel %vm577, %v1164, 0
      %v1276 = vsel %vm577, %v1165, 0
      %v1279 = vsel %vm577, %v1166, 0
      %v1282 = vsel %vm577, %v1167, 0
      %v1285 = vsel %vm577, %v1168, 0
      %v1288 = vsel %vm577, %v1169, 0
      %v1291 = vsel %vm577, %v1170, 0
      %v1294 = vsel %vm577, %v1171, 0
      %v1297 = vsel %vm577, %v1172, 0
      %v1300 = vsel %vm577, %v1173, 0
      %v1303 = vsel %vm577, %v1174, 0
      %v1306 = vsel %vm577, %v1175, 0
      %v1309 = vsel %vm577, %v1176, 0
      %v1312 = vsel %vm577, %v1177, 0
      %v1315 = vsel %vm577, %v1178, 0
      %v1318 = vsel %vm577, %v1179, 0
      %v1321 = vsel %vm577, %v1180, 0
      %v1324 = vsel %vm577, %v1181, 0
      %v1327 = vsel %vm577, %v1182, 0
      %v1330 = vsel %vm946, %v1220, 0
      %1332 = vmatpush.msra.mxu0 0.0
      %1333 = vmatpush.msra.mxu0 0.0
      %1334 = vmatpush.msra.mxu0 0.0
      %1335 = vmatpush.msra.mxu0 0.0
      %1336 = vmatpush.msra.mxu0 0.0
      %1337 = vmatpush.msra.mxu0 0.0
      %1338 = vmatpush.msra.mxu0 0.0
      %1339 = vmatpush.msra.mxu0 0.0
      %1340 = vmatpush.msra.mxu0 0.0
      %1341 = vmatpush.msra.mxu0 0.0
      %1342 = vmatpush.msra.mxu0 0.0
      %1343 = vmatpush.msra.mxu0 0.0
      %1344 = vmatpush.msra.mxu0 0.0
      %1345 = vmatpush.msra.mxu0 0.0
      %1346 = vmatpush.msra.mxu0 0.0
      %1347 = vmatpush.msra.mxu0 %v1330
      %1348 = vmatmul.f32.gmra.mxu0 %v1222
      %v1349 = vpop.f32.mrf.mxu0
      %v1350 = vadd.f32 0.0, %v1349
      %1351 = vmatmul.f32.gmra.mxu0 %v1225
      %v1352 = vpop.f32.mrf.mxu0
      %v1353 = vadd.f32 0.0, %v1352
      %1354 = vmatmul.f32.gmra.mxu0 %v1228
      %v1355 = vpop.f32.mrf.mxu0
      %v1356 = vadd.f32 0.0, %v1355
      %1357 = vmatmul.f32.gmra.mxu0 %v1231
      %v1358 = vpop.f32.mrf.mxu0
      %v1359 = vadd.f32 0.0, %v1358
      %1360 = vmatmul.f32.gmra.mxu0 %v1234
      %v1361 = vpop.f32.mrf.mxu0
      %v1362 = vadd.f32 0.0, %v1361
      %1363 = vmatmul.f32.gmra.mxu0 %v1237
      %v1364 = vpop.f32.mrf.mxu0
      %v1365 = vadd.f32 0.0, %v1364
      %1366 = vmatmul.f32.gmra.mxu0 %v1240
      %v1367 = vpop.f32.mrf.mxu0
      %v1368 = vadd.f32 0.0, %v1367
      %1369 = vmatmul.f32.gmra.mxu0 %v1243
      %v1370 = vpop.f32.mrf.mxu0
      %v1371 = vadd.f32 0.0, %v1370
      %1372 = vmatmul.f32.gmra.mxu0 %v1246
      %v1373 = vpop.f32.mrf.mxu0
      %v1374 = vadd.f32 0.0, %v1373
      %1375 = vmatmul.f32.gmra.mxu0 %v1249
      %v1376 = vpop.f32.mrf.mxu0
      %v1377 = vadd.f32 0.0, %v1376
      %1378 = vmatmul.f32.gmra.mxu0 %v1252
      %v1379 = vpop.f32.mrf.mxu0
      %v1380 = vadd.f32 0.0, %v1379
      %1381 = vmatmul.f32.gmra.mxu0 %v1255
      %v1382 = vpop.f32.mrf.mxu0
      %v1383 = vadd.f32 0.0, %v1382
      %1384 = vmatmul.f32.gmra.mxu0 %v1258
      %v1385 = vpop.f32.mrf.mxu0
      %v1386 = vadd.f32 0.0, %v1385
      %1387 = vmatmul.f32.gmra.mxu0 %v1261
      %v1388 = vpop.f32.mrf.mxu0
      %v1389 = vadd.f32 0.0, %v1388
      %1390 = vmatmul.f32.gmra.mxu0 %v1264
      %v1391 = vpop.f32.mrf.mxu0
      %v1392 = vadd.f32 0.0, %v1391
      %1393 = vmatmul.f32.gmra.mxu0 %v1267
      %v1394 = vpop.f32.mrf.mxu0
      %v1395 = vadd.f32 0.0, %v1394
      %1396 = vmatmul.f32.gmra.mxu0 %v1270
      %v1397 = vpop.f32.mrf.mxu0
      %v1398 = vadd.f32 0.0, %v1397
      %1399 = vmatmul.f32.gmra.mxu0 %v1273
      %v1400 = vpop.f32.mrf.mxu0
      %v1401 = vadd.f32 0.0, %v1400
      %1402 = vmatmul.f32.gmra.mxu0 %v1276
      %v1403 = vpop.f32.mrf.mxu0
      %v1404 = vadd.f32 0.0, %v1403
      %1405 = vmatmul.f32.gmra.mxu0 %v1279
      %v1406 = vpop.f32.mrf.mxu0
      %v1407 = vadd.f32 0.0, %v1406
      %1408 = vmatmul.f32.gmra.mxu0 %v1282
      %v1409 = vpop.f32.mrf.mxu0
      %v1410 = vadd.f32 0.0, %v1409
      %1411 = vmatmul.f32.gmra.mxu0 %v1285
      %v1412 = vpop.f32.mrf.mxu0
      %v1413 = vadd.f32 0.0, %v1412
      %1414 = vmatmul.f32.gmra.mxu0 %v1288
      %v1415 = vpop.f32.mrf.mxu0
      %v1416 = vadd.f32 0.0, %v1415
      %1417 = vmatmul.f32.gmra.mxu0 %v1291
      %v1418 = vpop.f32.mrf.mxu0
      %v1419 = vadd.f32 0.0, %v1418
      %1420 = vmatmul.f32.gmra.mxu0 %v1294
      %v1421 = vpop.f32.mrf.mxu0
      %v1422 = vadd.f32 0.0, %v1421
      %1423 = vmatmul.f32.gmra.mxu0 %v1297
      %v1424 = vpop.f32.mrf.mxu0
      %v1425 = vadd.f32 0.0, %v1424
      %1426 = vmatmul.f32.gmra.mxu0 %v1300
      %v1427 = vpop.f32.mrf.mxu0
      %v1428 = vadd.f32 0.0, %v1427
      %1429 = vmatmul.f32.gmra.mxu0 %v1303
      %v1430 = vpop.f32.mrf.mxu0
      %v1431 = vadd.f32 0.0, %v1430
      %1432 = vmatmul.f32.gmra.mxu0 %v1306
      %v1433 = vpop.f32.mrf.mxu0
      %v1434 = vadd.f32 0.0, %v1433
      %1435 = vmatmul.f32.gmra.mxu0 %v1309
      %v1436 = vpop.f32.mrf.mxu0
      %v1437 = vadd.f32 0.0, %v1436
      %1438 = vmatmul.f32.gmra.mxu0 %v1312
      %v1439 = vpop.f32.mrf.mxu0
      %v1440 = vadd.f32 0.0, %v1439
      %1441 = vmatmul.f32.gmra.mxu0 %v1315
      %v1442 = vpop.f32.mrf.mxu0
      %v1443 = vadd.f32 0.0, %v1442
      %1444 = vmatmul.f32.gmra.mxu0 %v1318
      %v1445 = vpop.f32.mrf.mxu0
      %v1446 = vadd.f32 0.0, %v1445
      %1447 = vmatmul.f32.gmra.mxu0 %v1321
      %v1448 = vpop.f32.mrf.mxu0
      %v1449 = vadd.f32 0.0, %v1448
      %1450 = vmatmul.f32.gmra.mxu0 %v1324
      %v1451 = vpop.f32.mrf.mxu0
      %v1452 = vadd.f32 0.0, %v1451
      %1453 = vmatmul.f32.gmra.mxu0 %v1327
      %v1454 = vpop.f32.mrf.mxu0
      %v1455 = vadd.f32 0.0, %v1454
      %1456 = vdwg.mxu0
      %v1457 = vadd.f32 %v1183, %v1350
      %v1458 = vadd.f32 %v1184, %v1353
      %v1459 = vadd.f32 %v1185, %v1356
      %v1460 = vadd.f32 %v1186, %v1359
      %v1461 = vadd.f32 %v1187, %v1362
      %v1462 = vadd.f32 %v1188, %v1365
      %v1463 = vadd.f32 %v1189, %v1368
      %v1464 = vadd.f32 %v1190, %v1371
      %v1465 = vadd.f32 %v1191, %v1374
      %v1466 = vadd.f32 %v1192, %v1377
      %v1467 = vadd.f32 %v1193, %v1380
      %v1468 = vadd.f32 %v1194, %v1383
      %v1469 = vadd.f32 %v1195, %v1386
      %v1470 = vadd.f32 %v1196, %v1389
      %v1471 = vadd.f32 %v1197, %v1392
      %v1472 = vadd.f32 %v1198, %v1395
      %v1473 = vadd.f32 %v1199, %v1398
      %v1474 = vadd.f32 %v1200, %v1401
      %v1475 = vadd.f32 %v1201, %v1404
      %v1476 = vadd.f32 %v1202, %v1407
      %v1477 = vadd.f32 %v1203, %v1410
      %v1478 = vadd.f32 %v1204, %v1413
      %v1479 = vadd.f32 %v1205, %v1416
      %v1480 = vadd.f32 %v1206, %v1419
      %v1481 = vadd.f32 %v1207, %v1422
      %v1482 = vadd.f32 %v1208, %v1425
      %v1483 = vadd.f32 %v1209, %v1428
      %v1484 = vadd.f32 %v1210, %v1431
      %v1485 = vadd.f32 %v1211, %v1434
      %v1486 = vadd.f32 %v1212, %v1437
      %v1487 = vadd.f32 %v1213, %v1440
      %v1488 = vadd.f32 %v1214, %v1443
      %v1489 = vadd.f32 %v1215, %v1446
      %v1490 = vadd.f32 %v1216, %v1449
      %v1491 = vadd.f32 %v1217, %v1452
      %v1492 = vadd.f32 %v1218, %v1455
      %1493 = vst.msk [vmem:[#allocation3] sm:$0xff] %vm577, %v1457
      %1494 = vst.msk [vmem:[#allocation3 + $0x8] sm:$0xff] %vm577, %v1458
      %1495 = vst.msk [vmem:[#allocation3 + $0x10] sm:$0xff] %vm577, %v1459
      %1496 = vst.msk [vmem:[#allocation3 + $0x18] sm:$0xff] %vm577, %v1460
      %1497 = vst.msk [vmem:[#allocation3 + $0x20] sm:$0xff] %vm577, %v1461
      %1498 = vst.msk [vmem:[#allocation3 + $0x28] sm:$0xff] %vm577, %v1462
      %1499 = vst.msk [vmem:[#allocation3 + $0x30] sm:$0xff] %vm577, %v1463
      %1500 = vst.msk [vmem:[#allocation3 + $0x38] sm:$0xff] %vm577, %v1464
      %1501 = vst.msk [vmem:[#allocation3 + $0x40] sm:$0xff] %vm577, %v1465
      %1502 = vst.msk [vmem:[#allocation3 + $0x48] sm:$0xff] %vm577, %v1466
      %1503 = vst.msk [vmem:[#allocation3 + $0x50] sm:$0xff] %vm577, %v1467
      %1504 = vst.msk [vmem:[#allocation3 + $0x58] sm:$0xff] %vm577, %v1468
      %1505 = vst.msk [vmem:[#allocation3 + $0x60] sm:$0xff] %vm577, %v1469
      %1506 = vst.msk [vmem:[#allocation3 + $0x68] sm:$0xff] %vm577, %v1470
      %1507 = vst.msk [vmem:[#allocation3 + $0x70] sm:$0xff] %vm577, %v1471
      %1508 = vst.msk [vmem:[#allocation3 + $0x78] sm:$0xff] %vm577, %v1472
      %1509 = vst.msk [vmem:[#allocation3 + $0x80] sm:$0xff] %vm577, %v1473
      %1510 = vst.msk [vmem:[#allocation3 + $0x88] sm:$0xff] %vm577, %v1474
      %1511 = vst.msk [vmem:[#allocation3 + $0x90] sm:$0xff] %vm577, %v1475
      %1512 = vst.msk [vmem:[#allocation3 + $0x98] sm:$0xff] %vm577, %v1476
      %1513 = vst.msk [vmem:[#allocation3 + $0xa0] sm:$0xff] %vm577, %v1477
      %1514 = vst.msk [vmem:[#allocation3 + $0xa8] sm:$0xff] %vm577, %v1478
      %1515 = vst.msk [vmem:[#allocation3 + $0xb0] sm:$0xff] %vm577, %v1479
      %1516 = vst.msk [vmem:[#allocation3 + $0xb8] sm:$0xff] %vm577, %v1480
      %1517 = vst.msk [vmem:[#allocation3 + $0xc0] sm:$0xff] %vm577, %v1481
      %1518 = vst.msk [vmem:[#allocation3 + $0xc8] sm:$0xff] %vm577, %v1482
      %1519 = vst.msk [vmem:[#allocation3 + $0xd0] sm:$0xff] %vm577, %v1483
      %1520 = vst.msk [vmem:[#allocation3 + $0xd8] sm:$0xff] %vm577, %v1484
      %1521 = vst.msk [vmem:[#allocation3 + $0xe0] sm:$0xff] %vm577, %v1485
      %1522 = vst.msk [vmem:[#allocation3 + $0xe8] sm:$0xff] %vm577, %v1486
      %1523 = vst.msk [vmem:[#allocation3 + $0xf0] sm:$0xff] %vm577, %v1487
      %1524 = vst.msk [vmem:[#allocation3 + $0xf8] sm:$0xff] %vm577, %v1488
      %1525 = vst.msk [vmem:[#allocation3 + $0x100] sm:$0xff] %vm577, %v1489
      %1526 = vst.msk [vmem:[#allocation3 + $0x108] sm:$0xff] %vm577, %v1490
      %1527 = vst.msk [vmem:[#allocation3 + $0x110] sm:$0xff] %vm577, %v1491
      %1528 = vst.msk [vmem:[#allocation3 + $0x118] sm:$0xff] %vm577, %v1492
      %v1529 = vld [vmem:[#allocation2 + $0x2] sm:$0xff]
      %v1530 = vld [vmem:[#allocation2 + $0xa] sm:$0xff]
      %v1531 = vld [vmem:[#allocation2 + $0x1a] sm:$0xff]
      %v1532 = vld [vmem:[#allocation2 + $0x22] sm:$0xff]
      %v1533 = vld [vmem:[#allocation2 + $0x32] sm:$0xff]
      %v1534 = vld [vmem:[#allocation2 + $0x3a] sm:$0xff]
      %v1535 = vld [vmem:[#allocation2 + $0x4a] sm:$0xff]
      %v1536 = vld [vmem:[#allocation2 + $0x52] sm:$0xff]
      %v1537 = vld [vmem:[#allocation2 + $0x62] sm:$0xff]
      %v1538 = vld [vmem:[#allocation2 + $0x6a] sm:$0xff]
      %v1539 = vld [vmem:[#allocation2 + $0x7a] sm:$0xff]
      %v1540 = vld [vmem:[#allocation2 + $0x82] sm:$0xff]
      %v1541 = vld [vmem:[#allocation2 + $0x92] sm:$0xff]
      %v1542 = vld [vmem:[#allocation2 + $0x9a] sm:$0xff]
      %v1543 = vld [vmem:[#allocation2 + $0xaa] sm:$0xff]
      %v1544 = vld [vmem:[#allocation2 + $0xb2] sm:$0xff]
      %v1545 = vld [vmem:[#allocation2 + $0xc2] sm:$0xff]
      %v1546 = vld [vmem:[#allocation2 + $0xca] sm:$0xff]
      %v1547 = vld [vmem:[#allocation2 + $0xda] sm:$0xff]
      %v1548 = vld [vmem:[#allocation2 + $0xe2] sm:$0xff]
      %v1549 = vld [vmem:[#allocation2 + $0xf2] sm:$0xff]
      %v1550 = vld [vmem:[#allocation2 + $0xfa] sm:$0xff]
      %v1551 = vld [vmem:[#allocation2 + $0x10a] sm:$0xff]
      %v1552 = vld [vmem:[#allocation2 + $0x112] sm:$0xff]
      %v1553 = vld [vmem:[#allocation2 + $0x122] sm:$0xff]
      %v1554 = vld [vmem:[#allocation2 + $0x12a] sm:$0xff]
      %v1555 = vld [vmem:[#allocation2 + $0x13a] sm:$0xff]
      %v1556 = vld [vmem:[#allocation2 + $0x142] sm:$0xff]
      %v1557 = vld [vmem:[#allocation2 + $0x152] sm:$0xff]
      %v1558 = vld [vmem:[#allocation2 + $0x15a] sm:$0xff]
      %v1559 = vld [vmem:[#allocation2 + $0x16a] sm:$0xff]
      %v1560 = vld [vmem:[#allocation2 + $0x172] sm:$0xff]
      %v1561 = vld [vmem:[#allocation2 + $0x182] sm:$0xff]
      %v1562 = vld [vmem:[#allocation2 + $0x18a] sm:$0xff]
      %v1563 = vld [vmem:[#allocation2 + $0x19a] sm:$0xff]
      %v1564 = vld [vmem:[#allocation2 + $0x1a2] sm:$0xff]
      %v1565 = vld [vmem:[#allocation3] sm:$0xff]
      %v1566 = vld [vmem:[#allocation3 + $0x8] sm:$0xff]
      %v1567 = vld [vmem:[#allocation3 + $0x10] sm:$0xff]
      %v1568 = vld [vmem:[#allocation3 + $0x18] sm:$0xff]
      %v1569 = vld [vmem:[#allocation3 + $0x20] sm:$0xff]
      %v1570 = vld [vmem:[#allocation3 + $0x28] sm:$0xff]
      %v1571 = vld [vmem:[#allocation3 + $0x30] sm:$0xff]
      %v1572 = vld [vmem:[#allocation3 + $0x38] sm:$0xff]
      %v1573 = vld [vmem:[#allocation3 + $0x40] sm:$0xff]
      %v1574 = vld [vmem:[#allocation3 + $0x48] sm:$0xff]
      %v1575 = vld [vmem:[#allocation3 + $0x50] sm:$0xff]
      %v1576 = vld [vmem:[#allocation3 + $0x58] sm:$0xff]
      %v1577 = vld [vmem:[#allocation3 + $0x60] sm:$0xff]
      %v1578 = vld [vmem:[#allocation3 + $0x68] sm:$0xff]
      %v1579 = vld [vmem:[#allocation3 + $0x70] sm:$0xff]
      %v1580 = vld [vmem:[#allocation3 + $0x78] sm:$0xff]
      %v1581 = vld [vmem:[#allocation3 + $0x80] sm:$0xff]
      %v1582 = vld [vmem:[#allocation3 + $0x88] sm:$0xff]
      %v1583 = vld [vmem:[#allocation3 + $0x90] sm:$0xff]
      %v1584 = vld [vmem:[#allocation3 + $0x98] sm:$0xff]
      %v1585 = vld [vmem:[#allocation3 + $0xa0] sm:$0xff]
      %v1586 = vld [vmem:[#allocation3 + $0xa8] sm:$0xff]
      %v1587 = vld [vmem:[#allocation3 + $0xb0] sm:$0xff]
      %v1588 = vld [vmem:[#allocation3 + $0xb8] sm:$0xff]
      %v1589 = vld [vmem:[#allocation3 + $0xc0] sm:$0xff]
      %v1590 = vld [vmem:[#allocation3 + $0xc8] sm:$0xff]
      %v1591 = vld [vmem:[#allocation3 + $0xd0] sm:$0xff]
      %v1592 = vld [vmem:[#allocation3 + $0xd8] sm:$0xff]
      %v1593 = vld [vmem:[#allocation3 + $0xe0] sm:$0xff]
      %v1594 = vld [vmem:[#allocation3 + $0xe8] sm:$0xff]
      %v1595 = vld [vmem:[#allocation3 + $0xf0] sm:$0xff]
      %v1596 = vld [vmem:[#allocation3 + $0xf8] sm:$0xff]
      %v1597 = vld [vmem:[#allocation3 + $0x100] sm:$0xff]
      %v1598 = vld [vmem:[#allocation3 + $0x108] sm:$0xff]
      %v1599 = vld [vmem:[#allocation3 + $0x110] sm:$0xff]
      %v1600 = vld [vmem:[#allocation3 + $0x118] sm:$0xff]
      %s1601 = scalar_lea.vmem %s3, 8
      %v1602 = vld [vmem:[%s1601] sm:$0xf]
      %v1604 = vsel %vm577, %v1529, 0
      %v1607 = vsel %vm577, %v1530, 0
      %v1610 = vsel %vm577, %v1531, 0
      %v1613 = vsel %vm577, %v1532, 0
      %v1616 = vsel %vm577, %v1533, 0
      %v1619 = vsel %vm577, %v1534, 0
      %v1622 = vsel %vm577, %v1535, 0
      %v1625 = vsel %vm577, %v1536, 0
      %v1628 = vsel %vm577, %v1537, 0
      %v1631 = vsel %vm577, %v1538, 0
      %v1634 = vsel %vm577, %v1539, 0
      %v1637 = vsel %vm577, %v1540, 0
      %v1640 = vsel %vm577, %v1541, 0
      %v1643 = vsel %vm577, %v1542, 0
      %v1646 = vsel %vm577, %v1543, 0
      %v1649 = vsel %vm577, %v1544, 0
      %v1652 = vsel %vm577, %v1545, 0
      %v1655 = vsel %vm577, %v1546, 0
      %v1658 = vsel %vm577, %v1547, 0
      %v1661 = vsel %vm577, %v1548, 0
      %v1664 = vsel %vm577, %v1549, 0
      %v1667 = vsel %vm577, %v1550, 0
      %v1670 = vsel %vm577, %v1551, 0
      %v1673 = vsel %vm577, %v1552, 0
      %v1676 = vsel %vm577, %v1553, 0
      %v1679 = vsel %vm577, %v1554, 0
      %v1682 = vsel %vm577, %v1555, 0
      %v1685 = vsel %vm577, %v1556, 0
      %v1688 = vsel %vm577, %v1557, 0
      %v1691 = vsel %vm577, %v1558, 0
      %v1694 = vsel %vm577, %v1559, 0
      %v1697 = vsel %vm577, %v1560, 0
      %v1700 = vsel %vm577, %v1561, 0
      %v1703 = vsel %vm577, %v1562, 0
      %v1706 = vsel %vm577, %v1563, 0
      %v1709 = vsel %vm577, %v1564, 0
      %v1712 = vsel %vm946, %v1602, 0
      %1714 = vmatpush.msra.mxu0 0.0
      %1715 = vmatpush.msra.mxu0 0.0
      %1716 = vmatpush.msra.mxu0 0.0
      %1717 = vmatpush.msra.mxu0 0.0
      %1718 = vmatpush.msra.mxu0 0.0
      %1719 = vmatpush.msra.mxu0 0.0
      %1720 = vmatpush.msra.mxu0 0.0
      %1721 = vmatpush.msra.mxu0 0.0
      %1722 = vmatpush.msra.mxu0 0.0
      %1723 = vmatpush.msra.mxu0 0.0
      %1724 = vmatpush.msra.mxu0 0.0
      %1725 = vmatpush.msra.mxu0 0.0
      %1726 = vmatpush.msra.mxu0 0.0
      %1727 = vmatpush.msra.mxu0 0.0
      %1728 = vmatpush.msra.mxu0 0.0
      %1729 = vmatpush.msra.mxu0 %v1712
      %1730 = vmatmul.f32.gmra.mxu0 %v1604
      %v1731 = vpop.f32.mrf.mxu0
      %v1732 = vadd.f32 0.0, %v1731
      %1733 = vmatmul.f32.gmra.mxu0 %v1607
      %v1734 = vpop.f32.mrf.mxu0
      %v1735 = vadd.f32 0.0, %v1734
      %1736 = vmatmul.f32.gmra.mxu0 %v1610
      %v1737 = vpop.f32.mrf.mxu0
      %v1738 = vadd.f32 0.0, %v1737
      %1739 = vmatmul.f32.gmra.mxu0 %v1613
      %v1740 = vpop.f32.mrf.mxu0
      %v1741 = vadd.f32 0.0, %v1740
      %1742 = vmatmul.f32.gmra.mxu0 %v1616
      %v1743 = vpop.f32.mrf.mxu0
      %v1744 = vadd.f32 0.0, %v1743
      %1745 = vmatmul.f32.gmra.mxu0 %v1619
      %v1746 = vpop.f32.mrf.mxu0
      %v1747 = vadd.f32 0.0, %v1746
      %1748 = vmatmul.f32.gmra.mxu0 %v1622
      %v1749 = vpop.f32.mrf.mxu0
      %v1750 = vadd.f32 0.0, %v1749
      %1751 = vmatmul.f32.gmra.mxu0 %v1625
      %v1752 = vpop.f32.mrf.mxu0
      %v1753 = vadd.f32 0.0, %v1752
      %1754 = vmatmul.f32.gmra.mxu0 %v1628
      %v1755 = vpop.f32.mrf.mxu0
      %v1756 = vadd.f32 0.0, %v1755
      %1757 = vmatmul.f32.gmra.mxu0 %v1631
      %v1758 = vpop.f32.mrf.mxu0
      %v1759 = vadd.f32 0.0, %v1758
      %1760 = vmatmul.f32.gmra.mxu0 %v1634
      %v1761 = vpop.f32.mrf.mxu0
      %v1762 = vadd.f32 0.0, %v1761
      %1763 = vmatmul.f32.gmra.mxu0 %v1637
      %v1764 = vpop.f32.mrf.mxu0
      %v1765 = vadd.f32 0.0, %v1764
      %1766 = vmatmul.f32.gmra.mxu0 %v1640
      %v1767 = vpop.f32.mrf.mxu0
      %v1768 = vadd.f32 0.0, %v1767
      %1769 = vmatmul.f32.gmra.mxu0 %v1643
      %v1770 = vpop.f32.mrf.mxu0
      %v1771 = vadd.f32 0.0, %v1770
      %1772 = vmatmul.f32.gmra.mxu0 %v1646
      %v1773 = vpop.f32.mrf.mxu0
      %v1774 = vadd.f32 0.0, %v1773
      %1775 = vmatmul.f32.gmra.mxu0 %v1649
      %v1776 = vpop.f32.mrf.mxu0
      %v1777 = vadd.f32 0.0, %v1776
      %1778 = vmatmul.f32.gmra.mxu0 %v1652
      %v1779 = vpop.f32.mrf.mxu0
      %v1780 = vadd.f32 0.0, %v1779
      %1781 = vmatmul.f32.gmra.mxu0 %v1655
      %v1782 = vpop.f32.mrf.mxu0
      %v1783 = vadd.f32 0.0, %v1782
      %1784 = vmatmul.f32.gmra.mxu0 %v1658
      %v1785 = vpop.f32.mrf.mxu0
      %v1786 = vadd.f32 0.0, %v1785
      %1787 = vmatmul.f32.gmra.mxu0 %v1661
      %v1788 = vpop.f32.mrf.mxu0
      %v1789 = vadd.f32 0.0, %v1788
      %1790 = vmatmul.f32.gmra.mxu0 %v1664
      %v1791 = vpop.f32.mrf.mxu0
      %v1792 = vadd.f32 0.0, %v1791
      %1793 = vmatmul.f32.gmra.mxu0 %v1667
      %v1794 = vpop.f32.mrf.mxu0
      %v1795 = vadd.f32 0.0, %v1794
      %1796 = vmatmul.f32.gmra.mxu0 %v1670
      %v1797 = vpop.f32.mrf.mxu0
      %v1798 = vadd.f32 0.0, %v1797
      %1799 = vmatmul.f32.gmra.mxu0 %v1673
      %v1800 = vpop.f32.mrf.mxu0
      %v1801 = vadd.f32 0.0, %v1800
      %1802 = vmatmul.f32.gmra.mxu0 %v1676
      %v1803 = vpop.f32.mrf.mxu0
      %v1804 = vadd.f32 0.0, %v1803
      %1805 = vmatmul.f32.gmra.mxu0 %v1679
      %v1806 = vpop.f32.mrf.mxu0
      %v1807 = vadd.f32 0.0, %v1806
      %1808 = vmatmul.f32.gmra.mxu0 %v1682
      %v1809 = vpop.f32.mrf.mxu0
      %v1810 = vadd.f32 0.0, %v1809
      %1811 = vmatmul.f32.gmra.mxu0 %v1685
      %v1812 = vpop.f32.mrf.mxu0
      %v1813 = vadd.f32 0.0, %v1812
      %1814 = vmatmul.f32.gmra.mxu0 %v1688
      %v1815 = vpop.f32.mrf.mxu0
      %v1816 = vadd.f32 0.0, %v1815
      %1817 = vmatmul.f32.gmra.mxu0 %v1691
      %v1818 = vpop.f32.mrf.mxu0
      %v1819 = vadd.f32 0.0, %v1818
      %1820 = vmatmul.f32.gmra.mxu0 %v1694
      %v1821 = vpop.f32.mrf.mxu0
      %v1822 = vadd.f32 0.0, %v1821
      %1823 = vmatmul.f32.gmra.mxu0 %v1697
      %v1824 = vpop.f32.mrf.mxu0
      %v1825 = vadd.f32 0.0, %v1824
      %1826 = vmatmul.f32.gmra.mxu0 %v1700
      %v1827 = vpop.f32.mrf.mxu0
      %v1828 = vadd.f32 0.0, %v1827
      %1829 = vmatmul.f32.gmra.mxu0 %v1703
      %v1830 = vpop.f32.mrf.mxu0
      %v1831 = vadd.f32 0.0, %v1830
      %1832 = vmatmul.f32.gmra.mxu0 %v1706
      %v1833 = vpop.f32.mrf.mxu0
      %v1834 = vadd.f32 0.0, %v1833
      %1835 = vmatmul.f32.gmra.mxu0 %v1709
      %v1836 = vpop.f32.mrf.mxu0
      %v1837 = vadd.f32 0.0, %v1836
      %1838 = vdwg.mxu0
      %v1839 = vadd.f32 %v1565, %v1732
      %v1840 = vadd.f32 %v1566, %v1735
      %v1841 = vadd.f32 %v1567, %v1738
      %v1842 = vadd.f32 %v1568, %v1741
      %v1843 = vadd.f32 %v1569, %v1744
      %v1844 = vadd.f32 %v1570, %v1747
      %v1845 = vadd.f32 %v1571, %v1750
      %v1846 = vadd.f32 %v1572, %v1753
      %v1847 = vadd.f32 %v1573, %v1756
      %v1848 = vadd.f32 %v1574, %v1759
      %v1849 = vadd.f32 %v1575, %v1762
      %v1850 = vadd.f32 %v1576, %v1765
      %v1851 = vadd.f32 %v1577, %v1768
      %v1852 = vadd.f32 %v1578, %v1771
      %v1853 = vadd.f32 %v1579, %v1774
      %v1854 = vadd.f32 %v1580, %v1777
      %v1855 = vadd.f32 %v1581, %v1780
      %v1856 = vadd.f32 %v1582, %v1783
      %v1857 = vadd.f32 %v1583, %v1786
      %v1858 = vadd.f32 %v1584, %v1789
      %v1859 = vadd.f32 %v1585, %v1792
      %v1860 = vadd.f32 %v1586, %v1795
      %v1861 = vadd.f32 %v1587, %v1798
      %v1862 = vadd.f32 %v1588, %v1801
      %v1863 = vadd.f32 %v1589, %v1804
      %v1864 = vadd.f32 %v1590, %v1807
      %v1865 = vadd.f32 %v1591, %v1810
      %v1866 = vadd.f32 %v1592, %v1813
      %v1867 = vadd.f32 %v1593, %v1816
      %v1868 = vadd.f32 %v1594, %v1819
      %v1869 = vadd.f32 %v1595, %v1822
      %v1870 = vadd.f32 %v1596, %v1825
      %v1871 = vadd.f32 %v1597, %v1828
      %v1872 = vadd.f32 %v1598, %v1831
      %v1873 = vadd.f32 %v1599, %v1834
      %v1874 = vadd.f32 %v1600, %v1837
      %1875 = vst.msk [vmem:[#allocation3] sm:$0xff] %vm577, %v1839
      %1876 = vst.msk [vmem:[#allocation3 + $0x8] sm:$0xff] %vm577, %v1840
      %1877 = vst.msk [vmem:[#allocation3 + $0x10] sm:$0xff] %vm577, %v1841
      %1878 = vst.msk [vmem:[#allocation3 + $0x18] sm:$0xff] %vm577, %v1842
      %1879 = vst.msk [vmem:[#allocation3 + $0x20] sm:$0xff] %vm577, %v1843
      %1880 = vst.msk [vmem:[#allocation3 + $0x28] sm:$0xff] %vm577, %v1844
      %1881 = vst.msk [vmem:[#allocation3 + $0x30] sm:$0xff] %vm577, %v1845
      %1882 = vst.msk [vmem:[#allocation3 + $0x38] sm:$0xff] %vm577, %v1846
      %1883 = vst.msk [vmem:[#allocation3 + $0x40] sm:$0xff] %vm577, %v1847
      %1884 = vst.msk [vmem:[#allocation3 + $0x48] sm:$0xff] %vm577, %v1848
      %1885 = vst.msk [vmem:[#allocation3 + $0x50] sm:$0xff] %vm577, %v1849
      %1886 = vst.msk [vmem:[#allocation3 + $0x58] sm:$0xff] %vm577, %v1850
      %1887 = vst.msk [vmem:[#allocation3 + $0x60] sm:$0xff] %vm577, %v1851
      %1888 = vst.msk [vmem:[#allocation3 + $0x68] sm:$0xff] %vm577, %v1852
      %1889 = vst.msk [vmem:[#allocation3 + $0x70] sm:$0xff] %vm577, %v1853
      %1890 = vst.msk [vmem:[#allocation3 + $0x78] sm:$0xff] %vm577, %v1854
      %1891 = vst.msk [vmem:[#allocation3 + $0x80] sm:$0xff] %vm577, %v1855
      %1892 = vst.msk [vmem:[#allocation3 + $0x88] sm:$0xff] %vm577, %v1856
      %1893 = vst.msk [vmem:[#allocation3 + $0x90] sm:$0xff] %vm577, %v1857
      %1894 = vst.msk [vmem:[#allocation3 + $0x98] sm:$0xff] %vm577, %v1858
      %1895 = vst.msk [vmem:[#allocation3 + $0xa0] sm:$0xff] %vm577, %v1859
      %1896 = vst.msk [vmem:[#allocation3 + $0xa8] sm:$0xff] %vm577, %v1860
      %1897 = vst.msk [vmem:[#allocation3 + $0xb0] sm:$0xff] %vm577, %v1861
      %1898 = vst.msk [vmem:[#allocation3 + $0xb8] sm:$0xff] %vm577, %v1862
      %1899 = vst.msk [vmem:[#allocation3 + $0xc0] sm:$0xff] %vm577, %v1863
      %1900 = vst.msk [vmem:[#allocation3 + $0xc8] sm:$0xff] %vm577, %v1864
      %1901 = vst.msk [vmem:[#allocation3 + $0xd0] sm:$0xff] %vm577, %v1865
      %1902 = vst.msk [vmem:[#allocation3 + $0xd8] sm:$0xff] %vm577, %v1866
      %1903 = vst.msk [vmem:[#allocation3 + $0xe0] sm:$0xff] %vm577, %v1867
      %1904 = vst.msk [vmem:[#allocation3 + $0xe8] sm:$0xff] %vm577, %v1868
      %1905 = vst.msk [vmem:[#allocation3 + $0xf0] sm:$0xff] %vm577, %v1869
      %1906 = vst.msk [vmem:[#allocation3 + $0xf8] sm:$0xff] %vm577, %v1870
      %1907 = vst.msk [vmem:[#allocation3 + $0x100] sm:$0xff] %vm577, %v1871
      %1908 = vst.msk [vmem:[#allocation3 + $0x108] sm:$0xff] %vm577, %v1872
      %1909 = vst.msk [vmem:[#allocation3 + $0x110] sm:$0xff] %vm577, %v1873
      %1910 = vst.msk [vmem:[#allocation3 + $0x118] sm:$0xff] %vm577, %v1874
      %s1911 = scalar_lea.vmem [#allocation2], 24
      %v1912 = vld [vmem:[%s1911] sm:$0xff]
      %v1913 = vld [vmem:[%s1911 + $0x8] sm:$0xff]
      %v1914 = vld [vmem:[%s1911 + $0x18] sm:$0xff]
      %v1915 = vld [vmem:[%s1911 + $0x20] sm:$0xff]
      %v1916 = vld [vmem:[%s1911 + $0x30] sm:$0xff]
      %v1917 = vld [vmem:[%s1911 + $0x38] sm:$0xff]
      %v1918 = vld [vmem:[%s1911 + $0x48] sm:$0xff]
      %v1919 = vld [vmem:[%s1911 + $0x50] sm:$0xff]
      %v1920 = vld [vmem:[%s1911 + $0x60] sm:$0xff]
      %v1921 = vld [vmem:[%s1911 + $0x68] sm:$0xff]
      %v1922 = vld [vmem:[%s1911 + $0x78] sm:$0xff]
      %v1923 = vld [vmem:[%s1911 + $0x80] sm:$0xff]
      %v1924 = vld [vmem:[%s1911 + $0x90] sm:$0xff]
      %v1925 = vld [vmem:[%s1911 + $0x98] sm:$0xff]
      %v1926 = vld [vmem:[%s1911 + $0xa8] sm:$0xff]
      %v1927 = vld [vmem:[%s1911 + $0xb0] sm:$0xff]
      %v1928 = vld [vmem:[%s1911 + $0xc0] sm:$0xff]
      %v1929 = vld [vmem:[%s1911 + $0xc8] sm:$0xff]
      %v1930 = vld [vmem:[%s1911 + $0xd8] sm:$0xff]
      %v1931 = vld [vmem:[%s1911 + $0xe0] sm:$0xff]
      %v1932 = vld [vmem:[%s1911 + $0xf0] sm:$0xff]
      %v1933 = vld [vmem:[%s1911 + $0xf8] sm:$0xff]
      %v1934 = vld [vmem:[%s1911 + $0x108] sm:$0xff]
      %v1935 = vld [vmem:[%s1911 + $0x110] sm:$0xff]
      %v1936 = vld [vmem:[%s1911 + $0x120] sm:$0xff]
      %v1937 = vld [vmem:[%s1911 + $0x128] sm:$0xff]
      %v1938 = vld [vmem:[%s1911 + $0x138] sm:$0xff]
      %v1939 = vld [vmem:[%s1911 + $0x140] sm:$0xff]
      %v1940 = vld [vmem:[%s1911 + $0x150] sm:$0xff]
      %v1941 = vld [vmem:[%s1911 + $0x158] sm:$0xff]
      %v1942 = vld [vmem:[%s1911 + $0x168] sm:$0xff]
      %v1943 = vld [vmem:[%s1911 + $0x170] sm:$0xff]
      %v1944 = vld [vmem:[%s1911 + $0x180] sm:$0xff]
      %v1945 = vld [vmem:[%s1911 + $0x188] sm:$0xff]
      %v1946 = vld [vmem:[%s1911 + $0x198] sm:$0xff]
      %v1947 = vld [vmem:[%s1911 + $0x1a0] sm:$0xff]
      %v1948 = vld [vmem:[#allocation3] sm:$0xff]
      %v1949 = vld [vmem:[#allocation3 + $0x8] sm:$0xff]
      %v1950 = vld [vmem:[#allocation3 + $0x10] sm:$0xff]
      %v1951 = vld [vmem:[#allocation3 + $0x18] sm:$0xff]
      %v1952 = vld [vmem:[#allocation3 + $0x20] sm:$0xff]
      %v1953 = vld [vmem:[#allocation3 + $0x28] sm:$0xff]
      %v1954 = vld [vmem:[#allocation3 + $0x30] sm:$0xff]
      %v1955 = vld [vmem:[#allocation3 + $0x38] sm:$0xff]
      %v1956 = vld [vmem:[#allocation3 + $0x40] sm:$0xff]
      %v1957 = vld [vmem:[#allocation3 + $0x48] sm:$0xff]
      %v1958 = vld [vmem:[#allocation3 + $0x50] sm:$0xff]
      %v1959 = vld [vmem:[#allocation3 + $0x58] sm:$0xff]
      %v1960 = vld [vmem:[#allocation3 + $0x60] sm:$0xff]
      %v1961 = vld [vmem:[#allocation3 + $0x68] sm:$0xff]
      %v1962 = vld [vmem:[#allocation3 + $0x70] sm:$0xff]
      %v1963 = vld [vmem:[#allocation3 + $0x78] sm:$0xff]
      %v1964 = vld [vmem:[#allocation3 + $0x80] sm:$0xff]
      %v1965 = vld [vmem:[#allocation3 + $0x88] sm:$0xff]
      %v1966 = vld [vmem:[#allocation3 + $0x90] sm:$0xff]
      %v1967 = vld [vmem:[#allocation3 + $0x98] sm:$0xff]
      %v1968 = vld [vmem:[#allocation3 + $0xa0] sm:$0xff]
      %v1969 = vld [vmem:[#allocation3 + $0xa8] sm:$0xff]
      %v1970 = vld [vmem:[#allocation3 + $0xb0] sm:$0xff]
      %v1971 = vld [vmem:[#allocation3 + $0xb8] sm:$0xff]
      %v1972 = vld [vmem:[#allocation3 + $0xc0] sm:$0xff]
      %v1973 = vld [vmem:[#allocation3 + $0xc8] sm:$0xff]
      %v1974 = vld [vmem:[#allocation3 + $0xd0] sm:$0xff]
      %v1975 = vld [vmem:[#allocation3 + $0xd8] sm:$0xff]
      %v1976 = vld [vmem:[#allocation3 + $0xe0] sm:$0xff]
      %v1977 = vld [vmem:[#allocation3 + $0xe8] sm:$0xff]
      %v1978 = vld [vmem:[#allocation3 + $0xf0] sm:$0xff]
      %v1979 = vld [vmem:[#allocation3 + $0xf8] sm:$0xff]
      %v1980 = vld [vmem:[#allocation3 + $0x100] sm:$0xff]
      %v1981 = vld [vmem:[#allocation3 + $0x108] sm:$0xff]
      %v1982 = vld [vmem:[#allocation3 + $0x110] sm:$0xff]
      %v1983 = vld [vmem:[#allocation3 + $0x118] sm:$0xff]
      %s1984 = scalar_lea.vmem %s3, 12
      %v1985 = vld [vmem:[%s1984] sm:$0xf]
      %v1987 = vsel %vm577, %v1912, 0
      %v1990 = vsel %vm577, %v1913, 0
      %v1993 = vsel %vm577, %v1914, 0
      %v1996 = vsel %vm577, %v1915, 0
      %v1999 = vsel %vm577, %v1916, 0
      %v2002 = vsel %vm577, %v1917, 0
      %v2005 = vsel %vm577, %v1918, 0
      %v2008 = vsel %vm577, %v1919, 0
      %v2011 = vsel %vm577, %v1920, 0
      %v2014 = vsel %vm577, %v1921, 0
      %v2017 = vsel %vm577, %v1922, 0
      %v2020 = vsel %vm577, %v1923, 0
      %v2023 = vsel %vm577, %v1924, 0
      %v2026 = vsel %vm577, %v1925, 0
      %v2029 = vsel %vm577, %v1926, 0
      %v2032 = vsel %vm577, %v1927, 0
      %v2035 = vsel %vm577, %v1928, 0
      %v2038 = vsel %vm577, %v1929, 0
      %v2041 = vsel %vm577, %v1930, 0
      %v2044 = vsel %vm577, %v1931, 0
      %v2047 = vsel %vm577, %v1932, 0
      %v2050 = vsel %vm577, %v1933, 0
      %v2053 = vsel %vm577, %v1934, 0
      %v2056 = vsel %vm577, %v1935, 0
      %v2059 = vsel %vm577, %v1936, 0
      %v2062 = vsel %vm577, %v1937, 0
      %v2065 = vsel %vm577, %v1938, 0
      %v2068 = vsel %vm577, %v1939, 0
      %v2071 = vsel %vm577, %v1940, 0
      %v2074 = vsel %vm577, %v1941, 0
      %v2077 = vsel %vm577, %v1942, 0
      %v2080 = vsel %vm577, %v1943, 0
      %v2083 = vsel %vm577, %v1944, 0
      %v2086 = vsel %vm577, %v1945, 0
      %v2089 = vsel %vm577, %v1946, 0
      %v2092 = vsel %vm577, %v1947, 0
      %v2095 = vsel %vm946, %v1985, 0
      %2097 = vmatpush.msra.mxu0 0.0
      %2098 = vmatpush.msra.mxu0 0.0
      %2099 = vmatpush.msra.mxu0 0.0
      %2100 = vmatpush.msra.mxu0 0.0
      %2101 = vmatpush.msra.mxu0 0.0
      %2102 = vmatpush.msra.mxu0 0.0
      %2103 = vmatpush.msra.mxu0 0.0
      %2104 = vmatpush.msra.mxu0 0.0
      %2105 = vmatpush.msra.mxu0 0.0
      %2106 = vmatpush.msra.mxu0 0.0
      %2107 = vmatpush.msra.mxu0 0.0
      %2108 = vmatpush.msra.mxu0 0.0
      %2109 = vmatpush.msra.mxu0 0.0
      %2110 = vmatpush.msra.mxu0 0.0
      %2111 = vmatpush.msra.mxu0 0.0
      %2112 = vmatpush.msra.mxu0 %v2095
      %2113 = vmatmul.f32.gmra.mxu0 %v1987
      %v2114 = vpop.f32.mrf.mxu0
      %v2115 = vadd.f32 0.0, %v2114
      %2116 = vmatmul.f32.gmra.mxu0 %v1990
      %v2117 = vpop.f32.mrf.mxu0
      %v2118 = vadd.f32 0.0, %v2117
      %2119 = vmatmul.f32.gmra.mxu0 %v1993
      %v2120 = vpop.f32.mrf.mxu0
      %v2121 = vadd.f32 0.0, %v2120
      %2122 = vmatmul.f32.gmra.mxu0 %v1996
      %v2123 = vpop.f32.mrf.mxu0
      %v2124 = vadd.f32 0.0, %v2123
      %2125 = vmatmul.f32.gmra.mxu0 %v1999
      %v2126 = vpop.f32.mrf.mxu0
      %v2127 = vadd.f32 0.0, %v2126
      %2128 = vmatmul.f32.gmra.mxu0 %v2002
      %v2129 = vpop.f32.mrf.mxu0
      %v2130 = vadd.f32 0.0, %v2129
      %2131 = vmatmul.f32.gmra.mxu0 %v2005
      %v2132 = vpop.f32.mrf.mxu0
      %v2133 = vadd.f32 0.0, %v2132
      %2134 = vmatmul.f32.gmra.mxu0 %v2008
      %v2135 = vpop.f32.mrf.mxu0
      %v2136 = vadd.f32 0.0, %v2135
      %2137 = vmatmul.f32.gmra.mxu0 %v2011
      %v2138 = vpop.f32.mrf.mxu0
      %v2139 = vadd.f32 0.0, %v2138
      %2140 = vmatmul.f32.gmra.mxu0 %v2014
      %v2141 = vpop.f32.mrf.mxu0
      %v2142 = vadd.f32 0.0, %v2141
      %2143 = vmatmul.f32.gmra.mxu0 %v2017
      %v2144 = vpop.f32.mrf.mxu0
      %v2145 = vadd.f32 0.0, %v2144
      %2146 = vmatmul.f32.gmra.mxu0 %v2020
      %v2147 = vpop.f32.mrf.mxu0
      %v2148 = vadd.f32 0.0, %v2147
      %2149 = vmatmul.f32.gmra.mxu0 %v2023
      %v2150 = vpop.f32.mrf.mxu0
      %v2151 = vadd.f32 0.0, %v2150
      %2152 = vmatmul.f32.gmra.mxu0 %v2026
      %v2153 = vpop.f32.mrf.mxu0
      %v2154 = vadd.f32 0.0, %v2153
      %2155 = vmatmul.f32.gmra.mxu0 %v2029
      %v2156 = vpop.f32.mrf.mxu0
      %v2157 = vadd.f32 0.0, %v2156
      %2158 = vmatmul.f32.gmra.mxu0 %v2032
      %v2159 = vpop.f32.mrf.mxu0
      %v2160 = vadd.f32 0.0, %v2159
      %2161 = vmatmul.f32.gmra.mxu0 %v2035
      %v2162 = vpop.f32.mrf.mxu0
      %v2163 = vadd.f32 0.0, %v2162
      %2164 = vmatmul.f32.gmra.mxu0 %v2038
      %v2165 = vpop.f32.mrf.mxu0
      %v2166 = vadd.f32 0.0, %v2165
      %2167 = vmatmul.f32.gmra.mxu0 %v2041
      %v2168 = vpop.f32.mrf.mxu0
      %v2169 = vadd.f32 0.0, %v2168
      %2170 = vmatmul.f32.gmra.mxu0 %v2044
      %v2171 = vpop.f32.mrf.mxu0
      %v2172 = vadd.f32 0.0, %v2171
      %2173 = vmatmul.f32.gmra.mxu0 %v2047
      %v2174 = vpop.f32.mrf.mxu0
      %v2175 = vadd.f32 0.0, %v2174
      %2176 = vmatmul.f32.gmra.mxu0 %v2050
      %v2177 = vpop.f32.mrf.mxu0
      %v2178 = vadd.f32 0.0, %v2177
      %2179 = vmatmul.f32.gmra.mxu0 %v2053
      %v2180 = vpop.f32.mrf.mxu0
      %v2181 = vadd.f32 0.0, %v2180
      %2182 = vmatmul.f32.gmra.mxu0 %v2056
      %v2183 = vpop.f32.mrf.mxu0
      %v2184 = vadd.f32 0.0, %v2183
      %2185 = vmatmul.f32.gmra.mxu0 %v2059
      %v2186 = vpop.f32.mrf.mxu0
      %v2187 = vadd.f32 0.0, %v2186
      %2188 = vmatmul.f32.gmra.mxu0 %v2062
      %v2189 = vpop.f32.mrf.mxu0
      %v2190 = vadd.f32 0.0, %v2189
      %2191 = vmatmul.f32.gmra.mxu0 %v2065
      %v2192 = vpop.f32.mrf.mxu0
      %v2193 = vadd.f32 0.0, %v2192
      %2194 = vmatmul.f32.gmra.mxu0 %v2068
      %v2195 = vpop.f32.mrf.mxu0
      %v2196 = vadd.f32 0.0, %v2195
      %2197 = vmatmul.f32.gmra.mxu0 %v2071
      %v2198 = vpop.f32.mrf.mxu0
      %v2199 = vadd.f32 0.0, %v2198
      %2200 = vmatmul.f32.gmra.mxu0 %v2074
      %v2201 = vpop.f32.mrf.mxu0
      %v2202 = vadd.f32 0.0, %v2201
      %2203 = vmatmul.f32.gmra.mxu0 %v2077
      %v2204 = vpop.f32.mrf.mxu0
      %v2205 = vadd.f32 0.0, %v2204
      %2206 = vmatmul.f32.gmra.mxu0 %v2080
      %v2207 = vpop.f32.mrf.mxu0
      %v2208 = vadd.f32 0.0, %v2207
      %2209 = vmatmul.f32.gmra.mxu0 %v2083
      %v2210 = vpop.f32.mrf.mxu0
      %v2211 = vadd.f32 0.0, %v2210
      %2212 = vmatmul.f32.gmra.mxu0 %v2086
      %v2213 = vpop.f32.mrf.mxu0
      %v2214 = vadd.f32 0.0, %v2213
      %2215 = vmatmul.f32.gmra.mxu0 %v2089
      %v2216 = vpop.f32.mrf.mxu0
      %v2217 = vadd.f32 0.0, %v2216
      %2218 = vmatmul.f32.gmra.mxu0 %v2092
      %v2219 = vpop.f32.mrf.mxu0
      %v2220 = vadd.f32 0.0, %v2219
      %2221 = vdwg.mxu0
      %v2222 = vadd.f32 %v1948, %v2115
      %v2223 = vadd.f32 %v1949, %v2118
      %v2224 = vadd.f32 %v1950, %v2121
      %v2225 = vadd.f32 %v1951, %v2124
      %v2226 = vadd.f32 %v1952, %v2127
      %v2227 = vadd.f32 %v1953, %v2130
      %v2228 = vadd.f32 %v1954, %v2133
      %v2229 = vadd.f32 %v1955, %v2136
      %v2230 = vadd.f32 %v1956, %v2139
      %v2231 = vadd.f32 %v1957, %v2142
      %v2232 = vadd.f32 %v1958, %v2145
      %v2233 = vadd.f32 %v1959, %v2148
      %v2234 = vadd.f32 %v1960, %v2151
      %v2235 = vadd.f32 %v1961, %v2154
      %v2236 = vadd.f32 %v1962, %v2157
      %v2237 = vadd.f32 %v1963, %v2160
      %v2238 = vadd.f32 %v1964, %v2163
      %v2239 = vadd.f32 %v1965, %v2166
      %v2240 = vadd.f32 %v1966, %v2169
      %v2241 = vadd.f32 %v1967, %v2172
      %v2242 = vadd.f32 %v1968, %v2175
      %v2243 = vadd.f32 %v1969, %v2178
      %v2244 = vadd.f32 %v1970, %v2181
      %v2245 = vadd.f32 %v1971, %v2184
      %v2246 = vadd.f32 %v1972, %v2187
      %v2247 = vadd.f32 %v1973, %v2190
      %v2248 = vadd.f32 %v1974, %v2193
      %v2249 = vadd.f32 %v1975, %v2196
      %v2250 = vadd.f32 %v1976, %v2199
      %v2251 = vadd.f32 %v1977, %v2202
      %v2252 = vadd.f32 %v1978, %v2205
      %v2253 = vadd.f32 %v1979, %v2208
      %v2254 = vadd.f32 %v1980, %v2211
      %v2255 = vadd.f32 %v1981, %v2214
      %v2256 = vadd.f32 %v1982, %v2217
      %v2257 = vadd.f32 %v1983, %v2220
      %2258 = vst.msk [vmem:[#allocation3] sm:$0xff] %vm577, %v2222
      %2259 = vst.msk [vmem:[#allocation3 + $0x8] sm:$0xff] %vm577, %v2223
      %2260 = vst.msk [vmem:[#allocation3 + $0x10] sm:$0xff] %vm577, %v2224
      %2261 = vst.msk [vmem:[#allocation3 + $0x18] sm:$0xff] %vm577, %v2225
      %2262 = vst.msk [vmem:[#allocation3 + $0x20] sm:$0xff] %vm577, %v2226
      %2263 = vst.msk [vmem:[#allocation3 + $0x28] sm:$0xff] %vm577, %v2227
      %2264 = vst.msk [vmem:[#allocation3 + $0x30] sm:$0xff] %vm577, %v2228
      %2265 = vst.msk [vmem:[#allocation3 + $0x38] sm:$0xff] %vm577, %v2229
      %2266 = vst.msk [vmem:[#allocation3 + $0x40] sm:$0xff] %vm577, %v2230
      %2267 = vst.msk [vmem:[#allocation3 + $0x48] sm:$0xff] %vm577, %v2231
      %2268 = vst.msk [vmem:[#allocation3 + $0x50] sm:$0xff] %vm577, %v2232
      %2269 = vst.msk [vmem:[#allocation3 + $0x58] sm:$0xff] %vm577, %v2233
      %2270 = vst.msk [vmem:[#allocation3 + $0x60] sm:$0xff] %vm577, %v2234
      %2271 = vst.msk [vmem:[#allocation3 + $0x68] sm:$0xff] %vm577, %v2235
      %2272 = vst.msk [vmem:[#allocation3 + $0x70] sm:$0xff] %vm577, %v2236
      %2273 = vst.msk [vmem:[#allocation3 + $0x78] sm:$0xff] %vm577, %v2237
      %2274 = vst.msk [vmem:[#allocation3 + $0x80] sm:$0xff] %vm577, %v2238
      %2275 = vst.msk [vmem:[#allocation3 + $0x88] sm:$0xff] %vm577, %v2239
      %2276 = vst.msk [vmem:[#allocation3 + $0x90] sm:$0xff] %vm577, %v2240
      %2277 = vst.msk [vmem:[#allocation3 + $0x98] sm:$0xff] %vm577, %v2241
      %2278 = vst.msk [vmem:[#allocation3 + $0xa0] sm:$0xff] %vm577, %v2242
      %2279 = vst.msk [vmem:[#allocation3 + $0xa8] sm:$0xff] %vm577, %v2243
      %2280 = vst.msk [vmem:[#allocation3 + $0xb0] sm:$0xff] %vm577, %v2244
      %2281 = vst.msk [vmem:[#allocation3 + $0xb8] sm:$0xff] %vm577, %v2245
      %2282 = vst.msk [vmem:[#allocation3 + $0xc0] sm:$0xff] %vm577, %v2246
      %2283 = vst.msk [vmem:[#allocation3 + $0xc8] sm:$0xff] %vm577, %v2247
      %2284 = vst.msk [vmem:[#allocation3 + $0xd0] sm:$0xff] %vm577, %v2248
      %2285 = vst.msk [vmem:[#allocation3 + $0xd8] sm:$0xff] %vm577, %v2249
      %2286 = vst.msk [vmem:[#allocation3 + $0xe0] sm:$0xff] %vm577, %v2250
      %2287 = vst.msk [vmem:[#allocation3 + $0xe8] sm:$0xff] %vm577, %v2251
      %2288 = vst.msk [vmem:[#allocation3 + $0xf0] sm:$0xff] %vm577, %v2252
      %2289 = vst.msk [vmem:[#allocation3 + $0xf8] sm:$0xff] %vm577, %v2253
      %2290 = vst.msk [vmem:[#allocation3 + $0x100] sm:$0xff] %vm577, %v2254
      %2291 = vst.msk [vmem:[#allocation3 + $0x108] sm:$0xff] %vm577, %v2255
      %2292 = vst.msk [vmem:[#allocation3 + $0x110] sm:$0xff] %vm577, %v2256
      %2293 = vst.msk [vmem:[#allocation3 + $0x118] sm:$0xff] %vm577, %v2257
      %v2294 = vld [vmem:[%s1911 + $0x1] sm:$0xff]
      %v2295 = vld [vmem:[%s1911 + $0x9] sm:$0xff]
      %v2296 = vld [vmem:[%s1911 + $0x19] sm:$0xff]
      %v2297 = vld [vmem:[%s1911 + $0x21] sm:$0xff]
      %v2298 = vld [vmem:[%s1911 + $0x31] sm:$0xff]
      %v2299 = vld [vmem:[%s1911 + $0x39] sm:$0xff]
      %v2300 = vld [vmem:[%s1911 + $0x49] sm:$0xff]
      %v2301 = vld [vmem:[%s1911 + $0x51] sm:$0xff]
      %v2302 = vld [vmem:[%s1911 + $0x61] sm:$0xff]
      %v2303 = vld [vmem:[%s1911 + $0x69] sm:$0xff]
      %v2304 = vld [vmem:[%s1911 + $0x79] sm:$0xff]
      %v2305 = vld [vmem:[%s1911 + $0x81] sm:$0xff]
      %v2306 = vld [vmem:[%s1911 + $0x91] sm:$0xff]
      %v2307 = vld [vmem:[%s1911 + $0x99] sm:$0xff]
      %v2308 = vld [vmem:[%s1911 + $0xa9] sm:$0xff]
      %v2309 = vld [vmem:[%s1911 + $0xb1] sm:$0xff]
      %v2310 = vld [vmem:[%s1911 + $0xc1] sm:$0xff]
      %v2311 = vld [vmem:[%s1911 + $0xc9] sm:$0xff]
      %v2312 = vld [vmem:[%s1911 + $0xd9] sm:$0xff]
      %v2313 = vld [vmem:[%s1911 + $0xe1] sm:$0xff]
      %v2314 = vld [vmem:[%s1911 + $0xf1] sm:$0xff]
      %v2315 = vld [vmem:[%s1911 + $0xf9] sm:$0xff]
      %v2316 = vld [vmem:[%s1911 + $0x109] sm:$0xff]
      %v2317 = vld [vmem:[%s1911 + $0x111] sm:$0xff]
      %v2318 = vld [vmem:[%s1911 + $0x121] sm:$0xff]
      %v2319 = vld [vmem:[%s1911 + $0x129] sm:$0xff]
      %v2320 = vld [vmem:[%s1911 + $0x139] sm:$0xff]
      %v2321 = vld [vmem:[%s1911 + $0x141] sm:$0xff]
      %v2322 = vld [vmem:[%s1911 + $0x151] sm:$0xff]
      %v2323 = vld [vmem:[%s1911 + $0x159] sm:$0xff]
      %v2324 = vld [vmem:[%s1911 + $0x169] sm:$0xff]
      %v2325 = vld [vmem:[%s1911 + $0x171] sm:$0xff]
      %v2326 = vld [vmem:[%s1911 + $0x181] sm:$0xff]
      %v2327 = vld [vmem:[%s1911 + $0x189] sm:$0xff]
      %v2328 = vld [vmem:[%s1911 + $0x199] sm:$0xff]
      %v2329 = vld [vmem:[%s1911 + $0x1a1] sm:$0xff]
      %v2330 = vld [vmem:[#allocation3] sm:$0xff]
      %v2331 = vld [vmem:[#allocation3 + $0x8] sm:$0xff]
      %v2332 = vld [vmem:[#allocation3 + $0x10] sm:$0xff]
      %v2333 = vld [vmem:[#allocation3 + $0x18] sm:$0xff]
      %v2334 = vld [vmem:[#allocation3 + $0x20] sm:$0xff]
      %v2335 = vld [vmem:[#allocation3 + $0x28] sm:$0xff]
      %v2336 = vld [vmem:[#allocation3 + $0x30] sm:$0xff]
      %v2337 = vld [vmem:[#allocation3 + $0x38] sm:$0xff]
      %v2338 = vld [vmem:[#allocation3 + $0x40] sm:$0xff]
      %v2339 = vld [vmem:[#allocation3 + $0x48] sm:$0xff]
      %v2340 = vld [vmem:[#allocation3 + $0x50] sm:$0xff]
      %v2341 = vld [vmem:[#allocation3 + $0x58] sm:$0xff]
      %v2342 = vld [vmem:[#allocation3 + $0x60] sm:$0xff]
      %v2343 = vld [vmem:[#allocation3 + $0x68] sm:$0xff]
      %v2344 = vld [vmem:[#allocation3 + $0x70] sm:$0xff]
      %v2345 = vld [vmem:[#allocation3 + $0x78] sm:$0xff]
      %v2346 = vld [vmem:[#allocation3 + $0x80] sm:$0xff]
      %v2347 = vld [vmem:[#allocation3 + $0x88] sm:$0xff]
      %v2348 = vld [vmem:[#allocation3 + $0x90] sm:$0xff]
      %v2349 = vld [vmem:[#allocation3 + $0x98] sm:$0xff]
      %v2350 = vld [vmem:[#allocation3 + $0xa0] sm:$0xff]
      %v2351 = vld [vmem:[#allocation3 + $0xa8] sm:$0xff]
      %v2352 = vld [vmem:[#allocation3 + $0xb0] sm:$0xff]
      %v2353 = vld [vmem:[#allocation3 + $0xb8] sm:$0xff]
      %v2354 = vld [vmem:[#allocation3 + $0xc0] sm:$0xff]
      %v2355 = vld [vmem:[#allocation3 + $0xc8] sm:$0xff]
      %v2356 = vld [vmem:[#allocation3 + $0xd0] sm:$0xff]
      %v2357 = vld [vmem:[#allocation3 + $0xd8] sm:$0xff]
      %v2358 = vld [vmem:[#allocation3 + $0xe0] sm:$0xff]
      %v2359 = vld [vmem:[#allocation3 + $0xe8] sm:$0xff]
      %v2360 = vld [vmem:[#allocation3 + $0xf0] sm:$0xff]
      %v2361 = vld [vmem:[#allocation3 + $0xf8] sm:$0xff]
      %v2362 = vld [vmem:[#allocation3 + $0x100] sm:$0xff]
      %v2363 = vld [vmem:[#allocation3 + $0x108] sm:$0xff]
      %v2364 = vld [vmem:[#allocation3 + $0x110] sm:$0xff]
      %v2365 = vld [vmem:[#allocation3 + $0x118] sm:$0xff]
      %s2366 = scalar_lea.vmem %s3, 16
      %v2367 = vld [vmem:[%s2366] sm:$0xf]
      %v2369 = vsel %vm577, %v2294, 0
      %v2372 = vsel %vm577, %v2295, 0
      %v2375 = vsel %vm577, %v2296, 0
      %v2378 = vsel %vm577, %v2297, 0
      %v2381 = vsel %vm577, %v2298, 0
      %v2384 = vsel %vm577, %v2299, 0
      %v2387 = vsel %vm577, %v2300, 0
      %v2390 = vsel %vm577, %v2301, 0
      %v2393 = vsel %vm577, %v2302, 0
      %v2396 = vsel %vm577, %v2303, 0
      %v2399 = vsel %vm577, %v2304, 0
      %v2402 = vsel %vm577, %v2305, 0
      %v2405 = vsel %vm577, %v2306, 0
      %v2408 = vsel %vm577, %v2307, 0
      %v2411 = vsel %vm577, %v2308, 0
      %v2414 = vsel %vm577, %v2309, 0
      %v2417 = vsel %vm577, %v2310, 0
      %v2420 = vsel %vm577, %v2311, 0
      %v2423 = vsel %vm577, %v2312, 0
      %v2426 = vsel %vm577, %v2313, 0
      %v2429 = vsel %vm577, %v2314, 0
      %v2432 = vsel %vm577, %v2315, 0
      %v2435 = vsel %vm577, %v2316, 0
      %v2438 = vsel %vm577, %v2317, 0
      %v2441 = vsel %vm577, %v2318, 0
      %v2444 = vsel %vm577, %v2319, 0
      %v2447 = vsel %vm577, %v2320, 0
      %v2450 = vsel %vm577, %v2321, 0
      %v2453 = vsel %vm577, %v2322, 0
      %v2456 = vsel %vm577, %v2323, 0
      %v2459 = vsel %vm577, %v2324, 0
      %v2462 = vsel %vm577, %v2325, 0
      %v2465 = vsel %vm577, %v2326, 0
      %v2468 = vsel %vm577, %v2327, 0
      %v2471 = vsel %vm577, %v2328, 0
      %v2474 = vsel %vm577, %v2329, 0
      %v2477 = vsel %vm946, %v2367, 0
      %2479 = vmatpush.msra.mxu0 0.0
      %2480 = vmatpush.msra.mxu0 0.0
      %2481 = vmatpush.msra.mxu0 0.0
      %2482 = vmatpush.msra.mxu0 0.0
      %2483 = vmatpush.msra.mxu0 0.0
      %2484 = vmatpush.msra.mxu0 0.0
      %2485 = vmatpush.msra.mxu0 0.0
      %2486 = vmatpush.msra.mxu0 0.0
      %2487 = vmatpush.msra.mxu0 0.0
      %2488 = vmatpush.msra.mxu0 0.0
      %2489 = vmatpush.msra.mxu0 0.0
      %2490 = vmatpush.msra.mxu0 0.0
      %2491 = vmatpush.msra.mxu0 0.0
      %2492 = vmatpush.msra.mxu0 0.0
      %2493 = vmatpush.msra.mxu0 0.0
      %2494 = vmatpush.msra.mxu0 %v2477
      %2495 = vmatmul.f32.gmra.mxu0 %v2369
      %v2496 = vpop.f32.mrf.mxu0
      %v2497 = vadd.f32 0.0, %v2496
      %2498 = vmatmul.f32.gmra.mxu0 %v2372
      %v2499 = vpop.f32.mrf.mxu0
      %v2500 = vadd.f32 0.0, %v2499
      %2501 = vmatmul.f32.gmra.mxu0 %v2375
      %v2502 = vpop.f32.mrf.mxu0
      %v2503 = vadd.f32 0.0, %v2502
      %2504 = vmatmul.f32.gmra.mxu0 %v2378
      %v2505 = vpop.f32.mrf.mxu0
      %v2506 = vadd.f32 0.0, %v2505
      %2507 = vmatmul.f32.gmra.mxu0 %v2381
      %v2508 = vpop.f32.mrf.mxu0
      %v2509 = vadd.f32 0.0, %v2508
      %2510 = vmatmul.f32.gmra.mxu0 %v2384
      %v2511 = vpop.f32.mrf.mxu0
      %v2512 = vadd.f32 0.0, %v2511
      %2513 = vmatmul.f32.gmra.mxu0 %v2387
      %v2514 = vpop.f32.mrf.mxu0
      %v2515 = vadd.f32 0.0, %v2514
      %2516 = vmatmul.f32.gmra.mxu0 %v2390
      %v2517 = vpop.f32.mrf.mxu0
      %v2518 = vadd.f32 0.0, %v2517
      %2519 = vmatmul.f32.gmra.mxu0 %v2393
      %v2520 = vpop.f32.mrf.mxu0
      %v2521 = vadd.f32 0.0, %v2520
      %2522 = vmatmul.f32.gmra.mxu0 %v2396
      %v2523 = vpop.f32.mrf.mxu0
      %v2524 = vadd.f32 0.0, %v2523
      %2525 = vmatmul.f32.gmra.mxu0 %v2399
      %v2526 = vpop.f32.mrf.mxu0
      %v2527 = vadd.f32 0.0, %v2526
      %2528 = vmatmul.f32.gmra.mxu0 %v2402
      %v2529 = vpop.f32.mrf.mxu0
      %v2530 = vadd.f32 0.0, %v2529
      %2531 = vmatmul.f32.gmra.mxu0 %v2405
      %v2532 = vpop.f32.mrf.mxu0
      %v2533 = vadd.f32 0.0, %v2532
      %2534 = vmatmul.f32.gmra.mxu0 %v2408
      %v2535 = vpop.f32.mrf.mxu0
      %v2536 = vadd.f32 0.0, %v2535
      %2537 = vmatmul.f32.gmra.mxu0 %v2411
      %v2538 = vpop.f32.mrf.mxu0
      %v2539 = vadd.f32 0.0, %v2538
      %2540 = vmatmul.f32.gmra.mxu0 %v2414
      %v2541 = vpop.f32.mrf.mxu0
      %v2542 = vadd.f32 0.0, %v2541
      %2543 = vmatmul.f32.gmra.mxu0 %v2417
      %v2544 = vpop.f32.mrf.mxu0
      %v2545 = vadd.f32 0.0, %v2544
      %2546 = vmatmul.f32.gmra.mxu0 %v2420
      %v2547 = vpop.f32.mrf.mxu0
      %v2548 = vadd.f32 0.0, %v2547
      %2549 = vmatmul.f32.gmra.mxu0 %v2423
      %v2550 = vpop.f32.mrf.mxu0
      %v2551 = vadd.f32 0.0, %v2550
      %2552 = vmatmul.f32.gmra.mxu0 %v2426
      %v2553 = vpop.f32.mrf.mxu0
      %v2554 = vadd.f32 0.0, %v2553
      %2555 = vmatmul.f32.gmra.mxu0 %v2429
      %v2556 = vpop.f32.mrf.mxu0
      %v2557 = vadd.f32 0.0, %v2556
      %2558 = vmatmul.f32.gmra.mxu0 %v2432
      %v2559 = vpop.f32.mrf.mxu0
      %v2560 = vadd.f32 0.0, %v2559
      %2561 = vmatmul.f32.gmra.mxu0 %v2435
      %v2562 = vpop.f32.mrf.mxu0
      %v2563 = vadd.f32 0.0, %v2562
      %2564 = vmatmul.f32.gmra.mxu0 %v2438
      %v2565 = vpop.f32.mrf.mxu0
      %v2566 = vadd.f32 0.0, %v2565
      %2567 = vmatmul.f32.gmra.mxu0 %v2441
      %v2568 = vpop.f32.mrf.mxu0
      %v2569 = vadd.f32 0.0, %v2568
      %2570 = vmatmul.f32.gmra.mxu0 %v2444
      %v2571 = vpop.f32.mrf.mxu0
      %v2572 = vadd.f32 0.0, %v2571
      %2573 = vmatmul.f32.gmra.mxu0 %v2447
      %v2574 = vpop.f32.mrf.mxu0
      %v2575 = vadd.f32 0.0, %v2574
      %2576 = vmatmul.f32.gmra.mxu0 %v2450
      %v2577 = vpop.f32.mrf.mxu0
      %v2578 = vadd.f32 0.0, %v2577
      %2579 = vmatmul.f32.gmra.mxu0 %v2453
      %v2580 = vpop.f32.mrf.mxu0
      %v2581 = vadd.f32 0.0, %v2580
      %2582 = vmatmul.f32.gmra.mxu0 %v2456
      %v2583 = vpop.f32.mrf.mxu0
      %v2584 = vadd.f32 0.0, %v2583
      %2585 = vmatmul.f32.gmra.mxu0 %v2459
      %v2586 = vpop.f32.mrf.mxu0
      %v2587 = vadd.f32 0.0, %v2586
      %2588 = vmatmul.f32.gmra.mxu0 %v2462
      %v2589 = vpop.f32.mrf.mxu0
      %v2590 = vadd.f32 0.0, %v2589
      %2591 = vmatmul.f32.gmra.mxu0 %v2465
      %v2592 = vpop.f32.mrf.mxu0
      %v2593 = vadd.f32 0.0, %v2592
      %2594 = vmatmul.f32.gmra.mxu0 %v2468
      %v2595 = vpop.f32.mrf.mxu0
      %v2596 = vadd.f32 0.0, %v2595
      %2597 = vmatmul.f32.gmra.mxu0 %v2471
      %v2598 = vpop.f32.mrf.mxu0
      %v2599 = vadd.f32 0.0, %v2598
      %2600 = vmatmul.f32.gmra.mxu0 %v2474
      %v2601 = vpop.f32.mrf.mxu0
      %v2602 = vadd.f32 0.0, %v2601
      %2603 = vdwg.mxu0
      %v2604 = vadd.f32 %v2330, %v2497
      %v2605 = vadd.f32 %v2331, %v2500
      %v2606 = vadd.f32 %v2332, %v2503
      %v2607 = vadd.f32 %v2333, %v2506
      %v2608 = vadd.f32 %v2334, %v2509
      %v2609 = vadd.f32 %v2335, %v2512
      %v2610 = vadd.f32 %v2336, %v2515
      %v2611 = vadd.f32 %v2337, %v2518
      %v2612 = vadd.f32 %v2338, %v2521
      %v2613 = vadd.f32 %v2339, %v2524
      %v2614 = vadd.f32 %v2340, %v2527
      %v2615 = vadd.f32 %v2341, %v2530
      %v2616 = vadd.f32 %v2342, %v2533
      %v2617 = vadd.f32 %v2343, %v2536
      %v2618 = vadd.f32 %v2344, %v2539
      %v2619 = vadd.f32 %v2345, %v2542
      %v2620 = vadd.f32 %v2346, %v2545
      %v2621 = vadd.f32 %v2347, %v2548
      %v2622 = vadd.f32 %v2348, %v2551
      %v2623 = vadd.f32 %v2349, %v2554
      %v2624 = vadd.f32 %v2350, %v2557
      %v2625 = vadd.f32 %v2351, %v2560
      %v2626 = vadd.f32 %v2352, %v2563
      %v2627 = vadd.f32 %v2353, %v2566
      %v2628 = vadd.f32 %v2354, %v2569
      %v2629 = vadd.f32 %v2355, %v2572
      %v2630 = vadd.f32 %v2356, %v2575
      %v2631 = vadd.f32 %v2357, %v2578
      %v2632 = vadd.f32 %v2358, %v2581
      %v2633 = vadd.f32 %v2359, %v2584
      %v2634 = vadd.f32 %v2360, %v2587
      %v2635 = vadd.f32 %v2361, %v2590
      %v2636 = vadd.f32 %v2362, %v2593
      %v2637 = vadd.f32 %v2363, %v2596
      %v2638 = vadd.f32 %v2364, %v2599
      %v2639 = vadd.f32 %v2365, %v2602
      %2640 = vst.msk [vmem:[#allocation3] sm:$0xff] %vm577, %v2604
      %2641 = vst.msk [vmem:[#allocation3 + $0x8] sm:$0xff] %vm577, %v2605
      %2642 = vst.msk [vmem:[#allocation3 + $0x10] sm:$0xff] %vm577, %v2606
      %2643 = vst.msk [vmem:[#allocation3 + $0x18] sm:$0xff] %vm577, %v2607
      %2644 = vst.msk [vmem:[#allocation3 + $0x20] sm:$0xff] %vm577, %v2608
      %2645 = vst.msk [vmem:[#allocation3 + $0x28] sm:$0xff] %vm577, %v2609
      %2646 = vst.msk [vmem:[#allocation3 + $0x30] sm:$0xff] %vm577, %v2610
      %2647 = vst.msk [vmem:[#allocation3 + $0x38] sm:$0xff] %vm577, %v2611
      %2648 = vst.msk [vmem:[#allocation3 + $0x40] sm:$0xff] %vm577, %v2612
      %2649 = vst.msk [vmem:[#allocation3 + $0x48] sm:$0xff] %vm577, %v2613
      %2650 = vst.msk [vmem:[#allocation3 + $0x50] sm:$0xff] %vm577, %v2614
      %2651 = vst.msk [vmem:[#allocation3 + $0x58] sm:$0xff] %vm577, %v2615
      %2652 = vst.msk [vmem:[#allocation3 + $0x60] sm:$0xff] %vm577, %v2616
      %2653 = vst.msk [vmem:[#allocation3 + $0x68] sm:$0xff] %vm577, %v2617
      %2654 = vst.msk [vmem:[#allocation3 + $0x70] sm:$0xff] %vm577, %v2618
      %2655 = vst.msk [vmem:[#allocation3 + $0x78] sm:$0xff] %vm577, %v2619
      %2656 = vst.msk [vmem:[#allocation3 + $0x80] sm:$0xff] %vm577, %v2620
      %2657 = vst.msk [vmem:[#allocation3 + $0x88] sm:$0xff] %vm577, %v2621
      %2658 = vst.msk [vmem:[#allocation3 + $0x90] sm:$0xff] %vm577, %v2622
      %2659 = vst.msk [vmem:[#allocation3 + $0x98] sm:$0xff] %vm577, %v2623
      %2660 = vst.msk [vmem:[#allocation3 + $0xa0] sm:$0xff] %vm577, %v2624
      %2661 = vst.msk [vmem:[#allocation3 + $0xa8] sm:$0xff] %vm577, %v2625
      %2662 = vst.msk [vmem:[#allocation3 + $0xb0] sm:$0xff] %vm577, %v2626
      %2663 = vst.msk [vmem:[#allocation3 + $0xb8] sm:$0xff] %vm577, %v2627
      %2664 = vst.msk [vmem:[#allocation3 + $0xc0] sm:$0xff] %vm577, %v2628
      %2665 = vst.msk [vmem:[#allocation3 + $0xc8] sm:$0xff] %vm577, %v2629
      %2666 = vst.msk [vmem:[#allocation3 + $0xd0] sm:$0xff] %vm577, %v2630
      %2667 = vst.msk [vmem:[#allocation3 + $0xd8] sm:$0xff] %vm577, %v2631
      %2668 = vst.msk [vmem:[#allocation3 + $0xe0] sm:$0xff] %vm577, %v2632
      %2669 = vst.msk [vmem:[#allocation3 + $0xe8] sm:$0xff] %vm577, %v2633
      %2670 = vst.msk [vmem:[#allocation3 + $0xf0] sm:$0xff] %vm577, %v2634
      %2671 = vst.msk [vmem:[#allocation3 + $0xf8] sm:$0xff] %vm577, %v2635
      %2672 = vst.msk [vmem:[#allocation3 + $0x100] sm:$0xff] %vm577, %v2636
      %2673 = vst.msk [vmem:[#allocation3 + $0x108] sm:$0xff] %vm577, %v2637
      %2674 = vst.msk [vmem:[#allocation3 + $0x110] sm:$0xff] %vm577, %v2638
      %2675 = vst.msk [vmem:[#allocation3 + $0x118] sm:$0xff] %vm577, %v2639
      %v2676 = vld [vmem:[%s1911 + $0x2] sm:$0xff]
      %v2677 = vld [vmem:[%s1911 + $0xa] sm:$0xff]
      %v2678 = vld [vmem:[%s1911 + $0x1a] sm:$0xff]
      %v2679 = vld [vmem:[%s1911 + $0x22] sm:$0xff]
      %v2680 = vld [vmem:[%s1911 + $0x32] sm:$0xff]
      %v2681 = vld [vmem:[%s1911 + $0x3a] sm:$0xff]
      %v2682 = vld [vmem:[%s1911 + $0x4a] sm:$0xff]
      %v2683 = vld [vmem:[%s1911 + $0x52] sm:$0xff]
      %v2684 = vld [vmem:[%s1911 + $0x62] sm:$0xff]
      %v2685 = vld [vmem:[%s1911 + $0x6a] sm:$0xff]
      %v2686 = vld [vmem:[%s1911 + $0x7a] sm:$0xff]
      %v2687 = vld [vmem:[%s1911 + $0x82] sm:$0xff]
      %v2688 = vld [vmem:[%s1911 + $0x92] sm:$0xff]
      %v2689 = vld [vmem:[%s1911 + $0x9a] sm:$0xff]
      %v2690 = vld [vmem:[%s1911 + $0xaa] sm:$0xff]
      %v2691 = vld [vmem:[%s1911 + $0xb2] sm:$0xff]
      %v2692 = vld [vmem:[%s1911 + $0xc2] sm:$0xff]
      %v2693 = vld [vmem:[%s1911 + $0xca] sm:$0xff]
      %v2694 = vld [vmem:[%s1911 + $0xda] sm:$0xff]
      %v2695 = vld [vmem:[%s1911 + $0xe2] sm:$0xff]
      %v2696 = vld [vmem:[%s1911 + $0xf2] sm:$0xff]
      %v2697 = vld [vmem:[%s1911 + $0xfa] sm:$0xff]
      %v2698 = vld [vmem:[%s1911 + $0x10a] sm:$0xff]
      %v2699 = vld [vmem:[%s1911 + $0x112] sm:$0xff]
      %v2700 = vld [vmem:[%s1911 + $0x122] sm:$0xff]
      %v2701 = vld [vmem:[%s1911 + $0x12a] sm:$0xff]
      %v2702 = vld [vmem:[%s1911 + $0x13a] sm:$0xff]
      %v2703 = vld [vmem:[%s1911 + $0x142] sm:$0xff]
      %v2704 = vld [vmem:[%s1911 + $0x152] sm:$0xff]
      %v2705 = vld [vmem:[%s1911 + $0x15a] sm:$0xff]
      %v2706 = vld [vmem:[%s1911 + $0x16a] sm:$0xff]
      %v2707 = vld [vmem:[%s1911 + $0x172] sm:$0xff]
      %v2708 = vld [vmem:[%s1911 + $0x182] sm:$0xff]
      %v2709 = vld [vmem:[%s1911 + $0x18a] sm:$0xff]
      %v2710 = vld [vmem:[%s1911 + $0x19a] sm:$0xff]
      %v2711 = vld [vmem:[%s1911 + $0x1a2] sm:$0xff]
      %v2712 = vld [vmem:[#allocation3] sm:$0xff]
      %v2713 = vld [vmem:[#allocation3 + $0x8] sm:$0xff]
      %v2714 = vld [vmem:[#allocation3 + $0x10] sm:$0xff]
      %v2715 = vld [vmem:[#allocation3 + $0x18] sm:$0xff]
      %v2716 = vld [vmem:[#allocation3 + $0x20] sm:$0xff]
      %v2717 = vld [vmem:[#allocation3 + $0x28] sm:$0xff]
      %v2718 = vld [vmem:[#allocation3 + $0x30] sm:$0xff]
      %v2719 = vld [vmem:[#allocation3 + $0x38] sm:$0xff]
      %v2720 = vld [vmem:[#allocation3 + $0x40] sm:$0xff]
      %v2721 = vld [vmem:[#allocation3 + $0x48] sm:$0xff]
      %v2722 = vld [vmem:[#allocation3 + $0x50] sm:$0xff]
      %v2723 = vld [vmem:[#allocation3 + $0x58] sm:$0xff]
      %v2724 = vld [vmem:[#allocation3 + $0x60] sm:$0xff]
      %v2725 = vld [vmem:[#allocation3 + $0x68] sm:$0xff]
      %v2726 = vld [vmem:[#allocation3 + $0x70] sm:$0xff]
      %v2727 = vld [vmem:[#allocation3 + $0x78] sm:$0xff]
      %v2728 = vld [vmem:[#allocation3 + $0x80] sm:$0xff]
      %v2729 = vld [vmem:[#allocation3 + $0x88] sm:$0xff]
      %v2730 = vld [vmem:[#allocation3 + $0x90] sm:$0xff]
      %v2731 = vld [vmem:[#allocation3 + $0x98] sm:$0xff]
      %v2732 = vld [vmem:[#allocation3 + $0xa0] sm:$0xff]
      %v2733 = vld [vmem:[#allocation3 + $0xa8] sm:$0xff]
      %v2734 = vld [vmem:[#allocation3 + $0xb0] sm:$0xff]
      %v2735 = vld [vmem:[#allocation3 + $0xb8] sm:$0xff]
      %v2736 = vld [vmem:[#allocation3 + $0xc0] sm:$0xff]
      %v2737 = vld [vmem:[#allocation3 + $0xc8] sm:$0xff]
      %v2738 = vld [vmem:[#allocation3 + $0xd0] sm:$0xff]
      %v2739 = vld [vmem:[#allocation3 + $0xd8] sm:$0xff]
      %v2740 = vld [vmem:[#allocation3 + $0xe0] sm:$0xff]
      %v2741 = vld [vmem:[#allocation3 + $0xe8] sm:$0xff]
      %v2742 = vld [vmem:[#allocation3 + $0xf0] sm:$0xff]
      %v2743 = vld [vmem:[#allocation3 + $0xf8] sm:$0xff]
      %v2744 = vld [vmem:[#allocation3 + $0x100] sm:$0xff]
      %v2745 = vld [vmem:[#allocation3 + $0x108] sm:$0xff]
      %v2746 = vld [vmem:[#allocation3 + $0x110] sm:$0xff]
      %v2747 = vld [vmem:[#allocation3 + $0x118] sm:$0xff]
      %s2748 = scalar_lea.vmem %s3, 20
      %v2749 = vld [vmem:[%s2748] sm:$0xf]
      %v2751 = vsel %vm577, %v2676, 0
      %v2754 = vsel %vm577, %v2677, 0
      %v2757 = vsel %vm577, %v2678, 0
      %v2760 = vsel %vm577, %v2679, 0
      %v2763 = vsel %vm577, %v2680, 0
      %v2766 = vsel %vm577, %v2681, 0
      %v2769 = vsel %vm577, %v2682, 0
      %v2772 = vsel %vm577, %v2683, 0
      %v2775 = vsel %vm577, %v2684, 0
      %v2778 = vsel %vm577, %v2685, 0
      %v2781 = vsel %vm577, %v2686, 0
      %v2784 = vsel %vm577, %v2687, 0
      %v2787 = vsel %vm577, %v2688, 0
      %v2790 = vsel %vm577, %v2689, 0
      %v2793 = vsel %vm577, %v2690, 0
      %v2796 = vsel %vm577, %v2691, 0
      %v2799 = vsel %vm577, %v2692, 0
      %v2802 = vsel %vm577, %v2693, 0
      %v2805 = vsel %vm577, %v2694, 0
      %v2808 = vsel %vm577, %v2695, 0
      %v2811 = vsel %vm577, %v2696, 0
      %v2814 = vsel %vm577, %v2697, 0
      %v2817 = vsel %vm577, %v2698, 0
      %v2820 = vsel %vm577, %v2699, 0
      %v2823 = vsel %vm577, %v2700, 0
      %v2826 = vsel %vm577, %v2701, 0
      %v2829 = vsel %vm577, %v2702, 0
      %v2832 = vsel %vm577, %v2703, 0
      %v2835 = vsel %vm577, %v2704, 0
      %v2838 = vsel %vm577, %v2705, 0
      %v2841 = vsel %vm577, %v2706, 0
      %v2844 = vsel %vm577, %v2707, 0
      %v2847 = vsel %vm577, %v2708, 0
      %v2850 = vsel %vm577, %v2709, 0
      %v2853 = vsel %vm577, %v2710, 0
      %v2856 = vsel %vm577, %v2711, 0
      %v2859 = vsel %vm946, %v2749, 0
      %2861 = vmatpush.msra.mxu0 0.0
      %2862 = vmatpush.msra.mxu0 0.0
      %2863 = vmatpush.msra.mxu0 0.0
      %2864 = vmatpush.msra.mxu0 0.0
      %2865 = vmatpush.msra.mxu0 0.0
      %2866 = vmatpush.msra.mxu0 0.0
      %2867 = vmatpush.msra.mxu0 0.0
      %2868 = vmatpush.msra.mxu0 0.0
      %2869 = vmatpush.msra.mxu0 0.0
      %2870 = vmatpush.msra.mxu0 0.0
      %2871 = vmatpush.msra.mxu0 0.0
      %2872 = vmatpush.msra.mxu0 0.0
      %2873 = vmatpush.msra.mxu0 0.0
      %2874 = vmatpush.msra.mxu0 0.0
      %2875 = vmatpush.msra.mxu0 0.0
      %2876 = vmatpush.msra.mxu0 %v2859
      %2877 = vmatmul.f32.gmra.mxu0 %v2751
      %v2878 = vpop.f32.mrf.mxu0
      %v2879 = vadd.f32 0.0, %v2878
      %2880 = vmatmul.f32.gmra.mxu0 %v2754
      %v2881 = vpop.f32.mrf.mxu0
      %v2882 = vadd.f32 0.0, %v2881
      %2883 = vmatmul.f32.gmra.mxu0 %v2757
      %v2884 = vpop.f32.mrf.mxu0
      %v2885 = vadd.f32 0.0, %v2884
      %2886 = vmatmul.f32.gmra.mxu0 %v2760
      %v2887 = vpop.f32.mrf.mxu0
      %v2888 = vadd.f32 0.0, %v2887
      %2889 = vmatmul.f32.gmra.mxu0 %v2763
      %v2890 = vpop.f32.mrf.mxu0
      %v2891 = vadd.f32 0.0, %v2890
      %2892 = vmatmul.f32.gmra.mxu0 %v2766
      %v2893 = vpop.f32.mrf.mxu0
      %v2894 = vadd.f32 0.0, %v2893
      %2895 = vmatmul.f32.gmra.mxu0 %v2769
      %v2896 = vpop.f32.mrf.mxu0
      %v2897 = vadd.f32 0.0, %v2896
      %2898 = vmatmul.f32.gmra.mxu0 %v2772
      %v2899 = vpop.f32.mrf.mxu0
      %v2900 = vadd.f32 0.0, %v2899
      %2901 = vmatmul.f32.gmra.mxu0 %v2775
      %v2902 = vpop.f32.mrf.mxu0
      %v2903 = vadd.f32 0.0, %v2902
      %2904 = vmatmul.f32.gmra.mxu0 %v2778
      %v2905 = vpop.f32.mrf.mxu0
      %v2906 = vadd.f32 0.0, %v2905
      %2907 = vmatmul.f32.gmra.mxu0 %v2781
      %v2908 = vpop.f32.mrf.mxu0
      %v2909 = vadd.f32 0.0, %v2908
      %2910 = vmatmul.f32.gmra.mxu0 %v2784
      %v2911 = vpop.f32.mrf.mxu0
      %v2912 = vadd.f32 0.0, %v2911
      %2913 = vmatmul.f32.gmra.mxu0 %v2787
      %v2914 = vpop.f32.mrf.mxu0
      %v2915 = vadd.f32 0.0, %v2914
      %2916 = vmatmul.f32.gmra.mxu0 %v2790
      %v2917 = vpop.f32.mrf.mxu0
      %v2918 = vadd.f32 0.0, %v2917
      %2919 = vmatmul.f32.gmra.mxu0 %v2793
      %v2920 = vpop.f32.mrf.mxu0
      %v2921 = vadd.f32 0.0, %v2920
      %2922 = vmatmul.f32.gmra.mxu0 %v2796
      %v2923 = vpop.f32.mrf.mxu0
      %v2924 = vadd.f32 0.0, %v2923
      %2925 = vmatmul.f32.gmra.mxu0 %v2799
      %v2926 = vpop.f32.mrf.mxu0
      %v2927 = vadd.f32 0.0, %v2926
      %2928 = vmatmul.f32.gmra.mxu0 %v2802
      %v2929 = vpop.f32.mrf.mxu0
      %v2930 = vadd.f32 0.0, %v2929
      %2931 = vmatmul.f32.gmra.mxu0 %v2805
      %v2932 = vpop.f32.mrf.mxu0
      %v2933 = vadd.f32 0.0, %v2932
      %2934 = vmatmul.f32.gmra.mxu0 %v2808
      %v2935 = vpop.f32.mrf.mxu0
      %v2936 = vadd.f32 0.0, %v2935
      %2937 = vmatmul.f32.gmra.mxu0 %v2811
      %v2938 = vpop.f32.mrf.mxu0
      %v2939 = vadd.f32 0.0, %v2938
      %2940 = vmatmul.f32.gmra.mxu0 %v2814
      %v2941 = vpop.f32.mrf.mxu0
      %v2942 = vadd.f32 0.0, %v2941
      %2943 = vmatmul.f32.gmra.mxu0 %v2817
      %v2944 = vpop.f32.mrf.mxu0
      %v2945 = vadd.f32 0.0, %v2944
      %2946 = vmatmul.f32.gmra.mxu0 %v2820
      %v2947 = vpop.f32.mrf.mxu0
      %v2948 = vadd.f32 0.0, %v2947
      %2949 = vmatmul.f32.gmra.mxu0 %v2823
      %v2950 = vpop.f32.mrf.mxu0
      %v2951 = vadd.f32 0.0, %v2950
      %2952 = vmatmul.f32.gmra.mxu0 %v2826
      %v2953 = vpop.f32.mrf.mxu0
      %v2954 = vadd.f32 0.0, %v2953
      %2955 = vmatmul.f32.gmra.mxu0 %v2829
      %v2956 = vpop.f32.mrf.mxu0
      %v2957 = vadd.f32 0.0, %v2956
      %2958 = vmatmul.f32.gmra.mxu0 %v2832
      %v2959 = vpop.f32.mrf.mxu0
      %v2960 = vadd.f32 0.0, %v2959
      %2961 = vmatmul.f32.gmra.mxu0 %v2835
      %v2962 = vpop.f32.mrf.mxu0
      %v2963 = vadd.f32 0.0, %v2962
      %2964 = vmatmul.f32.gmra.mxu0 %v2838
      %v2965 = vpop.f32.mrf.mxu0
      %v2966 = vadd.f32 0.0, %v2965
      %2967 = vmatmul.f32.gmra.mxu0 %v2841
      %v2968 = vpop.f32.mrf.mxu0
      %v2969 = vadd.f32 0.0, %v2968
      %2970 = vmatmul.f32.gmra.mxu0 %v2844
      %v2971 = vpop.f32.mrf.mxu0
      %v2972 = vadd.f32 0.0, %v2971
      %2973 = vmatmul.f32.gmra.mxu0 %v2847
      %v2974 = vpop.f32.mrf.mxu0
      %v2975 = vadd.f32 0.0, %v2974
      %2976 = vmatmul.f32.gmra.mxu0 %v2850
      %v2977 = vpop.f32.mrf.mxu0
      %v2978 = vadd.f32 0.0, %v2977
      %2979 = vmatmul.f32.gmra.mxu0 %v2853
      %v2980 = vpop.f32.mrf.mxu0
      %v2981 = vadd.f32 0.0, %v2980
      %2982 = vmatmul.f32.gmra.mxu0 %v2856
      %v2983 = vpop.f32.mrf.mxu0
      %v2984 = vadd.f32 0.0, %v2983
      %2985 = vdwg.mxu0
      %v2986 = vadd.f32 %v2712, %v2879
      %v2987 = vadd.f32 %v2713, %v2882
      %v2988 = vadd.f32 %v2714, %v2885
      %v2989 = vadd.f32 %v2715, %v2888
      %v2990 = vadd.f32 %v2716, %v2891
      %v2991 = vadd.f32 %v2717, %v2894
      %v2992 = vadd.f32 %v2718, %v2897
      %v2993 = vadd.f32 %v2719, %v2900
      %v2994 = vadd.f32 %v2720, %v2903
      %v2995 = vadd.f32 %v2721, %v2906
      %v2996 = vadd.f32 %v2722, %v2909
      %v2997 = vadd.f32 %v2723, %v2912
      %v2998 = vadd.f32 %v2724, %v2915
      %v2999 = vadd.f32 %v2725, %v2918
      %v3000 = vadd.f32 %v2726, %v2921
      %v3001 = vadd.f32 %v2727, %v2924
      %v3002 = vadd.f32 %v2728, %v2927
      %v3003 = vadd.f32 %v2729, %v2930
      %v3004 = vadd.f32 %v2730, %v2933
      %v3005 = vadd.f32 %v2731, %v2936
      %v3006 = vadd.f32 %v2732, %v2939
      %v3007 = vadd.f32 %v2733, %v2942
      %v3008 = vadd.f32 %v2734, %v2945
      %v3009 = vadd.f32 %v2735, %v2948
      %v3010 = vadd.f32 %v2736, %v2951
      %v3011 = vadd.f32 %v2737, %v2954
      %v3012 = vadd.f32 %v2738, %v2957
      %v3013 = vadd.f32 %v2739, %v2960
      %v3014 = vadd.f32 %v2740, %v2963
      %v3015 = vadd.f32 %v2741, %v2966
      %v3016 = vadd.f32 %v2742, %v2969
      %v3017 = vadd.f32 %v2743, %v2972
      %v3018 = vadd.f32 %v2744, %v2975
      %v3019 = vadd.f32 %v2745, %v2978
      %v3020 = vadd.f32 %v2746, %v2981
      %v3021 = vadd.f32 %v2747, %v2984
      %3022 = vst.msk [vmem:[#allocation3] sm:$0xff] %vm577, %v2986
      %3023 = vst.msk [vmem:[#allocation3 + $0x8] sm:$0xff] %vm577, %v2987
      %3024 = vst.msk [vmem:[#allocation3 + $0x10] sm:$0xff] %vm577, %v2988
      %3025 = vst.msk [vmem:[#allocation3 + $0x18] sm:$0xff] %vm577, %v2989
      %3026 = vst.msk [vmem:[#allocation3 + $0x20] sm:$0xff] %vm577, %v2990
      %3027 = vst.msk [vmem:[#allocation3 + $0x28] sm:$0xff] %vm577, %v2991
      %3028 = vst.msk [vmem:[#allocation3 + $0x30] sm:$0xff] %vm577, %v2992
      %3029 = vst.msk [vmem:[#allocation3 + $0x38] sm:$0xff] %vm577, %v2993
      %3030 = vst.msk [vmem:[#allocation3 + $0x40] sm:$0xff] %vm577, %v2994
      %3031 = vst.msk [vmem:[#allocation3 + $0x48] sm:$0xff] %vm577, %v2995
      %3032 = vst.msk [vmem:[#allocation3 + $0x50] sm:$0xff] %vm577, %v2996
      %3033 = vst.msk [vmem:[#allocation3 + $0x58] sm:$0xff] %vm577, %v2997
      %3034 = vst.msk [vmem:[#allocation3 + $0x60] sm:$0xff] %vm577, %v2998
      %3035 = vst.msk [vmem:[#allocation3 + $0x68] sm:$0xff] %vm577, %v2999
      %3036 = vst.msk [vmem:[#allocation3 + $0x70] sm:$0xff] %vm577, %v3000
      %3037 = vst.msk [vmem:[#allocation3 + $0x78] sm:$0xff] %vm577, %v3001
      %3038 = vst.msk [vmem:[#allocation3 + $0x80] sm:$0xff] %vm577, %v3002
      %3039 = vst.msk [vmem:[#allocation3 + $0x88] sm:$0xff] %vm577, %v3003
      %3040 = vst.msk [vmem:[#allocation3 + $0x90] sm:$0xff] %vm577, %v3004
      %3041 = vst.msk [vmem:[#allocation3 + $0x98] sm:$0xff] %vm577, %v3005
      %3042 = vst.msk [vmem:[#allocation3 + $0xa0] sm:$0xff] %vm577, %v3006
      %3043 = vst.msk [vmem:[#allocation3 + $0xa8] sm:$0xff] %vm577, %v3007
      %3044 = vst.msk [vmem:[#allocation3 + $0xb0] sm:$0xff] %vm577, %v3008
      %3045 = vst.msk [vmem:[#allocation3 + $0xb8] sm:$0xff] %vm577, %v3009
      %3046 = vst.msk [vmem:[#allocation3 + $0xc0] sm:$0xff] %vm577, %v3010
      %3047 = vst.msk [vmem:[#allocation3 + $0xc8] sm:$0xff] %vm577, %v3011
      %3048 = vst.msk [vmem:[#allocation3 + $0xd0] sm:$0xff] %vm577, %v3012
      %3049 = vst.msk [vmem:[#allocation3 + $0xd8] sm:$0xff] %vm577, %v3013
      %3050 = vst.msk [vmem:[#allocation3 + $0xe0] sm:$0xff] %vm577, %v3014
      %3051 = vst.msk [vmem:[#allocation3 + $0xe8] sm:$0xff] %vm577, %v3015
      %3052 = vst.msk [vmem:[#allocation3 + $0xf0] sm:$0xff] %vm577, %v3016
      %3053 = vst.msk [vmem:[#allocation3 + $0xf8] sm:$0xff] %vm577, %v3017
      %3054 = vst.msk [vmem:[#allocation3 + $0x100] sm:$0xff] %vm577, %v3018
      %3055 = vst.msk [vmem:[#allocation3 + $0x108] sm:$0xff] %vm577, %v3019
      %3056 = vst.msk [vmem:[#allocation3 + $0x110] sm:$0xff] %vm577, %v3020
      %3057 = vst.msk [vmem:[#allocation3 + $0x118] sm:$0xff] %vm577, %v3021
      %v3058 = vld [vmem:[%s671] sm:$0xff]
      %v3059 = vld [vmem:[%s671 + $0x8] sm:$0xff]
      %v3060 = vld [vmem:[%s671 + $0x18] sm:$0xff]
      %v3061 = vld [vmem:[%s671 + $0x20] sm:$0xff]
      %v3062 = vld [vmem:[%s671 + $0x30] sm:$0xff]
      %v3063 = vld [vmem:[%s671 + $0x38] sm:$0xff]
      %v3064 = vld [vmem:[%s671 + $0x48] sm:$0xff]
      %v3065 = vld [vmem:[%s671 + $0x50] sm:$0xff]
      %v3066 = vld [vmem:[%s671 + $0x60] sm:$0xff]
      %v3067 = vld [vmem:[%s671 + $0x68] sm:$0xff]
      %v3068 = vld [vmem:[%s671 + $0x78] sm:$0xff]
      %v3069 = vld [vmem:[%s671 + $0x80] sm:$0xff]
      %v3070 = vld [vmem:[%s671 + $0x90] sm:$0xff]
      %v3071 = vld [vmem:[%s671 + $0x98] sm:$0xff]
      %v3072 = vld [vmem:[%s671 + $0xa8] sm:$0xff]
      %v3073 = vld [vmem:[%s671 + $0xb0] sm:$0xff]
      %v3074 = vld [vmem:[%s671 + $0xc0] sm:$0xff]
      %v3075 = vld [vmem:[%s671 + $0xc8] sm:$0xff]
      %v3076 = vld [vmem:[%s671 + $0xd8] sm:$0xff]
      %v3077 = vld [vmem:[%s671 + $0xe0] sm:$0xff]
      %v3078 = vld [vmem:[%s671 + $0xf0] sm:$0xff]
      %v3079 = vld [vmem:[%s671 + $0xf8] sm:$0xff]
      %v3080 = vld [vmem:[%s671 + $0x108] sm:$0xff]
      %v3081 = vld [vmem:[%s671 + $0x110] sm:$0xff]
      %v3082 = vld [vmem:[%s671 + $0x120] sm:$0xff]
      %v3083 = vld [vmem:[%s671 + $0x128] sm:$0xff]
      %v3084 = vld [vmem:[%s671 + $0x138] sm:$0xff]
      %v3085 = vld [vmem:[%s671 + $0x140] sm:$0xff]
      %v3086 = vld [vmem:[%s671 + $0x150] sm:$0xff]
      %v3087 = vld [vmem:[%s671 + $0x158] sm:$0xff]
      %v3088 = vld [vmem:[%s671 + $0x168] sm:$0xff]
      %v3089 = vld [vmem:[%s671 + $0x170] sm:$0xff]
      %v3090 = vld [vmem:[%s671 + $0x180] sm:$0xff]
      %v3091 = vld [vmem:[%s671 + $0x188] sm:$0xff]
      %v3092 = vld [vmem:[%s671 + $0x198] sm:$0xff]
      %v3093 = vld [vmem:[%s671 + $0x1a0] sm:$0xff]
      %v3094 = vld [vmem:[#allocation3] sm:$0xff]
      %v3095 = vld [vmem:[#allocation3 + $0x8] sm:$0xff]
      %v3096 = vld [vmem:[#allocation3 + $0x10] sm:$0xff]
      %v3097 = vld [vmem:[#allocation3 + $0x18] sm:$0xff]
      %v3098 = vld [vmem:[#allocation3 + $0x20] sm:$0xff]
      %v3099 = vld [vmem:[#allocation3 + $0x28] sm:$0xff]
      %v3100 = vld [vmem:[#allocation3 + $0x30] sm:$0xff]
      %v3101 = vld [vmem:[#allocation3 + $0x38] sm:$0xff]
      %v3102 = vld [vmem:[#allocation3 + $0x40] sm:$0xff]
      %v3103 = vld [vmem:[#allocation3 + $0x48] sm:$0xff]
      %v3104 = vld [vmem:[#allocation3 + $0x50] sm:$0xff]
      %v3105 = vld [vmem:[#allocation3 + $0x58] sm:$0xff]
      %v3106 = vld [vmem:[#allocation3 + $0x60] sm:$0xff]
      %v3107 = vld [vmem:[#allocation3 + $0x68] sm:$0xff]
      %v3108 = vld [vmem:[#allocation3 + $0x70] sm:$0xff]
      %v3109 = vld [vmem:[#allocation3 + $0x78] sm:$0xff]
      %v3110 = vld [vmem:[#allocation3 + $0x80] sm:$0xff]
      %v3111 = vld [vmem:[#allocation3 + $0x88] sm:$0xff]
      %v3112 = vld [vmem:[#allocation3 + $0x90] sm:$0xff]
      %v3113 = vld [vmem:[#allocation3 + $0x98] sm:$0xff]
      %v3114 = vld [vmem:[#allocation3 + $0xa0] sm:$0xff]
      %v3115 = vld [vmem:[#allocation3 + $0xa8] sm:$0xff]
      %v3116 = vld [vmem:[#allocation3 + $0xb0] sm:$0xff]
      %v3117 = vld [vmem:[#allocation3 + $0xb8] sm:$0xff]
      %v3118 = vld [vmem:[#allocation3 + $0xc0] sm:$0xff]
      %v3119 = vld [vmem:[#allocation3 + $0xc8] sm:$0xff]
      %v3120 = vld [vmem:[#allocation3 + $0xd0] sm:$0xff]
      %v3121 = vld [vmem:[#allocation3 + $0xd8] sm:$0xff]
      %v3122 = vld [vmem:[#allocation3 + $0xe0] sm:$0xff]
      %v3123 = vld [vmem:[#allocation3 + $0xe8] sm:$0xff]
      %v3124 = vld [vmem:[#allocation3 + $0xf0] sm:$0xff]
      %v3125 = vld [vmem:[#allocation3 + $0xf8] sm:$0xff]
      %v3126 = vld [vmem:[#allocation3 + $0x100] sm:$0xff]
      %v3127 = vld [vmem:[#allocation3 + $0x108] sm:$0xff]
      %v3128 = vld [vmem:[#allocation3 + $0x110] sm:$0xff]
      %v3129 = vld [vmem:[#allocation3 + $0x118] sm:$0xff]
      %s3130 = scalar_lea.vmem %s3, 24
      %v3131 = vld [vmem:[%s3130] sm:$0xf]
      %v3133 = vsel %vm577, %v3058, 0
      %v3136 = vsel %vm577, %v3059, 0
      %v3139 = vsel %vm577, %v3060, 0
      %v3142 = vsel %vm577, %v3061, 0
      %v3145 = vsel %vm577, %v3062, 0
      %v3148 = vsel %vm577, %v3063, 0
      %v3151 = vsel %vm577, %v3064, 0
      %v3154 = vsel %vm577, %v3065, 0
      %v3157 = vsel %vm577, %v3066, 0
      %v3160 = vsel %vm577, %v3067, 0
      %v3163 = vsel %vm577, %v3068, 0
      %v3166 = vsel %vm577, %v3069, 0
      %v3169 = vsel %vm577, %v3070, 0
      %v3172 = vsel %vm577, %v3071, 0
      %v3175 = vsel %vm577, %v3072, 0
      %v3178 = vsel %vm577, %v3073, 0
      %v3181 = vsel %vm577, %v3074, 0
      %v3184 = vsel %vm577, %v3075, 0
      %v3187 = vsel %vm577, %v3076, 0
      %v3190 = vsel %vm577, %v3077, 0
      %v3193 = vsel %vm577, %v3078, 0
      %v3196 = vsel %vm577, %v3079, 0
      %v3199 = vsel %vm577, %v3080, 0
      %v3202 = vsel %vm577, %v3081, 0
      %v3205 = vsel %vm577, %v3082, 0
      %v3208 = vsel %vm577, %v3083, 0
      %v3211 = vsel %vm577, %v3084, 0
      %v3214 = vsel %vm577, %v3085, 0
      %v3217 = vsel %vm577, %v3086, 0
      %v3220 = vsel %vm577, %v3087, 0
      %v3223 = vsel %vm577, %v3088, 0
      %v3226 = vsel %vm577, %v3089, 0
      %v3229 = vsel %vm577, %v3090, 0
      %v3232 = vsel %vm577, %v3091, 0
      %v3235 = vsel %vm577, %v3092, 0
      %v3238 = vsel %vm577, %v3093, 0
      %v3241 = vsel %vm946, %v3131, 0
      %3243 = vmatpush.msra.mxu0 0.0
      %3244 = vmatpush.msra.mxu0 0.0
      %3245 = vmatpush.msra.mxu0 0.0
      %3246 = vmatpush.msra.mxu0 0.0
      %3247 = vmatpush.msra.mxu0 0.0
      %3248 = vmatpush.msra.mxu0 0.0
      %3249 = vmatpush.msra.mxu0 0.0
      %3250 = vmatpush.msra.mxu0 0.0
      %3251 = vmatpush.msra.mxu0 0.0
      %3252 = vmatpush.msra.mxu0 0.0
      %3253 = vmatpush.msra.mxu0 0.0
      %3254 = vmatpush.msra.mxu0 0.0
      %3255 = vmatpush.msra.mxu0 0.0
      %3256 = vmatpush.msra.mxu0 0.0
      %3257 = vmatpush.msra.mxu0 0.0
      %3258 = vmatpush.msra.mxu0 %v3241
      %3259 = vmatmul.f32.gmra.mxu0 %v3133
      %v3260 = vpop.f32.mrf.mxu0
      %v3261 = vadd.f32 0.0, %v3260
      %3262 = vmatmul.f32.gmra.mxu0 %v3136
      %v3263 = vpop.f32.mrf.mxu0
      %v3264 = vadd.f32 0.0, %v3263
      %3265 = vmatmul.f32.gmra.mxu0 %v3139
      %v3266 = vpop.f32.mrf.mxu0
      %v3267 = vadd.f32 0.0, %v3266
      %3268 = vmatmul.f32.gmra.mxu0 %v3142
      %v3269 = vpop.f32.mrf.mxu0
      %v3270 = vadd.f32 0.0, %v3269
      %3271 = vmatmul.f32.gmra.mxu0 %v3145
      %v3272 = vpop.f32.mrf.mxu0
      %v3273 = vadd.f32 0.0, %v3272
      %3274 = vmatmul.f32.gmra.mxu0 %v3148
      %v3275 = vpop.f32.mrf.mxu0
      %v3276 = vadd.f32 0.0, %v3275
      %3277 = vmatmul.f32.gmra.mxu0 %v3151
      %v3278 = vpop.f32.mrf.mxu0
      %v3279 = vadd.f32 0.0, %v3278
      %3280 = vmatmul.f32.gmra.mxu0 %v3154
      %v3281 = vpop.f32.mrf.mxu0
      %v3282 = vadd.f32 0.0, %v3281
      %3283 = vmatmul.f32.gmra.mxu0 %v3157
      %v3284 = vpop.f32.mrf.mxu0
      %v3285 = vadd.f32 0.0, %v3284
      %3286 = vmatmul.f32.gmra.mxu0 %v3160
      %v3287 = vpop.f32.mrf.mxu0
      %v3288 = vadd.f32 0.0, %v3287
      %3289 = vmatmul.f32.gmra.mxu0 %v3163
      %v3290 = vpop.f32.mrf.mxu0
      %v3291 = vadd.f32 0.0, %v3290
      %3292 = vmatmul.f32.gmra.mxu0 %v3166
      %v3293 = vpop.f32.mrf.mxu0
      %v3294 = vadd.f32 0.0, %v3293
      %3295 = vmatmul.f32.gmra.mxu0 %v3169
      %v3296 = vpop.f32.mrf.mxu0
      %v3297 = vadd.f32 0.0, %v3296
      %3298 = vmatmul.f32.gmra.mxu0 %v3172
      %v3299 = vpop.f32.mrf.mxu0
      %v3300 = vadd.f32 0.0, %v3299
      %3301 = vmatmul.f32.gmra.mxu0 %v3175
      %v3302 = vpop.f32.mrf.mxu0
      %v3303 = vadd.f32 0.0, %v3302
      %3304 = vmatmul.f32.gmra.mxu0 %v3178
      %v3305 = vpop.f32.mrf.mxu0
      %v3306 = vadd.f32 0.0, %v3305
      %3307 = vmatmul.f32.gmra.mxu0 %v3181
      %v3308 = vpop.f32.mrf.mxu0
      %v3309 = vadd.f32 0.0, %v3308
      %3310 = vmatmul.f32.gmra.mxu0 %v3184
      %v3311 = vpop.f32.mrf.mxu0
      %v3312 = vadd.f32 0.0, %v3311
      %3313 = vmatmul.f32.gmra.mxu0 %v3187
      %v3314 = vpop.f32.mrf.mxu0
      %v3315 = vadd.f32 0.0, %v3314
      %3316 = vmatmul.f32.gmra.mxu0 %v3190
      %v3317 = vpop.f32.mrf.mxu0
      %v3318 = vadd.f32 0.0, %v3317
      %3319 = vmatmul.f32.gmra.mxu0 %v3193
      %v3320 = vpop.f32.mrf.mxu0
      %v3321 = vadd.f32 0.0, %v3320
      %3322 = vmatmul.f32.gmra.mxu0 %v3196
      %v3323 = vpop.f32.mrf.mxu0
      %v3324 = vadd.f32 0.0, %v3323
      %3325 = vmatmul.f32.gmra.mxu0 %v3199
      %v3326 = vpop.f32.mrf.mxu0
      %v3327 = vadd.f32 0.0, %v3326
      %3328 = vmatmul.f32.gmra.mxu0 %v3202
      %v3329 = vpop.f32.mrf.mxu0
      %v3330 = vadd.f32 0.0, %v3329
      %3331 = vmatmul.f32.gmra.mxu0 %v3205
      %v3332 = vpop.f32.mrf.mxu0
      %v3333 = vadd.f32 0.0, %v3332
      %3334 = vmatmul.f32.gmra.mxu0 %v3208
      %v3335 = vpop.f32.mrf.mxu0
      %v3336 = vadd.f32 0.0, %v3335
      %3337 = vmatmul.f32.gmra.mxu0 %v3211
      %v3338 = vpop.f32.mrf.mxu0
      %v3339 = vadd.f32 0.0, %v3338
      %3340 = vmatmul.f32.gmra.mxu0 %v3214
      %v3341 = vpop.f32.mrf.mxu0
      %v3342 = vadd.f32 0.0, %v3341
      %3343 = vmatmul.f32.gmra.mxu0 %v3217
      %v3344 = vpop.f32.mrf.mxu0
      %v3345 = vadd.f32 0.0, %v3344
      %3346 = vmatmul.f32.gmra.mxu0 %v3220
      %v3347 = vpop.f32.mrf.mxu0
      %v3348 = vadd.f32 0.0, %v3347
      %3349 = vmatmul.f32.gmra.mxu0 %v3223
      %v3350 = vpop.f32.mrf.mxu0
      %v3351 = vadd.f32 0.0, %v3350
      %3352 = vmatmul.f32.gmra.mxu0 %v3226
      %v3353 = vpop.f32.mrf.mxu0
      %v3354 = vadd.f32 0.0, %v3353
      %3355 = vmatmul.f32.gmra.mxu0 %v3229
      %v3356 = vpop.f32.mrf.mxu0
      %v3357 = vadd.f32 0.0, %v3356
      %3358 = vmatmul.f32.gmra.mxu0 %v3232
      %v3359 = vpop.f32.mrf.mxu0
      %v3360 = vadd.f32 0.0, %v3359
      %3361 = vmatmul.f32.gmra.mxu0 %v3235
      %v3362 = vpop.f32.mrf.mxu0
      %v3363 = vadd.f32 0.0, %v3362
      %3364 = vmatmul.f32.gmra.mxu0 %v3238
      %v3365 = vpop.f32.mrf.mxu0
      %v3366 = vadd.f32 0.0, %v3365
      %3367 = vdwg.mxu0
      %v3368 = vadd.f32 %v3094, %v3261
      %v3369 = vadd.f32 %v3095, %v3264
      %v3370 = vadd.f32 %v3096, %v3267
      %v3371 = vadd.f32 %v3097, %v3270
      %v3372 = vadd.f32 %v3098, %v3273
      %v3373 = vadd.f32 %v3099, %v3276
      %v3374 = vadd.f32 %v3100, %v3279
      %v3375 = vadd.f32 %v3101, %v3282
      %v3376 = vadd.f32 %v3102, %v3285
      %v3377 = vadd.f32 %v3103, %v3288
      %v3378 = vadd.f32 %v3104, %v3291
      %v3379 = vadd.f32 %v3105, %v3294
      %v3380 = vadd.f32 %v3106, %v3297
      %v3381 = vadd.f32 %v3107, %v3300
      %v3382 = vadd.f32 %v3108, %v3303
      %v3383 = vadd.f32 %v3109, %v3306
      %v3384 = vadd.f32 %v3110, %v3309
      %v3385 = vadd.f32 %v3111, %v3312
      %v3386 = vadd.f32 %v3112, %v3315
      %v3387 = vadd.f32 %v3113, %v3318
      %v3388 = vadd.f32 %v3114, %v3321
      %v3389 = vadd.f32 %v3115, %v3324
      %v3390 = vadd.f32 %v3116, %v3327
      %v3391 = vadd.f32 %v3117, %v3330
      %v3392 = vadd.f32 %v3118, %v3333
      %v3393 = vadd.f32 %v3119, %v3336
      %v3394 = vadd.f32 %v3120, %v3339
      %v3395 = vadd.f32 %v3121, %v3342
      %v3396 = vadd.f32 %v3122, %v3345
      %v3397 = vadd.f32 %v3123, %v3348
      %v3398 = vadd.f32 %v3124, %v3351
      %v3399 = vadd.f32 %v3125, %v3354
      %v3400 = vadd.f32 %v3126, %v3357
      %v3401 = vadd.f32 %v3127, %v3360
      %v3402 = vadd.f32 %v3128, %v3363
      %v3403 = vadd.f32 %v3129, %v3366
      %3404 = vst.msk [vmem:[#allocation3] sm:$0xff] %vm577, %v3368
      %3405 = vst.msk [vmem:[#allocation3 + $0x8] sm:$0xff] %vm577, %v3369
      %3406 = vst.msk [vmem:[#allocation3 + $0x10] sm:$0xff] %vm577, %v3370
      %3407 = vst.msk [vmem:[#allocation3 + $0x18] sm:$0xff] %vm577, %v3371
      %3408 = vst.msk [vmem:[#allocation3 + $0x20] sm:$0xff] %vm577, %v3372
      %3409 = vst.msk [vmem:[#allocation3 + $0x28] sm:$0xff] %vm577, %v3373
      %3410 = vst.msk [vmem:[#allocation3 + $0x30] sm:$0xff] %vm577, %v3374
      %3411 = vst.msk [vmem:[#allocation3 + $0x38] sm:$0xff] %vm577, %v3375
      %3412 = vst.msk [vmem:[#allocation3 + $0x40] sm:$0xff] %vm577, %v3376
      %3413 = vst.msk [vmem:[#allocation3 + $0x48] sm:$0xff] %vm577, %v3377
      %3414 = vst.msk [vmem:[#allocation3 + $0x50] sm:$0xff] %vm577, %v3378
      %3415 = vst.msk [vmem:[#allocation3 + $0x58] sm:$0xff] %vm577, %v3379
      %3416 = vst.msk [vmem:[#allocation3 + $0x60] sm:$0xff] %vm577, %v3380
      %3417 = vst.msk [vmem:[#allocation3 + $0x68] sm:$0xff] %vm577, %v3381
      %3418 = vst.msk [vmem:[#allocation3 + $0x70] sm:$0xff] %vm577, %v3382
      %3419 = vst.msk [vmem:[#allocation3 + $0x78] sm:$0xff] %vm577, %v3383
      %3420 = vst.msk [vmem:[#allocation3 + $0x80] sm:$0xff] %vm577, %v3384
      %3421 = vst.msk [vmem:[#allocation3 + $0x88] sm:$0xff] %vm577, %v3385
      %3422 = vst.msk [vmem:[#allocation3 + $0x90] sm:$0xff] %vm577, %v3386
      %3423 = vst.msk [vmem:[#allocation3 + $0x98] sm:$0xff] %vm577, %v3387
      %3424 = vst.msk [vmem:[#allocation3 + $0xa0] sm:$0xff] %vm577, %v3388
      %3425 = vst.msk [vmem:[#allocation3 + $0xa8] sm:$0xff] %vm577, %v3389
      %3426 = vst.msk [vmem:[#allocation3 + $0xb0] sm:$0xff] %vm577, %v3390
      %3427 = vst.msk [vmem:[#allocation3 + $0xb8] sm:$0xff] %vm577, %v3391
      %3428 = vst.msk [vmem:[#allocation3 + $0xc0] sm:$0xff] %vm577, %v3392
      %3429 = vst.msk [vmem:[#allocation3 + $0xc8] sm:$0xff] %vm577, %v3393
      %3430 = vst.msk [vmem:[#allocation3 + $0xd0] sm:$0xff] %vm577, %v3394
      %3431 = vst.msk [vmem:[#allocation3 + $0xd8] sm:$0xff] %vm577, %v3395
      %3432 = vst.msk [vmem:[#allocation3 + $0xe0] sm:$0xff] %vm577, %v3396
      %3433 = vst.msk [vmem:[#allocation3 + $0xe8] sm:$0xff] %vm577, %v3397
      %3434 = vst.msk [vmem:[#allocation3 + $0xf0] sm:$0xff] %vm577, %v3398
      %3435 = vst.msk [vmem:[#allocation3 + $0xf8] sm:$0xff] %vm577, %v3399
      %3436 = vst.msk [vmem:[#allocation3 + $0x100] sm:$0xff] %vm577, %v3400
      %3437 = vst.msk [vmem:[#allocation3 + $0x108] sm:$0xff] %vm577, %v3401
      %3438 = vst.msk [vmem:[#allocation3 + $0x110] sm:$0xff] %vm577, %v3402
      %3439 = vst.msk [vmem:[#allocation3 + $0x118] sm:$0xff] %vm577, %v3403
      %v3440 = vld [vmem:[%s671 + $0x1] sm:$0xff]
      %v3441 = vld [vmem:[%s671 + $0x9] sm:$0xff]
      %v3442 = vld [vmem:[%s671 + $0x19] sm:$0xff]
      %v3443 = vld [vmem:[%s671 + $0x21] sm:$0xff]
      %v3444 = vld [vmem:[%s671 + $0x31] sm:$0xff]
      %v3445 = vld [vmem:[%s671 + $0x39] sm:$0xff]
      %v3446 = vld [vmem:[%s671 + $0x49] sm:$0xff]
      %v3447 = vld [vmem:[%s671 + $0x51] sm:$0xff]
      %v3448 = vld [vmem:[%s671 + $0x61] sm:$0xff]
      %v3449 = vld [vmem:[%s671 + $0x69] sm:$0xff]
      %v3450 = vld [vmem:[%s671 + $0x79] sm:$0xff]
      %v3451 = vld [vmem:[%s671 + $0x81] sm:$0xff]
      %v3452 = vld [vmem:[%s671 + $0x91] sm:$0xff]
      %v3453 = vld [vmem:[%s671 + $0x99] sm:$0xff]
      %v3454 = vld [vmem:[%s671 + $0xa9] sm:$0xff]
      %v3455 = vld [vmem:[%s671 + $0xb1] sm:$0xff]
      %v3456 = vld [vmem:[%s671 + $0xc1] sm:$0xff]
      %v3457 = vld [vmem:[%s671 + $0xc9] sm:$0xff]
      %v3458 = vld [vmem:[%s671 + $0xd9] sm:$0xff]
      %v3459 = vld [vmem:[%s671 + $0xe1] sm:$0xff]
      %v3460 = vld [vmem:[%s671 + $0xf1] sm:$0xff]
      %v3461 = vld [vmem:[%s671 + $0xf9] sm:$0xff]
      %v3462 = vld [vmem:[%s671 + $0x109] sm:$0xff]
      %v3463 = vld [vmem:[%s671 + $0x111] sm:$0xff]
      %v3464 = vld [vmem:[%s671 + $0x121] sm:$0xff]
      %v3465 = vld [vmem:[%s671 + $0x129] sm:$0xff]
      %v3466 = vld [vmem:[%s671 + $0x139] sm:$0xff]
      %v3467 = vld [vmem:[%s671 + $0x141] sm:$0xff]
      %v3468 = vld [vmem:[%s671 + $0x151] sm:$0xff]
      %v3469 = vld [vmem:[%s671 + $0x159] sm:$0xff]
      %v3470 = vld [vmem:[%s671 + $0x169] sm:$0xff]
      %v3471 = vld [vmem:[%s671 + $0x171] sm:$0xff]
      %v3472 = vld [vmem:[%s671 + $0x181] sm:$0xff]
      %v3473 = vld [vmem:[%s671 + $0x189] sm:$0xff]
      %v3474 = vld [vmem:[%s671 + $0x199] sm:$0xff]
      %v3475 = vld [vmem:[%s671 + $0x1a1] sm:$0xff]
      %v3476 = vld [vmem:[#allocation3] sm:$0xff]
      %v3477 = vld [vmem:[#allocation3 + $0x8] sm:$0xff]
      %v3478 = vld [vmem:[#allocation3 + $0x10] sm:$0xff]
      %v3479 = vld [vmem:[#allocation3 + $0x18] sm:$0xff]
      %v3480 = vld [vmem:[#allocation3 + $0x20] sm:$0xff]
      %v3481 = vld [vmem:[#allocation3 + $0x28] sm:$0xff]
      %v3482 = vld [vmem:[#allocation3 + $0x30] sm:$0xff]
      %v3483 = vld [vmem:[#allocation3 + $0x38] sm:$0xff]
      %v3484 = vld [vmem:[#allocation3 + $0x40] sm:$0xff]
      %v3485 = vld [vmem:[#allocation3 + $0x48] sm:$0xff]
      %v3486 = vld [vmem:[#allocation3 + $0x50] sm:$0xff]
      %v3487 = vld [vmem:[#allocation3 + $0x58] sm:$0xff]
      %v3488 = vld [vmem:[#allocation3 + $0x60] sm:$0xff]
      %v3489 = vld [vmem:[#allocation3 + $0x68] sm:$0xff]
      %v3490 = vld [vmem:[#allocation3 + $0x70] sm:$0xff]
      %v3491 = vld [vmem:[#allocation3 + $0x78] sm:$0xff]
      %v3492 = vld [vmem:[#allocation3 + $0x80] sm:$0xff]
      %v3493 = vld [vmem:[#allocation3 + $0x88] sm:$0xff]
      %v3494 = vld [vmem:[#allocation3 + $0x90] sm:$0xff]
      %v3495 = vld [vmem:[#allocation3 + $0x98] sm:$0xff]
      %v3496 = vld [vmem:[#allocation3 + $0xa0] sm:$0xff]
      %v3497 = vld [vmem:[#allocation3 + $0xa8] sm:$0xff]
      %v3498 = vld [vmem:[#allocation3 + $0xb0] sm:$0xff]
      %v3499 = vld [vmem:[#allocation3 + $0xb8] sm:$0xff]
      %v3500 = vld [vmem:[#allocation3 + $0xc0] sm:$0xff]
      %v3501 = vld [vmem:[#allocation3 + $0xc8] sm:$0xff]
      %v3502 = vld [vmem:[#allocation3 + $0xd0] sm:$0xff]
      %v3503 = vld [vmem:[#allocation3 + $0xd8] sm:$0xff]
      %v3504 = vld [vmem:[#allocation3 + $0xe0] sm:$0xff]
      %v3505 = vld [vmem:[#allocation3 + $0xe8] sm:$0xff]
      %v3506 = vld [vmem:[#allocation3 + $0xf0] sm:$0xff]
      %v3507 = vld [vmem:[#allocation3 + $0xf8] sm:$0xff]
      %v3508 = vld [vmem:[#allocation3 + $0x100] sm:$0xff]
      %v3509 = vld [vmem:[#allocation3 + $0x108] sm:$0xff]
      %v3510 = vld [vmem:[#allocation3 + $0x110] sm:$0xff]
      %v3511 = vld [vmem:[#allocation3 + $0x118] sm:$0xff]
      %s3512 = scalar_lea.vmem %s3, 28
      %v3513 = vld [vmem:[%s3512] sm:$0xf]
      %v3515 = vsel %vm577, %v3440, 0
      %v3518 = vsel %vm577, %v3441, 0
      %v3521 = vsel %vm577, %v3442, 0
      %v3524 = vsel %vm577, %v3443, 0
      %v3527 = vsel %vm577, %v3444, 0
      %v3530 = vsel %vm577, %v3445, 0
      %v3533 = vsel %vm577, %v3446, 0
      %v3536 = vsel %vm577, %v3447, 0
      %v3539 = vsel %vm577, %v3448, 0
      %v3542 = vsel %vm577, %v3449, 0
      %v3545 = vsel %vm577, %v3450, 0
      %v3548 = vsel %vm577, %v3451, 0
      %v3551 = vsel %vm577, %v3452, 0
      %v3554 = vsel %vm577, %v3453, 0
      %v3557 = vsel %vm577, %v3454, 0
      %v3560 = vsel %vm577, %v3455, 0
      %v3563 = vsel %vm577, %v3456, 0
      %v3566 = vsel %vm577, %v3457, 0
      %v3569 = vsel %vm577, %v3458, 0
      %v3572 = vsel %vm577, %v3459, 0
      %v3575 = vsel %vm577, %v3460, 0
      %v3578 = vsel %vm577, %v3461, 0
      %v3581 = vsel %vm577, %v3462, 0
      %v3584 = vsel %vm577, %v3463, 0
      %v3587 = vsel %vm577, %v3464, 0
      %v3590 = vsel %vm577, %v3465, 0
      %v3593 = vsel %vm577, %v3466, 0
      %v3596 = vsel %vm577, %v3467, 0
      %v3599 = vsel %vm577, %v3468, 0
      %v3602 = vsel %vm577, %v3469, 0
      %v3605 = vsel %vm577, %v3470, 0
      %v3608 = vsel %vm577, %v3471, 0
      %v3611 = vsel %vm577, %v3472, 0
      %v3614 = vsel %vm577, %v3473, 0
      %v3617 = vsel %vm577, %v3474, 0
      %v3620 = vsel %vm577, %v3475, 0
      %v3623 = vsel %vm946, %v3513, 0
      %3625 = vmatpush.msra.mxu0 0.0
      %3626 = vmatpush.msra.mxu0 0.0
      %3627 = vmatpush.msra.mxu0 0.0
      %3628 = vmatpush.msra.mxu0 0.0
      %3629 = vmatpush.msra.mxu0 0.0
      %3630 = vmatpush.msra.mxu0 0.0
      %3631 = vmatpush.msra.mxu0 0.0
      %3632 = vmatpush.msra.mxu0 0.0
      %3633 = vmatpush.msra.mxu0 0.0
      %3634 = vmatpush.msra.mxu0 0.0
      %3635 = vmatpush.msra.mxu0 0.0
      %3636 = vmatpush.msra.mxu0 0.0
      %3637 = vmatpush.msra.mxu0 0.0
      %3638 = vmatpush.msra.mxu0 0.0
      %3639 = vmatpush.msra.mxu0 0.0
      %3640 = vmatpush.msra.mxu0 %v3623
      %3641 = vmatmul.f32.gmra.mxu0 %v3515
      %v3642 = vpop.f32.mrf.mxu0
      %v3643 = vadd.f32 0.0, %v3642
      %3644 = vmatmul.f32.gmra.mxu0 %v3518
      %v3645 = vpop.f32.mrf.mxu0
      %v3646 = vadd.f32 0.0, %v3645
      %3647 = vmatmul.f32.gmra.mxu0 %v3521
      %v3648 = vpop.f32.mrf.mxu0
      %v3649 = vadd.f32 0.0, %v3648
      %3650 = vmatmul.f32.gmra.mxu0 %v3524
      %v3651 = vpop.f32.mrf.mxu0
      %v3652 = vadd.f32 0.0, %v3651
      %3653 = vmatmul.f32.gmra.mxu0 %v3527
      %v3654 = vpop.f32.mrf.mxu0
      %v3655 = vadd.f32 0.0, %v3654
      %3656 = vmatmul.f32.gmra.mxu0 %v3530
      %v3657 = vpop.f32.mrf.mxu0
      %v3658 = vadd.f32 0.0, %v3657
      %3659 = vmatmul.f32.gmra.mxu0 %v3533
      %v3660 = vpop.f32.mrf.mxu0
      %v3661 = vadd.f32 0.0, %v3660
      %3662 = vmatmul.f32.gmra.mxu0 %v3536
      %v3663 = vpop.f32.mrf.mxu0
      %v3664 = vadd.f32 0.0, %v3663
      %3665 = vmatmul.f32.gmra.mxu0 %v3539
      %v3666 = vpop.f32.mrf.mxu0
      %v3667 = vadd.f32 0.0, %v3666
      %3668 = vmatmul.f32.gmra.mxu0 %v3542
      %v3669 = vpop.f32.mrf.mxu0
      %v3670 = vadd.f32 0.0, %v3669
      %3671 = vmatmul.f32.gmra.mxu0 %v3545
      %v3672 = vpop.f32.mrf.mxu0
      %v3673 = vadd.f32 0.0, %v3672
      %3674 = vmatmul.f32.gmra.mxu0 %v3548
      %v3675 = vpop.f32.mrf.mxu0
      %v3676 = vadd.f32 0.0, %v3675
      %3677 = vmatmul.f32.gmra.mxu0 %v3551
      %v3678 = vpop.f32.mrf.mxu0
      %v3679 = vadd.f32 0.0, %v3678
      %3680 = vmatmul.f32.gmra.mxu0 %v3554
      %v3681 = vpop.f32.mrf.mxu0
      %v3682 = vadd.f32 0.0, %v3681
      %3683 = vmatmul.f32.gmra.mxu0 %v3557
      %v3684 = vpop.f32.mrf.mxu0
      %v3685 = vadd.f32 0.0, %v3684
      %3686 = vmatmul.f32.gmra.mxu0 %v3560
      %v3687 = vpop.f32.mrf.mxu0
      %v3688 = vadd.f32 0.0, %v3687
      %3689 = vmatmul.f32.gmra.mxu0 %v3563
      %v3690 = vpop.f32.mrf.mxu0
      %v3691 = vadd.f32 0.0, %v3690
      %3692 = vmatmul.f32.gmra.mxu0 %v3566
      %v3693 = vpop.f32.mrf.mxu0
      %v3694 = vadd.f32 0.0, %v3693
      %3695 = vmatmul.f32.gmra.mxu0 %v3569
      %v3696 = vpop.f32.mrf.mxu0
      %v3697 = vadd.f32 0.0, %v3696
      %3698 = vmatmul.f32.gmra.mxu0 %v3572
      %v3699 = vpop.f32.mrf.mxu0
      %v3700 = vadd.f32 0.0, %v3699
      %3701 = vmatmul.f32.gmra.mxu0 %v3575
      %v3702 = vpop.f32.mrf.mxu0
      %v3703 = vadd.f32 0.0, %v3702
      %3704 = vmatmul.f32.gmra.mxu0 %v3578
      %v3705 = vpop.f32.mrf.mxu0
      %v3706 = vadd.f32 0.0, %v3705
      %3707 = vmatmul.f32.gmra.mxu0 %v3581
      %v3708 = vpop.f32.mrf.mxu0
      %v3709 = vadd.f32 0.0, %v3708
      %3710 = vmatmul.f32.gmra.mxu0 %v3584
      %v3711 = vpop.f32.mrf.mxu0
      %v3712 = vadd.f32 0.0, %v3711
      %3713 = vmatmul.f32.gmra.mxu0 %v3587
      %v3714 = vpop.f32.mrf.mxu0
      %v3715 = vadd.f32 0.0, %v3714
      %3716 = vmatmul.f32.gmra.mxu0 %v3590
      %v3717 = vpop.f32.mrf.mxu0
      %v3718 = vadd.f32 0.0, %v3717
      %3719 = vmatmul.f32.gmra.mxu0 %v3593
      %v3720 = vpop.f32.mrf.mxu0
      %v3721 = vadd.f32 0.0, %v3720
      %3722 = vmatmul.f32.gmra.mxu0 %v3596
      %v3723 = vpop.f32.mrf.mxu0
      %v3724 = vadd.f32 0.0, %v3723
      %3725 = vmatmul.f32.gmra.mxu0 %v3599
      %v3726 = vpop.f32.mrf.mxu0
      %v3727 = vadd.f32 0.0, %v3726
      %3728 = vmatmul.f32.gmra.mxu0 %v3602
      %v3729 = vpop.f32.mrf.mxu0
      %v3730 = vadd.f32 0.0, %v3729
      %3731 = vmatmul.f32.gmra.mxu0 %v3605
      %v3732 = vpop.f32.mrf.mxu0
      %v3733 = vadd.f32 0.0, %v3732
      %3734 = vmatmul.f32.gmra.mxu0 %v3608
      %v3735 = vpop.f32.mrf.mxu0
      %v3736 = vadd.f32 0.0, %v3735
      %3737 = vmatmul.f32.gmra.mxu0 %v3611
      %v3738 = vpop.f32.mrf.mxu0
      %v3739 = vadd.f32 0.0, %v3738
      %3740 = vmatmul.f32.gmra.mxu0 %v3614
      %v3741 = vpop.f32.mrf.mxu0
      %v3742 = vadd.f32 0.0, %v3741
      %3743 = vmatmul.f32.gmra.mxu0 %v3617
      %v3744 = vpop.f32.mrf.mxu0
      %v3745 = vadd.f32 0.0, %v3744
      %3746 = vmatmul.f32.gmra.mxu0 %v3620
      %v3747 = vpop.f32.mrf.mxu0
      %v3748 = vadd.f32 0.0, %v3747
      %3749 = vdwg.mxu0
      %v3750 = vadd.f32 %v3476, %v3643
      %v3751 = vadd.f32 %v3477, %v3646
      %v3752 = vadd.f32 %v3478, %v3649
      %v3753 = vadd.f32 %v3479, %v3652
      %v3754 = vadd.f32 %v3480, %v3655
      %v3755 = vadd.f32 %v3481, %v3658
      %v3756 = vadd.f32 %v3482, %v3661
      %v3757 = vadd.f32 %v3483, %v3664
      %v3758 = vadd.f32 %v3484, %v3667
      %v3759 = vadd.f32 %v3485, %v3670
      %v3760 = vadd.f32 %v3486, %v3673
      %v3761 = vadd.f32 %v3487, %v3676
      %v3762 = vadd.f32 %v3488, %v3679
      %v3763 = vadd.f32 %v3489, %v3682
      %v3764 = vadd.f32 %v3490, %v3685
      %v3765 = vadd.f32 %v3491, %v3688
      %v3766 = vadd.f32 %v3492, %v3691
      %v3767 = vadd.f32 %v3493, %v3694
      %v3768 = vadd.f32 %v3494, %v3697
      %v3769 = vadd.f32 %v3495, %v3700
      %v3770 = vadd.f32 %v3496, %v3703
      %v3771 = vadd.f32 %v3497, %v3706
      %v3772 = vadd.f32 %v3498, %v3709
      %v3773 = vadd.f32 %v3499, %v3712
      %v3774 = vadd.f32 %v3500, %v3715
      %v3775 = vadd.f32 %v3501, %v3718
      %v3776 = vadd.f32 %v3502, %v3721
      %v3777 = vadd.f32 %v3503, %v3724
      %v3778 = vadd.f32 %v3504, %v3727
      %v3779 = vadd.f32 %v3505, %v3730
      %v3780 = vadd.f32 %v3506, %v3733
      %v3781 = vadd.f32 %v3507, %v3736
      %v3782 = vadd.f32 %v3508, %v3739
      %v3783 = vadd.f32 %v3509, %v3742
      %v3784 = vadd.f32 %v3510, %v3745
      %v3785 = vadd.f32 %v3511, %v3748
      %3786 = vst.msk [vmem:[#allocation3] sm:$0xff] %vm577, %v3750
      %3787 = vst.msk [vmem:[#allocation3 + $0x8] sm:$0xff] %vm577, %v3751
      %3788 = vst.msk [vmem:[#allocation3 + $0x10] sm:$0xff] %vm577, %v3752
      %3789 = vst.msk [vmem:[#allocation3 + $0x18] sm:$0xff] %vm577, %v3753
      %3790 = vst.msk [vmem:[#allocation3 + $0x20] sm:$0xff] %vm577, %v3754
      %3791 = vst.msk [vmem:[#allocation3 + $0x28] sm:$0xff] %vm577, %v3755
      %3792 = vst.msk [vmem:[#allocation3 + $0x30] sm:$0xff] %vm577, %v3756
      %3793 = vst.msk [vmem:[#allocation3 + $0x38] sm:$0xff] %vm577, %v3757
      %3794 = vst.msk [vmem:[#allocation3 + $0x40] sm:$0xff] %vm577, %v3758
      %3795 = vst.msk [vmem:[#allocation3 + $0x48] sm:$0xff] %vm577, %v3759
      %3796 = vst.msk [vmem:[#allocation3 + $0x50] sm:$0xff] %vm577, %v3760
      %3797 = vst.msk [vmem:[#allocation3 + $0x58] sm:$0xff] %vm577, %v3761
      %3798 = vst.msk [vmem:[#allocation3 + $0x60] sm:$0xff] %vm577, %v3762
      %3799 = vst.msk [vmem:[#allocation3 + $0x68] sm:$0xff] %vm577, %v3763
      %3800 = vst.msk [vmem:[#allocation3 + $0x70] sm:$0xff] %vm577, %v3764
      %3801 = vst.msk [vmem:[#allocation3 + $0x78] sm:$0xff] %vm577, %v3765
      %3802 = vst.msk [vmem:[#allocation3 + $0x80] sm:$0xff] %vm577, %v3766
      %3803 = vst.msk [vmem:[#allocation3 + $0x88] sm:$0xff] %vm577, %v3767
      %3804 = vst.msk [vmem:[#allocation3 + $0x90] sm:$0xff] %vm577, %v3768
      %3805 = vst.msk [vmem:[#allocation3 + $0x98] sm:$0xff] %vm577, %v3769
      %3806 = vst.msk [vmem:[#allocation3 + $0xa0] sm:$0xff] %vm577, %v3770
      %3807 = vst.msk [vmem:[#allocation3 + $0xa8] sm:$0xff] %vm577, %v3771
      %3808 = vst.msk [vmem:[#allocation3 + $0xb0] sm:$0xff] %vm577, %v3772
      %3809 = vst.msk [vmem:[#allocation3 + $0xb8] sm:$0xff] %vm577, %v3773
      %3810 = vst.msk [vmem:[#allocation3 + $0xc0] sm:$0xff] %vm577, %v3774
      %3811 = vst.msk [vmem:[#allocation3 + $0xc8] sm:$0xff] %vm577, %v3775
      %3812 = vst.msk [vmem:[#allocation3 + $0xd0] sm:$0xff] %vm577, %v3776
      %3813 = vst.msk [vmem:[#allocation3 + $0xd8] sm:$0xff] %vm577, %v3777
      %3814 = vst.msk [vmem:[#allocation3 + $0xe0] sm:$0xff] %vm577, %v3778
      %3815 = vst.msk [vmem:[#allocation3 + $0xe8] sm:$0xff] %vm577, %v3779
      %3816 = vst.msk [vmem:[#allocation3 + $0xf0] sm:$0xff] %vm577, %v3780
      %3817 = vst.msk [vmem:[#allocation3 + $0xf8] sm:$0xff] %vm577, %v3781
      %3818 = vst.msk [vmem:[#allocation3 + $0x100] sm:$0xff] %vm577, %v3782
      %3819 = vst.msk [vmem:[#allocation3 + $0x108] sm:$0xff] %vm577, %v3783
      %3820 = vst.msk [vmem:[#allocation3 + $0x110] sm:$0xff] %vm577, %v3784
      %3821 = vst.msk [vmem:[#allocation3 + $0x118] sm:$0xff] %vm577, %v3785
      %v3822 = vld [vmem:[%s671 + $0x2] sm:$0xff]
      %v3823 = vld [vmem:[%s671 + $0xa] sm:$0xff]
      %v3824 = vld [vmem:[%s671 + $0x1a] sm:$0xff]
      %v3825 = vld [vmem:[%s671 + $0x22] sm:$0xff]
      %v3826 = vld [vmem:[%s671 + $0x32] sm:$0xff]
      %v3827 = vld [vmem:[%s671 + $0x3a] sm:$0xff]
      %v3828 = vld [vmem:[%s671 + $0x4a] sm:$0xff]
      %v3829 = vld [vmem:[%s671 + $0x52] sm:$0xff]
      %v3830 = vld [vmem:[%s671 + $0x62] sm:$0xff]
      %v3831 = vld [vmem:[%s671 + $0x6a] sm:$0xff]
      %v3832 = vld [vmem:[%s671 + $0x7a] sm:$0xff]
      %v3833 = vld [vmem:[%s671 + $0x82] sm:$0xff]
      %v3834 = vld [vmem:[%s671 + $0x92] sm:$0xff]
      %v3835 = vld [vmem:[%s671 + $0x9a] sm:$0xff]
      %v3836 = vld [vmem:[%s671 + $0xaa] sm:$0xff]
      %v3837 = vld [vmem:[%s671 + $0xb2] sm:$0xff]
      %v3838 = vld [vmem:[%s671 + $0xc2] sm:$0xff]
      %v3839 = vld [vmem:[%s671 + $0xca] sm:$0xff]
      %v3840 = vld [vmem:[%s671 + $0xda] sm:$0xff]
      %v3841 = vld [vmem:[%s671 + $0xe2] sm:$0xff]
      %v3842 = vld [vmem:[%s671 + $0xf2] sm:$0xff]
      %v3843 = vld [vmem:[%s671 + $0xfa] sm:$0xff]
      %v3844 = vld [vmem:[%s671 + $0x10a] sm:$0xff]
      %v3845 = vld [vmem:[%s671 + $0x112] sm:$0xff]
      %v3846 = vld [vmem:[%s671 + $0x122] sm:$0xff]
      %v3847 = vld [vmem:[%s671 + $0x12a] sm:$0xff]
      %v3848 = vld [vmem:[%s671 + $0x13a] sm:$0xff]
      %v3849 = vld [vmem:[%s671 + $0x142] sm:$0xff]
      %v3850 = vld [vmem:[%s671 + $0x152] sm:$0xff]
      %v3851 = vld [vmem:[%s671 + $0x15a] sm:$0xff]
      %v3852 = vld [vmem:[%s671 + $0x16a] sm:$0xff]
      %v3853 = vld [vmem:[%s671 + $0x172] sm:$0xff]
      %v3854 = vld [vmem:[%s671 + $0x182] sm:$0xff]
      %v3855 = vld [vmem:[%s671 + $0x18a] sm:$0xff]
      %v3856 = vld [vmem:[%s671 + $0x19a] sm:$0xff]
      %v3857 = vld [vmem:[%s671 + $0x1a2] sm:$0xff]
      %v3858 = vld [vmem:[#allocation3] sm:$0xff]
      %v3859 = vld [vmem:[#allocation3 + $0x8] sm:$0xff]
      %v3860 = vld [vmem:[#allocation3 + $0x10] sm:$0xff]
      %v3861 = vld [vmem:[#allocation3 + $0x18] sm:$0xff]
      %v3862 = vld [vmem:[#allocation3 + $0x20] sm:$0xff]
      %v3863 = vld [vmem:[#allocation3 + $0x28] sm:$0xff]
      %v3864 = vld [vmem:[#allocation3 + $0x30] sm:$0xff]
      %v3865 = vld [vmem:[#allocation3 + $0x38] sm:$0xff]
      %v3866 = vld [vmem:[#allocation3 + $0x40] sm:$0xff]
      %v3867 = vld [vmem:[#allocation3 + $0x48] sm:$0xff]
      %v3868 = vld [vmem:[#allocation3 + $0x50] sm:$0xff]
      %v3869 = vld [vmem:[#allocation3 + $0x58] sm:$0xff]
      %v3870 = vld [vmem:[#allocation3 + $0x60] sm:$0xff]
      %v3871 = vld [vmem:[#allocation3 + $0x68] sm:$0xff]
      %v3872 = vld [vmem:[#allocation3 + $0x70] sm:$0xff]
      %v3873 = vld [vmem:[#allocation3 + $0x78] sm:$0xff]
      %v3874 = vld [vmem:[#allocation3 + $0x80] sm:$0xff]
      %v3875 = vld [vmem:[#allocation3 + $0x88] sm:$0xff]
      %v3876 = vld [vmem:[#allocation3 + $0x90] sm:$0xff]
      %v3877 = vld [vmem:[#allocation3 + $0x98] sm:$0xff]
      %v3878 = vld [vmem:[#allocation3 + $0xa0] sm:$0xff]
      %v3879 = vld [vmem:[#allocation3 + $0xa8] sm:$0xff]
      %v3880 = vld [vmem:[#allocation3 + $0xb0] sm:$0xff]
      %v3881 = vld [vmem:[#allocation3 + $0xb8] sm:$0xff]
      %v3882 = vld [vmem:[#allocation3 + $0xc0] sm:$0xff]
      %v3883 = vld [vmem:[#allocation3 + $0xc8] sm:$0xff]
      %v3884 = vld [vmem:[#allocation3 + $0xd0] sm:$0xff]
      %v3885 = vld [vmem:[#allocation3 + $0xd8] sm:$0xff]
      %v3886 = vld [vmem:[#allocation3 + $0xe0] sm:$0xff]
      %v3887 = vld [vmem:[#allocation3 + $0xe8] sm:$0xff]
      %v3888 = vld [vmem:[#allocation3 + $0xf0] sm:$0xff]
      %v3889 = vld [vmem:[#allocation3 + $0xf8] sm:$0xff]
      %v3890 = vld [vmem:[#allocation3 + $0x100] sm:$0xff]
      %v3891 = vld [vmem:[#allocation3 + $0x108] sm:$0xff]
      %v3892 = vld [vmem:[#allocation3 + $0x110] sm:$0xff]
      %v3893 = vld [vmem:[#allocation3 + $0x118] sm:$0xff]
      %s3894 = scalar_lea.vmem %s3, 32
      %v3895 = vld [vmem:[%s3894] sm:$0xf]
      %v3897 = vsel %vm577, %v3822, 0
      %v3900 = vsel %vm577, %v3823, 0
      %v3903 = vsel %vm577, %v3824, 0
      %v3906 = vsel %vm577, %v3825, 0
      %v3909 = vsel %vm577, %v3826, 0
      %v3912 = vsel %vm577, %v3827, 0
      %v3915 = vsel %vm577, %v3828, 0
      %v3918 = vsel %vm577, %v3829, 0
      %v3921 = vsel %vm577, %v3830, 0
      %v3924 = vsel %vm577, %v3831, 0
      %v3927 = vsel %vm577, %v3832, 0
      %v3930 = vsel %vm577, %v3833, 0
      %v3933 = vsel %vm577, %v3834, 0
      %v3936 = vsel %vm577, %v3835, 0
      %v3939 = vsel %vm577, %v3836, 0
      %v3942 = vsel %vm577, %v3837, 0
      %v3945 = vsel %vm577, %v3838, 0
      %v3948 = vsel %vm577, %v3839, 0
      %v3951 = vsel %vm577, %v3840, 0
      %v3954 = vsel %vm577, %v3841, 0
      %v3957 = vsel %vm577, %v3842, 0
      %v3960 = vsel %vm577, %v3843, 0
      %v3963 = vsel %vm577, %v3844, 0
      %v3966 = vsel %vm577, %v3845, 0
      %v3969 = vsel %vm577, %v3846, 0
      %v3972 = vsel %vm577, %v3847, 0
      %v3975 = vsel %vm577, %v3848, 0
      %v3978 = vsel %vm577, %v3849, 0
      %v3981 = vsel %vm577, %v3850, 0
      %v3984 = vsel %vm577, %v3851, 0
      %v3987 = vsel %vm577, %v3852, 0
      %v3990 = vsel %vm577, %v3853, 0
      %v3993 = vsel %vm577, %v3854, 0
      %v3996 = vsel %vm577, %v3855, 0
      %v3999 = vsel %vm577, %v3856, 0
      %v4002 = vsel %vm577, %v3857, 0
      %v4005 = vsel %vm946, %v3895, 0
      %4007 = vmatpush.msra.mxu0 0.0
      %4008 = vmatpush.msra.mxu0 0.0
      %4009 = vmatpush.msra.mxu0 0.0
      %4010 = vmatpush.msra.mxu0 0.0
      %4011 = vmatpush.msra.mxu0 0.0
      %4012 = vmatpush.msra.mxu0 0.0
      %4013 = vmatpush.msra.mxu0 0.0
      %4014 = vmatpush.msra.mxu0 0.0
      %4015 = vmatpush.msra.mxu0 0.0
      %4016 = vmatpush.msra.mxu0 0.0
      %4017 = vmatpush.msra.mxu0 0.0
      %4018 = vmatpush.msra.mxu0 0.0
      %4019 = vmatpush.msra.mxu0 0.0
      %4020 = vmatpush.msra.mxu0 0.0
      %4021 = vmatpush.msra.mxu0 0.0
      %4022 = vmatpush.msra.mxu0 %v4005
      %4023 = vmatmul.f32.gmra.mxu0 %v3897
      %v4024 = vpop.f32.mrf.mxu0
      %v4025 = vadd.f32 0.0, %v4024
      %4026 = vmatmul.f32.gmra.mxu0 %v3900
      %v4027 = vpop.f32.mrf.mxu0
      %v4028 = vadd.f32 0.0, %v4027
      %4029 = vmatmul.f32.gmra.mxu0 %v3903
      %v4030 = vpop.f32.mrf.mxu0
      %v4031 = vadd.f32 0.0, %v4030
      %4032 = vmatmul.f32.gmra.mxu0 %v3906
      %v4033 = vpop.f32.mrf.mxu0
      %v4034 = vadd.f32 0.0, %v4033
      %4035 = vmatmul.f32.gmra.mxu0 %v3909
      %v4036 = vpop.f32.mrf.mxu0
      %v4037 = vadd.f32 0.0, %v4036
      %4038 = vmatmul.f32.gmra.mxu0 %v3912
      %v4039 = vpop.f32.mrf.mxu0
      %v4040 = vadd.f32 0.0, %v4039
      %4041 = vmatmul.f32.gmra.mxu0 %v3915
      %v4042 = vpop.f32.mrf.mxu0
      %v4043 = vadd.f32 0.0, %v4042
      %4044 = vmatmul.f32.gmra.mxu0 %v3918
      %v4045 = vpop.f32.mrf.mxu0
      %v4046 = vadd.f32 0.0, %v4045
      %4047 = vmatmul.f32.gmra.mxu0 %v3921
      %v4048 = vpop.f32.mrf.mxu0
      %v4049 = vadd.f32 0.0, %v4048
      %4050 = vmatmul.f32.gmra.mxu0 %v3924
      %v4051 = vpop.f32.mrf.mxu0
      %v4052 = vadd.f32 0.0, %v4051
      %4053 = vmatmul.f32.gmra.mxu0 %v3927
      %v4054 = vpop.f32.mrf.mxu0
      %v4055 = vadd.f32 0.0, %v4054
      %4056 = vmatmul.f32.gmra.mxu0 %v3930
      %v4057 = vpop.f32.mrf.mxu0
      %v4058 = vadd.f32 0.0, %v4057
      %4059 = vmatmul.f32.gmra.mxu0 %v3933
      %v4060 = vpop.f32.mrf.mxu0
      %v4061 = vadd.f32 0.0, %v4060
      %4062 = vmatmul.f32.gmra.mxu0 %v3936
      %v4063 = vpop.f32.mrf.mxu0
      %v4064 = vadd.f32 0.0, %v4063
      %4065 = vmatmul.f32.gmra.mxu0 %v3939
      %v4066 = vpop.f32.mrf.mxu0
      %v4067 = vadd.f32 0.0, %v4066
      %4068 = vmatmul.f32.gmra.mxu0 %v3942
      %v4069 = vpop.f32.mrf.mxu0
      %v4070 = vadd.f32 0.0, %v4069
      %4071 = vmatmul.f32.gmra.mxu0 %v3945
      %v4072 = vpop.f32.mrf.mxu0
      %v4073 = vadd.f32 0.0, %v4072
      %4074 = vmatmul.f32.gmra.mxu0 %v3948
      %v4075 = vpop.f32.mrf.mxu0
      %v4076 = vadd.f32 0.0, %v4075
      %4077 = vmatmul.f32.gmra.mxu0 %v3951
      %v4078 = vpop.f32.mrf.mxu0
      %v4079 = vadd.f32 0.0, %v4078
      %4080 = vmatmul.f32.gmra.mxu0 %v3954
      %v4081 = vpop.f32.mrf.mxu0
      %v4082 = vadd.f32 0.0, %v4081
      %4083 = vmatmul.f32.gmra.mxu0 %v3957
      %v4084 = vpop.f32.mrf.mxu0
      %v4085 = vadd.f32 0.0, %v4084
      %4086 = vmatmul.f32.gmra.mxu0 %v3960
      %v4087 = vpop.f32.mrf.mxu0
      %v4088 = vadd.f32 0.0, %v4087
      %4089 = vmatmul.f32.gmra.mxu0 %v3963
      %v4090 = vpop.f32.mrf.mxu0
      %v4091 = vadd.f32 0.0, %v4090
      %4092 = vmatmul.f32.gmra.mxu0 %v3966
      %v4093 = vpop.f32.mrf.mxu0
      %v4094 = vadd.f32 0.0, %v4093
      %4095 = vmatmul.f32.gmra.mxu0 %v3969
      %v4096 = vpop.f32.mrf.mxu0
      %v4097 = vadd.f32 0.0, %v4096
      %4098 = vmatmul.f32.gmra.mxu0 %v3972
      %v4099 = vpop.f32.mrf.mxu0
      %v4100 = vadd.f32 0.0, %v4099
      %4101 = vmatmul.f32.gmra.mxu0 %v3975
      %v4102 = vpop.f32.mrf.mxu0
      %v4103 = vadd.f32 0.0, %v4102
      %4104 = vmatmul.f32.gmra.mxu0 %v3978
      %v4105 = vpop.f32.mrf.mxu0
      %v4106 = vadd.f32 0.0, %v4105
      %4107 = vmatmul.f32.gmra.mxu0 %v3981
      %v4108 = vpop.f32.mrf.mxu0
      %v4109 = vadd.f32 0.0, %v4108
      %4110 = vmatmul.f32.gmra.mxu0 %v3984
      %v4111 = vpop.f32.mrf.mxu0
      %v4112 = vadd.f32 0.0, %v4111
      %4113 = vmatmul.f32.gmra.mxu0 %v3987
      %v4114 = vpop.f32.mrf.mxu0
      %v4115 = vadd.f32 0.0, %v4114
      %4116 = vmatmul.f32.gmra.mxu0 %v3990
      %v4117 = vpop.f32.mrf.mxu0
      %v4118 = vadd.f32 0.0, %v4117
      %4119 = vmatmul.f32.gmra.mxu0 %v3993
      %v4120 = vpop.f32.mrf.mxu0
      %v4121 = vadd.f32 0.0, %v4120
      %4122 = vmatmul.f32.gmra.mxu0 %v3996
      %v4123 = vpop.f32.mrf.mxu0
      %v4124 = vadd.f32 0.0, %v4123
      %4125 = vmatmul.f32.gmra.mxu0 %v3999
      %v4126 = vpop.f32.mrf.mxu0
      %v4127 = vadd.f32 0.0, %v4126
      %4128 = vmatmul.f32.gmra.mxu0 %v4002
      %v4129 = vpop.f32.mrf.mxu0
      %v4130 = vadd.f32 0.0, %v4129
      %4131 = vdwg.mxu0
      %v4132 = vadd.f32 %v3858, %v4025
      %v4133 = vadd.f32 %v3859, %v4028
      %v4134 = vadd.f32 %v3860, %v4031
      %v4135 = vadd.f32 %v3861, %v4034
      %v4136 = vadd.f32 %v3862, %v4037
      %v4137 = vadd.f32 %v3863, %v4040
      %v4138 = vadd.f32 %v3864, %v4043
      %v4139 = vadd.f32 %v3865, %v4046
      %v4140 = vadd.f32 %v3866, %v4049
      %v4141 = vadd.f32 %v3867, %v4052
      %v4142 = vadd.f32 %v3868, %v4055
      %v4143 = vadd.f32 %v3869, %v4058
      %v4144 = vadd.f32 %v3870, %v4061
      %v4145 = vadd.f32 %v3871, %v4064
      %v4146 = vadd.f32 %v3872, %v4067
      %v4147 = vadd.f32 %v3873, %v4070
      %v4148 = vadd.f32 %v3874, %v4073
      %v4149 = vadd.f32 %v3875, %v4076
      %v4150 = vadd.f32 %v3876, %v4079
      %v4151 = vadd.f32 %v3877, %v4082
      %v4152 = vadd.f32 %v3878, %v4085
      %v4153 = vadd.f32 %v3879, %v4088
      %v4154 = vadd.f32 %v3880, %v4091
      %v4155 = vadd.f32 %v3881, %v4094
      %v4156 = vadd.f32 %v3882, %v4097
      %v4157 = vadd.f32 %v3883, %v4100
      %v4158 = vadd.f32 %v3884, %v4103
      %v4159 = vadd.f32 %v3885, %v4106
      %v4160 = vadd.f32 %v3886, %v4109
      %v4161 = vadd.f32 %v3887, %v4112
      %v4162 = vadd.f32 %v3888, %v4115
      %v4163 = vadd.f32 %v3889, %v4118
      %v4164 = vadd.f32 %v3890, %v4121
      %v4165 = vadd.f32 %v3891, %v4124
      %v4166 = vadd.f32 %v3892, %v4127
      %v4167 = vadd.f32 %v3893, %v4130
      %4168 = vst.msk [vmem:[#allocation3] sm:$0xff] %vm577, %v4132
      %4169 = vst.msk [vmem:[#allocation3 + $0x8] sm:$0xff] %vm577, %v4133
      %4170 = vst.msk [vmem:[#allocation3 + $0x10] sm:$0xff] %vm577, %v4134
      %4171 = vst.msk [vmem:[#allocation3 + $0x18] sm:$0xff] %vm577, %v4135
      %4172 = vst.msk [vmem:[#allocation3 + $0x20] sm:$0xff] %vm577, %v4136
      %4173 = vst.msk [vmem:[#allocation3 + $0x28] sm:$0xff] %vm577, %v4137
      %4174 = vst.msk [vmem:[#allocation3 + $0x30] sm:$0xff] %vm577, %v4138
      %4175 = vst.msk [vmem:[#allocation3 + $0x38] sm:$0xff] %vm577, %v4139
      %4176 = vst.msk [vmem:[#allocation3 + $0x40] sm:$0xff] %vm577, %v4140
      %4177 = vst.msk [vmem:[#allocation3 + $0x48] sm:$0xff] %vm577, %v4141
      %4178 = vst.msk [vmem:[#allocation3 + $0x50] sm:$0xff] %vm577, %v4142
      %4179 = vst.msk [vmem:[#allocation3 + $0x58] sm:$0xff] %vm577, %v4143
      %4180 = vst.msk [vmem:[#allocation3 + $0x60] sm:$0xff] %vm577, %v4144
      %4181 = vst.msk [vmem:[#allocation3 + $0x68] sm:$0xff] %vm577, %v4145
      %4182 = vst.msk [vmem:[#allocation3 + $0x70] sm:$0xff] %vm577, %v4146
      %4183 = vst.msk [vmem:[#allocation3 + $0x78] sm:$0xff] %vm577, %v4147
      %4184 = vst.msk [vmem:[#allocation3 + $0x80] sm:$0xff] %vm577, %v4148
      %4185 = vst.msk [vmem:[#allocation3 + $0x88] sm:$0xff] %vm577, %v4149
      %4186 = vst.msk [vmem:[#allocation3 + $0x90] sm:$0xff] %vm577, %v4150
      %4187 = vst.msk [vmem:[#allocation3 + $0x98] sm:$0xff] %vm577, %v4151
      %4188 = vst.msk [vmem:[#allocation3 + $0xa0] sm:$0xff] %vm577, %v4152
      %4189 = vst.msk [vmem:[#allocation3 + $0xa8] sm:$0xff] %vm577, %v4153
      %4190 = vst.msk [vmem:[#allocation3 + $0xb0] sm:$0xff] %vm577, %v4154
      %4191 = vst.msk [vmem:[#allocation3 + $0xb8] sm:$0xff] %vm577, %v4155
      %4192 = vst.msk [vmem:[#allocation3 + $0xc0] sm:$0xff] %vm577, %v4156
      %4193 = vst.msk [vmem:[#allocation3 + $0xc8] sm:$0xff] %vm577, %v4157
      %4194 = vst.msk [vmem:[#allocation3 + $0xd0] sm:$0xff] %vm577, %v4158
      %4195 = vst.msk [vmem:[#allocation3 + $0xd8] sm:$0xff] %vm577, %v4159
      %4196 = vst.msk [vmem:[#allocation3 + $0xe0] sm:$0xff] %vm577, %v4160
      %4197 = vst.msk [vmem:[#allocation3 + $0xe8] sm:$0xff] %vm577, %v4161
      %4198 = vst.msk [vmem:[#allocation3 + $0xf0] sm:$0xff] %vm577, %v4162
      %4199 = vst.msk [vmem:[#allocation3 + $0xf8] sm:$0xff] %vm577, %v4163
      %4200 = vst.msk [vmem:[#allocation3 + $0x100] sm:$0xff] %vm577, %v4164
      %4201 = vst.msk [vmem:[#allocation3 + $0x108] sm:$0xff] %vm577, %v4165
      %4202 = vst.msk [vmem:[#allocation3 + $0x110] sm:$0xff] %vm577, %v4166
      %4203 = vst.msk [vmem:[#allocation3 + $0x118] sm:$0xff] %vm577, %v4167
      %v4204 = vld [vmem:[#allocation3] sm:$0xff]
      %v4205 = vld [vmem:[#allocation3 + $0x8] sm:$0xff]
      %v4206 = vld [vmem:[#allocation3 + $0x10] sm:$0xff]
      %v4207 = vld [vmem:[#allocation3 + $0x18] sm:$0xff]
      %v4208 = vld [vmem:[#allocation3 + $0x20] sm:$0xff]
      %v4209 = vld [vmem:[#allocation3 + $0x28] sm:$0xff]
      %v4210 = vld [vmem:[#allocation3 + $0x30] sm:$0xff]
      %v4211 = vld [vmem:[#allocation3 + $0x38] sm:$0xff]
      %v4212 = vld [vmem:[#allocation3 + $0x40] sm:$0xff]
      %v4213 = vld [vmem:[#allocation3 + $0x48] sm:$0xff]
      %v4214 = vld [vmem:[#allocation3 + $0x50] sm:$0xff]
      %v4215 = vld [vmem:[#allocation3 + $0x58] sm:$0xff]
      %v4216 = vld [vmem:[#allocation3 + $0x60] sm:$0xff]
      %v4217 = vld [vmem:[#allocation3 + $0x68] sm:$0xff]
      %v4218 = vld [vmem:[#allocation3 + $0x70] sm:$0xff]
      %v4219 = vld [vmem:[#allocation3 + $0x78] sm:$0xff]
      %v4220 = vld [vmem:[#allocation3 + $0x80] sm:$0xff]
      %v4221 = vld [vmem:[#allocation3 + $0x88] sm:$0xff]
      %v4222 = vld [vmem:[#allocation3 + $0x90] sm:$0xff]
      %v4223 = vld [vmem:[#allocation3 + $0x98] sm:$0xff]
      %v4224 = vld [vmem:[#allocation3 + $0xa0] sm:$0xff]
      %v4225 = vld [vmem:[#allocation3 + $0xa8] sm:$0xff]
      %v4226 = vld [vmem:[#allocation3 + $0xb0] sm:$0xff]
      %v4227 = vld [vmem:[#allocation3 + $0xb8] sm:$0xff]
      %v4228 = vld [vmem:[#allocation3 + $0xc0] sm:$0xff]
      %v4229 = vld [vmem:[#allocation3 + $0xc8] sm:$0xff]
      %v4230 = vld [vmem:[#allocation3 + $0xd0] sm:$0xff]
      %v4231 = vld [vmem:[#allocation3 + $0xd8] sm:$0xff]
      %v4232 = vld [vmem:[#allocation3 + $0xe0] sm:$0xff]
      %v4233 = vld [vmem:[#allocation3 + $0xe8] sm:$0xff]
      %v4234 = vld [vmem:[#allocation3 + $0xf0] sm:$0xff]
      %v4235 = vld [vmem:[#allocation3 + $0xf8] sm:$0xff]
      %v4236 = vld [vmem:[#allocation3 + $0x100] sm:$0xff]
      %v4237 = vld [vmem:[#allocation3 + $0x108] sm:$0xff]
      %v4238 = vld [vmem:[#allocation3 + $0x110] sm:$0xff]
      %v4239 = vld [vmem:[#allocation3 + $0x118] sm:$0xff]
      %v4240 = vld [vmem:[%s5] sm:$0x1]
      %v4242 = vperm.slane %v4240, 0
      %v4244 = vmul.f32 %v4204, %v4242
      %v4245 = vmul.f32 %v4205, %v4242
      %v4246 = vmul.f32 %v4206, %v4242
      %v4247 = vmul.f32 %v4207, %v4242
      %v4248 = vmul.f32 %v4208, %v4242
      %v4249 = vmul.f32 %v4209, %v4242
      %v4250 = vmul.f32 %v4210, %v4242
      %v4251 = vmul.f32 %v4211, %v4242
      %v4252 = vmul.f32 %v4212, %v4242
      %v4253 = vmul.f32 %v4213, %v4242
      %v4254 = vmul.f32 %v4214, %v4242
      %v4255 = vmul.f32 %v4215, %v4242
      %v4256 = vmul.f32 %v4216, %v4242
      %v4257 = vmul.f32 %v4217, %v4242
      %v4258 = vmul.f32 %v4218, %v4242
      %v4259 = vmul.f32 %v4219, %v4242
      %v4260 = vmul.f32 %v4220, %v4242
      %v4261 = vmul.f32 %v4221, %v4242
      %v4262 = vmul.f32 %v4222, %v4242
      %v4263 = vmul.f32 %v4223, %v4242
      %v4264 = vmul.f32 %v4224, %v4242
      %v4265 = vmul.f32 %v4225, %v4242
      %v4266 = vmul.f32 %v4226, %v4242
      %v4267 = vmul.f32 %v4227, %v4242
      %v4268 = vmul.f32 %v4228, %v4242
      %v4269 = vmul.f32 %v4229, %v4242
      %v4270 = vmul.f32 %v4230, %v4242
      %v4271 = vmul.f32 %v4231, %v4242
      %v4272 = vmul.f32 %v4232, %v4242
      %v4273 = vmul.f32 %v4233, %v4242
      %v4274 = vmul.f32 %v4234, %v4242
      %v4275 = vmul.f32 %v4235, %v4242
      %v4276 = vmul.f32 %v4236, %v4242
      %v4277 = vmul.f32 %v4237, %v4242
      %v4278 = vmul.f32 %v4238, %v4242
      %v4279 = vmul.f32 %v4239, %v4242
      %v4280 = vld [vmem:[%s6] sm:$0x1]
      %v4282 = vperm.slane %v4280, 0
      %v4284 = vadd.f32 %v4244, %v4282
      %v4285 = vadd.f32 %v4245, %v4282
      %v4286 = vadd.f32 %v4246, %v4282
      %v4287 = vadd.f32 %v4247, %v4282
      %v4288 = vadd.f32 %v4248, %v4282
      %v4289 = vadd.f32 %v4249, %v4282
      %v4290 = vadd.f32 %v4250, %v4282
      %v4291 = vadd.f32 %v4251, %v4282
      %v4292 = vadd.f32 %v4252, %v4282
      %v4293 = vadd.f32 %v4253, %v4282
      %v4294 = vadd.f32 %v4254, %v4282
      %v4295 = vadd.f32 %v4255, %v4282
      %v4296 = vadd.f32 %v4256, %v4282
      %v4297 = vadd.f32 %v4257, %v4282
      %v4298 = vadd.f32 %v4258, %v4282
      %v4299 = vadd.f32 %v4259, %v4282
      %v4300 = vadd.f32 %v4260, %v4282
      %v4301 = vadd.f32 %v4261, %v4282
      %v4302 = vadd.f32 %v4262, %v4282
      %v4303 = vadd.f32 %v4263, %v4282
      %v4304 = vadd.f32 %v4264, %v4282
      %v4305 = vadd.f32 %v4265, %v4282
      %v4306 = vadd.f32 %v4266, %v4282
      %v4307 = vadd.f32 %v4267, %v4282
      %v4308 = vadd.f32 %v4268, %v4282
      %v4309 = vadd.f32 %v4269, %v4282
      %v4310 = vadd.f32 %v4270, %v4282
      %v4311 = vadd.f32 %v4271, %v4282
      %v4312 = vadd.f32 %v4272, %v4282
      %v4313 = vadd.f32 %v4273, %v4282
      %v4314 = vadd.f32 %v4274, %v4282
      %v4315 = vadd.f32 %v4275, %v4282
      %v4316 = vadd.f32 %v4276, %v4282
      %v4317 = vadd.f32 %v4277, %v4282
      %v4318 = vadd.f32 %v4278, %v4282
      %v4319 = vadd.f32 %v4279, %v4282
      %v4320 = vmax.f32 %v4284, 0.0
      %v4321 = vmax.f32 %v4285, 0.0
      %v4322 = vmax.f32 %v4286, 0.0
      %v4323 = vmax.f32 %v4287, 0.0
      %v4324 = vmax.f32 %v4288, 0.0
      %v4325 = vmax.f32 %v4289, 0.0
      %v4326 = vmax.f32 %v4290, 0.0
      %v4327 = vmax.f32 %v4291, 0.0
      %v4328 = vmax.f32 %v4292, 0.0
      %v4329 = vmax.f32 %v4293, 0.0
      %v4330 = vmax.f32 %v4294, 0.0
      %v4331 = vmax.f32 %v4295, 0.0
      %v4332 = vmax.f32 %v4296, 0.0
      %v4333 = vmax.f32 %v4297, 0.0
      %v4334 = vmax.f32 %v4298, 0.0
      %v4335 = vmax.f32 %v4299, 0.0
      %v4336 = vmax.f32 %v4300, 0.0
      %v4337 = vmax.f32 %v4301, 0.0
      %v4338 = vmax.f32 %v4302, 0.0
      %v4339 = vmax.f32 %v4303, 0.0
      %v4340 = vmax.f32 %v4304, 0.0
      %v4341 = vmax.f32 %v4305, 0.0
      %v4342 = vmax.f32 %v4306, 0.0
      %v4343 = vmax.f32 %v4307, 0.0
      %v4344 = vmax.f32 %v4308, 0.0
      %v4345 = vmax.f32 %v4309, 0.0
      %v4346 = vmax.f32 %v4310, 0.0
      %v4347 = vmax.f32 %v4311, 0.0
      %v4348 = vmax.f32 %v4312, 0.0
      %v4349 = vmax.f32 %v4313, 0.0
      %v4350 = vmax.f32 %v4314, 0.0
      %v4351 = vmax.f32 %v4315, 0.0
      %v4352 = vmax.f32 %v4316, 0.0
      %v4353 = vmax.f32 %v4317, 0.0
      %v4354 = vmax.f32 %v4318, 0.0
      %v4355 = vmax.f32 %v4319, 0.0
      %4356 = vst.msk [vmem:[#allocation4] sm:$0xff] %vm577, 0.0
      %4357 = vst.msk [vmem:[#allocation4 + $0x8] sm:$0xff] %vm577, 0.0
      %4358 = vst.msk [vmem:[#allocation4 + $0x10] sm:$0x3] %vm580, 0.0
      %4359 = vst.msk [vmem:[#allocation4 + $0x18] sm:$0xff] %vm577, 0.0
      %4360 = vst.msk [vmem:[#allocation4 + $0x20] sm:$0xff] %vm577, 0.0
      %4361 = vst.msk [vmem:[#allocation4 + $0x28] sm:$0x3] %vm580, 0.0
      %4362 = vst.msk [vmem:[#allocation4 + $0x30] sm:$0xff] %vm577, 0.0
      %4363 = vst.msk [vmem:[#allocation4 + $0x38] sm:$0xff] %vm577, 0.0
      %4364 = vst.msk [vmem:[#allocation4 + $0x40] sm:$0x3] %vm580, 0.0
      %4365 = vst.msk [vmem:[#allocation4 + $0x48] sm:$0xff] %vm577, 0.0
      %4366 = vst.msk [vmem:[#allocation4 + $0x50] sm:$0xff] %vm577, 0.0
      %4367 = vst.msk [vmem:[#allocation4 + $0x58] sm:$0x3] %vm580, 0.0
      %4368 = vst.msk [vmem:[#allocation4 + $0x60] sm:$0xff] %vm577, 0.0
      %4369 = vst.msk [vmem:[#allocation4 + $0x68] sm:$0xff] %vm577, 0.0
      %4370 = vst.msk [vmem:[#allocation4 + $0x70] sm:$0x3] %vm580, 0.0
      %4371 = vst.msk [vmem:[#allocation4 + $0x78] sm:$0xff] %vm577, 0.0
      %4372 = vst.msk [vmem:[#allocation4 + $0x80] sm:$0xff] %vm577, 0.0
      %4373 = vst.msk [vmem:[#allocation4 + $0x88] sm:$0x3] %vm580, 0.0
      %4374 = vst.msk [vmem:[#allocation4 + $0x90] sm:$0xff] %vm577, 0.0
      %4375 = vst.msk [vmem:[#allocation4 + $0x98] sm:$0xff] %vm577, 0.0
      %4376 = vst.msk [vmem:[#allocation4 + $0xa0] sm:$0x3] %vm580, 0.0
      %4377 = vst.msk [vmem:[#allocation4 + $0xa8] sm:$0xff] %vm577, 0.0
      %4378 = vst.msk [vmem:[#allocation4 + $0xb0] sm:$0xff] %vm577, 0.0
      %4379 = vst.msk [vmem:[#allocation4 + $0xb8] sm:$0x3] %vm580, 0.0
      %4380 = vst.msk [vmem:[#allocation4 + $0xc0] sm:$0xff] %vm577, 0.0
      %4381 = vst.msk [vmem:[#allocation4 + $0xc8] sm:$0xff] %vm577, 0.0
      %4382 = vst.msk [vmem:[#allocation4 + $0xd0] sm:$0x3] %vm580, 0.0
      %4383 = vst.msk [vmem:[#allocation4 + $0xd8] sm:$0xff] %vm577, 0.0
      %4384 = vst.msk [vmem:[#allocation4 + $0xe0] sm:$0xff] %vm577, 0.0
      %4385 = vst.msk [vmem:[#allocation4 + $0xe8] sm:$0x3] %vm580, 0.0
      %4386 = vst.msk [vmem:[#allocation4 + $0xf0] sm:$0xff] %vm577, 0.0
      %4387 = vst.msk [vmem:[#allocation4 + $0xf8] sm:$0xff] %vm577, 0.0
      %4388 = vst.msk [vmem:[#allocation4 + $0x100] sm:$0x3] %vm580, 0.0
      %4389 = vst.msk [vmem:[#allocation4 + $0x108] sm:$0xff] %vm577, 0.0
      %4390 = vst.msk [vmem:[#allocation4 + $0x110] sm:$0xff] %vm577, 0.0
      %4391 = vst.msk [vmem:[#allocation4 + $0x118] sm:$0x3] %vm580, 0.0
      %4392 = vst.msk [vmem:[#allocation4 + $0x120] sm:$0xff] %vm577, 0.0
      %4393 = vst.msk [vmem:[#allocation4 + $0x128] sm:$0xff] %vm577, 0.0
      %4394 = vst.msk [vmem:[#allocation4 + $0x130] sm:$0x3] %vm580, 0.0
      %4395 = vst.msk [vmem:[#allocation4 + $0x138] sm:$0xff] %vm577, 0.0
      %4396 = vst.msk [vmem:[#allocation4 + $0x140] sm:$0xff] %vm577, 0.0
      %4397 = vst.msk [vmem:[#allocation4 + $0x148] sm:$0x3] %vm580, 0.0
      %4398 = vst.msk [vmem:[#allocation4 + $0x150] sm:$0xff] %vm577, 0.0
      %4399 = vst.msk [vmem:[#allocation4 + $0x158] sm:$0xff] %vm577, 0.0
      %4400 = vst.msk [vmem:[#allocation4 + $0x160] sm:$0x3] %vm580, 0.0
      %4401 = vst.msk [vmem:[#allocation4 + $0x168] sm:$0xff] %vm577, 0.0
      %4402 = vst.msk [vmem:[#allocation4 + $0x170] sm:$0xff] %vm577, 0.0
      %4403 = vst.msk [vmem:[#allocation4 + $0x178] sm:$0x3] %vm580, 0.0
      %4404 = vst.msk [vmem:[#allocation4 + $0x180] sm:$0xff] %vm577, 0.0
      %4405 = vst.msk [vmem:[#allocation4 + $0x188] sm:$0xff] %vm577, 0.0
      %4406 = vst.msk [vmem:[#allocation4 + $0x190] sm:$0x3] %vm580, 0.0
      %4407 = vst.msk [vmem:[#allocation4 + $0x198] sm:$0xff] %vm577, 0.0
      %4408 = vst.msk [vmem:[#allocation4 + $0x1a0] sm:$0xff] %vm577, 0.0
      %4409 = vst.msk [vmem:[#allocation4 + $0x1a8] sm:$0x3] %vm580, 0.0
      %4410 = vst.msk [vmem:[#allocation4 + $0x1] sm:$0xff] %vm577, %v4320
      %4411 = vst.msk [vmem:[#allocation4 + $0x9] sm:$0xff] %vm577, %v4321
      %4412 = vst.msk [vmem:[#allocation4 + $0x19] sm:$0xff] %vm577, %v4322
      %4413 = vst.msk [vmem:[#allocation4 + $0x21] sm:$0xff] %vm577, %v4323
      %4414 = vst.msk [vmem:[#allocation4 + $0x31] sm:$0xff] %vm577, %v4324
      %4415 = vst.msk [vmem:[#allocation4 + $0x39] sm:$0xff] %vm577, %v4325
      %4416 = vst.msk [vmem:[#allocation4 + $0x49] sm:$0xff] %vm577, %v4326
      %4417 = vst.msk [vmem:[#allocation4 + $0x51] sm:$0xff] %vm577, %v4327
      %4418 = vst.msk [vmem:[#allocation4 + $0x61] sm:$0xff] %vm577, %v4328
      %4419 = vst.msk [vmem:[#allocation4 + $0x69] sm:$0xff] %vm577, %v4329
      %4420 = vst.msk [vmem:[#allocation4 + $0x79] sm:$0xff] %vm577, %v4330
      %4421 = vst.msk [vmem:[#allocation4 + $0x81] sm:$0xff] %vm577, %v4331
      %4422 = vst.msk [vmem:[#allocation4 + $0x91] sm:$0xff] %vm577, %v4332
      %4423 = vst.msk [vmem:[#allocation4 + $0x99] sm:$0xff] %vm577, %v4333
      %4424 = vst.msk [vmem:[#allocation4 + $0xa9] sm:$0xff] %vm577, %v4334
      %4425 = vst.msk [vmem:[#allocation4 + $0xb1] sm:$0xff] %vm577, %v4335
      %4426 = vst.msk [vmem:[#allocation4 + $0xc1] sm:$0xff] %vm577, %v4336
      %4427 = vst.msk [vmem:[#allocation4 + $0xc9] sm:$0xff] %vm577, %v4337
      %4428 = vst.msk [vmem:[#allocation4 + $0xd9] sm:$0xff] %vm577, %v4338
      %4429 = vst.msk [vmem:[#allocation4 + $0xe1] sm:$0xff] %vm577, %v4339
      %4430 = vst.msk [vmem:[#allocation4 + $0xf1] sm:$0xff] %vm577, %v4340
      %4431 = vst.msk [vmem:[#allocation4 + $0xf9] sm:$0xff] %vm577, %v4341
      %4432 = vst.msk [vmem:[#allocation4 + $0x109] sm:$0xff] %vm577, %v4342
      %4433 = vst.msk [vmem:[#allocation4 + $0x111] sm:$0xff] %vm577, %v4343
      %4434 = vst.msk [vmem:[#allocation4 + $0x121] sm:$0xff] %vm577, %v4344
      %4435 = vst.msk [vmem:[#allocation4 + $0x129] sm:$0xff] %vm577, %v4345
      %4436 = vst.msk [vmem:[#allocation4 + $0x139] sm:$0xff] %vm577, %v4346
      %4437 = vst.msk [vmem:[#allocation4 + $0x141] sm:$0xff] %vm577, %v4347
      %4438 = vst.msk [vmem:[#allocation4 + $0x151] sm:$0xff] %vm577, %v4348
      %4439 = vst.msk [vmem:[#allocation4 + $0x159] sm:$0xff] %vm577, %v4349
      %4440 = vst.msk [vmem:[#allocation4 + $0x169] sm:$0xff] %vm577, %v4350
      %4441 = vst.msk [vmem:[#allocation4 + $0x171] sm:$0xff] %vm577, %v4351
      %4442 = vst.msk [vmem:[#allocation4 + $0x181] sm:$0xff] %vm577, %v4352
      %4443 = vst.msk [vmem:[#allocation4 + $0x189] sm:$0xff] %vm577, %v4353
      %4444 = vst.msk [vmem:[#allocation4 + $0x199] sm:$0xff] %vm577, %v4354
      %4445 = vst.msk [vmem:[#allocation4 + $0x1a1] sm:$0xff] %vm577, %v4355
      %p4446 = scmp.eq.s32.totalorder %s26, 0
      // Predicated region
      $region69: #{tpu_custom_call.1} parent=59 // pred_check
        %p4447 = pneg %p4446
      $region70: #{tpu_custom_call.1} parent=59 // pred_check_branch
        %4449 = sbr.rel (%p4447) target = $region72
      $region71: #{tpu_custom_call.1} parent=59 // pred_region
        %4450 = vst.msk [vmem:[#allocation4] sm:$0xff] %vm577, 0.0
        %4451 = vst.msk [vmem:[#allocation4 + $0x8] sm:$0xff] %vm577, 0.0
        %4452 = vst.msk [vmem:[#allocation4 + $0x10] sm:$0x3] %vm580, 0.0
        %s4453 = scalar_lea.vmem [#allocation4], 408
        %4454 = vst.msk [vmem:[%s4453] sm:$0xff] %vm577, 0.0
        %4455 = vst.msk [vmem:[%s4453 + $0x8] sm:$0xff] %vm577, 0.0
        %4456 = vst.msk [vmem:[%s4453 + $0x10] sm:$0x3] %vm580, 0.0
      $region72: #{tpu_custom_call.1} parent=59 // pred_fallthru
        _
      %v4457 = vld [vmem:[%s7] sm:$0x1]
      %v4458 = vld [vmem:[%s8] sm:$0x1]
      %4459 = vst.msk [vmem:[#allocation5] sm:$0xff] %vm577, 0.0
      %4460 = vst.msk [vmem:[#allocation5 + $0x8] sm:$0xff] %vm577, 0.0
      %4461 = vst.msk [vmem:[#allocation5 + $0x10] sm:$0xff] %vm577, 0.0
      %4462 = vst.msk [vmem:[#allocation5 + $0x18] sm:$0xff] %vm577, 0.0
      %4463 = vst.msk [vmem:[#allocation5 + $0x20] sm:$0xff] %vm577, 0.0
      %4464 = vst.msk [vmem:[#allocation5 + $0x28] sm:$0xff] %vm577, 0.0
      %4465 = vst.msk [vmem:[#allocation5 + $0x30] sm:$0xff] %vm577, 0.0
      %4466 = vst.msk [vmem:[#allocation5 + $0x38] sm:$0xff] %vm577, 0.0
      %4467 = vst.msk [vmem:[#allocation5 + $0x40] sm:$0xff] %vm577, 0.0
      %4468 = vst.msk [vmem:[#allocation5 + $0x48] sm:$0xff] %vm577, 0.0
      %4469 = vst.msk [vmem:[#allocation5 + $0x50] sm:$0xff] %vm577, 0.0
      %4470 = vst.msk [vmem:[#allocation5 + $0x58] sm:$0xff] %vm577, 0.0
      %4471 = vst.msk [vmem:[#allocation5 + $0x60] sm:$0xff] %vm577, 0.0
      %4472 = vst.msk [vmem:[#allocation5 + $0x68] sm:$0xff] %vm577, 0.0
      %4473 = vst.msk [vmem:[#allocation5 + $0x70] sm:$0xff] %vm577, 0.0
      %4474 = vst.msk [vmem:[#allocation5 + $0x78] sm:$0xff] %vm577, 0.0
      %4475 = vst.msk [vmem:[#allocation5 + $0x80] sm:$0xff] %vm577, 0.0
      %4476 = vst.msk [vmem:[#allocation5 + $0x88] sm:$0xff] %vm577, 0.0
      %4477 = vst.msk [vmem:[#allocation5 + $0x90] sm:$0xff] %vm577, 0.0
      %4478 = vst.msk [vmem:[#allocation5 + $0x98] sm:$0xff] %vm577, 0.0
      %4479 = vst.msk [vmem:[#allocation5 + $0xa0] sm:$0xff] %vm577, 0.0
      %4480 = vst.msk [vmem:[#allocation5 + $0xa8] sm:$0xff] %vm577, 0.0
      %4481 = vst.msk [vmem:[#allocation5 + $0xb0] sm:$0xff] %vm577, 0.0
      %4482 = vst.msk [vmem:[#allocation5 + $0xb8] sm:$0xff] %vm577, 0.0
      %4483 = vst.msk [vmem:[#allocation5 + $0xc0] sm:$0xff] %vm577, 0.0
      %4484 = vst.msk [vmem:[#allocation5 + $0xc8] sm:$0xff] %vm577, 0.0
      %4485 = vst.msk [vmem:[#allocation5 + $0xd0] sm:$0xff] %vm577, 0.0
      %4486 = vst.msk [vmem:[#allocation5 + $0xd8] sm:$0xff] %vm577, 0.0
      %4487 = vst.msk [vmem:[#allocation5 + $0xe0] sm:$0xff] %vm577, 0.0
      %4488 = vst.msk [vmem:[#allocation5 + $0xe8] sm:$0xff] %vm577, 0.0
      %4489 = vst.msk [vmem:[#allocation5 + $0xf0] sm:$0xff] %vm577, 0.0
      %4490 = vst.msk [vmem:[#allocation5 + $0xf8] sm:$0xff] %vm577, 0.0
      %v4491 = vld [vmem:[#allocation4] sm:$0xff]
      %v4492 = vld [vmem:[#allocation4 + $0x8] sm:$0xff]
      %v4493 = vld [vmem:[#allocation4 + $0x18] sm:$0xff]
      %v4494 = vld [vmem:[#allocation4 + $0x20] sm:$0xff]
      %v4495 = vld [vmem:[#allocation4 + $0x30] sm:$0xff]
      %v4496 = vld [vmem:[#allocation4 + $0x38] sm:$0xff]
      %v4497 = vld [vmem:[#allocation4 + $0x48] sm:$0xff]
      %v4498 = vld [vmem:[#allocation4 + $0x50] sm:$0xff]
      %v4499 = vld [vmem:[#allocation4 + $0x60] sm:$0xff]
      %v4500 = vld [vmem:[#allocation4 + $0x68] sm:$0xff]
      %v4501 = vld [vmem:[#allocation4 + $0x78] sm:$0xff]
      %v4502 = vld [vmem:[#allocation4 + $0x80] sm:$0xff]
      %v4503 = vld [vmem:[#allocation4 + $0x90] sm:$0xff]
      %v4504 = vld [vmem:[#allocation4 + $0x98] sm:$0xff]
      %v4505 = vld [vmem:[#allocation4 + $0xa8] sm:$0xff]
      %v4506 = vld [vmem:[#allocation4 + $0xb0] sm:$0xff]
      %v4507 = vld [vmem:[#allocation4 + $0xc0] sm:$0xff]
      %v4508 = vld [vmem:[#allocation4 + $0xc8] sm:$0xff]
      %v4509 = vld [vmem:[#allocation4 + $0xd8] sm:$0xff]
      %v4510 = vld [vmem:[#allocation4 + $0xe0] sm:$0xff]
      %v4511 = vld [vmem:[#allocation4 + $0xf0] sm:$0xff]
      %v4512 = vld [vmem:[#allocation4 + $0xf8] sm:$0xff]
      %v4513 = vld [vmem:[#allocation4 + $0x108] sm:$0xff]
      %v4514 = vld [vmem:[#allocation4 + $0x110] sm:$0xff]
      %v4515 = vld [vmem:[#allocation4 + $0x120] sm:$0xff]
      %v4516 = vld [vmem:[#allocation4 + $0x128] sm:$0xff]
      %v4517 = vld [vmem:[#allocation4 + $0x138] sm:$0xff]
      %v4518 = vld [vmem:[#allocation4 + $0x140] sm:$0xff]
      %v4519 = vld [vmem:[#allocation4 + $0x150] sm:$0xff]
      %v4520 = vld [vmem:[#allocation4 + $0x158] sm:$0xff]
      %v4521 = vld [vmem:[#allocation4 + $0x168] sm:$0xff]
      %v4522 = vld [vmem:[#allocation4 + $0x170] sm:$0xff]
      %v4523 = vld [vmem:[#allocation5] sm:$0xff]
      %v4524 = vld [vmem:[#allocation5 + $0x8] sm:$0xff]
      %v4525 = vld [vmem:[#allocation5 + $0x10] sm:$0xff]
      %v4526 = vld [vmem:[#allocation5 + $0x18] sm:$0xff]
      %v4527 = vld [vmem:[#allocation5 + $0x20] sm:$0xff]
      %v4528 = vld [vmem:[#allocation5 + $0x28] sm:$0xff]
      %v4529 = vld [vmem:[#allocation5 + $0x30] sm:$0xff]
      %v4530 = vld [vmem:[#allocation5 + $0x38] sm:$0xff]
      %v4531 = vld [vmem:[#allocation5 + $0x40] sm:$0xff]
      %v4532 = vld [vmem:[#allocation5 + $0x48] sm:$0xff]
      %v4533 = vld [vmem:[#allocation5 + $0x50] sm:$0xff]
      %v4534 = vld [vmem:[#allocation5 + $0x58] sm:$0xff]
      %v4535 = vld [vmem:[#allocation5 + $0x60] sm:$0xff]
      %v4536 = vld [vmem:[#allocation5 + $0x68] sm:$0xff]
      %v4537 = vld [vmem:[#allocation5 + $0x70] sm:$0xff]
      %v4538 = vld [vmem:[#allocation5 + $0x78] sm:$0xff]
      %v4539 = vld [vmem:[#allocation5 + $0x80] sm:$0xff]
      %v4540 = vld [vmem:[#allocation5 + $0x88] sm:$0xff]
      %v4541 = vld [vmem:[#allocation5 + $0x90] sm:$0xff]
      %v4542 = vld [vmem:[#allocation5 + $0x98] sm:$0xff]
      %v4543 = vld [vmem:[#allocation5 + $0xa0] sm:$0xff]
      %v4544 = vld [vmem:[#allocation5 + $0xa8] sm:$0xff]
      %v4545 = vld [vmem:[#allocation5 + $0xb0] sm:$0xff]
      %v4546 = vld [vmem:[#allocation5 + $0xb8] sm:$0xff]
      %v4547 = vld [vmem:[#allocation5 + $0xc0] sm:$0xff]
      %v4548 = vld [vmem:[#allocation5 + $0xc8] sm:$0xff]
      %v4549 = vld [vmem:[#allocation5 + $0xd0] sm:$0xff]
      %v4550 = vld [vmem:[#allocation5 + $0xd8] sm:$0xff]
      %v4551 = vld [vmem:[#allocation5 + $0xe0] sm:$0xff]
      %v4552 = vld [vmem:[#allocation5 + $0xe8] sm:$0xff]
      %v4553 = vld [vmem:[#allocation5 + $0xf0] sm:$0xff]
      %v4554 = vld [vmem:[#allocation5 + $0xf8] sm:$0xff]
      %v4555 = vld [vmem:[%s4] sm:$0xf]
      %v4557 = vsel %vm577, %v4491, 0
      %v4560 = vsel %vm577, %v4492, 0
      %v4563 = vsel %vm577, %v4493, 0
      %v4566 = vsel %vm577, %v4494, 0
      %v4569 = vsel %vm577, %v4495, 0
      %v4572 = vsel %vm577, %v4496, 0
      %v4575 = vsel %vm577, %v4497, 0
      %v4578 = vsel %vm577, %v4498, 0
      %v4581 = vsel %vm577, %v4499, 0
      %v4584 = vsel %vm577, %v4500, 0
      %v4587 = vsel %vm577, %v4501, 0
      %v4590 = vsel %vm577, %v4502, 0
      %v4593 = vsel %vm577, %v4503, 0
      %v4596 = vsel %vm577, %v4504, 0
      %v4599 = vsel %vm577, %v4505, 0
      %v4602 = vsel %vm577, %v4506, 0
      %v4605 = vsel %vm577, %v4507, 0
      %v4608 = vsel %vm577, %v4508, 0
      %v4611 = vsel %vm577, %v4509, 0
      %v4614 = vsel %vm577, %v4510, 0
      %v4617 = vsel %vm577, %v4511, 0
      %v4620 = vsel %vm577, %v4512, 0
      %v4623 = vsel %vm577, %v4513, 0
      %v4626 = vsel %vm577, %v4514, 0
      %v4629 = vsel %vm577, %v4515, 0
      %v4632 = vsel %vm577, %v4516, 0
      %v4635 = vsel %vm577, %v4517, 0
      %v4638 = vsel %vm577, %v4518, 0
      %v4641 = vsel %vm577, %v4519, 0
      %v4644 = vsel %vm577, %v4520, 0
      %v4647 = vsel %vm577, %v4521, 0
      %v4650 = vsel %vm577, %v4522, 0
      %v4653 = vsel %vm946, %v4555, 0
      %4655 = vmatpush.msra.mxu0 0.0
      %4656 = vmatpush.msra.mxu0 0.0
      %4657 = vmatpush.msra.mxu0 0.0
      %4658 = vmatpush.msra.mxu0 0.0
      %4659 = vmatpush.msra.mxu0 0.0
      %4660 = vmatpush.msra.mxu0 0.0
      %4661 = vmatpush.msra.mxu0 0.0
      %4662 = vmatpush.msra.mxu0 0.0
      %4663 = vmatpush.msra.mxu0 0.0
      %4664 = vmatpush.msra.mxu0 0.0
      %4665 = vmatpush.msra.mxu0 0.0
      %4666 = vmatpush.msra.mxu0 0.0
      %4667 = vmatpush.msra.mxu0 0.0
      %4668 = vmatpush.msra.mxu0 0.0
      %4669 = vmatpush.msra.mxu0 0.0
      %4670 = vmatpush.msra.mxu0 %v4653
      %4671 = vmatmul.f32.gmra.mxu0 %v4557
      %v4672 = vpop.f32.mrf.mxu0
      %v4673 = vadd.f32 0.0, %v4672
      %4674 = vmatmul.f32.gmra.mxu0 %v4560
      %v4675 = vpop.f32.mrf.mxu0
      %v4676 = vadd.f32 0.0, %v4675
      %4677 = vmatmul.f32.gmra.mxu0 %v4563
      %v4678 = vpop.f32.mrf.mxu0
      %v4679 = vadd.f32 0.0, %v4678
      %4680 = vmatmul.f32.gmra.mxu0 %v4566
      %v4681 = vpop.f32.mrf.mxu0
      %v4682 = vadd.f32 0.0, %v4681
      %4683 = vmatmul.f32.gmra.mxu0 %v4569
      %v4684 = vpop.f32.mrf.mxu0
      %v4685 = vadd.f32 0.0, %v4684
      %4686 = vmatmul.f32.gmra.mxu0 %v4572
      %v4687 = vpop.f32.mrf.mxu0
      %v4688 = vadd.f32 0.0, %v4687
      %4689 = vmatmul.f32.gmra.mxu0 %v4575
      %v4690 = vpop.f32.mrf.mxu0
      %v4691 = vadd.f32 0.0, %v4690
      %4692 = vmatmul.f32.gmra.mxu0 %v4578
      %v4693 = vpop.f32.mrf.mxu0
      %v4694 = vadd.f32 0.0, %v4693
      %4695 = vmatmul.f32.gmra.mxu0 %v4581
      %v4696 = vpop.f32.mrf.mxu0
      %v4697 = vadd.f32 0.0, %v4696
      %4698 = vmatmul.f32.gmra.mxu0 %v4584
      %v4699 = vpop.f32.mrf.mxu0
      %v4700 = vadd.f32 0.0, %v4699
      %4701 = vmatmul.f32.gmra.mxu0 %v4587
      %v4702 = vpop.f32.mrf.mxu0
      %v4703 = vadd.f32 0.0, %v4702
      %4704 = vmatmul.f32.gmra.mxu0 %v4590
      %v4705 = vpop.f32.mrf.mxu0
      %v4706 = vadd.f32 0.0, %v4705
      %4707 = vmatmul.f32.gmra.mxu0 %v4593
      %v4708 = vpop.f32.mrf.mxu0
      %v4709 = vadd.f32 0.0, %v4708
      %4710 = vmatmul.f32.gmra.mxu0 %v4596
      %v4711 = vpop.f32.mrf.mxu0
      %v4712 = vadd.f32 0.0, %v4711
      %4713 = vmatmul.f32.gmra.mxu0 %v4599
      %v4714 = vpop.f32.mrf.mxu0
      %v4715 = vadd.f32 0.0, %v4714
      %4716 = vmatmul.f32.gmra.mxu0 %v4602
      %v4717 = vpop.f32.mrf.mxu0
      %v4718 = vadd.f32 0.0, %v4717
      %4719 = vmatmul.f32.gmra.mxu0 %v4605
      %v4720 = vpop.f32.mrf.mxu0
      %v4721 = vadd.f32 0.0, %v4720
      %4722 = vmatmul.f32.gmra.mxu0 %v4608
      %v4723 = vpop.f32.mrf.mxu0
      %v4724 = vadd.f32 0.0, %v4723
      %4725 = vmatmul.f32.gmra.mxu0 %v4611
      %v4726 = vpop.f32.mrf.mxu0
      %v4727 = vadd.f32 0.0, %v4726
      %4728 = vmatmul.f32.gmra.mxu0 %v4614
      %v4729 = vpop.f32.mrf.mxu0
      %v4730 = vadd.f32 0.0, %v4729
      %4731 = vmatmul.f32.gmra.mxu0 %v4617
      %v4732 = vpop.f32.mrf.mxu0
      %v4733 = vadd.f32 0.0, %v4732
      %4734 = vmatmul.f32.gmra.mxu0 %v4620
      %v4735 = vpop.f32.mrf.mxu0
      %v4736 = vadd.f32 0.0, %v4735
      %4737 = vmatmul.f32.gmra.mxu0 %v4623
      %v4738 = vpop.f32.mrf.mxu0
      %v4739 = vadd.f32 0.0, %v4738
      %4740 = vmatmul.f32.gmra.mxu0 %v4626
      %v4741 = vpop.f32.mrf.mxu0
      %v4742 = vadd.f32 0.0, %v4741
      %4743 = vmatmul.f32.gmra.mxu0 %v4629
      %v4744 = vpop.f32.mrf.mxu0
      %v4745 = vadd.f32 0.0, %v4744
      %4746 = vmatmul.f32.gmra.mxu0 %v4632
      %v4747 = vpop.f32.mrf.mxu0
      %v4748 = vadd.f32 0.0, %v4747
      %4749 = vmatmul.f32.gmra.mxu0 %v4635
      %v4750 = vpop.f32.mrf.mxu0
      %v4751 = vadd.f32 0.0, %v4750
      %4752 = vmatmul.f32.gmra.mxu0 %v4638
      %v4753 = vpop.f32.mrf.mxu0
      %v4754 = vadd.f32 0.0, %v4753
      %4755 = vmatmul.f32.gmra.mxu0 %v4641
      %v4756 = vpop.f32.mrf.mxu0
      %v4757 = vadd.f32 0.0, %v4756
      %4758 = vmatmul.f32.gmra.mxu0 %v4644
      %v4759 = vpop.f32.mrf.mxu0
      %v4760 = vadd.f32 0.0, %v4759
      %4761 = vmatmul.f32.gmra.mxu0 %v4647
      %v4762 = vpop.f32.mrf.mxu0
      %v4763 = vadd.f32 0.0, %v4762
      %4764 = vmatmul.f32.gmra.mxu0 %v4650
      %v4765 = vpop.f32.mrf.mxu0
      %v4766 = vadd.f32 0.0, %v4765
      %4767 = vdwg.mxu0
      %v4768 = vadd.f32 %v4523, %v4673
      %v4769 = vadd.f32 %v4524, %v4676
      %v4770 = vadd.f32 %v4525, %v4679
      %v4771 = vadd.f32 %v4526, %v4682
      %v4772 = vadd.f32 %v4527, %v4685
      %v4773 = vadd.f32 %v4528, %v4688
      %v4774 = vadd.f32 %v4529, %v4691
      %v4775 = vadd.f32 %v4530, %v4694
      %v4776 = vadd.f32 %v4531, %v4697
      %v4777 = vadd.f32 %v4532, %v4700
      %v4778 = vadd.f32 %v4533, %v4703
      %v4779 = vadd.f32 %v4534, %v4706
      %v4780 = vadd.f32 %v4535, %v4709
      %v4781 = vadd.f32 %v4536, %v4712
      %v4782 = vadd.f32 %v4537, %v4715
      %v4783 = vadd.f32 %v4538, %v4718
      %v4784 = vadd.f32 %v4539, %v4721
      %v4785 = vadd.f32 %v4540, %v4724
      %v4786 = vadd.f32 %v4541, %v4727
      %v4787 = vadd.f32 %v4542, %v4730
      %v4788 = vadd.f32 %v4543, %v4733
      %v4789 = vadd.f32 %v4544, %v4736
      %v4790 = vadd.f32 %v4545, %v4739
      %v4791 = vadd.f32 %v4546, %v4742
      %v4792 = vadd.f32 %v4547, %v4745
      %v4793 = vadd.f32 %v4548, %v4748
      %v4794 = vadd.f32 %v4549, %v4751
      %v4795 = vadd.f32 %v4550, %v4754
      %v4796 = vadd.f32 %v4551, %v4757
      %v4797 = vadd.f32 %v4552, %v4760
      %v4798 = vadd.f32 %v4553, %v4763
      %v4799 = vadd.f32 %v4554, %v4766
      %4800 = vst.msk [vmem:[#allocation5] sm:$0xff] %vm577, %v4768
      %4801 = vst.msk [vmem:[#allocation5 + $0x8] sm:$0xff] %vm577, %v4769
      %4802 = vst.msk [vmem:[#allocation5 + $0x10] sm:$0xff] %vm577, %v4770
      %4803 = vst.msk [vmem:[#allocation5 + $0x18] sm:$0xff] %vm577, %v4771
      %4804 = vst.msk [vmem:[#allocation5 + $0x20] sm:$0xff] %vm577, %v4772
      %4805 = vst.msk [vmem:[#allocation5 + $0x28] sm:$0xff] %vm577, %v4773
      %4806 = vst.msk [vmem:[#allocation5 + $0x30] sm:$0xff] %vm577, %v4774
      %4807 = vst.msk [vmem:[#allocation5 + $0x38] sm:$0xff] %vm577, %v4775
      %4808 = vst.msk [vmem:[#allocation5 + $0x40] sm:$0xff] %vm577, %v4776
      %4809 = vst.msk [vmem:[#allocation5 + $0x48] sm:$0xff] %vm577, %v4777
      %4810 = vst.msk [vmem:[#allocation5 + $0x50] sm:$0xff] %vm577, %v4778
      %4811 = vst.msk [vmem:[#allocation5 + $0x58] sm:$0xff] %vm577, %v4779
      %4812 = vst.msk [vmem:[#allocation5 + $0x60] sm:$0xff] %vm577, %v4780
      %4813 = vst.msk [vmem:[#allocation5 + $0x68] sm:$0xff] %vm577, %v4781
      %4814 = vst.msk [vmem:[#allocation5 + $0x70] sm:$0xff] %vm577, %v4782
      %4815 = vst.msk [vmem:[#allocation5 + $0x78] sm:$0xff] %vm577, %v4783
      %4816 = vst.msk [vmem:[#allocation5 + $0x80] sm:$0xff] %vm577, %v4784
      %4817 = vst.msk [vmem:[#allocation5 + $0x88] sm:$0xff] %vm577, %v4785
      %4818 = vst.msk [vmem:[#allocation5 + $0x90] sm:$0xff] %vm577, %v4786
      %4819 = vst.msk [vmem:[#allocation5 + $0x98] sm:$0xff] %vm577, %v4787
      %4820 = vst.msk [vmem:[#allocation5 + $0xa0] sm:$0xff] %vm577, %v4788
      %4821 = vst.msk [vmem:[#allocation5 + $0xa8] sm:$0xff] %vm577, %v4789
      %4822 = vst.msk [vmem:[#allocation5 + $0xb0] sm:$0xff] %vm577, %v4790
      %4823 = vst.msk [vmem:[#allocation5 + $0xb8] sm:$0xff] %vm577, %v4791
      %4824 = vst.msk [vmem:[#allocation5 + $0xc0] sm:$0xff] %vm577, %v4792
      %4825 = vst.msk [vmem:[#allocation5 + $0xc8] sm:$0xff] %vm577, %v4793
      %4826 = vst.msk [vmem:[#allocation5 + $0xd0] sm:$0xff] %vm577, %v4794
      %4827 = vst.msk [vmem:[#allocation5 + $0xd8] sm:$0xff] %vm577, %v4795
      %4828 = vst.msk [vmem:[#allocation5 + $0xe0] sm:$0xff] %vm577, %v4796
      %4829 = vst.msk [vmem:[#allocation5 + $0xe8] sm:$0xff] %vm577, %v4797
      %4830 = vst.msk [vmem:[#allocation5 + $0xf0] sm:$0xff] %vm577, %v4798
      %4831 = vst.msk [vmem:[#allocation5 + $0xf8] sm:$0xff] %vm577, %v4799
      %v4832 = vld [vmem:[#allocation4 + $0x1] sm:$0xff]
      %v4833 = vld [vmem:[#allocation4 + $0x9] sm:$0xff]
      %v4834 = vld [vmem:[#allocation4 + $0x19] sm:$0xff]
      %v4835 = vld [vmem:[#allocation4 + $0x21] sm:$0xff]
      %v4836 = vld [vmem:[#allocation4 + $0x31] sm:$0xff]
      %v4837 = vld [vmem:[#allocation4 + $0x39] sm:$0xff]
      %v4838 = vld [vmem:[#allocation4 + $0x49] sm:$0xff]
      %v4839 = vld [vmem:[#allocation4 + $0x51] sm:$0xff]
      %v4840 = vld [vmem:[#allocation4 + $0x61] sm:$0xff]
      %v4841 = vld [vmem:[#allocation4 + $0x69] sm:$0xff]
      %v4842 = vld [vmem:[#allocation4 + $0x79] sm:$0xff]
      %v4843 = vld [vmem:[#allocation4 + $0x81] sm:$0xff]
      %v4844 = vld [vmem:[#allocation4 + $0x91] sm:$0xff]
      %v4845 = vld [vmem:[#allocation4 + $0x99] sm:$0xff]
      %v4846 = vld [vmem:[#allocation4 + $0xa9] sm:$0xff]
      %v4847 = vld [vmem:[#allocation4 + $0xb1] sm:$0xff]
      %v4848 = vld [vmem:[#allocation4 + $0xc1] sm:$0xff]
      %v4849 = vld [vmem:[#allocation4 + $0xc9] sm:$0xff]
      %v4850 = vld [vmem:[#allocation4 + $0xd9] sm:$0xff]
      %v4851 = vld [vmem:[#allocation4 + $0xe1] sm:$0xff]
      %v4852 = vld [vmem:[#allocation4 + $0xf1] sm:$0xff]
      %v4853 = vld [vmem:[#allocation4 + $0xf9] sm:$0xff]
      %v4854 = vld [vmem:[#allocation4 + $0x109] sm:$0xff]
      %v4855 = vld [vmem:[#allocation4 + $0x111] sm:$0xff]
      %v4856 = vld [vmem:[#allocation4 + $0x121] sm:$0xff]
      %v4857 = vld [vmem:[#allocation4 + $0x129] sm:$0xff]
      %v4858 = vld [vmem:[#allocation4 + $0x139] sm:$0xff]
      %v4859 = vld [vmem:[#allocation4 + $0x141] sm:$0xff]
      %v4860 = vld [vmem:[#allocation4 + $0x151] sm:$0xff]
      %v4861 = vld [vmem:[#allocation4 + $0x159] sm:$0xff]
      %v4862 = vld [vmem:[#allocation4 + $0x169] sm:$0xff]
      %v4863 = vld [vmem:[#allocation4 + $0x171] sm:$0xff]
      %v4864 = vld [vmem:[#allocation5] sm:$0xff]
      %v4865 = vld [vmem:[#allocation5 + $0x8] sm:$0xff]
      %v4866 = vld [vmem:[#allocation5 + $0x10] sm:$0xff]
      %v4867 = vld [vmem:[#allocation5 + $0x18] sm:$0xff]
      %v4868 = vld [vmem:[#allocation5 + $0x20] sm:$0xff]
      %v4869 = vld [vmem:[#allocation5 + $0x28] sm:$0xff]
      %v4870 = vld [vmem:[#allocation5 + $0x30] sm:$0xff]
      %v4871 = vld [vmem:[#allocation5 + $0x38] sm:$0xff]
      %v4872 = vld [vmem:[#allocation5 + $0x40] sm:$0xff]
      %v4873 = vld [vmem:[#allocation5 + $0x48] sm:$0xff]
      %v4874 = vld [vmem:[#allocation5 + $0x50] sm:$0xff]
      %v4875 = vld [vmem:[#allocation5 + $0x58] sm:$0xff]
      %v4876 = vld [vmem:[#allocation5 + $0x60] sm:$0xff]
      %v4877 = vld [vmem:[#allocation5 + $0x68] sm:$0xff]
      %v4878 = vld [vmem:[#allocation5 + $0x70] sm:$0xff]
      %v4879 = vld [vmem:[#allocation5 + $0x78] sm:$0xff]
      %v4880 = vld [vmem:[#allocation5 + $0x80] sm:$0xff]
      %v4881 = vld [vmem:[#allocation5 + $0x88] sm:$0xff]
      %v4882 = vld [vmem:[#allocation5 + $0x90] sm:$0xff]
      %v4883 = vld [vmem:[#allocation5 + $0x98] sm:$0xff]
      %v4884 = vld [vmem:[#allocation5 + $0xa0] sm:$0xff]
      %v4885 = vld [vmem:[#allocation5 + $0xa8] sm:$0xff]
      %v4886 = vld [vmem:[#allocation5 + $0xb0] sm:$0xff]
      %v4887 = vld [vmem:[#allocation5 + $0xb8] sm:$0xff]
      %v4888 = vld [vmem:[#allocation5 + $0xc0] sm:$0xff]
      %v4889 = vld [vmem:[#allocation5 + $0xc8] sm:$0xff]
      %v4890 = vld [vmem:[#allocation5 + $0xd0] sm:$0xff]
      %v4891 = vld [vmem:[#allocation5 + $0xd8] sm:$0xff]
      %v4892 = vld [vmem:[#allocation5 + $0xe0] sm:$0xff]
      %v4893 = vld [vmem:[#allocation5 + $0xe8] sm:$0xff]
      %v4894 = vld [vmem:[#allocation5 + $0xf0] sm:$0xff]
      %v4895 = vld [vmem:[#allocation5 + $0xf8] sm:$0xff]
      %s4896 = scalar_lea.vmem %s4, 4
      %v4897 = vld [vmem:[%s4896] sm:$0xf]
      %v4899 = vsel %vm577, %v4832, 0
      %v4902 = vsel %vm577, %v4833, 0
      %v4905 = vsel %vm577, %v4834, 0
      %v4908 = vsel %vm577, %v4835, 0
      %v4911 = vsel %vm577, %v4836, 0
      %v4914 = vsel %vm577, %v4837, 0
      %v4917 = vsel %vm577, %v4838, 0
      %v4920 = vsel %vm577, %v4839, 0
      %v4923 = vsel %vm577, %v4840, 0
      %v4926 = vsel %vm577, %v4841, 0
      %v4929 = vsel %vm577, %v4842, 0
      %v4932 = vsel %vm577, %v4843, 0
      %v4935 = vsel %vm577, %v4844, 0
      %v4938 = vsel %vm577, %v4845, 0
      %v4941 = vsel %vm577, %v4846, 0
      %v4944 = vsel %vm577, %v4847, 0
      %v4947 = vsel %vm577, %v4848, 0
      %v4950 = vsel %vm577, %v4849, 0
      %v4953 = vsel %vm577, %v4850, 0
      %v4956 = vsel %vm577, %v4851, 0
      %v4959 = vsel %vm577, %v4852, 0
      %v4962 = vsel %vm577, %v4853, 0
      %v4965 = vsel %vm577, %v4854, 0
      %v4968 = vsel %vm577, %v4855, 0
      %v4971 = vsel %vm577, %v4856, 0
      %v4974 = vsel %vm577, %v4857, 0
      %v4977 = vsel %vm577, %v4858, 0
      %v4980 = vsel %vm577, %v4859, 0
      %v4983 = vsel %vm577, %v4860, 0
      %v4986 = vsel %vm577, %v4861, 0
      %v4989 = vsel %vm577, %v4862, 0
      %v4992 = vsel %vm577, %v4863, 0
      %v4995 = vsel %vm946, %v4897, 0
      %4997 = vmatpush.msra.mxu0 0.0
      %4998 = vmatpush.msra.mxu0 0.0
      %4999 = vmatpush.msra.mxu0 0.0
      %5000 = vmatpush.msra.mxu0 0.0
      %5001 = vmatpush.msra.mxu0 0.0
      %5002 = vmatpush.msra.mxu0 0.0
      %5003 = vmatpush.msra.mxu0 0.0
      %5004 = vmatpush.msra.mxu0 0.0
      %5005 = vmatpush.msra.mxu0 0.0
      %5006 = vmatpush.msra.mxu0 0.0
      %5007 = vmatpush.msra.mxu0 0.0
      %5008 = vmatpush.msra.mxu0 0.0
      %5009 = vmatpush.msra.mxu0 0.0
      %5010 = vmatpush.msra.mxu0 0.0
      %5011 = vmatpush.msra.mxu0 0.0
      %5012 = vmatpush.msra.mxu0 %v4995
      %5013 = vmatmul.f32.gmra.mxu0 %v4899
      %v5014 = vpop.f32.mrf.mxu0
      %v5015 = vadd.f32 0.0, %v5014
      %5016 = vmatmul.f32.gmra.mxu0 %v4902
      %v5017 = vpop.f32.mrf.mxu0
      %v5018 = vadd.f32 0.0, %v5017
      %5019 = vmatmul.f32.gmra.mxu0 %v4905
      %v5020 = vpop.f32.mrf.mxu0
      %v5021 = vadd.f32 0.0, %v5020
      %5022 = vmatmul.f32.gmra.mxu0 %v4908
      %v5023 = vpop.f32.mrf.mxu0
      %v5024 = vadd.f32 0.0, %v5023
      %5025 = vmatmul.f32.gmra.mxu0 %v4911
      %v5026 = vpop.f32.mrf.mxu0
      %v5027 = vadd.f32 0.0, %v5026
      %5028 = vmatmul.f32.gmra.mxu0 %v4914
      %v5029 = vpop.f32.mrf.mxu0
      %v5030 = vadd.f32 0.0, %v5029
      %5031 = vmatmul.f32.gmra.mxu0 %v4917
      %v5032 = vpop.f32.mrf.mxu0
      %v5033 = vadd.f32 0.0, %v5032
      %5034 = vmatmul.f32.gmra.mxu0 %v4920
      %v5035 = vpop.f32.mrf.mxu0
      %v5036 = vadd.f32 0.0, %v5035
      %5037 = vmatmul.f32.gmra.mxu0 %v4923
      %v5038 = vpop.f32.mrf.mxu0
      %v5039 = vadd.f32 0.0, %v5038
      %5040 = vmatmul.f32.gmra.mxu0 %v4926
      %v5041 = vpop.f32.mrf.mxu0
      %v5042 = vadd.f32 0.0, %v5041
      %5043 = vmatmul.f32.gmra.mxu0 %v4929
      %v5044 = vpop.f32.mrf.mxu0
      %v5045 = vadd.f32 0.0, %v5044
      %5046 = vmatmul.f32.gmra.mxu0 %v4932
      %v5047 = vpop.f32.mrf.mxu0
      %v5048 = vadd.f32 0.0, %v5047
      %5049 = vmatmul.f32.gmra.mxu0 %v4935
      %v5050 = vpop.f32.mrf.mxu0
      %v5051 = vadd.f32 0.0, %v5050
      %5052 = vmatmul.f32.gmra.mxu0 %v4938
      %v5053 = vpop.f32.mrf.mxu0
      %v5054 = vadd.f32 0.0, %v5053
      %5055 = vmatmul.f32.gmra.mxu0 %v4941
      %v5056 = vpop.f32.mrf.mxu0
      %v5057 = vadd.f32 0.0, %v5056
      %5058 = vmatmul.f32.gmra.mxu0 %v4944
      %v5059 = vpop.f32.mrf.mxu0
      %v5060 = vadd.f32 0.0, %v5059
      %5061 = vmatmul.f32.gmra.mxu0 %v4947
      %v5062 = vpop.f32.mrf.mxu0
      %v5063 = vadd.f32 0.0, %v5062
      %5064 = vmatmul.f32.gmra.mxu0 %v4950
      %v5065 = vpop.f32.mrf.mxu0
      %v5066 = vadd.f32 0.0, %v5065
      %5067 = vmatmul.f32.gmra.mxu0 %v4953
      %v5068 = vpop.f32.mrf.mxu0
      %v5069 = vadd.f32 0.0, %v5068
      %5070 = vmatmul.f32.gmra.mxu0 %v4956
      %v5071 = vpop.f32.mrf.mxu0
      %v5072 = vadd.f32 0.0, %v5071
      %5073 = vmatmul.f32.gmra.mxu0 %v4959
      %v5074 = vpop.f32.mrf.mxu0
      %v5075 = vadd.f32 0.0, %v5074
      %5076 = vmatmul.f32.gmra.mxu0 %v4962
      %v5077 = vpop.f32.mrf.mxu0
      %v5078 = vadd.f32 0.0, %v5077
      %5079 = vmatmul.f32.gmra.mxu0 %v4965
      %v5080 = vpop.f32.mrf.mxu0
      %v5081 = vadd.f32 0.0, %v5080
      %5082 = vmatmul.f32.gmra.mxu0 %v4968
      %v5083 = vpop.f32.mrf.mxu0
      %v5084 = vadd.f32 0.0, %v5083
      %5085 = vmatmul.f32.gmra.mxu0 %v4971
      %v5086 = vpop.f32.mrf.mxu0
      %v5087 = vadd.f32 0.0, %v5086
      %5088 = vmatmul.f32.gmra.mxu0 %v4974
      %v5089 = vpop.f32.mrf.mxu0
      %v5090 = vadd.f32 0.0, %v5089
      %5091 = vmatmul.f32.gmra.mxu0 %v4977
      %v5092 = vpop.f32.mrf.mxu0
      %v5093 = vadd.f32 0.0, %v5092
      %5094 = vmatmul.f32.gmra.mxu0 %v4980
      %v5095 = vpop.f32.mrf.mxu0
      %v5096 = vadd.f32 0.0, %v5095
      %5097 = vmatmul.f32.gmra.mxu0 %v4983
      %v5098 = vpop.f32.mrf.mxu0
      %v5099 = vadd.f32 0.0, %v5098
      %5100 = vmatmul.f32.gmra.mxu0 %v4986
      %v5101 = vpop.f32.mrf.mxu0
      %v5102 = vadd.f32 0.0, %v5101
      %5103 = vmatmul.f32.gmra.mxu0 %v4989
      %v5104 = vpop.f32.mrf.mxu0
      %v5105 = vadd.f32 0.0, %v5104
      %5106 = vmatmul.f32.gmra.mxu0 %v4992
      %v5107 = vpop.f32.mrf.mxu0
      %v5108 = vadd.f32 0.0, %v5107
      %5109 = vdwg.mxu0
      %v5110 = vadd.f32 %v4864, %v5015
      %v5111 = vadd.f32 %v4865, %v5018
      %v5112 = vadd.f32 %v4866, %v5021
      %v5113 = vadd.f32 %v4867, %v5024
      %v5114 = vadd.f32 %v4868, %v5027
      %v5115 = vadd.f32 %v4869, %v5030
      %v5116 = vadd.f32 %v4870, %v5033
      %v5117 = vadd.f32 %v4871, %v5036
      %v5118 = vadd.f32 %v4872, %v5039
      %v5119 = vadd.f32 %v4873, %v5042
      %v5120 = vadd.f32 %v4874, %v5045
      %v5121 = vadd.f32 %v4875, %v5048
      %v5122 = vadd.f32 %v4876, %v5051
      %v5123 = vadd.f32 %v4877, %v5054
      %v5124 = vadd.f32 %v4878, %v5057
      %v5125 = vadd.f32 %v4879, %v5060
      %v5126 = vadd.f32 %v4880, %v5063
      %v5127 = vadd.f32 %v4881, %v5066
      %v5128 = vadd.f32 %v4882, %v5069
      %v5129 = vadd.f32 %v4883, %v5072
      %v5130 = vadd.f32 %v4884, %v5075
      %v5131 = vadd.f32 %v4885, %v5078
      %v5132 = vadd.f32 %v4886, %v5081
      %v5133 = vadd.f32 %v4887, %v5084
      %v5134 = vadd.f32 %v4888, %v5087
      %v5135 = vadd.f32 %v4889, %v5090
      %v5136 = vadd.f32 %v4890, %v5093
      %v5137 = vadd.f32 %v4891, %v5096
      %v5138 = vadd.f32 %v4892, %v5099
      %v5139 = vadd.f32 %v4893, %v5102
      %v5140 = vadd.f32 %v4894, %v5105
      %v5141 = vadd.f32 %v4895, %v5108
      %5142 = vst.msk [vmem:[#allocation5] sm:$0xff] %vm577, %v5110
      %5143 = vst.msk [vmem:[#allocation5 + $0x8] sm:$0xff] %vm577, %v5111
      %5144 = vst.msk [vmem:[#allocation5 + $0x10] sm:$0xff] %vm577, %v5112
      %5145 = vst.msk [vmem:[#allocation5 + $0x18] sm:$0xff] %vm577, %v5113
      %5146 = vst.msk [vmem:[#allocation5 + $0x20] sm:$0xff] %vm577, %v5114
      %5147 = vst.msk [vmem:[#allocation5 + $0x28] sm:$0xff] %vm577, %v5115
      %5148 = vst.msk [vmem:[#allocation5 + $0x30] sm:$0xff] %vm577, %v5116
      %5149 = vst.msk [vmem:[#allocation5 + $0x38] sm:$0xff] %vm577, %v5117
      %5150 = vst.msk [vmem:[#allocation5 + $0x40] sm:$0xff] %vm577, %v5118
      %5151 = vst.msk [vmem:[#allocation5 + $0x48] sm:$0xff] %vm577, %v5119
      %5152 = vst.msk [vmem:[#allocation5 + $0x50] sm:$0xff] %vm577, %v5120
      %5153 = vst.msk [vmem:[#allocation5 + $0x58] sm:$0xff] %vm577, %v5121
      %5154 = vst.msk [vmem:[#allocation5 + $0x60] sm:$0xff] %vm577, %v5122
      %5155 = vst.msk [vmem:[#allocation5 + $0x68] sm:$0xff] %vm577, %v5123
      %5156 = vst.msk [vmem:[#allocation5 + $0x70] sm:$0xff] %vm577, %v5124
      %5157 = vst.msk [vmem:[#allocation5 + $0x78] sm:$0xff] %vm577, %v5125
      %5158 = vst.msk [vmem:[#allocation5 + $0x80] sm:$0xff] %vm577, %v5126
      %5159 = vst.msk [vmem:[#allocation5 + $0x88] sm:$0xff] %vm577, %v5127
      %5160 = vst.msk [vmem:[#allocation5 + $0x90] sm:$0xff] %vm577, %v5128
      %5161 = vst.msk [vmem:[#allocation5 + $0x98] sm:$0xff] %vm577, %v5129
      %5162 = vst.msk [vmem:[#allocation5 + $0xa0] sm:$0xff] %vm577, %v5130
      %5163 = vst.msk [vmem:[#allocation5 + $0xa8] sm:$0xff] %vm577, %v5131
      %5164 = vst.msk [vmem:[#allocation5 + $0xb0] sm:$0xff] %vm577, %v5132
      %5165 = vst.msk [vmem:[#allocation5 + $0xb8] sm:$0xff] %vm577, %v5133
      %5166 = vst.msk [vmem:[#allocation5 + $0xc0] sm:$0xff] %vm577, %v5134
      %5167 = vst.msk [vmem:[#allocation5 + $0xc8] sm:$0xff] %vm577, %v5135
      %5168 = vst.msk [vmem:[#allocation5 + $0xd0] sm:$0xff] %vm577, %v5136
      %5169 = vst.msk [vmem:[#allocation5 + $0xd8] sm:$0xff] %vm577, %v5137
      %5170 = vst.msk [vmem:[#allocation5 + $0xe0] sm:$0xff] %vm577, %v5138
      %5171 = vst.msk [vmem:[#allocation5 + $0xe8] sm:$0xff] %vm577, %v5139
      %5172 = vst.msk [vmem:[#allocation5 + $0xf0] sm:$0xff] %vm577, %v5140
      %5173 = vst.msk [vmem:[#allocation5 + $0xf8] sm:$0xff] %vm577, %v5141
      %v5174 = vld [vmem:[#allocation4 + $0x2] sm:$0xff]
      %v5175 = vld [vmem:[#allocation4 + $0xa] sm:$0xff]
      %v5176 = vld [vmem:[#allocation4 + $0x1a] sm:$0xff]
      %v5177 = vld [vmem:[#allocation4 + $0x22] sm:$0xff]
      %v5178 = vld [vmem:[#allocation4 + $0x32] sm:$0xff]
      %v5179 = vld [vmem:[#allocation4 + $0x3a] sm:$0xff]
      %v5180 = vld [vmem:[#allocation4 + $0x4a] sm:$0xff]
      %v5181 = vld [vmem:[#allocation4 + $0x52] sm:$0xff]
      %v5182 = vld [vmem:[#allocation4 + $0x62] sm:$0xff]
      %v5183 = vld [vmem:[#allocation4 + $0x6a] sm:$0xff]
      %v5184 = vld [vmem:[#allocation4 + $0x7a] sm:$0xff]
      %v5185 = vld [vmem:[#allocation4 + $0x82] sm:$0xff]
      %v5186 = vld [vmem:[#allocation4 + $0x92] sm:$0xff]
      %v5187 = vld [vmem:[#allocation4 + $0x9a] sm:$0xff]
      %v5188 = vld [vmem:[#allocation4 + $0xaa] sm:$0xff]
      %v5189 = vld [vmem:[#allocation4 + $0xb2] sm:$0xff]
      %v5190 = vld [vmem:[#allocation4 + $0xc2] sm:$0xff]
      %v5191 = vld [vmem:[#allocation4 + $0xca] sm:$0xff]
      %v5192 = vld [vmem:[#allocation4 + $0xda] sm:$0xff]
      %v5193 = vld [vmem:[#allocation4 + $0xe2] sm:$0xff]
      %v5194 = vld [vmem:[#allocation4 + $0xf2] sm:$0xff]
      %v5195 = vld [vmem:[#allocation4 + $0xfa] sm:$0xff]
      %v5196 = vld [vmem:[#allocation4 + $0x10a] sm:$0xff]
      %v5197 = vld [vmem:[#allocation4 + $0x112] sm:$0xff]
      %v5198 = vld [vmem:[#allocation4 + $0x122] sm:$0xff]
      %v5199 = vld [vmem:[#allocation4 + $0x12a] sm:$0xff]
      %v5200 = vld [vmem:[#allocation4 + $0x13a] sm:$0xff]
      %v5201 = vld [vmem:[#allocation4 + $0x142] sm:$0xff]
      %v5202 = vld [vmem:[#allocation4 + $0x152] sm:$0xff]
      %v5203 = vld [vmem:[#allocation4 + $0x15a] sm:$0xff]
      %v5204 = vld [vmem:[#allocation4 + $0x16a] sm:$0xff]
      %v5205 = vld [vmem:[#allocation4 + $0x172] sm:$0xff]
      %v5206 = vld [vmem:[#allocation5] sm:$0xff]
      %v5207 = vld [vmem:[#allocation5 + $0x8] sm:$0xff]
      %v5208 = vld [vmem:[#allocation5 + $0x10] sm:$0xff]
      %v5209 = vld [vmem:[#allocation5 + $0x18] sm:$0xff]
      %v5210 = vld [vmem:[#allocation5 + $0x20] sm:$0xff]
      %v5211 = vld [vmem:[#allocation5 + $0x28] sm:$0xff]
      %v5212 = vld [vmem:[#allocation5 + $0x30] sm:$0xff]
      %v5213 = vld [vmem:[#allocation5 + $0x38] sm:$0xff]
      %v5214 = vld [vmem:[#allocation5 + $0x40] sm:$0xff]
      %v5215 = vld [vmem:[#allocation5 + $0x48] sm:$0xff]
      %v5216 = vld [vmem:[#allocation5 + $0x50] sm:$0xff]
      %v5217 = vld [vmem:[#allocation5 + $0x58] sm:$0xff]
      %v5218 = vld [vmem:[#allocation5 + $0x60] sm:$0xff]
      %v5219 = vld [vmem:[#allocation5 + $0x68] sm:$0xff]
      %v5220 = vld [vmem:[#allocation5 + $0x70] sm:$0xff]
      %v5221 = vld [vmem:[#allocation5 + $0x78] sm:$0xff]
      %v5222 = vld [vmem:[#allocation5 + $0x80] sm:$0xff]
      %v5223 = vld [vmem:[#allocation5 + $0x88] sm:$0xff]
      %v5224 = vld [vmem:[#allocation5 + $0x90] sm:$0xff]
      %v5225 = vld [vmem:[#allocation5 + $0x98] sm:$0xff]
      %v5226 = vld [vmem:[#allocation5 + $0xa0] sm:$0xff]
      %v5227 = vld [vmem:[#allocation5 + $0xa8] sm:$0xff]
      %v5228 = vld [vmem:[#allocation5 + $0xb0] sm:$0xff]
      %v5229 = vld [vmem:[#allocation5 + $0xb8] sm:$0xff]
      %v5230 = vld [vmem:[#allocation5 + $0xc0] sm:$0xff]
      %v5231 = vld [vmem:[#allocation5 + $0xc8] sm:$0xff]
      %v5232 = vld [vmem:[#allocation5 + $0xd0] sm:$0xff]
      %v5233 = vld [vmem:[#allocation5 + $0xd8] sm:$0xff]
      %v5234 = vld [vmem:[#allocation5 + $0xe0] sm:$0xff]
      %v5235 = vld [vmem:[#allocation5 + $0xe8] sm:$0xff]
      %v5236 = vld [vmem:[#allocation5 + $0xf0] sm:$0xff]
      %v5237 = vld [vmem:[#allocation5 + $0xf8] sm:$0xff]
      %s5238 = scalar_lea.vmem %s4, 8
      %v5239 = vld [vmem:[%s5238] sm:$0xf]
      %v5241 = vsel %vm577, %v5174, 0
      %v5244 = vsel %vm577, %v5175, 0
      %v5247 = vsel %vm577, %v5176, 0
      %v5250 = vsel %vm577, %v5177, 0
      %v5253 = vsel %vm577, %v5178, 0
      %v5256 = vsel %vm577, %v5179, 0
      %v5259 = vsel %vm577, %v5180, 0
      %v5262 = vsel %vm577, %v5181, 0
      %v5265 = vsel %vm577, %v5182, 0
      %v5268 = vsel %vm577, %v5183, 0
      %v5271 = vsel %vm577, %v5184, 0
      %v5274 = vsel %vm577, %v5185, 0
      %v5277 = vsel %vm577, %v5186, 0
      %v5280 = vsel %vm577, %v5187, 0
      %v5283 = vsel %vm577, %v5188, 0
      %v5286 = vsel %vm577, %v5189, 0
      %v5289 = vsel %vm577, %v5190, 0
      %v5292 = vsel %vm577, %v5191, 0
      %v5295 = vsel %vm577, %v5192, 0
      %v5298 = vsel %vm577, %v5193, 0
      %v5301 = vsel %vm577, %v5194, 0
      %v5304 = vsel %vm577, %v5195, 0
      %v5307 = vsel %vm577, %v5196, 0
      %v5310 = vsel %vm577, %v5197, 0
      %v5313 = vsel %vm577, %v5198, 0
      %v5316 = vsel %vm577, %v5199, 0
      %v5319 = vsel %vm577, %v5200, 0
      %v5322 = vsel %vm577, %v5201, 0
      %v5325 = vsel %vm577, %v5202, 0
      %v5328 = vsel %vm577, %v5203, 0
      %v5331 = vsel %vm577, %v5204, 0
      %v5334 = vsel %vm577, %v5205, 0
      %v5337 = vsel %vm946, %v5239, 0
      %5339 = vmatpush.msra.mxu0 0.0
      %5340 = vmatpush.msra.mxu0 0.0
      %5341 = vmatpush.msra.mxu0 0.0
      %5342 = vmatpush.msra.mxu0 0.0
      %5343 = vmatpush.msra.mxu0 0.0
      %5344 = vmatpush.msra.mxu0 0.0
      %5345 = vmatpush.msra.mxu0 0.0
      %5346 = vmatpush.msra.mxu0 0.0
      %5347 = vmatpush.msra.mxu0 0.0
      %5348 = vmatpush.msra.mxu0 0.0
      %5349 = vmatpush.msra.mxu0 0.0
      %5350 = vmatpush.msra.mxu0 0.0
      %5351 = vmatpush.msra.mxu0 0.0
      %5352 = vmatpush.msra.mxu0 0.0
      %5353 = vmatpush.msra.mxu0 0.0
      %5354 = vmatpush.msra.mxu0 %v5337
      %5355 = vmatmul.f32.gmra.mxu0 %v5241
      %v5356 = vpop.f32.mrf.mxu0
      %v5357 = vadd.f32 0.0, %v5356
      %5358 = vmatmul.f32.gmra.mxu0 %v5244
      %v5359 = vpop.f32.mrf.mxu0
      %v5360 = vadd.f32 0.0, %v5359
      %5361 = vmatmul.f32.gmra.mxu0 %v5247
      %v5362 = vpop.f32.mrf.mxu0
      %v5363 = vadd.f32 0.0, %v5362
      %5364 = vmatmul.f32.gmra.mxu0 %v5250
      %v5365 = vpop.f32.mrf.mxu0
      %v5366 = vadd.f32 0.0, %v5365
      %5367 = vmatmul.f32.gmra.mxu0 %v5253
      %v5368 = vpop.f32.mrf.mxu0
      %v5369 = vadd.f32 0.0, %v5368
      %5370 = vmatmul.f32.gmra.mxu0 %v5256
      %v5371 = vpop.f32.mrf.mxu0
      %v5372 = vadd.f32 0.0, %v5371
      %5373 = vmatmul.f32.gmra.mxu0 %v5259
      %v5374 = vpop.f32.mrf.mxu0
      %v5375 = vadd.f32 0.0, %v5374
      %5376 = vmatmul.f32.gmra.mxu0 %v5262
      %v5377 = vpop.f32.mrf.mxu0
      %v5378 = vadd.f32 0.0, %v5377
      %5379 = vmatmul.f32.gmra.mxu0 %v5265
      %v5380 = vpop.f32.mrf.mxu0
      %v5381 = vadd.f32 0.0, %v5380
      %5382 = vmatmul.f32.gmra.mxu0 %v5268
      %v5383 = vpop.f32.mrf.mxu0
      %v5384 = vadd.f32 0.0, %v5383
      %5385 = vmatmul.f32.gmra.mxu0 %v5271
      %v5386 = vpop.f32.mrf.mxu0
      %v5387 = vadd.f32 0.0, %v5386
      %5388 = vmatmul.f32.gmra.mxu0 %v5274
      %v5389 = vpop.f32.mrf.mxu0
      %v5390 = vadd.f32 0.0, %v5389
      %5391 = vmatmul.f32.gmra.mxu0 %v5277
      %v5392 = vpop.f32.mrf.mxu0
      %v5393 = vadd.f32 0.0, %v5392
      %5394 = vmatmul.f32.gmra.mxu0 %v5280
      %v5395 = vpop.f32.mrf.mxu0
      %v5396 = vadd.f32 0.0, %v5395
      %5397 = vmatmul.f32.gmra.mxu0 %v5283
      %v5398 = vpop.f32.mrf.mxu0
      %v5399 = vadd.f32 0.0, %v5398
      %5400 = vmatmul.f32.gmra.mxu0 %v5286
      %v5401 = vpop.f32.mrf.mxu0
      %v5402 = vadd.f32 0.0, %v5401
      %5403 = vmatmul.f32.gmra.mxu0 %v5289
      %v5404 = vpop.f32.mrf.mxu0
      %v5405 = vadd.f32 0.0, %v5404
      %5406 = vmatmul.f32.gmra.mxu0 %v5292
      %v5407 = vpop.f32.mrf.mxu0
      %v5408 = vadd.f32 0.0, %v5407
      %5409 = vmatmul.f32.gmra.mxu0 %v5295
      %v5410 = vpop.f32.mrf.mxu0
      %v5411 = vadd.f32 0.0, %v5410
      %5412 = vmatmul.f32.gmra.mxu0 %v5298
      %v5413 = vpop.f32.mrf.mxu0
      %v5414 = vadd.f32 0.0, %v5413
      %5415 = vmatmul.f32.gmra.mxu0 %v5301
      %v5416 = vpop.f32.mrf.mxu0
      %v5417 = vadd.f32 0.0, %v5416
      %5418 = vmatmul.f32.gmra.mxu0 %v5304
      %v5419 = vpop.f32.mrf.mxu0
      %v5420 = vadd.f32 0.0, %v5419
      %5421 = vmatmul.f32.gmra.mxu0 %v5307
      %v5422 = vpop.f32.mrf.mxu0
      %v5423 = vadd.f32 0.0, %v5422
      %5424 = vmatmul.f32.gmra.mxu0 %v5310
      %v5425 = vpop.f32.mrf.mxu0
      %v5426 = vadd.f32 0.0, %v5425
      %5427 = vmatmul.f32.gmra.mxu0 %v5313
      %v5428 = vpop.f32.mrf.mxu0
      %v5429 = vadd.f32 0.0, %v5428
      %5430 = vmatmul.f32.gmra.mxu0 %v5316
      %v5431 = vpop.f32.mrf.mxu0
      %v5432 = vadd.f32 0.0, %v5431
      %5433 = vmatmul.f32.gmra.mxu0 %v5319
      %v5434 = vpop.f32.mrf.mxu0
      %v5435 = vadd.f32 0.0, %v5434
      %5436 = vmatmul.f32.gmra.mxu0 %v5322
      %v5437 = vpop.f32.mrf.mxu0
      %v5438 = vadd.f32 0.0, %v5437
      %5439 = vmatmul.f32.gmra.mxu0 %v5325
      %v5440 = vpop.f32.mrf.mxu0
      %v5441 = vadd.f32 0.0, %v5440
      %5442 = vmatmul.f32.gmra.mxu0 %v5328
      %v5443 = vpop.f32.mrf.mxu0
      %v5444 = vadd.f32 0.0, %v5443
      %5445 = vmatmul.f32.gmra.mxu0 %v5331
      %v5446 = vpop.f32.mrf.mxu0
      %v5447 = vadd.f32 0.0, %v5446
      %5448 = vmatmul.f32.gmra.mxu0 %v5334
      %v5449 = vpop.f32.mrf.mxu0
      %v5450 = vadd.f32 0.0, %v5449
      %5451 = vdwg.mxu0
      %v5452 = vadd.f32 %v5206, %v5357
      %v5453 = vadd.f32 %v5207, %v5360
      %v5454 = vadd.f32 %v5208, %v5363
      %v5455 = vadd.f32 %v5209, %v5366
      %v5456 = vadd.f32 %v5210, %v5369
      %v5457 = vadd.f32 %v5211, %v5372
      %v5458 = vadd.f32 %v5212, %v5375
      %v5459 = vadd.f32 %v5213, %v5378
      %v5460 = vadd.f32 %v5214, %v5381
      %v5461 = vadd.f32 %v5215, %v5384
      %v5462 = vadd.f32 %v5216, %v5387
      %v5463 = vadd.f32 %v5217, %v5390
      %v5464 = vadd.f32 %v5218, %v5393
      %v5465 = vadd.f32 %v5219, %v5396
      %v5466 = vadd.f32 %v5220, %v5399
      %v5467 = vadd.f32 %v5221, %v5402
      %v5468 = vadd.f32 %v5222, %v5405
      %v5469 = vadd.f32 %v5223, %v5408
      %v5470 = vadd.f32 %v5224, %v5411
      %v5471 = vadd.f32 %v5225, %v5414
      %v5472 = vadd.f32 %v5226, %v5417
      %v5473 = vadd.f32 %v5227, %v5420
      %v5474 = vadd.f32 %v5228, %v5423
      %v5475 = vadd.f32 %v5229, %v5426
      %v5476 = vadd.f32 %v5230, %v5429
      %v5477 = vadd.f32 %v5231, %v5432
      %v5478 = vadd.f32 %v5232, %v5435
      %v5479 = vadd.f32 %v5233, %v5438
      %v5480 = vadd.f32 %v5234, %v5441
      %v5481 = vadd.f32 %v5235, %v5444
      %v5482 = vadd.f32 %v5236, %v5447
      %v5483 = vadd.f32 %v5237, %v5450
      %5484 = vst.msk [vmem:[#allocation5] sm:$0xff] %vm577, %v5452
      %5485 = vst.msk [vmem:[#allocation5 + $0x8] sm:$0xff] %vm577, %v5453
      %5486 = vst.msk [vmem:[#allocation5 + $0x10] sm:$0xff] %vm577, %v5454
      %5487 = vst.msk [vmem:[#allocation5 + $0x18] sm:$0xff] %vm577, %v5455
      %5488 = vst.msk [vmem:[#allocation5 + $0x20] sm:$0xff] %vm577, %v5456
      %5489 = vst.msk [vmem:[#allocation5 + $0x28] sm:$0xff] %vm577, %v5457
      %5490 = vst.msk [vmem:[#allocation5 + $0x30] sm:$0xff] %vm577, %v5458
      %5491 = vst.msk [vmem:[#allocation5 + $0x38] sm:$0xff] %vm577, %v5459
      %5492 = vst.msk [vmem:[#allocation5 + $0x40] sm:$0xff] %vm577, %v5460
      %5493 = vst.msk [vmem:[#allocation5 + $0x48] sm:$0xff] %vm577, %v5461
      %5494 = vst.msk [vmem:[#allocation5 + $0x50] sm:$0xff] %vm577, %v5462
      %5495 = vst.msk [vmem:[#allocation5 + $0x58] sm:$0xff] %vm577, %v5463
      %5496 = vst.msk [vmem:[#allocation5 + $0x60] sm:$0xff] %vm577, %v5464
      %5497 = vst.msk [vmem:[#allocation5 + $0x68] sm:$0xff] %vm577, %v5465
      %5498 = vst.msk [vmem:[#allocation5 + $0x70] sm:$0xff] %vm577, %v5466
      %5499 = vst.msk [vmem:[#allocation5 + $0x78] sm:$0xff] %vm577, %v5467
      %5500 = vst.msk [vmem:[#allocation5 + $0x80] sm:$0xff] %vm577, %v5468
      %5501 = vst.msk [vmem:[#allocation5 + $0x88] sm:$0xff] %vm577, %v5469
      %5502 = vst.msk [vmem:[#allocation5 + $0x90] sm:$0xff] %vm577, %v5470
      %5503 = vst.msk [vmem:[#allocation5 + $0x98] sm:$0xff] %vm577, %v5471
      %5504 = vst.msk [vmem:[#allocation5 + $0xa0] sm:$0xff] %vm577, %v5472
      %5505 = vst.msk [vmem:[#allocation5 + $0xa8] sm:$0xff] %vm577, %v5473
      %5506 = vst.msk [vmem:[#allocation5 + $0xb0] sm:$0xff] %vm577, %v5474
      %5507 = vst.msk [vmem:[#allocation5 + $0xb8] sm:$0xff] %vm577, %v5475
      %5508 = vst.msk [vmem:[#allocation5 + $0xc0] sm:$0xff] %vm577, %v5476
      %5509 = vst.msk [vmem:[#allocation5 + $0xc8] sm:$0xff] %vm577, %v5477
      %5510 = vst.msk [vmem:[#allocation5 + $0xd0] sm:$0xff] %vm577, %v5478
      %5511 = vst.msk [vmem:[#allocation5 + $0xd8] sm:$0xff] %vm577, %v5479
      %5512 = vst.msk [vmem:[#allocation5 + $0xe0] sm:$0xff] %vm577, %v5480
      %5513 = vst.msk [vmem:[#allocation5 + $0xe8] sm:$0xff] %vm577, %v5481
      %5514 = vst.msk [vmem:[#allocation5 + $0xf0] sm:$0xff] %vm577, %v5482
      %5515 = vst.msk [vmem:[#allocation5 + $0xf8] sm:$0xff] %vm577, %v5483
      %s5516 = scalar_lea.vmem [#allocation4], 24
      %v5517 = vld [vmem:[%s5516] sm:$0xff]
      %v5518 = vld [vmem:[%s5516 + $0x8] sm:$0xff]
      %v5519 = vld [vmem:[%s5516 + $0x18] sm:$0xff]
      %v5520 = vld [vmem:[%s5516 + $0x20] sm:$0xff]
      %v5521 = vld [vmem:[%s5516 + $0x30] sm:$0xff]
      %v5522 = vld [vmem:[%s5516 + $0x38] sm:$0xff]
      %v5523 = vld [vmem:[%s5516 + $0x48] sm:$0xff]
      %v5524 = vld [vmem:[%s5516 + $0x50] sm:$0xff]
      %v5525 = vld [vmem:[%s5516 + $0x60] sm:$0xff]
      %v5526 = vld [vmem:[%s5516 + $0x68] sm:$0xff]
      %v5527 = vld [vmem:[%s5516 + $0x78] sm:$0xff]
      %v5528 = vld [vmem:[%s5516 + $0x80] sm:$0xff]
      %v5529 = vld [vmem:[%s5516 + $0x90] sm:$0xff]
      %v5530 = vld [vmem:[%s5516 + $0x98] sm:$0xff]
      %v5531 = vld [vmem:[%s5516 + $0xa8] sm:$0xff]
      %v5532 = vld [vmem:[%s5516 + $0xb0] sm:$0xff]
      %v5533 = vld [vmem:[%s5516 + $0xc0] sm:$0xff]
      %v5534 = vld [vmem:[%s5516 + $0xc8] sm:$0xff]
      %v5535 = vld [vmem:[%s5516 + $0xd8] sm:$0xff]
      %v5536 = vld [vmem:[%s5516 + $0xe0] sm:$0xff]
      %v5537 = vld [vmem:[%s5516 + $0xf0] sm:$0xff]
      %v5538 = vld [vmem:[%s5516 + $0xf8] sm:$0xff]
      %v5539 = vld [vmem:[%s5516 + $0x108] sm:$0xff]
      %v5540 = vld [vmem:[%s5516 + $0x110] sm:$0xff]
      %v5541 = vld [vmem:[%s5516 + $0x120] sm:$0xff]
      %v5542 = vld [vmem:[%s5516 + $0x128] sm:$0xff]
      %v5543 = vld [vmem:[%s5516 + $0x138] sm:$0xff]
      %v5544 = vld [vmem:[%s5516 + $0x140] sm:$0xff]
      %v5545 = vld [vmem:[%s5516 + $0x150] sm:$0xff]
      %v5546 = vld [vmem:[%s5516 + $0x158] sm:$0xff]
      %v5547 = vld [vmem:[%s5516 + $0x168] sm:$0xff]
      %v5548 = vld [vmem:[%s5516 + $0x170] sm:$0xff]
      %v5549 = vld [vmem:[#allocation5] sm:$0xff]
      %v5550 = vld [vmem:[#allocation5 + $0x8] sm:$0xff]
      %v5551 = vld [vmem:[#allocation5 + $0x10] sm:$0xff]
      %v5552 = vld [vmem:[#allocation5 + $0x18] sm:$0xff]
      %v5553 = vld [vmem:[#allocation5 + $0x20] sm:$0xff]
      %v5554 = vld [vmem:[#allocation5 + $0x28] sm:$0xff]
      %v5555 = vld [vmem:[#allocation5 + $0x30] sm:$0xff]
      %v5556 = vld [vmem:[#allocation5 + $0x38] sm:$0xff]
      %v5557 = vld [vmem:[#allocation5 + $0x40] sm:$0xff]
      %v5558 = vld [vmem:[#allocation5 + $0x48] sm:$0xff]
      %v5559 = vld [vmem:[#allocation5 + $0x50] sm:$0xff]
      %v5560 = vld [vmem:[#allocation5 + $0x58] sm:$0xff]
      %v5561 = vld [vmem:[#allocation5 + $0x60] sm:$0xff]
      %v5562 = vld [vmem:[#allocation5 + $0x68] sm:$0xff]
      %v5563 = vld [vmem:[#allocation5 + $0x70] sm:$0xff]
      %v5564 = vld [vmem:[#allocation5 + $0x78] sm:$0xff]
      %v5565 = vld [vmem:[#allocation5 + $0x80] sm:$0xff]
      %v5566 = vld [vmem:[#allocation5 + $0x88] sm:$0xff]
      %v5567 = vld [vmem:[#allocation5 + $0x90] sm:$0xff]
      %v5568 = vld [vmem:[#allocation5 + $0x98] sm:$0xff]
      %v5569 = vld [vmem:[#allocation5 + $0xa0] sm:$0xff]
      %v5570 = vld [vmem:[#allocation5 + $0xa8] sm:$0xff]
      %v5571 = vld [vmem:[#allocation5 + $0xb0] sm:$0xff]
      %v5572 = vld [vmem:[#allocation5 + $0xb8] sm:$0xff]
      %v5573 = vld [vmem:[#allocation5 + $0xc0] sm:$0xff]
      %v5574 = vld [vmem:[#allocation5 + $0xc8] sm:$0xff]
      %v5575 = vld [vmem:[#allocation5 + $0xd0] sm:$0xff]
      %v5576 = vld [vmem:[#allocation5 + $0xd8] sm:$0xff]
      %v5577 = vld [vmem:[#allocation5 + $0xe0] sm:$0xff]
      %v5578 = vld [vmem:[#allocation5 + $0xe8] sm:$0xff]
      %v5579 = vld [vmem:[#allocation5 + $0xf0] sm:$0xff]
      %v5580 = vld [vmem:[#allocation5 + $0xf8] sm:$0xff]
      %s5581 = scalar_lea.vmem %s4, 12
      %v5582 = vld [vmem:[%s5581] sm:$0xf]
      %v5584 = vsel %vm577, %v5517, 0
      %v5587 = vsel %vm577, %v5518, 0
      %v5590 = vsel %vm577, %v5519, 0
      %v5593 = vsel %vm577, %v5520, 0
      %v5596 = vsel %vm577, %v5521, 0
      %v5599 = vsel %vm577, %v5522, 0
      %v5602 = vsel %vm577, %v5523, 0
      %v5605 = vsel %vm577, %v5524, 0
      %v5608 = vsel %vm577, %v5525, 0
      %v5611 = vsel %vm577, %v5526, 0
      %v5614 = vsel %vm577, %v5527, 0
      %v5617 = vsel %vm577, %v5528, 0
      %v5620 = vsel %vm577, %v5529, 0
      %v5623 = vsel %vm577, %v5530, 0
      %v5626 = vsel %vm577, %v5531, 0
      %v5629 = vsel %vm577, %v5532, 0
      %v5632 = vsel %vm577, %v5533, 0
      %v5635 = vsel %vm577, %v5534, 0
      %v5638 = vsel %vm577, %v5535, 0
      %v5641 = vsel %vm577, %v5536, 0
      %v5644 = vsel %vm577, %v5537, 0
      %v5647 = vsel %vm577, %v5538, 0
      %v5650 = vsel %vm577, %v5539, 0
      %v5653 = vsel %vm577, %v5540, 0
      %v5656 = vsel %vm577, %v5541, 0
      %v5659 = vsel %vm577, %v5542, 0
      %v5662 = vsel %vm577, %v5543, 0
      %v5665 = vsel %vm577, %v5544, 0
      %v5668 = vsel %vm577, %v5545, 0
      %v5671 = vsel %vm577, %v5546, 0
      %v5674 = vsel %vm577, %v5547, 0
      %v5677 = vsel %vm577, %v5548, 0
      %v5680 = vsel %vm946, %v5582, 0
      %5682 = vmatpush.msra.mxu0 0.0
      %5683 = vmatpush.msra.mxu0 0.0
      %5684 = vmatpush.msra.mxu0 0.0
      %5685 = vmatpush.msra.mxu0 0.0
      %5686 = vmatpush.msra.mxu0 0.0
      %5687 = vmatpush.msra.mxu0 0.0
      %5688 = vmatpush.msra.mxu0 0.0
      %5689 = vmatpush.msra.mxu0 0.0
      %5690 = vmatpush.msra.mxu0 0.0
      %5691 = vmatpush.msra.mxu0 0.0
      %5692 = vmatpush.msra.mxu0 0.0
      %5693 = vmatpush.msra.mxu0 0.0
      %5694 = vmatpush.msra.mxu0 0.0
      %5695 = vmatpush.msra.mxu0 0.0
      %5696 = vmatpush.msra.mxu0 0.0
      %5697 = vmatpush.msra.mxu0 %v5680
      %5698 = vmatmul.f32.gmra.mxu0 %v5584
      %v5699 = vpop.f32.mrf.mxu0
      %v5700 = vadd.f32 0.0, %v5699
      %5701 = vmatmul.f32.gmra.mxu0 %v5587
      %v5702 = vpop.f32.mrf.mxu0
      %v5703 = vadd.f32 0.0, %v5702
      %5704 = vmatmul.f32.gmra.mxu0 %v5590
      %v5705 = vpop.f32.mrf.mxu0
      %v5706 = vadd.f32 0.0, %v5705
      %5707 = vmatmul.f32.gmra.mxu0 %v5593
      %v5708 = vpop.f32.mrf.mxu0
      %v5709 = vadd.f32 0.0, %v5708
      %5710 = vmatmul.f32.gmra.mxu0 %v5596
      %v5711 = vpop.f32.mrf.mxu0
      %v5712 = vadd.f32 0.0, %v5711
      %5713 = vmatmul.f32.gmra.mxu0 %v5599
      %v5714 = vpop.f32.mrf.mxu0
      %v5715 = vadd.f32 0.0, %v5714
      %5716 = vmatmul.f32.gmra.mxu0 %v5602
      %v5717 = vpop.f32.mrf.mxu0
      %v5718 = vadd.f32 0.0, %v5717
      %5719 = vmatmul.f32.gmra.mxu0 %v5605
      %v5720 = vpop.f32.mrf.mxu0
      %v5721 = vadd.f32 0.0, %v5720
      %5722 = vmatmul.f32.gmra.mxu0 %v5608
      %v5723 = vpop.f32.mrf.mxu0
      %v5724 = vadd.f32 0.0, %v5723
      %5725 = vmatmul.f32.gmra.mxu0 %v5611
      %v5726 = vpop.f32.mrf.mxu0
      %v5727 = vadd.f32 0.0, %v5726
      %5728 = vmatmul.f32.gmra.mxu0 %v5614
      %v5729 = vpop.f32.mrf.mxu0
      %v5730 = vadd.f32 0.0, %v5729
      %5731 = vmatmul.f32.gmra.mxu0 %v5617
      %v5732 = vpop.f32.mrf.mxu0
      %v5733 = vadd.f32 0.0, %v5732
      %5734 = vmatmul.f32.gmra.mxu0 %v5620
      %v5735 = vpop.f32.mrf.mxu0
      %v5736 = vadd.f32 0.0, %v5735
      %5737 = vmatmul.f32.gmra.mxu0 %v5623
      %v5738 = vpop.f32.mrf.mxu0
      %v5739 = vadd.f32 0.0, %v5738
      %5740 = vmatmul.f32.gmra.mxu0 %v5626
      %v5741 = vpop.f32.mrf.mxu0
      %v5742 = vadd.f32 0.0, %v5741
      %5743 = vmatmul.f32.gmra.mxu0 %v5629
      %v5744 = vpop.f32.mrf.mxu0
      %v5745 = vadd.f32 0.0, %v5744
      %5746 = vmatmul.f32.gmra.mxu0 %v5632
      %v5747 = vpop.f32.mrf.mxu0
      %v5748 = vadd.f32 0.0, %v5747
      %5749 = vmatmul.f32.gmra.mxu0 %v5635
      %v5750 = vpop.f32.mrf.mxu0
      %v5751 = vadd.f32 0.0, %v5750
      %5752 = vmatmul.f32.gmra.mxu0 %v5638
      %v5753 = vpop.f32.mrf.mxu0
      %v5754 = vadd.f32 0.0, %v5753
      %5755 = vmatmul.f32.gmra.mxu0 %v5641
      %v5756 = vpop.f32.mrf.mxu0
      %v5757 = vadd.f32 0.0, %v5756
      %5758 = vmatmul.f32.gmra.mxu0 %v5644
      %v5759 = vpop.f32.mrf.mxu0
      %v5760 = vadd.f32 0.0, %v5759
      %5761 = vmatmul.f32.gmra.mxu0 %v5647
      %v5762 = vpop.f32.mrf.mxu0
      %v5763 = vadd.f32 0.0, %v5762
      %5764 = vmatmul.f32.gmra.mxu0 %v5650
      %v5765 = vpop.f32.mrf.mxu0
      %v5766 = vadd.f32 0.0, %v5765
      %5767 = vmatmul.f32.gmra.mxu0 %v5653
      %v5768 = vpop.f32.mrf.mxu0
      %v5769 = vadd.f32 0.0, %v5768
      %5770 = vmatmul.f32.gmra.mxu0 %v5656
      %v5771 = vpop.f32.mrf.mxu0
      %v5772 = vadd.f32 0.0, %v5771
      %5773 = vmatmul.f32.gmra.mxu0 %v5659
      %v5774 = vpop.f32.mrf.mxu0
      %v5775 = vadd.f32 0.0, %v5774
      %5776 = vmatmul.f32.gmra.mxu0 %v5662
      %v5777 = vpop.f32.mrf.mxu0
      %v5778 = vadd.f32 0.0, %v5777
      %5779 = vmatmul.f32.gmra.mxu0 %v5665
      %v5780 = vpop.f32.mrf.mxu0
      %v5781 = vadd.f32 0.0, %v5780
      %5782 = vmatmul.f32.gmra.mxu0 %v5668
      %v5783 = vpop.f32.mrf.mxu0
      %v5784 = vadd.f32 0.0, %v5783
      %5785 = vmatmul.f32.gmra.mxu0 %v5671
      %v5786 = vpop.f32.mrf.mxu0
      %v5787 = vadd.f32 0.0, %v5786
      %5788 = vmatmul.f32.gmra.mxu0 %v5674
      %v5789 = vpop.f32.mrf.mxu0
      %v5790 = vadd.f32 0.0, %v5789
      %5791 = vmatmul.f32.gmra.mxu0 %v5677
      %v5792 = vpop.f32.mrf.mxu0
      %v5793 = vadd.f32 0.0, %v5792
      %5794 = vdwg.mxu0
      %v5795 = vadd.f32 %v5549, %v5700
      %v5796 = vadd.f32 %v5550, %v5703
      %v5797 = vadd.f32 %v5551, %v5706
      %v5798 = vadd.f32 %v5552, %v5709
      %v5799 = vadd.f32 %v5553, %v5712
      %v5800 = vadd.f32 %v5554, %v5715
      %v5801 = vadd.f32 %v5555, %v5718
      %v5802 = vadd.f32 %v5556, %v5721
      %v5803 = vadd.f32 %v5557, %v5724
      %v5804 = vadd.f32 %v5558, %v5727
      %v5805 = vadd.f32 %v5559, %v5730
      %v5806 = vadd.f32 %v5560, %v5733
      %v5807 = vadd.f32 %v5561, %v5736
      %v5808 = vadd.f32 %v5562, %v5739
      %v5809 = vadd.f32 %v5563, %v5742
      %v5810 = vadd.f32 %v5564, %v5745
      %v5811 = vadd.f32 %v5565, %v5748
      %v5812 = vadd.f32 %v5566, %v5751
      %v5813 = vadd.f32 %v5567, %v5754
      %v5814 = vadd.f32 %v5568, %v5757
      %v5815 = vadd.f32 %v5569, %v5760
      %v5816 = vadd.f32 %v5570, %v5763
      %v5817 = vadd.f32 %v5571, %v5766
      %v5818 = vadd.f32 %v5572, %v5769
      %v5819 = vadd.f32 %v5573, %v5772
      %v5820 = vadd.f32 %v5574, %v5775
      %v5821 = vadd.f32 %v5575, %v5778
      %v5822 = vadd.f32 %v5576, %v5781
      %v5823 = vadd.f32 %v5577, %v5784
      %v5824 = vadd.f32 %v5578, %v5787
      %v5825 = vadd.f32 %v5579, %v5790
      %v5826 = vadd.f32 %v5580, %v5793
      %5827 = vst.msk [vmem:[#allocation5] sm:$0xff] %vm577, %v5795
      %5828 = vst.msk [vmem:[#allocation5 + $0x8] sm:$0xff] %vm577, %v5796
      %5829 = vst.msk [vmem:[#allocation5 + $0x10] sm:$0xff] %vm577, %v5797
      %5830 = vst.msk [vmem:[#allocation5 + $0x18] sm:$0xff] %vm577, %v5798
      %5831 = vst.msk [vmem:[#allocation5 + $0x20] sm:$0xff] %vm577, %v5799
      %5832 = vst.msk [vmem:[#allocation5 + $0x28] sm:$0xff] %vm577, %v5800
      %5833 = vst.msk [vmem:[#allocation5 + $0x30] sm:$0xff] %vm577, %v5801
      %5834 = vst.msk [vmem:[#allocation5 + $0x38] sm:$0xff] %vm577, %v5802
      %5835 = vst.msk [vmem:[#allocation5 + $0x40] sm:$0xff] %vm577, %v5803
      %5836 = vst.msk [vmem:[#allocation5 + $0x48] sm:$0xff] %vm577, %v5804
      %5837 = vst.msk [vmem:[#allocation5 + $0x50] sm:$0xff] %vm577, %v5805
      %5838 = vst.msk [vmem:[#allocation5 + $0x58] sm:$0xff] %vm577, %v5806
      %5839 = vst.msk [vmem:[#allocation5 + $0x60] sm:$0xff] %vm577, %v5807
      %5840 = vst.msk [vmem:[#allocation5 + $0x68] sm:$0xff] %vm577, %v5808
      %5841 = vst.msk [vmem:[#allocation5 + $0x70] sm:$0xff] %vm577, %v5809
      %5842 = vst.msk [vmem:[#allocation5 + $0x78] sm:$0xff] %vm577, %v5810
      %5843 = vst.msk [vmem:[#allocation5 + $0x80] sm:$0xff] %vm577, %v5811
      %5844 = vst.msk [vmem:[#allocation5 + $0x88] sm:$0xff] %vm577, %v5812
      %5845 = vst.msk [vmem:[#allocation5 + $0x90] sm:$0xff] %vm577, %v5813
      %5846 = vst.msk [vmem:[#allocation5 + $0x98] sm:$0xff] %vm577, %v5814
      %5847 = vst.msk [vmem:[#allocation5 + $0xa0] sm:$0xff] %vm577, %v5815
      %5848 = vst.msk [vmem:[#allocation5 + $0xa8] sm:$0xff] %vm577, %v5816
      %5849 = vst.msk [vmem:[#allocation5 + $0xb0] sm:$0xff] %vm577, %v5817
      %5850 = vst.msk [vmem:[#allocation5 + $0xb8] sm:$0xff] %vm577, %v5818
      %5851 = vst.msk [vmem:[#allocation5 + $0xc0] sm:$0xff] %vm577, %v5819
      %5852 = vst.msk [vmem:[#allocation5 + $0xc8] sm:$0xff] %vm577, %v5820
      %5853 = vst.msk [vmem:[#allocation5 + $0xd0] sm:$0xff] %vm577, %v5821
      %5854 = vst.msk [vmem:[#allocation5 + $0xd8] sm:$0xff] %vm577, %v5822
      %5855 = vst.msk [vmem:[#allocation5 + $0xe0] sm:$0xff] %vm577, %v5823
      %5856 = vst.msk [vmem:[#allocation5 + $0xe8] sm:$0xff] %vm577, %v5824
      %5857 = vst.msk [vmem:[#allocation5 + $0xf0] sm:$0xff] %vm577, %v5825
      %5858 = vst.msk [vmem:[#allocation5 + $0xf8] sm:$0xff] %vm577, %v5826
      %v5859 = vld [vmem:[%s5516 + $0x1] sm:$0xff]
      %v5860 = vld [vmem:[%s5516 + $0x9] sm:$0xff]
      %v5861 = vld [vmem:[%s5516 + $0x19] sm:$0xff]
      %v5862 = vld [vmem:[%s5516 + $0x21] sm:$0xff]
      %v5863 = vld [vmem:[%s5516 + $0x31] sm:$0xff]
      %v5864 = vld [vmem:[%s5516 + $0x39] sm:$0xff]
      %v5865 = vld [vmem:[%s5516 + $0x49] sm:$0xff]
      %v5866 = vld [vmem:[%s5516 + $0x51] sm:$0xff]
      %v5867 = vld [vmem:[%s5516 + $0x61] sm:$0xff]
      %v5868 = vld [vmem:[%s5516 + $0x69] sm:$0xff]
      %v5869 = vld [vmem:[%s5516 + $0x79] sm:$0xff]
      %v5870 = vld [vmem:[%s5516 + $0x81] sm:$0xff]
      %v5871 = vld [vmem:[%s5516 + $0x91] sm:$0xff]
      %v5872 = vld [vmem:[%s5516 + $0x99] sm:$0xff]
      %v5873 = vld [vmem:[%s5516 + $0xa9] sm:$0xff]
      %v5874 = vld [vmem:[%s5516 + $0xb1] sm:$0xff]
      %v5875 = vld [vmem:[%s5516 + $0xc1] sm:$0xff]
      %v5876 = vld [vmem:[%s5516 + $0xc9] sm:$0xff]
      %v5877 = vld [vmem:[%s5516 + $0xd9] sm:$0xff]
      %v5878 = vld [vmem:[%s5516 + $0xe1] sm:$0xff]
      %v5879 = vld [vmem:[%s5516 + $0xf1] sm:$0xff]
      %v5880 = vld [vmem:[%s5516 + $0xf9] sm:$0xff]
      %v5881 = vld [vmem:[%s5516 + $0x109] sm:$0xff]
      %v5882 = vld [vmem:[%s5516 + $0x111] sm:$0xff]
      %v5883 = vld [vmem:[%s5516 + $0x121] sm:$0xff]
      %v5884 = vld [vmem:[%s5516 + $0x129] sm:$0xff]
      %v5885 = vld [vmem:[%s5516 + $0x139] sm:$0xff]
      %v5886 = vld [vmem:[%s5516 + $0x141] sm:$0xff]
      %v5887 = vld [vmem:[%s5516 + $0x151] sm:$0xff]
      %v5888 = vld [vmem:[%s5516 + $0x159] sm:$0xff]
      %v5889 = vld [vmem:[%s5516 + $0x169] sm:$0xff]
      %v5890 = vld [vmem:[%s5516 + $0x171] sm:$0xff]
      %v5891 = vld [vmem:[#allocation5] sm:$0xff]
      %v5892 = vld [vmem:[#allocation5 + $0x8] sm:$0xff]
      %v5893 = vld [vmem:[#allocation5 + $0x10] sm:$0xff]
      %v5894 = vld [vmem:[#allocation5 + $0x18] sm:$0xff]
      %v5895 = vld [vmem:[#allocation5 + $0x20] sm:$0xff]
      %v5896 = vld [vmem:[#allocation5 + $0x28] sm:$0xff]
      %v5897 = vld [vmem:[#allocation5 + $0x30] sm:$0xff]
      %v5898 = vld [vmem:[#allocation5 + $0x38] sm:$0xff]
      %v5899 = vld [vmem:[#allocation5 + $0x40] sm:$0xff]
      %v5900 = vld [vmem:[#allocation5 + $0x48] sm:$0xff]
      %v5901 = vld [vmem:[#allocation5 + $0x50] sm:$0xff]
      %v5902 = vld [vmem:[#allocation5 + $0x58] sm:$0xff]
      %v5903 = vld [vmem:[#allocation5 + $0x60] sm:$0xff]
      %v5904 = vld [vmem:[#allocation5 + $0x68] sm:$0xff]
      %v5905 = vld [vmem:[#allocation5 + $0x70] sm:$0xff]
      %v5906 = vld [vmem:[#allocation5 + $0x78] sm:$0xff]
      %v5907 = vld [vmem:[#allocation5 + $0x80] sm:$0xff]
      %v5908 = vld [vmem:[#allocation5 + $0x88] sm:$0xff]
      %v5909 = vld [vmem:[#allocation5 + $0x90] sm:$0xff]
      %v5910 = vld [vmem:[#allocation5 + $0x98] sm:$0xff]
      %v5911 = vld [vmem:[#allocation5 + $0xa0] sm:$0xff]
      %v5912 = vld [vmem:[#allocation5 + $0xa8] sm:$0xff]
      %v5913 = vld [vmem:[#allocation5 + $0xb0] sm:$0xff]
      %v5914 = vld [vmem:[#allocation5 + $0xb8] sm:$0xff]
      %v5915 = vld [vmem:[#allocation5 + $0xc0] sm:$0xff]
      %v5916 = vld [vmem:[#allocation5 + $0xc8] sm:$0xff]
      %v5917 = vld [vmem:[#allocation5 + $0xd0] sm:$0xff]
      %v5918 = vld [vmem:[#allocation5 + $0xd8] sm:$0xff]
      %v5919 = vld [vmem:[#allocation5 + $0xe0] sm:$0xff]
      %v5920 = vld [vmem:[#allocation5 + $0xe8] sm:$0xff]
      %v5921 = vld [vmem:[#allocation5 + $0xf0] sm:$0xff]
      %v5922 = vld [vmem:[#allocation5 + $0xf8] sm:$0xff]
      %s5923 = scalar_lea.vmem %s4, 16
      %v5924 = vld [vmem:[%s5923] sm:$0xf]
      %v5926 = vsel %vm577, %v5859, 0
      %v5929 = vsel %vm577, %v5860, 0
      %v5932 = vsel %vm577, %v5861, 0
      %v5935 = vsel %vm577, %v5862, 0
      %v5938 = vsel %vm577, %v5863, 0
      %v5941 = vsel %vm577, %v5864, 0
      %v5944 = vsel %vm577, %v5865, 0
      %v5947 = vsel %vm577, %v5866, 0
      %v5950 = vsel %vm577, %v5867, 0
      %v5953 = vsel %vm577, %v5868, 0
      %v5956 = vsel %vm577, %v5869, 0
      %v5959 = vsel %vm577, %v5870, 0
      %v5962 = vsel %vm577, %v5871, 0
      %v5965 = vsel %vm577, %v5872, 0
      %v5968 = vsel %vm577, %v5873, 0
      %v5971 = vsel %vm577, %v5874, 0
      %v5974 = vsel %vm577, %v5875, 0
      %v5977 = vsel %vm577, %v5876, 0
      %v5980 = vsel %vm577, %v5877, 0
      %v5983 = vsel %vm577, %v5878, 0
      %v5986 = vsel %vm577, %v5879, 0
      %v5989 = vsel %vm577, %v5880, 0
      %v5992 = vsel %vm577, %v5881, 0
      %v5995 = vsel %vm577, %v5882, 0
      %v5998 = vsel %vm577, %v5883, 0
      %v6001 = vsel %vm577, %v5884, 0
      %v6004 = vsel %vm577, %v5885, 0
      %v6007 = vsel %vm577, %v5886, 0
      %v6010 = vsel %vm577, %v5887, 0
      %v6013 = vsel %vm577, %v5888, 0
      %v6016 = vsel %vm577, %v5889, 0
      %v6019 = vsel %vm577, %v5890, 0
      %v6022 = vsel %vm946, %v5924, 0
      %6024 = vmatpush.msra.mxu0 0.0
      %6025 = vmatpush.msra.mxu0 0.0
      %6026 = vmatpush.msra.mxu0 0.0
      %6027 = vmatpush.msra.mxu0 0.0
      %6028 = vmatpush.msra.mxu0 0.0
      %6029 = vmatpush.msra.mxu0 0.0
      %6030 = vmatpush.msra.mxu0 0.0
      %6031 = vmatpush.msra.mxu0 0.0
      %6032 = vmatpush.msra.mxu0 0.0
      %6033 = vmatpush.msra.mxu0 0.0
      %6034 = vmatpush.msra.mxu0 0.0
      %6035 = vmatpush.msra.mxu0 0.0
      %6036 = vmatpush.msra.mxu0 0.0
      %6037 = vmatpush.msra.mxu0 0.0
      %6038 = vmatpush.msra.mxu0 0.0
      %6039 = vmatpush.msra.mxu0 %v6022
      %6040 = vmatmul.f32.gmra.mxu0 %v5926
      %v6041 = vpop.f32.mrf.mxu0
      %v6042 = vadd.f32 0.0, %v6041
      %6043 = vmatmul.f32.gmra.mxu0 %v5929
      %v6044 = vpop.f32.mrf.mxu0
      %v6045 = vadd.f32 0.0, %v6044
      %6046 = vmatmul.f32.gmra.mxu0 %v5932
      %v6047 = vpop.f32.mrf.mxu0
      %v6048 = vadd.f32 0.0, %v6047
      %6049 = vmatmul.f32.gmra.mxu0 %v5935
      %v6050 = vpop.f32.mrf.mxu0
      %v6051 = vadd.f32 0.0, %v6050
      %6052 = vmatmul.f32.gmra.mxu0 %v5938
      %v6053 = vpop.f32.mrf.mxu0
      %v6054 = vadd.f32 0.0, %v6053
      %6055 = vmatmul.f32.gmra.mxu0 %v5941
      %v6056 = vpop.f32.mrf.mxu0
      %v6057 = vadd.f32 0.0, %v6056
      %6058 = vmatmul.f32.gmra.mxu0 %v5944
      %v6059 = vpop.f32.mrf.mxu0
      %v6060 = vadd.f32 0.0, %v6059
      %6061 = vmatmul.f32.gmra.mxu0 %v5947
      %v6062 = vpop.f32.mrf.mxu0
      %v6063 = vadd.f32 0.0, %v6062
      %6064 = vmatmul.f32.gmra.mxu0 %v5950
      %v6065 = vpop.f32.mrf.mxu0
      %v6066 = vadd.f32 0.0, %v6065
      %6067 = vmatmul.f32.gmra.mxu0 %v5953
      %v6068 = vpop.f32.mrf.mxu0
      %v6069 = vadd.f32 0.0, %v6068
      %6070 = vmatmul.f32.gmra.mxu0 %v5956
      %v6071 = vpop.f32.mrf.mxu0
      %v6072 = vadd.f32 0.0, %v6071
      %6073 = vmatmul.f32.gmra.mxu0 %v5959
      %v6074 = vpop.f32.mrf.mxu0
      %v6075 = vadd.f32 0.0, %v6074
      %6076 = vmatmul.f32.gmra.mxu0 %v5962
      %v6077 = vpop.f32.mrf.mxu0
      %v6078 = vadd.f32 0.0, %v6077
      %6079 = vmatmul.f32.gmra.mxu0 %v5965
      %v6080 = vpop.f32.mrf.mxu0
      %v6081 = vadd.f32 0.0, %v6080
      %6082 = vmatmul.f32.gmra.mxu0 %v5968
      %v6083 = vpop.f32.mrf.mxu0
      %v6084 = vadd.f32 0.0, %v6083
      %6085 = vmatmul.f32.gmra.mxu0 %v5971
      %v6086 = vpop.f32.mrf.mxu0
      %v6087 = vadd.f32 0.0, %v6086
      %6088 = vmatmul.f32.gmra.mxu0 %v5974
      %v6089 = vpop.f32.mrf.mxu0
      %v6090 = vadd.f32 0.0, %v6089
      %6091 = vmatmul.f32.gmra.mxu0 %v5977
      %v6092 = vpop.f32.mrf.mxu0
      %v6093 = vadd.f32 0.0, %v6092
      %6094 = vmatmul.f32.gmra.mxu0 %v5980
      %v6095 = vpop.f32.mrf.mxu0
      %v6096 = vadd.f32 0.0, %v6095
      %6097 = vmatmul.f32.gmra.mxu0 %v5983
      %v6098 = vpop.f32.mrf.mxu0
      %v6099 = vadd.f32 0.0, %v6098
      %6100 = vmatmul.f32.gmra.mxu0 %v5986
      %v6101 = vpop.f32.mrf.mxu0
      %v6102 = vadd.f32 0.0, %v6101
      %6103 = vmatmul.f32.gmra.mxu0 %v5989
      %v6104 = vpop.f32.mrf.mxu0
      %v6105 = vadd.f32 0.0, %v6104
      %6106 = vmatmul.f32.gmra.mxu0 %v5992
      %v6107 = vpop.f32.mrf.mxu0
      %v6108 = vadd.f32 0.0, %v6107
      %6109 = vmatmul.f32.gmra.mxu0 %v5995
      %v6110 = vpop.f32.mrf.mxu0
      %v6111 = vadd.f32 0.0, %v6110
      %6112 = vmatmul.f32.gmra.mxu0 %v5998
      %v6113 = vpop.f32.mrf.mxu0
      %v6114 = vadd.f32 0.0, %v6113
      %6115 = vmatmul.f32.gmra.mxu0 %v6001
      %v6116 = vpop.f32.mrf.mxu0
      %v6117 = vadd.f32 0.0, %v6116
      %6118 = vmatmul.f32.gmra.mxu0 %v6004
      %v6119 = vpop.f32.mrf.mxu0
      %v6120 = vadd.f32 0.0, %v6119
      %6121 = vmatmul.f32.gmra.mxu0 %v6007
      %v6122 = vpop.f32.mrf.mxu0
      %v6123 = vadd.f32 0.0, %v6122
      %6124 = vmatmul.f32.gmra.mxu0 %v6010
      %v6125 = vpop.f32.mrf.mxu0
      %v6126 = vadd.f32 0.0, %v6125
      %6127 = vmatmul.f32.gmra.mxu0 %v6013
      %v6128 = vpop.f32.mrf.mxu0
      %v6129 = vadd.f32 0.0, %v6128
      %6130 = vmatmul.f32.gmra.mxu0 %v6016
      %v6131 = vpop.f32.mrf.mxu0
      %v6132 = vadd.f32 0.0, %v6131
      %6133 = vmatmul.f32.gmra.mxu0 %v6019
      %v6134 = vpop.f32.mrf.mxu0
      %v6135 = vadd.f32 0.0, %v6134
      %6136 = vdwg.mxu0
      %v6137 = vadd.f32 %v5891, %v6042
      %v6138 = vadd.f32 %v5892, %v6045
      %v6139 = vadd.f32 %v5893, %v6048
      %v6140 = vadd.f32 %v5894, %v6051
      %v6141 = vadd.f32 %v5895, %v6054
      %v6142 = vadd.f32 %v5896, %v6057
      %v6143 = vadd.f32 %v5897, %v6060
      %v6144 = vadd.f32 %v5898, %v6063
      %v6145 = vadd.f32 %v5899, %v6066
      %v6146 = vadd.f32 %v5900, %v6069
      %v6147 = vadd.f32 %v5901, %v6072
      %v6148 = vadd.f32 %v5902, %v6075
      %v6149 = vadd.f32 %v5903, %v6078
      %v6150 = vadd.f32 %v5904, %v6081
      %v6151 = vadd.f32 %v5905, %v6084
      %v6152 = vadd.f32 %v5906, %v6087
      %v6153 = vadd.f32 %v5907, %v6090
      %v6154 = vadd.f32 %v5908, %v6093
      %v6155 = vadd.f32 %v5909, %v6096
      %v6156 = vadd.f32 %v5910, %v6099
      %v6157 = vadd.f32 %v5911, %v6102
      %v6158 = vadd.f32 %v5912, %v6105
      %v6159 = vadd.f32 %v5913, %v6108
      %v6160 = vadd.f32 %v5914, %v6111
      %v6161 = vadd.f32 %v5915, %v6114
      %v6162 = vadd.f32 %v5916, %v6117
      %v6163 = vadd.f32 %v5917, %v6120
      %v6164 = vadd.f32 %v5918, %v6123
      %v6165 = vadd.f32 %v5919, %v6126
      %v6166 = vadd.f32 %v5920, %v6129
      %v6167 = vadd.f32 %v5921, %v6132
      %v6168 = vadd.f32 %v5922, %v6135
      %6169 = vst.msk [vmem:[#allocation5] sm:$0xff] %vm577, %v6137
      %6170 = vst.msk [vmem:[#allocation5 + $0x8] sm:$0xff] %vm577, %v6138
      %6171 = vst.msk [vmem:[#allocation5 + $0x10] sm:$0xff] %vm577, %v6139
      %6172 = vst.msk [vmem:[#allocation5 + $0x18] sm:$0xff] %vm577, %v6140
      %6173 = vst.msk [vmem:[#allocation5 + $0x20] sm:$0xff] %vm577, %v6141
      %6174 = vst.msk [vmem:[#allocation5 + $0x28] sm:$0xff] %vm577, %v6142
      %6175 = vst.msk [vmem:[#allocation5 + $0x30] sm:$0xff] %vm577, %v6143
      %6176 = vst.msk [vmem:[#allocation5 + $0x38] sm:$0xff] %vm577, %v6144
      %6177 = vst.msk [vmem:[#allocation5 + $0x40] sm:$0xff] %vm577, %v6145
      %6178 = vst.msk [vmem:[#allocation5 + $0x48] sm:$0xff] %vm577, %v6146
      %6179 = vst.msk [vmem:[#allocation5 + $0x50] sm:$0xff] %vm577, %v6147
      %6180 = vst.msk [vmem:[#allocation5 + $0x58] sm:$0xff] %vm577, %v6148
      %6181 = vst.msk [vmem:[#allocation5 + $0x60] sm:$0xff] %vm577, %v6149
      %6182 = vst.msk [vmem:[#allocation5 + $0x68] sm:$0xff] %vm577, %v6150
      %6183 = vst.msk [vmem:[#allocation5 + $0x70] sm:$0xff] %vm577, %v6151
      %6184 = vst.msk [vmem:[#allocation5 + $0x78] sm:$0xff] %vm577, %v6152
      %6185 = vst.msk [vmem:[#allocation5 + $0x80] sm:$0xff] %vm577, %v6153
      %6186 = vst.msk [vmem:[#allocation5 + $0x88] sm:$0xff] %vm577, %v6154
      %6187 = vst.msk [vmem:[#allocation5 + $0x90] sm:$0xff] %vm577, %v6155
      %6188 = vst.msk [vmem:[#allocation5 + $0x98] sm:$0xff] %vm577, %v6156
      %6189 = vst.msk [vmem:[#allocation5 + $0xa0] sm:$0xff] %vm577, %v6157
      %6190 = vst.msk [vmem:[#allocation5 + $0xa8] sm:$0xff] %vm577, %v6158
      %6191 = vst.msk [vmem:[#allocation5 + $0xb0] sm:$0xff] %vm577, %v6159
      %6192 = vst.msk [vmem:[#allocation5 + $0xb8] sm:$0xff] %vm577, %v6160
      %6193 = vst.msk [vmem:[#allocation5 + $0xc0] sm:$0xff] %vm577, %v6161
      %6194 = vst.msk [vmem:[#allocation5 + $0xc8] sm:$0xff] %vm577, %v6162
      %6195 = vst.msk [vmem:[#allocation5 + $0xd0] sm:$0xff] %vm577, %v6163
      %6196 = vst.msk [vmem:[#allocation5 + $0xd8] sm:$0xff] %vm577, %v6164
      %6197 = vst.msk [vmem:[#allocation5 + $0xe0] sm:$0xff] %vm577, %v6165
      %6198 = vst.msk [vmem:[#allocation5 + $0xe8] sm:$0xff] %vm577, %v6166
      %6199 = vst.msk [vmem:[#allocation5 + $0xf0] sm:$0xff] %vm577, %v6167
      %6200 = vst.msk [vmem:[#allocation5 + $0xf8] sm:$0xff] %vm577, %v6168
      %v6201 = vld [vmem:[%s5516 + $0x2] sm:$0xff]
      %v6202 = vld [vmem:[%s5516 + $0xa] sm:$0xff]
      %v6203 = vld [vmem:[%s5516 + $0x1a] sm:$0xff]
      %v6204 = vld [vmem:[%s5516 + $0x22] sm:$0xff]
      %v6205 = vld [vmem:[%s5516 + $0x32] sm:$0xff]
      %v6206 = vld [vmem:[%s5516 + $0x3a] sm:$0xff]
      %v6207 = vld [vmem:[%s5516 + $0x4a] sm:$0xff]
      %v6208 = vld [vmem:[%s5516 + $0x52] sm:$0xff]
      %v6209 = vld [vmem:[%s5516 + $0x62] sm:$0xff]
      %v6210 = vld [vmem:[%s5516 + $0x6a] sm:$0xff]
      %v6211 = vld [vmem:[%s5516 + $0x7a] sm:$0xff]
      %v6212 = vld [vmem:[%s5516 + $0x82] sm:$0xff]
      %v6213 = vld [vmem:[%s5516 + $0x92] sm:$0xff]
      %v6214 = vld [vmem:[%s5516 + $0x9a] sm:$0xff]
      %v6215 = vld [vmem:[%s5516 + $0xaa] sm:$0xff]
      %v6216 = vld [vmem:[%s5516 + $0xb2] sm:$0xff]
      %v6217 = vld [vmem:[%s5516 + $0xc2] sm:$0xff]
      %v6218 = vld [vmem:[%s5516 + $0xca] sm:$0xff]
      %v6219 = vld [vmem:[%s5516 + $0xda] sm:$0xff]
      %v6220 = vld [vmem:[%s5516 + $0xe2] sm:$0xff]
      %v6221 = vld [vmem:[%s5516 + $0xf2] sm:$0xff]
      %v6222 = vld [vmem:[%s5516 + $0xfa] sm:$0xff]
      %v6223 = vld [vmem:[%s5516 + $0x10a] sm:$0xff]
      %v6224 = vld [vmem:[%s5516 + $0x112] sm:$0xff]
      %v6225 = vld [vmem:[%s5516 + $0x122] sm:$0xff]
      %v6226 = vld [vmem:[%s5516 + $0x12a] sm:$0xff]
      %v6227 = vld [vmem:[%s5516 + $0x13a] sm:$0xff]
      %v6228 = vld [vmem:[%s5516 + $0x142] sm:$0xff]
      %v6229 = vld [vmem:[%s5516 + $0x152] sm:$0xff]
      %v6230 = vld [vmem:[%s5516 + $0x15a] sm:$0xff]
      %v6231 = vld [vmem:[%s5516 + $0x16a] sm:$0xff]
      %v6232 = vld [vmem:[%s5516 + $0x172] sm:$0xff]
      %v6233 = vld [vmem:[#allocation5] sm:$0xff]
      %v6234 = vld [vmem:[#allocation5 + $0x8] sm:$0xff]
      %v6235 = vld [vmem:[#allocation5 + $0x10] sm:$0xff]
      %v6236 = vld [vmem:[#allocation5 + $0x18] sm:$0xff]
      %v6237 = vld [vmem:[#allocation5 + $0x20] sm:$0xff]
      %v6238 = vld [vmem:[#allocation5 + $0x28] sm:$0xff]
      %v6239 = vld [vmem:[#allocation5 + $0x30] sm:$0xff]
      %v6240 = vld [vmem:[#allocation5 + $0x38] sm:$0xff]
      %v6241 = vld [vmem:[#allocation5 + $0x40] sm:$0xff]
      %v6242 = vld [vmem:[#allocation5 + $0x48] sm:$0xff]
      %v6243 = vld [vmem:[#allocation5 + $0x50] sm:$0xff]
      %v6244 = vld [vmem:[#allocation5 + $0x58] sm:$0xff]
      %v6245 = vld [vmem:[#allocation5 + $0x60] sm:$0xff]
      %v6246 = vld [vmem:[#allocation5 + $0x68] sm:$0xff]
      %v6247 = vld [vmem:[#allocation5 + $0x70] sm:$0xff]
      %v6248 = vld [vmem:[#allocation5 + $0x78] sm:$0xff]
      %v6249 = vld [vmem:[#allocation5 + $0x80] sm:$0xff]
      %v6250 = vld [vmem:[#allocation5 + $0x88] sm:$0xff]
      %v6251 = vld [vmem:[#allocation5 + $0x90] sm:$0xff]
      %v6252 = vld [vmem:[#allocation5 + $0x98] sm:$0xff]
      %v6253 = vld [vmem:[#allocation5 + $0xa0] sm:$0xff]
      %v6254 = vld [vmem:[#allocation5 + $0xa8] sm:$0xff]
      %v6255 = vld [vmem:[#allocation5 + $0xb0] sm:$0xff]
      %v6256 = vld [vmem:[#allocation5 + $0xb8] sm:$0xff]
      %v6257 = vld [vmem:[#allocation5 + $0xc0] sm:$0xff]
      %v6258 = vld [vmem:[#allocation5 + $0xc8] sm:$0xff]
      %v6259 = vld [vmem:[#allocation5 + $0xd0] sm:$0xff]
      %v6260 = vld [vmem:[#allocation5 + $0xd8] sm:$0xff]
      %v6261 = vld [vmem:[#allocation5 + $0xe0] sm:$0xff]
      %v6262 = vld [vmem:[#allocation5 + $0xe8] sm:$0xff]
      %v6263 = vld [vmem:[#allocation5 + $0xf0] sm:$0xff]
      %v6264 = vld [vmem:[#allocation5 + $0xf8] sm:$0xff]
      %s6265 = scalar_lea.vmem %s4, 20
      %v6266 = vld [vmem:[%s6265] sm:$0xf]
      %v6268 = vsel %vm577, %v6201, 0
      %v6271 = vsel %vm577, %v6202, 0
      %v6274 = vsel %vm577, %v6203, 0
      %v6277 = vsel %vm577, %v6204, 0
      %v6280 = vsel %vm577, %v6205, 0
      %v6283 = vsel %vm577, %v6206, 0
      %v6286 = vsel %vm577, %v6207, 0
      %v6289 = vsel %vm577, %v6208, 0
      %v6292 = vsel %vm577, %v6209, 0
      %v6295 = vsel %vm577, %v6210, 0
      %v6298 = vsel %vm577, %v6211, 0
      %v6301 = vsel %vm577, %v6212, 0
      %v6304 = vsel %vm577, %v6213, 0
      %v6307 = vsel %vm577, %v6214, 0
      %v6310 = vsel %vm577, %v6215, 0
      %v6313 = vsel %vm577, %v6216, 0
      %v6316 = vsel %vm577, %v6217, 0
      %v6319 = vsel %vm577, %v6218, 0
      %v6322 = vsel %vm577, %v6219, 0
      %v6325 = vsel %vm577, %v6220, 0
      %v6328 = vsel %vm577, %v6221, 0
      %v6331 = vsel %vm577, %v6222, 0
      %v6334 = vsel %vm577, %v6223, 0
      %v6337 = vsel %vm577, %v6224, 0
      %v6340 = vsel %vm577, %v6225, 0
      %v6343 = vsel %vm577, %v6226, 0
      %v6346 = vsel %vm577, %v6227, 0
      %v6349 = vsel %vm577, %v6228, 0
      %v6352 = vsel %vm577, %v6229, 0
      %v6355 = vsel %vm577, %v6230, 0
      %v6358 = vsel %vm577, %v6231, 0
      %v6361 = vsel %vm577, %v6232, 0
      %v6364 = vsel %vm946, %v6266, 0
      %6366 = vmatpush.msra.mxu0 0.0
      %6367 = vmatpush.msra.mxu0 0.0
      %6368 = vmatpush.msra.mxu0 0.0
      %6369 = vmatpush.msra.mxu0 0.0
      %6370 = vmatpush.msra.mxu0 0.0
      %6371 = vmatpush.msra.mxu0 0.0
      %6372 = vmatpush.msra.mxu0 0.0
      %6373 = vmatpush.msra.mxu0 0.0
      %6374 = vmatpush.msra.mxu0 0.0
      %6375 = vmatpush.msra.mxu0 0.0
      %6376 = vmatpush.msra.mxu0 0.0
      %6377 = vmatpush.msra.mxu0 0.0
      %6378 = vmatpush.msra.mxu0 0.0
      %6379 = vmatpush.msra.mxu0 0.0
      %6380 = vmatpush.msra.mxu0 0.0
      %6381 = vmatpush.msra.mxu0 %v6364
      %6382 = vmatmul.f32.gmra.mxu0 %v6268
      %v6383 = vpop.f32.mrf.mxu0
      %v6384 = vadd.f32 0.0, %v6383
      %6385 = vmatmul.f32.gmra.mxu0 %v6271
      %v6386 = vpop.f32.mrf.mxu0
      %v6387 = vadd.f32 0.0, %v6386
      %6388 = vmatmul.f32.gmra.mxu0 %v6274
      %v6389 = vpop.f32.mrf.mxu0
      %v6390 = vadd.f32 0.0, %v6389
      %6391 = vmatmul.f32.gmra.mxu0 %v6277
      %v6392 = vpop.f32.mrf.mxu0
      %v6393 = vadd.f32 0.0, %v6392
      %6394 = vmatmul.f32.gmra.mxu0 %v6280
      %v6395 = vpop.f32.mrf.mxu0
      %v6396 = vadd.f32 0.0, %v6395
      %6397 = vmatmul.f32.gmra.mxu0 %v6283
      %v6398 = vpop.f32.mrf.mxu0
      %v6399 = vadd.f32 0.0, %v6398
      %6400 = vmatmul.f32.gmra.mxu0 %v6286
      %v6401 = vpop.f32.mrf.mxu0
      %v6402 = vadd.f32 0.0, %v6401
      %6403 = vmatmul.f32.gmra.mxu0 %v6289
      %v6404 = vpop.f32.mrf.mxu0
      %v6405 = vadd.f32 0.0, %v6404
      %6406 = vmatmul.f32.gmra.mxu0 %v6292
      %v6407 = vpop.f32.mrf.mxu0
      %v6408 = vadd.f32 0.0, %v6407
      %6409 = vmatmul.f32.gmra.mxu0 %v6295
      %v6410 = vpop.f32.mrf.mxu0
      %v6411 = vadd.f32 0.0, %v6410
      %6412 = vmatmul.f32.gmra.mxu0 %v6298
      %v6413 = vpop.f32.mrf.mxu0
      %v6414 = vadd.f32 0.0, %v6413
      %6415 = vmatmul.f32.gmra.mxu0 %v6301
      %v6416 = vpop.f32.mrf.mxu0
      %v6417 = vadd.f32 0.0, %v6416
      %6418 = vmatmul.f32.gmra.mxu0 %v6304
      %v6419 = vpop.f32.mrf.mxu0
      %v6420 = vadd.f32 0.0, %v6419
      %6421 = vmatmul.f32.gmra.mxu0 %v6307
      %v6422 = vpop.f32.mrf.mxu0
      %v6423 = vadd.f32 0.0, %v6422
      %6424 = vmatmul.f32.gmra.mxu0 %v6310
      %v6425 = vpop.f32.mrf.mxu0
      %v6426 = vadd.f32 0.0, %v6425
      %6427 = vmatmul.f32.gmra.mxu0 %v6313
      %v6428 = vpop.f32.mrf.mxu0
      %v6429 = vadd.f32 0.0, %v6428
      %6430 = vmatmul.f32.gmra.mxu0 %v6316
      %v6431 = vpop.f32.mrf.mxu0
      %v6432 = vadd.f32 0.0, %v6431
      %6433 = vmatmul.f32.gmra.mxu0 %v6319
      %v6434 = vpop.f32.mrf.mxu0
      %v6435 = vadd.f32 0.0, %v6434
      %6436 = vmatmul.f32.gmra.mxu0 %v6322
      %v6437 = vpop.f32.mrf.mxu0
      %v6438 = vadd.f32 0.0, %v6437
      %6439 = vmatmul.f32.gmra.mxu0 %v6325
      %v6440 = vpop.f32.mrf.mxu0
      %v6441 = vadd.f32 0.0, %v6440
      %6442 = vmatmul.f32.gmra.mxu0 %v6328
      %v6443 = vpop.f32.mrf.mxu0
      %v6444 = vadd.f32 0.0, %v6443
      %6445 = vmatmul.f32.gmra.mxu0 %v6331
      %v6446 = vpop.f32.mrf.mxu0
      %v6447 = vadd.f32 0.0, %v6446
      %6448 = vmatmul.f32.gmra.mxu0 %v6334
      %v6449 = vpop.f32.mrf.mxu0
      %v6450 = vadd.f32 0.0, %v6449
      %6451 = vmatmul.f32.gmra.mxu0 %v6337
      %v6452 = vpop.f32.mrf.mxu0
      %v6453 = vadd.f32 0.0, %v6452
      %6454 = vmatmul.f32.gmra.mxu0 %v6340
      %v6455 = vpop.f32.mrf.mxu0
      %v6456 = vadd.f32 0.0, %v6455
      %6457 = vmatmul.f32.gmra.mxu0 %v6343
      %v6458 = vpop.f32.mrf.mxu0
      %v6459 = vadd.f32 0.0, %v6458
      %6460 = vmatmul.f32.gmra.mxu0 %v6346
      %v6461 = vpop.f32.mrf.mxu0
      %v6462 = vadd.f32 0.0, %v6461
      %6463 = vmatmul.f32.gmra.mxu0 %v6349
      %v6464 = vpop.f32.mrf.mxu0
      %v6465 = vadd.f32 0.0, %v6464
      %6466 = vmatmul.f32.gmra.mxu0 %v6352
      %v6467 = vpop.f32.mrf.mxu0
      %v6468 = vadd.f32 0.0, %v6467
      %6469 = vmatmul.f32.gmra.mxu0 %v6355
      %v6470 = vpop.f32.mrf.mxu0
      %v6471 = vadd.f32 0.0, %v6470
      %6472 = vmatmul.f32.gmra.mxu0 %v6358
      %v6473 = vpop.f32.mrf.mxu0
      %v6474 = vadd.f32 0.0, %v6473
      %6475 = vmatmul.f32.gmra.mxu0 %v6361
      %v6476 = vpop.f32.mrf.mxu0
      %v6477 = vadd.f32 0.0, %v6476
      %6478 = vdwg.mxu0
      %v6479 = vadd.f32 %v6233, %v6384
      %v6480 = vadd.f32 %v6234, %v6387
      %v6481 = vadd.f32 %v6235, %v6390
      %v6482 = vadd.f32 %v6236, %v6393
      %v6483 = vadd.f32 %v6237, %v6396
      %v6484 = vadd.f32 %v6238, %v6399
      %v6485 = vadd.f32 %v6239, %v6402
      %v6486 = vadd.f32 %v6240, %v6405
      %v6487 = vadd.f32 %v6241, %v6408
      %v6488 = vadd.f32 %v6242, %v6411
      %v6489 = vadd.f32 %v6243, %v6414
      %v6490 = vadd.f32 %v6244, %v6417
      %v6491 = vadd.f32 %v6245, %v6420
      %v6492 = vadd.f32 %v6246, %v6423
      %v6493 = vadd.f32 %v6247, %v6426
      %v6494 = vadd.f32 %v6248, %v6429
      %v6495 = vadd.f32 %v6249, %v6432
      %v6496 = vadd.f32 %v6250, %v6435
      %v6497 = vadd.f32 %v6251, %v6438
      %v6498 = vadd.f32 %v6252, %v6441
      %v6499 = vadd.f32 %v6253, %v6444
      %v6500 = vadd.f32 %v6254, %v6447
      %v6501 = vadd.f32 %v6255, %v6450
      %v6502 = vadd.f32 %v6256, %v6453
      %v6503 = vadd.f32 %v6257, %v6456
      %v6504 = vadd.f32 %v6258, %v6459
      %v6505 = vadd.f32 %v6259, %v6462
      %v6506 = vadd.f32 %v6260, %v6465
      %v6507 = vadd.f32 %v6261, %v6468
      %v6508 = vadd.f32 %v6262, %v6471
      %v6509 = vadd.f32 %v6263, %v6474
      %v6510 = vadd.f32 %v6264, %v6477
      %6511 = vst.msk [vmem:[#allocation5] sm:$0xff] %vm577, %v6479
      %6512 = vst.msk [vmem:[#allocation5 + $0x8] sm:$0xff] %vm577, %v6480
      %6513 = vst.msk [vmem:[#allocation5 + $0x10] sm:$0xff] %vm577, %v6481
      %6514 = vst.msk [vmem:[#allocation5 + $0x18] sm:$0xff] %vm577, %v6482
      %6515 = vst.msk [vmem:[#allocation5 + $0x20] sm:$0xff] %vm577, %v6483
      %6516 = vst.msk [vmem:[#allocation5 + $0x28] sm:$0xff] %vm577, %v6484
      %6517 = vst.msk [vmem:[#allocation5 + $0x30] sm:$0xff] %vm577, %v6485
      %6518 = vst.msk [vmem:[#allocation5 + $0x38] sm:$0xff] %vm577, %v6486
      %6519 = vst.msk [vmem:[#allocation5 + $0x40] sm:$0xff] %vm577, %v6487
      %6520 = vst.msk [vmem:[#allocation5 + $0x48] sm:$0xff] %vm577, %v6488
      %6521 = vst.msk [vmem:[#allocation5 + $0x50] sm:$0xff] %vm577, %v6489
      %6522 = vst.msk [vmem:[#allocation5 + $0x58] sm:$0xff] %vm577, %v6490
      %6523 = vst.msk [vmem:[#allocation5 + $0x60] sm:$0xff] %vm577, %v6491
      %6524 = vst.msk [vmem:[#allocation5 + $0x68] sm:$0xff] %vm577, %v6492
      %6525 = vst.msk [vmem:[#allocation5 + $0x70] sm:$0xff] %vm577, %v6493
      %6526 = vst.msk [vmem:[#allocation5 + $0x78] sm:$0xff] %vm577, %v6494
      %6527 = vst.msk [vmem:[#allocation5 + $0x80] sm:$0xff] %vm577, %v6495
      %6528 = vst.msk [vmem:[#allocation5 + $0x88] sm:$0xff] %vm577, %v6496
      %6529 = vst.msk [vmem:[#allocation5 + $0x90] sm:$0xff] %vm577, %v6497
      %6530 = vst.msk [vmem:[#allocation5 + $0x98] sm:$0xff] %vm577, %v6498
      %6531 = vst.msk [vmem:[#allocation5 + $0xa0] sm:$0xff] %vm577, %v6499
      %6532 = vst.msk [vmem:[#allocation5 + $0xa8] sm:$0xff] %vm577, %v6500
      %6533 = vst.msk [vmem:[#allocation5 + $0xb0] sm:$0xff] %vm577, %v6501
      %6534 = vst.msk [vmem:[#allocation5 + $0xb8] sm:$0xff] %vm577, %v6502
      %6535 = vst.msk [vmem:[#allocation5 + $0xc0] sm:$0xff] %vm577, %v6503
      %6536 = vst.msk [vmem:[#allocation5 + $0xc8] sm:$0xff] %vm577, %v6504
      %6537 = vst.msk [vmem:[#allocation5 + $0xd0] sm:$0xff] %vm577, %v6505
      %6538 = vst.msk [vmem:[#allocation5 + $0xd8] sm:$0xff] %vm577, %v6506
      %6539 = vst.msk [vmem:[#allocation5 + $0xe0] sm:$0xff] %vm577, %v6507
      %6540 = vst.msk [vmem:[#allocation5 + $0xe8] sm:$0xff] %vm577, %v6508
      %6541 = vst.msk [vmem:[#allocation5 + $0xf0] sm:$0xff] %vm577, %v6509
      %6542 = vst.msk [vmem:[#allocation5 + $0xf8] sm:$0xff] %vm577, %v6510
      %s6543 = scalar_lea.vmem [#allocation4], 48
      %v6544 = vld [vmem:[%s6543] sm:$0xff]
      %v6545 = vld [vmem:[%s6543 + $0x8] sm:$0xff]
      %v6546 = vld [vmem:[%s6543 + $0x18] sm:$0xff]
      %v6547 = vld [vmem:[%s6543 + $0x20] sm:$0xff]
      %v6548 = vld [vmem:[%s6543 + $0x30] sm:$0xff]
      %v6549 = vld [vmem:[%s6543 + $0x38] sm:$0xff]
      %v6550 = vld [vmem:[%s6543 + $0x48] sm:$0xff]
      %v6551 = vld [vmem:[%s6543 + $0x50] sm:$0xff]
      %v6552 = vld [vmem:[%s6543 + $0x60] sm:$0xff]
      %v6553 = vld [vmem:[%s6543 + $0x68] sm:$0xff]
      %v6554 = vld [vmem:[%s6543 + $0x78] sm:$0xff]
      %v6555 = vld [vmem:[%s6543 + $0x80] sm:$0xff]
      %v6556 = vld [vmem:[%s6543 + $0x90] sm:$0xff]
      %v6557 = vld [vmem:[%s6543 + $0x98] sm:$0xff]
      %v6558 = vld [vmem:[%s6543 + $0xa8] sm:$0xff]
      %v6559 = vld [vmem:[%s6543 + $0xb0] sm:$0xff]
      %v6560 = vld [vmem:[%s6543 + $0xc0] sm:$0xff]
      %v6561 = vld [vmem:[%s6543 + $0xc8] sm:$0xff]
      %v6562 = vld [vmem:[%s6543 + $0xd8] sm:$0xff]
      %v6563 = vld [vmem:[%s6543 + $0xe0] sm:$0xff]
      %v6564 = vld [vmem:[%s6543 + $0xf0] sm:$0xff]
      %v6565 = vld [vmem:[%s6543 + $0xf8] sm:$0xff]
      %v6566 = vld [vmem:[%s6543 + $0x108] sm:$0xff]
      %v6567 = vld [vmem:[%s6543 + $0x110] sm:$0xff]
      %v6568 = vld [vmem:[%s6543 + $0x120] sm:$0xff]
      %v6569 = vld [vmem:[%s6543 + $0x128] sm:$0xff]
      %v6570 = vld [vmem:[%s6543 + $0x138] sm:$0xff]
      %v6571 = vld [vmem:[%s6543 + $0x140] sm:$0xff]
      %v6572 = vld [vmem:[%s6543 + $0x150] sm:$0xff]
      %v6573 = vld [vmem:[%s6543 + $0x158] sm:$0xff]
      %v6574 = vld [vmem:[%s6543 + $0x168] sm:$0xff]
      %v6575 = vld [vmem:[%s6543 + $0x170] sm:$0xff]
      %v6576 = vld [vmem:[#allocation5] sm:$0xff]
      %v6577 = vld [vmem:[#allocation5 + $0x8] sm:$0xff]
      %v6578 = vld [vmem:[#allocation5 + $0x10] sm:$0xff]
      %v6579 = vld [vmem:[#allocation5 + $0x18] sm:$0xff]
      %v6580 = vld [vmem:[#allocation5 + $0x20] sm:$0xff]
      %v6581 = vld [vmem:[#allocation5 + $0x28] sm:$0xff]
      %v6582 = vld [vmem:[#allocation5 + $0x30] sm:$0xff]
      %v6583 = vld [vmem:[#allocation5 + $0x38] sm:$0xff]
      %v6584 = vld [vmem:[#allocation5 + $0x40] sm:$0xff]
      %v6585 = vld [vmem:[#allocation5 + $0x48] sm:$0xff]
      %v6586 = vld [vmem:[#allocation5 + $0x50] sm:$0xff]
      %v6587 = vld [vmem:[#allocation5 + $0x58] sm:$0xff]
      %v6588 = vld [vmem:[#allocation5 + $0x60] sm:$0xff]
      %v6589 = vld [vmem:[#allocation5 + $0x68] sm:$0xff]
      %v6590 = vld [vmem:[#allocation5 + $0x70] sm:$0xff]
      %v6591 = vld [vmem:[#allocation5 + $0x78] sm:$0xff]
      %v6592 = vld [vmem:[#allocation5 + $0x80] sm:$0xff]
      %v6593 = vld [vmem:[#allocation5 + $0x88] sm:$0xff]
      %v6594 = vld [vmem:[#allocation5 + $0x90] sm:$0xff]
      %v6595 = vld [vmem:[#allocation5 + $0x98] sm:$0xff]
      %v6596 = vld [vmem:[#allocation5 + $0xa0] sm:$0xff]
      %v6597 = vld [vmem:[#allocation5 + $0xa8] sm:$0xff]
      %v6598 = vld [vmem:[#allocation5 + $0xb0] sm:$0xff]
      %v6599 = vld [vmem:[#allocation5 + $0xb8] sm:$0xff]
      %v6600 = vld [vmem:[#allocation5 + $0xc0] sm:$0xff]
      %v6601 = vld [vmem:[#allocation5 + $0xc8] sm:$0xff]
      %v6602 = vld [vmem:[#allocation5 + $0xd0] sm:$0xff]
      %v6603 = vld [vmem:[#allocation5 + $0xd8] sm:$0xff]
      %v6604 = vld [vmem:[#allocation5 + $0xe0] sm:$0xff]
      %v6605 = vld [vmem:[#allocation5 + $0xe8] sm:$0xff]
      %v6606 = vld [vmem:[#allocation5 + $0xf0] sm:$0xff]
      %v6607 = vld [vmem:[#allocation5 + $0xf8] sm:$0xff]
      %s6608 = scalar_lea.vmem %s4, 24
      %v6609 = vld [vmem:[%s6608] sm:$0xf]
      %v6611 = vsel %vm577, %v6544, 0
      %v6614 = vsel %vm577, %v6545, 0
      %v6617 = vsel %vm577, %v6546, 0
      %v6620 = vsel %vm577, %v6547, 0
      %v6623 = vsel %vm577, %v6548, 0
      %v6626 = vsel %vm577, %v6549, 0
      %v6629 = vsel %vm577, %v6550, 0
      %v6632 = vsel %vm577, %v6551, 0
      %v6635 = vsel %vm577, %v6552, 0
      %v6638 = vsel %vm577, %v6553, 0
      %v6641 = vsel %vm577, %v6554, 0
      %v6644 = vsel %vm577, %v6555, 0
      %v6647 = vsel %vm577, %v6556, 0
      %v6650 = vsel %vm577, %v6557, 0
      %v6653 = vsel %vm577, %v6558, 0
      %v6656 = vsel %vm577, %v6559, 0
      %v6659 = vsel %vm577, %v6560, 0
      %v6662 = vsel %vm577, %v6561, 0
      %v6665 = vsel %vm577, %v6562, 0
      %v6668 = vsel %vm577, %v6563, 0
      %v6671 = vsel %vm577, %v6564, 0
      %v6674 = vsel %vm577, %v6565, 0
      %v6677 = vsel %vm577, %v6566, 0
      %v6680 = vsel %vm577, %v6567, 0
      %v6683 = vsel %vm577, %v6568, 0
      %v6686 = vsel %vm577, %v6569, 0
      %v6689 = vsel %vm577, %v6570, 0
      %v6692 = vsel %vm577, %v6571, 0
      %v6695 = vsel %vm577, %v6572, 0
      %v6698 = vsel %vm577, %v6573, 0
      %v6701 = vsel %vm577, %v6574, 0
      %v6704 = vsel %vm577, %v6575, 0
      %v6707 = vsel %vm946, %v6609, 0
      %6709 = vmatpush.msra.mxu0 0.0
      %6710 = vmatpush.msra.mxu0 0.0
      %6711 = vmatpush.msra.mxu0 0.0
      %6712 = vmatpush.msra.mxu0 0.0
      %6713 = vmatpush.msra.mxu0 0.0
      %6714 = vmatpush.msra.mxu0 0.0
      %6715 = vmatpush.msra.mxu0 0.0
      %6716 = vmatpush.msra.mxu0 0.0
      %6717 = vmatpush.msra.mxu0 0.0
      %6718 = vmatpush.msra.mxu0 0.0
      %6719 = vmatpush.msra.mxu0 0.0
      %6720 = vmatpush.msra.mxu0 0.0
      %6721 = vmatpush.msra.mxu0 0.0
      %6722 = vmatpush.msra.mxu0 0.0
      %6723 = vmatpush.msra.mxu0 0.0
      %6724 = vmatpush.msra.mxu0 %v6707
      %6725 = vmatmul.f32.gmra.mxu0 %v6611
      %v6726 = vpop.f32.mrf.mxu0
      %v6727 = vadd.f32 0.0, %v6726
      %6728 = vmatmul.f32.gmra.mxu0 %v6614
      %v6729 = vpop.f32.mrf.mxu0
      %v6730 = vadd.f32 0.0, %v6729
      %6731 = vmatmul.f32.gmra.mxu0 %v6617
      %v6732 = vpop.f32.mrf.mxu0
      %v6733 = vadd.f32 0.0, %v6732
      %6734 = vmatmul.f32.gmra.mxu0 %v6620
      %v6735 = vpop.f32.mrf.mxu0
      %v6736 = vadd.f32 0.0, %v6735
      %6737 = vmatmul.f32.gmra.mxu0 %v6623
      %v6738 = vpop.f32.mrf.mxu0
      %v6739 = vadd.f32 0.0, %v6738
      %6740 = vmatmul.f32.gmra.mxu0 %v6626
      %v6741 = vpop.f32.mrf.mxu0
      %v6742 = vadd.f32 0.0, %v6741
      %6743 = vmatmul.f32.gmra.mxu0 %v6629
      %v6744 = vpop.f32.mrf.mxu0
      %v6745 = vadd.f32 0.0, %v6744
      %6746 = vmatmul.f32.gmra.mxu0 %v6632
      %v6747 = vpop.f32.mrf.mxu0
      %v6748 = vadd.f32 0.0, %v6747
      %6749 = vmatmul.f32.gmra.mxu0 %v6635
      %v6750 = vpop.f32.mrf.mxu0
      %v6751 = vadd.f32 0.0, %v6750
      %6752 = vmatmul.f32.gmra.mxu0 %v6638
      %v6753 = vpop.f32.mrf.mxu0
      %v6754 = vadd.f32 0.0, %v6753
      %6755 = vmatmul.f32.gmra.mxu0 %v6641
      %v6756 = vpop.f32.mrf.mxu0
      %v6757 = vadd.f32 0.0, %v6756
      %6758 = vmatmul.f32.gmra.mxu0 %v6644
      %v6759 = vpop.f32.mrf.mxu0
      %v6760 = vadd.f32 0.0, %v6759
      %6761 = vmatmul.f32.gmra.mxu0 %v6647
      %v6762 = vpop.f32.mrf.mxu0
      %v6763 = vadd.f32 0.0, %v6762
      %6764 = vmatmul.f32.gmra.mxu0 %v6650
      %v6765 = vpop.f32.mrf.mxu0
      %v6766 = vadd.f32 0.0, %v6765
      %6767 = vmatmul.f32.gmra.mxu0 %v6653
      %v6768 = vpop.f32.mrf.mxu0
      %v6769 = vadd.f32 0.0, %v6768
      %6770 = vmatmul.f32.gmra.mxu0 %v6656
      %v6771 = vpop.f32.mrf.mxu0
      %v6772 = vadd.f32 0.0, %v6771
      %6773 = vmatmul.f32.gmra.mxu0 %v6659
      %v6774 = vpop.f32.mrf.mxu0
      %v6775 = vadd.f32 0.0, %v6774
      %6776 = vmatmul.f32.gmra.mxu0 %v6662
      %v6777 = vpop.f32.mrf.mxu0
      %v6778 = vadd.f32 0.0, %v6777
      %6779 = vmatmul.f32.gmra.mxu0 %v6665
      %v6780 = vpop.f32.mrf.mxu0
      %v6781 = vadd.f32 0.0, %v6780
      %6782 = vmatmul.f32.gmra.mxu0 %v6668
      %v6783 = vpop.f32.mrf.mxu0
      %v6784 = vadd.f32 0.0, %v6783
      %6785 = vmatmul.f32.gmra.mxu0 %v6671
      %v6786 = vpop.f32.mrf.mxu0
      %v6787 = vadd.f32 0.0, %v6786
      %6788 = vmatmul.f32.gmra.mxu0 %v6674
      %v6789 = vpop.f32.mrf.mxu0
      %v6790 = vadd.f32 0.0, %v6789
      %6791 = vmatmul.f32.gmra.mxu0 %v6677
      %v6792 = vpop.f32.mrf.mxu0
      %v6793 = vadd.f32 0.0, %v6792
      %6794 = vmatmul.f32.gmra.mxu0 %v6680
      %v6795 = vpop.f32.mrf.mxu0
      %v6796 = vadd.f32 0.0, %v6795
      %6797 = vmatmul.f32.gmra.mxu0 %v6683
      %v6798 = vpop.f32.mrf.mxu0
      %v6799 = vadd.f32 0.0, %v6798
      %6800 = vmatmul.f32.gmra.mxu0 %v6686
      %v6801 = vpop.f32.mrf.mxu0
      %v6802 = vadd.f32 0.0, %v6801
      %6803 = vmatmul.f32.gmra.mxu0 %v6689
      %v6804 = vpop.f32.mrf.mxu0
      %v6805 = vadd.f32 0.0, %v6804
      %6806 = vmatmul.f32.gmra.mxu0 %v6692
      %v6807 = vpop.f32.mrf.mxu0
      %v6808 = vadd.f32 0.0, %v6807
      %6809 = vmatmul.f32.gmra.mxu0 %v6695
      %v6810 = vpop.f32.mrf.mxu0
      %v6811 = vadd.f32 0.0, %v6810
      %6812 = vmatmul.f32.gmra.mxu0 %v6698
      %v6813 = vpop.f32.mrf.mxu0
      %v6814 = vadd.f32 0.0, %v6813
      %6815 = vmatmul.f32.gmra.mxu0 %v6701
      %v6816 = vpop.f32.mrf.mxu0
      %v6817 = vadd.f32 0.0, %v6816
      %6818 = vmatmul.f32.gmra.mxu0 %v6704
      %v6819 = vpop.f32.mrf.mxu0
      %v6820 = vadd.f32 0.0, %v6819
      %6821 = vdwg.mxu0
      %v6822 = vadd.f32 %v6576, %v6727
      %v6823 = vadd.f32 %v6577, %v6730
      %v6824 = vadd.f32 %v6578, %v6733
      %v6825 = vadd.f32 %v6579, %v6736
      %v6826 = vadd.f32 %v6580, %v6739
      %v6827 = vadd.f32 %v6581, %v6742
      %v6828 = vadd.f32 %v6582, %v6745
      %v6829 = vadd.f32 %v6583, %v6748
      %v6830 = vadd.f32 %v6584, %v6751
      %v6831 = vadd.f32 %v6585, %v6754
      %v6832 = vadd.f32 %v6586, %v6757
      %v6833 = vadd.f32 %v6587, %v6760
      %v6834 = vadd.f32 %v6588, %v6763
      %v6835 = vadd.f32 %v6589, %v6766
      %v6836 = vadd.f32 %v6590, %v6769
      %v6837 = vadd.f32 %v6591, %v6772
      %v6838 = vadd.f32 %v6592, %v6775
      %v6839 = vadd.f32 %v6593, %v6778
      %v6840 = vadd.f32 %v6594, %v6781
      %v6841 = vadd.f32 %v6595, %v6784
      %v6842 = vadd.f32 %v6596, %v6787
      %v6843 = vadd.f32 %v6597, %v6790
      %v6844 = vadd.f32 %v6598, %v6793
      %v6845 = vadd.f32 %v6599, %v6796
      %v6846 = vadd.f32 %v6600, %v6799
      %v6847 = vadd.f32 %v6601, %v6802
      %v6848 = vadd.f32 %v6602, %v6805
      %v6849 = vadd.f32 %v6603, %v6808
      %v6850 = vadd.f32 %v6604, %v6811
      %v6851 = vadd.f32 %v6605, %v6814
      %v6852 = vadd.f32 %v6606, %v6817
      %v6853 = vadd.f32 %v6607, %v6820
      %6854 = vst.msk [vmem:[#allocation5] sm:$0xff] %vm577, %v6822
      %6855 = vst.msk [vmem:[#allocation5 + $0x8] sm:$0xff] %vm577, %v6823
      %6856 = vst.msk [vmem:[#allocation5 + $0x10] sm:$0xff] %vm577, %v6824
      %6857 = vst.msk [vmem:[#allocation5 + $0x18] sm:$0xff] %vm577, %v6825
      %6858 = vst.msk [vmem:[#allocation5 + $0x20] sm:$0xff] %vm577, %v6826
      %6859 = vst.msk [vmem:[#allocation5 + $0x28] sm:$0xff] %vm577, %v6827
      %6860 = vst.msk [vmem:[#allocation5 + $0x30] sm:$0xff] %vm577, %v6828
      %6861 = vst.msk [vmem:[#allocation5 + $0x38] sm:$0xff] %vm577, %v6829
      %6862 = vst.msk [vmem:[#allocation5 + $0x40] sm:$0xff] %vm577, %v6830
      %6863 = vst.msk [vmem:[#allocation5 + $0x48] sm:$0xff] %vm577, %v6831
      %6864 = vst.msk [vmem:[#allocation5 + $0x50] sm:$0xff] %vm577, %v6832
      %6865 = vst.msk [vmem:[#allocation5 + $0x58] sm:$0xff] %vm577, %v6833
      %6866 = vst.msk [vmem:[#allocation5 + $0x60] sm:$0xff] %vm577, %v6834
      %6867 = vst.msk [vmem:[#allocation5 + $0x68] sm:$0xff] %vm577, %v6835
      %6868 = vst.msk [vmem:[#allocation5 + $0x70] sm:$0xff] %vm577, %v6836
      %6869 = vst.msk [vmem:[#allocation5 + $0x78] sm:$0xff] %vm577, %v6837
      %6870 = vst.msk [vmem:[#allocation5 + $0x80] sm:$0xff] %vm577, %v6838
      %6871 = vst.msk [vmem:[#allocation5 + $0x88] sm:$0xff] %vm577, %v6839
      %6872 = vst.msk [vmem:[#allocation5 + $0x90] sm:$0xff] %vm577, %v6840
      %6873 = vst.msk [vmem:[#allocation5 + $0x98] sm:$0xff] %vm577, %v6841
      %6874 = vst.msk [vmem:[#allocation5 + $0xa0] sm:$0xff] %vm577, %v6842
      %6875 = vst.msk [vmem:[#allocation5 + $0xa8] sm:$0xff] %vm577, %v6843
      %6876 = vst.msk [vmem:[#allocation5 + $0xb0] sm:$0xff] %vm577, %v6844
      %6877 = vst.msk [vmem:[#allocation5 + $0xb8] sm:$0xff] %vm577, %v6845
      %6878 = vst.msk [vmem:[#allocation5 + $0xc0] sm:$0xff] %vm577, %v6846
      %6879 = vst.msk [vmem:[#allocation5 + $0xc8] sm:$0xff] %vm577, %v6847
      %6880 = vst.msk [vmem:[#allocation5 + $0xd0] sm:$0xff] %vm577, %v6848
      %6881 = vst.msk [vmem:[#allocation5 + $0xd8] sm:$0xff] %vm577, %v6849
      %6882 = vst.msk [vmem:[#allocation5 + $0xe0] sm:$0xff] %vm577, %v6850
      %6883 = vst.msk [vmem:[#allocation5 + $0xe8] sm:$0xff] %vm577, %v6851
      %6884 = vst.msk [vmem:[#allocation5 + $0xf0] sm:$0xff] %vm577, %v6852
      %6885 = vst.msk [vmem:[#allocation5 + $0xf8] sm:$0xff] %vm577, %v6853
      %v6886 = vld [vmem:[%s6543 + $0x1] sm:$0xff]
      %v6887 = vld [vmem:[%s6543 + $0x9] sm:$0xff]
      %v6888 = vld [vmem:[%s6543 + $0x19] sm:$0xff]
      %v6889 = vld [vmem:[%s6543 + $0x21] sm:$0xff]
      %v6890 = vld [vmem:[%s6543 + $0x31] sm:$0xff]
      %v6891 = vld [vmem:[%s6543 + $0x39] sm:$0xff]
      %v6892 = vld [vmem:[%s6543 + $0x49] sm:$0xff]
      %v6893 = vld [vmem:[%s6543 + $0x51] sm:$0xff]
      %v6894 = vld [vmem:[%s6543 + $0x61] sm:$0xff]
      %v6895 = vld [vmem:[%s6543 + $0x69] sm:$0xff]
      %v6896 = vld [vmem:[%s6543 + $0x79] sm:$0xff]
      %v6897 = vld [vmem:[%s6543 + $0x81] sm:$0xff]
      %v6898 = vld [vmem:[%s6543 + $0x91] sm:$0xff]
      %v6899 = vld [vmem:[%s6543 + $0x99] sm:$0xff]
      %v6900 = vld [vmem:[%s6543 + $0xa9] sm:$0xff]
      %v6901 = vld [vmem:[%s6543 + $0xb1] sm:$0xff]
      %v6902 = vld [vmem:[%s6543 + $0xc1] sm:$0xff]
      %v6903 = vld [vmem:[%s6543 + $0xc9] sm:$0xff]
      %v6904 = vld [vmem:[%s6543 + $0xd9] sm:$0xff]
      %v6905 = vld [vmem:[%s6543 + $0xe1] sm:$0xff]
      %v6906 = vld [vmem:[%s6543 + $0xf1] sm:$0xff]
      %v6907 = vld [vmem:[%s6543 + $0xf9] sm:$0xff]
      %v6908 = vld [vmem:[%s6543 + $0x109] sm:$0xff]
      %v6909 = vld [vmem:[%s6543 + $0x111] sm:$0xff]
      %v6910 = vld [vmem:[%s6543 + $0x121] sm:$0xff]
      %v6911 = vld [vmem:[%s6543 + $0x129] sm:$0xff]
      %v6912 = vld [vmem:[%s6543 + $0x139] sm:$0xff]
      %v6913 = vld [vmem:[%s6543 + $0x141] sm:$0xff]
      %v6914 = vld [vmem:[%s6543 + $0x151] sm:$0xff]
      %v6915 = vld [vmem:[%s6543 + $0x159] sm:$0xff]
      %v6916 = vld [vmem:[%s6543 + $0x169] sm:$0xff]
      %v6917 = vld [vmem:[%s6543 + $0x171] sm:$0xff]
      %v6918 = vld [vmem:[#allocation5] sm:$0xff]
      %v6919 = vld [vmem:[#allocation5 + $0x8] sm:$0xff]
      %v6920 = vld [vmem:[#allocation5 + $0x10] sm:$0xff]
      %v6921 = vld [vmem:[#allocation5 + $0x18] sm:$0xff]
      %v6922 = vld [vmem:[#allocation5 + $0x20] sm:$0xff]
      %v6923 = vld [vmem:[#allocation5 + $0x28] sm:$0xff]
      %v6924 = vld [vmem:[#allocation5 + $0x30] sm:$0xff]
      %v6925 = vld [vmem:[#allocation5 + $0x38] sm:$0xff]
      %v6926 = vld [vmem:[#allocation5 + $0x40] sm:$0xff]
      %v6927 = vld [vmem:[#allocation5 + $0x48] sm:$0xff]
      %v6928 = vld [vmem:[#allocation5 + $0x50] sm:$0xff]
      %v6929 = vld [vmem:[#allocation5 + $0x58] sm:$0xff]
      %v6930 = vld [vmem:[#allocation5 + $0x60] sm:$0xff]
      %v6931 = vld [vmem:[#allocation5 + $0x68] sm:$0xff]
      %v6932 = vld [vmem:[#allocation5 + $0x70] sm:$0xff]
      %v6933 = vld [vmem:[#allocation5 + $0x78] sm:$0xff]
      %v6934 = vld [vmem:[#allocation5 + $0x80] sm:$0xff]
      %v6935 = vld [vmem:[#allocation5 + $0x88] sm:$0xff]
      %v6936 = vld [vmem:[#allocation5 + $0x90] sm:$0xff]
      %v6937 = vld [vmem:[#allocation5 + $0x98] sm:$0xff]
      %v6938 = vld [vmem:[#allocation5 + $0xa0] sm:$0xff]
      %v6939 = vld [vmem:[#allocation5 + $0xa8] sm:$0xff]
      %v6940 = vld [vmem:[#allocation5 + $0xb0] sm:$0xff]
      %v6941 = vld [vmem:[#allocation5 + $0xb8] sm:$0xff]
      %v6942 = vld [vmem:[#allocation5 + $0xc0] sm:$0xff]
      %v6943 = vld [vmem:[#allocation5 + $0xc8] sm:$0xff]
      %v6944 = vld [vmem:[#allocation5 + $0xd0] sm:$0xff]
      %v6945 = vld [vmem:[#allocation5 + $0xd8] sm:$0xff]
      %v6946 = vld [vmem:[#allocation5 + $0xe0] sm:$0xff]
      %v6947 = vld [vmem:[#allocation5 + $0xe8] sm:$0xff]
      %v6948 = vld [vmem:[#allocation5 + $0xf0] sm:$0xff]
      %v6949 = vld [vmem:[#allocation5 + $0xf8] sm:$0xff]
      %s6950 = scalar_lea.vmem %s4, 28
      %v6951 = vld [vmem:[%s6950] sm:$0xf]
      %v6953 = vsel %vm577, %v6886, 0
      %v6956 = vsel %vm577, %v6887, 0
      %v6959 = vsel %vm577, %v6888, 0
      %v6962 = vsel %vm577, %v6889, 0
      %v6965 = vsel %vm577, %v6890, 0
      %v6968 = vsel %vm577, %v6891, 0
      %v6971 = vsel %vm577, %v6892, 0
      %v6974 = vsel %vm577, %v6893, 0
      %v6977 = vsel %vm577, %v6894, 0
      %v6980 = vsel %vm577, %v6895, 0
      %v6983 = vsel %vm577, %v6896, 0
      %v6986 = vsel %vm577, %v6897, 0
      %v6989 = vsel %vm577, %v6898, 0
      %v6992 = vsel %vm577, %v6899, 0
      %v6995 = vsel %vm577, %v6900, 0
      %v6998 = vsel %vm577, %v6901, 0
      %v7001 = vsel %vm577, %v6902, 0
      %v7004 = vsel %vm577, %v6903, 0
      %v7007 = vsel %vm577, %v6904, 0
      %v7010 = vsel %vm577, %v6905, 0
      %v7013 = vsel %vm577, %v6906, 0
      %v7016 = vsel %vm577, %v6907, 0
      %v7019 = vsel %vm577, %v6908, 0
      %v7022 = vsel %vm577, %v6909, 0
      %v7025 = vsel %vm577, %v6910, 0
      %v7028 = vsel %vm577, %v6911, 0
      %v7031 = vsel %vm577, %v6912, 0
      %v7034 = vsel %vm577, %v6913, 0
      %v7037 = vsel %vm577, %v6914, 0
      %v7040 = vsel %vm577, %v6915, 0
      %v7043 = vsel %vm577, %v6916, 0
      %v7046 = vsel %vm577, %v6917, 0
      %v7049 = vsel %vm946, %v6951, 0
      %7051 = vmatpush.msra.mxu0 0.0
      %7052 = vmatpush.msra.mxu0 0.0
      %7053 = vmatpush.msra.mxu0 0.0
      %7054 = vmatpush.msra.mxu0 0.0
      %7055 = vmatpush.msra.mxu0 0.0
      %7056 = vmatpush.msra.mxu0 0.0
      %7057 = vmatpush.msra.mxu0 0.0
      %7058 = vmatpush.msra.mxu0 0.0
      %7059 = vmatpush.msra.mxu0 0.0
      %7060 = vmatpush.msra.mxu0 0.0
      %7061 = vmatpush.msra.mxu0 0.0
      %7062 = vmatpush.msra.mxu0 0.0
      %7063 = vmatpush.msra.mxu0 0.0
      %7064 = vmatpush.msra.mxu0 0.0
      %7065 = vmatpush.msra.mxu0 0.0
      %7066 = vmatpush.msra.mxu0 %v7049
      %7067 = vmatmul.f32.gmra.mxu0 %v6953
      %v7068 = vpop.f32.mrf.mxu0
      %v7069 = vadd.f32 0.0, %v7068
      %7070 = vmatmul.f32.gmra.mxu0 %v6956
      %v7071 = vpop.f32.mrf.mxu0
      %v7072 = vadd.f32 0.0, %v7071
      %7073 = vmatmul.f32.gmra.mxu0 %v6959
      %v7074 = vpop.f32.mrf.mxu0
      %v7075 = vadd.f32 0.0, %v7074
      %7076 = vmatmul.f32.gmra.mxu0 %v6962
      %v7077 = vpop.f32.mrf.mxu0
      %v7078 = vadd.f32 0.0, %v7077
      %7079 = vmatmul.f32.gmra.mxu0 %v6965
      %v7080 = vpop.f32.mrf.mxu0
      %v7081 = vadd.f32 0.0, %v7080
      %7082 = vmatmul.f32.gmra.mxu0 %v6968
      %v7083 = vpop.f32.mrf.mxu0
      %v7084 = vadd.f32 0.0, %v7083
      %7085 = vmatmul.f32.gmra.mxu0 %v6971
      %v7086 = vpop.f32.mrf.mxu0
      %v7087 = vadd.f32 0.0, %v7086
      %7088 = vmatmul.f32.gmra.mxu0 %v6974
      %v7089 = vpop.f32.mrf.mxu0
      %v7090 = vadd.f32 0.0, %v7089
      %7091 = vmatmul.f32.gmra.mxu0 %v6977
      %v7092 = vpop.f32.mrf.mxu0
      %v7093 = vadd.f32 0.0, %v7092
      %7094 = vmatmul.f32.gmra.mxu0 %v6980
      %v7095 = vpop.f32.mrf.mxu0
      %v7096 = vadd.f32 0.0, %v7095
      %7097 = vmatmul.f32.gmra.mxu0 %v6983
      %v7098 = vpop.f32.mrf.mxu0
      %v7099 = vadd.f32 0.0, %v7098
      %7100 = vmatmul.f32.gmra.mxu0 %v6986
      %v7101 = vpop.f32.mrf.mxu0
      %v7102 = vadd.f32 0.0, %v7101
      %7103 = vmatmul.f32.gmra.mxu0 %v6989
      %v7104 = vpop.f32.mrf.mxu0
      %v7105 = vadd.f32 0.0, %v7104
      %7106 = vmatmul.f32.gmra.mxu0 %v6992
      %v7107 = vpop.f32.mrf.mxu0
      %v7108 = vadd.f32 0.0, %v7107
      %7109 = vmatmul.f32.gmra.mxu0 %v6995
      %v7110 = vpop.f32.mrf.mxu0
      %v7111 = vadd.f32 0.0, %v7110
      %7112 = vmatmul.f32.gmra.mxu0 %v6998
      %v7113 = vpop.f32.mrf.mxu0
      %v7114 = vadd.f32 0.0, %v7113
      %7115 = vmatmul.f32.gmra.mxu0 %v7001
      %v7116 = vpop.f32.mrf.mxu0
      %v7117 = vadd.f32 0.0, %v7116
      %7118 = vmatmul.f32.gmra.mxu0 %v7004
      %v7119 = vpop.f32.mrf.mxu0
      %v7120 = vadd.f32 0.0, %v7119
      %7121 = vmatmul.f32.gmra.mxu0 %v7007
      %v7122 = vpop.f32.mrf.mxu0
      %v7123 = vadd.f32 0.0, %v7122
      %7124 = vmatmul.f32.gmra.mxu0 %v7010
      %v7125 = vpop.f32.mrf.mxu0
      %v7126 = vadd.f32 0.0, %v7125
      %7127 = vmatmul.f32.gmra.mxu0 %v7013
      %v7128 = vpop.f32.mrf.mxu0
      %v7129 = vadd.f32 0.0, %v7128
      %7130 = vmatmul.f32.gmra.mxu0 %v7016
      %v7131 = vpop.f32.mrf.mxu0
      %v7132 = vadd.f32 0.0, %v7131
      %7133 = vmatmul.f32.gmra.mxu0 %v7019
      %v7134 = vpop.f32.mrf.mxu0
      %v7135 = vadd.f32 0.0, %v7134
      %7136 = vmatmul.f32.gmra.mxu0 %v7022
      %v7137 = vpop.f32.mrf.mxu0
      %v7138 = vadd.f32 0.0, %v7137
      %7139 = vmatmul.f32.gmra.mxu0 %v7025
      %v7140 = vpop.f32.mrf.mxu0
      %v7141 = vadd.f32 0.0, %v7140
      %7142 = vmatmul.f32.gmra.mxu0 %v7028
      %v7143 = vpop.f32.mrf.mxu0
      %v7144 = vadd.f32 0.0, %v7143
      %7145 = vmatmul.f32.gmra.mxu0 %v7031
      %v7146 = vpop.f32.mrf.mxu0
      %v7147 = vadd.f32 0.0, %v7146
      %7148 = vmatmul.f32.gmra.mxu0 %v7034
      %v7149 = vpop.f32.mrf.mxu0
      %v7150 = vadd.f32 0.0, %v7149
      %7151 = vmatmul.f32.gmra.mxu0 %v7037
      %v7152 = vpop.f32.mrf.mxu0
      %v7153 = vadd.f32 0.0, %v7152
      %7154 = vmatmul.f32.gmra.mxu0 %v7040
      %v7155 = vpop.f32.mrf.mxu0
      %v7156 = vadd.f32 0.0, %v7155
      %7157 = vmatmul.f32.gmra.mxu0 %v7043
      %v7158 = vpop.f32.mrf.mxu0
      %v7159 = vadd.f32 0.0, %v7158
      %7160 = vmatmul.f32.gmra.mxu0 %v7046
      %v7161 = vpop.f32.mrf.mxu0
      %v7162 = vadd.f32 0.0, %v7161
      %7163 = vdwg.mxu0
      %v7164 = vadd.f32 %v6918, %v7069
      %v7165 = vadd.f32 %v6919, %v7072
      %v7166 = vadd.f32 %v6920, %v7075
      %v7167 = vadd.f32 %v6921, %v7078
      %v7168 = vadd.f32 %v6922, %v7081
      %v7169 = vadd.f32 %v6923, %v7084
      %v7170 = vadd.f32 %v6924, %v7087
      %v7171 = vadd.f32 %v6925, %v7090
      %v7172 = vadd.f32 %v6926, %v7093
      %v7173 = vadd.f32 %v6927, %v7096
      %v7174 = vadd.f32 %v6928, %v7099
      %v7175 = vadd.f32 %v6929, %v7102
      %v7176 = vadd.f32 %v6930, %v7105
      %v7177 = vadd.f32 %v6931, %v7108
      %v7178 = vadd.f32 %v6932, %v7111
      %v7179 = vadd.f32 %v6933, %v7114
      %v7180 = vadd.f32 %v6934, %v7117
      %v7181 = vadd.f32 %v6935, %v7120
      %v7182 = vadd.f32 %v6936, %v7123
      %v7183 = vadd.f32 %v6937, %v7126
      %v7184 = vadd.f32 %v6938, %v7129
      %v7185 = vadd.f32 %v6939, %v7132
      %v7186 = vadd.f32 %v6940, %v7135
      %v7187 = vadd.f32 %v6941, %v7138
      %v7188 = vadd.f32 %v6942, %v7141
      %v7189 = vadd.f32 %v6943, %v7144
      %v7190 = vadd.f32 %v6944, %v7147
      %v7191 = vadd.f32 %v6945, %v7150
      %v7192 = vadd.f32 %v6946, %v7153
      %v7193 = vadd.f32 %v6947, %v7156
      %v7194 = vadd.f32 %v6948, %v7159
      %v7195 = vadd.f32 %v6949, %v7162
      %7196 = vst.msk [vmem:[#allocation5] sm:$0xff] %vm577, %v7164
      %7197 = vst.msk [vmem:[#allocation5 + $0x8] sm:$0xff] %vm577, %v7165
      %7198 = vst.msk [vmem:[#allocation5 + $0x10] sm:$0xff] %vm577, %v7166
      %7199 = vst.msk [vmem:[#allocation5 + $0x18] sm:$0xff] %vm577, %v7167
      %7200 = vst.msk [vmem:[#allocation5 + $0x20] sm:$0xff] %vm577, %v7168
      %7201 = vst.msk [vmem:[#allocation5 + $0x28] sm:$0xff] %vm577, %v7169
      %7202 = vst.msk [vmem:[#allocation5 + $0x30] sm:$0xff] %vm577, %v7170
      %7203 = vst.msk [vmem:[#allocation5 + $0x38] sm:$0xff] %vm577, %v7171
      %7204 = vst.msk [vmem:[#allocation5 + $0x40] sm:$0xff] %vm577, %v7172
      %7205 = vst.msk [vmem:[#allocation5 + $0x48] sm:$0xff] %vm577, %v7173
      %7206 = vst.msk [vmem:[#allocation5 + $0x50] sm:$0xff] %vm577, %v7174
      %7207 = vst.msk [vmem:[#allocation5 + $0x58] sm:$0xff] %vm577, %v7175
      %7208 = vst.msk [vmem:[#allocation5 + $0x60] sm:$0xff] %vm577, %v7176
      %7209 = vst.msk [vmem:[#allocation5 + $0x68] sm:$0xff] %vm577, %v7177
      %7210 = vst.msk [vmem:[#allocation5 + $0x70] sm:$0xff] %vm577, %v7178
      %7211 = vst.msk [vmem:[#allocation5 + $0x78] sm:$0xff] %vm577, %v7179
      %7212 = vst.msk [vmem:[#allocation5 + $0x80] sm:$0xff] %vm577, %v7180
      %7213 = vst.msk [vmem:[#allocation5 + $0x88] sm:$0xff] %vm577, %v7181
      %7214 = vst.msk [vmem:[#allocation5 + $0x90] sm:$0xff] %vm577, %v7182
      %7215 = vst.msk [vmem:[#allocation5 + $0x98] sm:$0xff] %vm577, %v7183
      %7216 = vst.msk [vmem:[#allocation5 + $0xa0] sm:$0xff] %vm577, %v7184
      %7217 = vst.msk [vmem:[#allocation5 + $0xa8] sm:$0xff] %vm577, %v7185
      %7218 = vst.msk [vmem:[#allocation5 + $0xb0] sm:$0xff] %vm577, %v7186
      %7219 = vst.msk [vmem:[#allocation5 + $0xb8] sm:$0xff] %vm577, %v7187
      %7220 = vst.msk [vmem:[#allocation5 + $0xc0] sm:$0xff] %vm577, %v7188
      %7221 = vst.msk [vmem:[#allocation5 + $0xc8] sm:$0xff] %vm577, %v7189
      %7222 = vst.msk [vmem:[#allocation5 + $0xd0] sm:$0xff] %vm577, %v7190
      %7223 = vst.msk [vmem:[#allocation5 + $0xd8] sm:$0xff] %vm577, %v7191
      %7224 = vst.msk [vmem:[#allocation5 + $0xe0] sm:$0xff] %vm577, %v7192
      %7225 = vst.msk [vmem:[#allocation5 + $0xe8] sm:$0xff] %vm577, %v7193
      %7226 = vst.msk [vmem:[#allocation5 + $0xf0] sm:$0xff] %vm577, %v7194
      %7227 = vst.msk [vmem:[#allocation5 + $0xf8] sm:$0xff] %vm577, %v7195
      %v7228 = vld [vmem:[%s6543 + $0x2] sm:$0xff]
      %v7229 = vld [vmem:[%s6543 + $0xa] sm:$0xff]
      %v7230 = vld [vmem:[%s6543 + $0x1a] sm:$0xff]
      %v7231 = vld [vmem:[%s6543 + $0x22] sm:$0xff]
      %v7232 = vld [vmem:[%s6543 + $0x32] sm:$0xff]
      %v7233 = vld [vmem:[%s6543 + $0x3a] sm:$0xff]
      %v7234 = vld [vmem:[%s6543 + $0x4a] sm:$0xff]
      %v7235 = vld [vmem:[%s6543 + $0x52] sm:$0xff]
      %v7236 = vld [vmem:[%s6543 + $0x62] sm:$0xff]
      %v7237 = vld [vmem:[%s6543 + $0x6a] sm:$0xff]
      %v7238 = vld [vmem:[%s6543 + $0x7a] sm:$0xff]
      %v7239 = vld [vmem:[%s6543 + $0x82] sm:$0xff]
      %v7240 = vld [vmem:[%s6543 + $0x92] sm:$0xff]
      %v7241 = vld [vmem:[%s6543 + $0x9a] sm:$0xff]
      %v7242 = vld [vmem:[%s6543 + $0xaa] sm:$0xff]
      %v7243 = vld [vmem:[%s6543 + $0xb2] sm:$0xff]
      %v7244 = vld [vmem:[%s6543 + $0xc2] sm:$0xff]
      %v7245 = vld [vmem:[%s6543 + $0xca] sm:$0xff]
      %v7246 = vld [vmem:[%s6543 + $0xda] sm:$0xff]
      %v7247 = vld [vmem:[%s6543 + $0xe2] sm:$0xff]
      %v7248 = vld [vmem:[%s6543 + $0xf2] sm:$0xff]
      %v7249 = vld [vmem:[%s6543 + $0xfa] sm:$0xff]
      %v7250 = vld [vmem:[%s6543 + $0x10a] sm:$0xff]
      %v7251 = vld [vmem:[%s6543 + $0x112] sm:$0xff]
      %v7252 = vld [vmem:[%s6543 + $0x122] sm:$0xff]
      %v7253 = vld [vmem:[%s6543 + $0x12a] sm:$0xff]
      %v7254 = vld [vmem:[%s6543 + $0x13a] sm:$0xff]
      %v7255 = vld [vmem:[%s6543 + $0x142] sm:$0xff]
      %v7256 = vld [vmem:[%s6543 + $0x152] sm:$0xff]
      %v7257 = vld [vmem:[%s6543 + $0x15a] sm:$0xff]
      %v7258 = vld [vmem:[%s6543 + $0x16a] sm:$0xff]
      %v7259 = vld [vmem:[%s6543 + $0x172] sm:$0xff]
      %v7260 = vld [vmem:[#allocation5] sm:$0xff]
      %v7261 = vld [vmem:[#allocation5 + $0x8] sm:$0xff]
      %v7262 = vld [vmem:[#allocation5 + $0x10] sm:$0xff]
      %v7263 = vld [vmem:[#allocation5 + $0x18] sm:$0xff]
      %v7264 = vld [vmem:[#allocation5 + $0x20] sm:$0xff]
      %v7265 = vld [vmem:[#allocation5 + $0x28] sm:$0xff]
      %v7266 = vld [vmem:[#allocation5 + $0x30] sm:$0xff]
      %v7267 = vld [vmem:[#allocation5 + $0x38] sm:$0xff]
      %v7268 = vld [vmem:[#allocation5 + $0x40] sm:$0xff]
      %v7269 = vld [vmem:[#allocation5 + $0x48] sm:$0xff]
      %v7270 = vld [vmem:[#allocation5 + $0x50] sm:$0xff]
      %v7271 = vld [vmem:[#allocation5 + $0x58] sm:$0xff]
      %v7272 = vld [vmem:[#allocation5 + $0x60] sm:$0xff]
      %v7273 = vld [vmem:[#allocation5 + $0x68] sm:$0xff]
      %v7274 = vld [vmem:[#allocation5 + $0x70] sm:$0xff]
      %v7275 = vld [vmem:[#allocation5 + $0x78] sm:$0xff]
      %v7276 = vld [vmem:[#allocation5 + $0x80] sm:$0xff]
      %v7277 = vld [vmem:[#allocation5 + $0x88] sm:$0xff]
      %v7278 = vld [vmem:[#allocation5 + $0x90] sm:$0xff]
      %v7279 = vld [vmem:[#allocation5 + $0x98] sm:$0xff]
      %v7280 = vld [vmem:[#allocation5 + $0xa0] sm:$0xff]
      %v7281 = vld [vmem:[#allocation5 + $0xa8] sm:$0xff]
      %v7282 = vld [vmem:[#allocation5 + $0xb0] sm:$0xff]
      %v7283 = vld [vmem:[#allocation5 + $0xb8] sm:$0xff]
      %v7284 = vld [vmem:[#allocation5 + $0xc0] sm:$0xff]
      %v7285 = vld [vmem:[#allocation5 + $0xc8] sm:$0xff]
      %v7286 = vld [vmem:[#allocation5 + $0xd0] sm:$0xff]
      %v7287 = vld [vmem:[#allocation5 + $0xd8] sm:$0xff]
      %v7288 = vld [vmem:[#allocation5 + $0xe0] sm:$0xff]
      %v7289 = vld [vmem:[#allocation5 + $0xe8] sm:$0xff]
      %v7290 = vld [vmem:[#allocation5 + $0xf0] sm:$0xff]
      %v7291 = vld [vmem:[#allocation5 + $0xf8] sm:$0xff]
      %s7292 = scalar_lea.vmem %s4, 32
      %v7293 = vld [vmem:[%s7292] sm:$0xf]
      %v7295 = vsel %vm577, %v7228, 0
      %v7298 = vsel %vm577, %v7229, 0
      %v7301 = vsel %vm577, %v7230, 0
      %v7304 = vsel %vm577, %v7231, 0
      %v7307 = vsel %vm577, %v7232, 0
      %v7310 = vsel %vm577, %v7233, 0
      %v7313 = vsel %vm577, %v7234, 0
      %v7316 = vsel %vm577, %v7235, 0
      %v7319 = vsel %vm577, %v7236, 0
      %v7322 = vsel %vm577, %v7237, 0
      %v7325 = vsel %vm577, %v7238, 0
      %v7328 = vsel %vm577, %v7239, 0
      %v7331 = vsel %vm577, %v7240, 0
      %v7334 = vsel %vm577, %v7241, 0
      %v7337 = vsel %vm577, %v7242, 0
      %v7340 = vsel %vm577, %v7243, 0
      %v7343 = vsel %vm577, %v7244, 0
      %v7346 = vsel %vm577, %v7245, 0
      %v7349 = vsel %vm577, %v7246, 0
      %v7352 = vsel %vm577, %v7247, 0
      %v7355 = vsel %vm577, %v7248, 0
      %v7358 = vsel %vm577, %v7249, 0
      %v7361 = vsel %vm577, %v7250, 0
      %v7364 = vsel %vm577, %v7251, 0
      %v7367 = vsel %vm577, %v7252, 0
      %v7370 = vsel %vm577, %v7253, 0
      %v7373 = vsel %vm577, %v7254, 0
      %v7376 = vsel %vm577, %v7255, 0
      %v7379 = vsel %vm577, %v7256, 0
      %v7382 = vsel %vm577, %v7257, 0
      %v7385 = vsel %vm577, %v7258, 0
      %v7388 = vsel %vm577, %v7259, 0
      %v7391 = vsel %vm946, %v7293, 0
      %7393 = vmatpush.msra.mxu0 0.0
      %7394 = vmatpush.msra.mxu0 0.0
      %7395 = vmatpush.msra.mxu0 0.0
      %7396 = vmatpush.msra.mxu0 0.0
      %7397 = vmatpush.msra.mxu0 0.0
      %7398 = vmatpush.msra.mxu0 0.0
      %7399 = vmatpush.msra.mxu0 0.0
      %7400 = vmatpush.msra.mxu0 0.0
      %7401 = vmatpush.msra.mxu0 0.0
      %7402 = vmatpush.msra.mxu0 0.0
      %7403 = vmatpush.msra.mxu0 0.0
      %7404 = vmatpush.msra.mxu0 0.0
      %7405 = vmatpush.msra.mxu0 0.0
      %7406 = vmatpush.msra.mxu0 0.0
      %7407 = vmatpush.msra.mxu0 0.0
      %7408 = vmatpush.msra.mxu0 %v7391
      %7409 = vmatmul.f32.gmra.mxu0 %v7295
      %v7410 = vpop.f32.mrf.mxu0
      %v7411 = vadd.f32 0.0, %v7410
      %7412 = vmatmul.f32.gmra.mxu0 %v7298
      %v7413 = vpop.f32.mrf.mxu0
      %v7414 = vadd.f32 0.0, %v7413
      %7415 = vmatmul.f32.gmra.mxu0 %v7301
      %v7416 = vpop.f32.mrf.mxu0
      %v7417 = vadd.f32 0.0, %v7416
      %7418 = vmatmul.f32.gmra.mxu0 %v7304
      %v7419 = vpop.f32.mrf.mxu0
      %v7420 = vadd.f32 0.0, %v7419
      %7421 = vmatmul.f32.gmra.mxu0 %v7307
      %v7422 = vpop.f32.mrf.mxu0
      %v7423 = vadd.f32 0.0, %v7422
      %7424 = vmatmul.f32.gmra.mxu0 %v7310
      %v7425 = vpop.f32.mrf.mxu0
      %v7426 = vadd.f32 0.0, %v7425
      %7427 = vmatmul.f32.gmra.mxu0 %v7313
      %v7428 = vpop.f32.mrf.mxu0
      %v7429 = vadd.f32 0.0, %v7428
      %7430 = vmatmul.f32.gmra.mxu0 %v7316
      %v7431 = vpop.f32.mrf.mxu0
      %v7432 = vadd.f32 0.0, %v7431
      %7433 = vmatmul.f32.gmra.mxu0 %v7319
      %v7434 = vpop.f32.mrf.mxu0
      %v7435 = vadd.f32 0.0, %v7434
      %7436 = vmatmul.f32.gmra.mxu0 %v7322
      %v7437 = vpop.f32.mrf.mxu0
      %v7438 = vadd.f32 0.0, %v7437
      %7439 = vmatmul.f32.gmra.mxu0 %v7325
      %v7440 = vpop.f32.mrf.mxu0
      %v7441 = vadd.f32 0.0, %v7440
      %7442 = vmatmul.f32.gmra.mxu0 %v7328
      %v7443 = vpop.f32.mrf.mxu0
      %v7444 = vadd.f32 0.0, %v7443
      %7445 = vmatmul.f32.gmra.mxu0 %v7331
      %v7446 = vpop.f32.mrf.mxu0
      %v7447 = vadd.f32 0.0, %v7446
      %7448 = vmatmul.f32.gmra.mxu0 %v7334
      %v7449 = vpop.f32.mrf.mxu0
      %v7450 = vadd.f32 0.0, %v7449
      %7451 = vmatmul.f32.gmra.mxu0 %v7337
      %v7452 = vpop.f32.mrf.mxu0
      %v7453 = vadd.f32 0.0, %v7452
      %7454 = vmatmul.f32.gmra.mxu0 %v7340
      %v7455 = vpop.f32.mrf.mxu0
      %v7456 = vadd.f32 0.0, %v7455
      %7457 = vmatmul.f32.gmra.mxu0 %v7343
      %v7458 = vpop.f32.mrf.mxu0
      %v7459 = vadd.f32 0.0, %v7458
      %7460 = vmatmul.f32.gmra.mxu0 %v7346
      %v7461 = vpop.f32.mrf.mxu0
      %v7462 = vadd.f32 0.0, %v7461
      %7463 = vmatmul.f32.gmra.mxu0 %v7349
      %v7464 = vpop.f32.mrf.mxu0
      %v7465 = vadd.f32 0.0, %v7464
      %7466 = vmatmul.f32.gmra.mxu0 %v7352
      %v7467 = vpop.f32.mrf.mxu0
      %v7468 = vadd.f32 0.0, %v7467
      %7469 = vmatmul.f32.gmra.mxu0 %v7355
      %v7470 = vpop.f32.mrf.mxu0
      %v7471 = vadd.f32 0.0, %v7470
      %7472 = vmatmul.f32.gmra.mxu0 %v7358
      %v7473 = vpop.f32.mrf.mxu0
      %v7474 = vadd.f32 0.0, %v7473
      %7475 = vmatmul.f32.gmra.mxu0 %v7361
      %v7476 = vpop.f32.mrf.mxu0
      %v7477 = vadd.f32 0.0, %v7476
      %7478 = vmatmul.f32.gmra.mxu0 %v7364
      %v7479 = vpop.f32.mrf.mxu0
      %v7480 = vadd.f32 0.0, %v7479
      %7481 = vmatmul.f32.gmra.mxu0 %v7367
      %v7482 = vpop.f32.mrf.mxu0
      %v7483 = vadd.f32 0.0, %v7482
      %7484 = vmatmul.f32.gmra.mxu0 %v7370
      %v7485 = vpop.f32.mrf.mxu0
      %v7486 = vadd.f32 0.0, %v7485
      %7487 = vmatmul.f32.gmra.mxu0 %v7373
      %v7488 = vpop.f32.mrf.mxu0
      %v7489 = vadd.f32 0.0, %v7488
      %7490 = vmatmul.f32.gmra.mxu0 %v7376
      %v7491 = vpop.f32.mrf.mxu0
      %v7492 = vadd.f32 0.0, %v7491
      %7493 = vmatmul.f32.gmra.mxu0 %v7379
      %v7494 = vpop.f32.mrf.mxu0
      %v7495 = vadd.f32 0.0, %v7494
      %7496 = vmatmul.f32.gmra.mxu0 %v7382
      %v7497 = vpop.f32.mrf.mxu0
      %v7498 = vadd.f32 0.0, %v7497
      %7499 = vmatmul.f32.gmra.mxu0 %v7385
      %v7500 = vpop.f32.mrf.mxu0
      %v7501 = vadd.f32 0.0, %v7500
      %7502 = vmatmul.f32.gmra.mxu0 %v7388
      %v7503 = vpop.f32.mrf.mxu0
      %v7504 = vadd.f32 0.0, %v7503
      %7505 = vdwg.mxu0
      %v7506 = vadd.f32 %v7260, %v7411
      %v7507 = vadd.f32 %v7261, %v7414
      %v7508 = vadd.f32 %v7262, %v7417
      %v7509 = vadd.f32 %v7263, %v7420
      %v7510 = vadd.f32 %v7264, %v7423
      %v7511 = vadd.f32 %v7265, %v7426
      %v7512 = vadd.f32 %v7266, %v7429
      %v7513 = vadd.f32 %v7267, %v7432
      %v7514 = vadd.f32 %v7268, %v7435
      %v7515 = vadd.f32 %v7269, %v7438
      %v7516 = vadd.f32 %v7270, %v7441
      %v7517 = vadd.f32 %v7271, %v7444
      %v7518 = vadd.f32 %v7272, %v7447
      %v7519 = vadd.f32 %v7273, %v7450
      %v7520 = vadd.f32 %v7274, %v7453
      %v7521 = vadd.f32 %v7275, %v7456
      %v7522 = vadd.f32 %v7276, %v7459
      %v7523 = vadd.f32 %v7277, %v7462
      %v7524 = vadd.f32 %v7278, %v7465
      %v7525 = vadd.f32 %v7279, %v7468
      %v7526 = vadd.f32 %v7280, %v7471
      %v7527 = vadd.f32 %v7281, %v7474
      %v7528 = vadd.f32 %v7282, %v7477
      %v7529 = vadd.f32 %v7283, %v7480
      %v7530 = vadd.f32 %v7284, %v7483
      %v7531 = vadd.f32 %v7285, %v7486
      %v7532 = vadd.f32 %v7286, %v7489
      %v7533 = vadd.f32 %v7287, %v7492
      %v7534 = vadd.f32 %v7288, %v7495
      %v7535 = vadd.f32 %v7289, %v7498
      %v7536 = vadd.f32 %v7290, %v7501
      %v7537 = vadd.f32 %v7291, %v7504
      %7538 = vst.msk [vmem:[#allocation5] sm:$0xff] %vm577, %v7506
      %7539 = vst.msk [vmem:[#allocation5 + $0x8] sm:$0xff] %vm577, %v7507
      %7540 = vst.msk [vmem:[#allocation5 + $0x10] sm:$0xff] %vm577, %v7508
      %7541 = vst.msk [vmem:[#allocation5 + $0x18] sm:$0xff] %vm577, %v7509
      %7542 = vst.msk [vmem:[#allocation5 + $0x20] sm:$0xff] %vm577, %v7510
      %7543 = vst.msk [vmem:[#allocation5 + $0x28] sm:$0xff] %vm577, %v7511
      %7544 = vst.msk [vmem:[#allocation5 + $0x30] sm:$0xff] %vm577, %v7512
      %7545 = vst.msk [vmem:[#allocation5 + $0x38] sm:$0xff] %vm577, %v7513
      %7546 = vst.msk [vmem:[#allocation5 + $0x40] sm:$0xff] %vm577, %v7514
      %7547 = vst.msk [vmem:[#allocation5 + $0x48] sm:$0xff] %vm577, %v7515
      %7548 = vst.msk [vmem:[#allocation5 + $0x50] sm:$0xff] %vm577, %v7516
      %7549 = vst.msk [vmem:[#allocation5 + $0x58] sm:$0xff] %vm577, %v7517
      %7550 = vst.msk [vmem:[#allocation5 + $0x60] sm:$0xff] %vm577, %v7518
      %7551 = vst.msk [vmem:[#allocation5 + $0x68] sm:$0xff] %vm577, %v7519
      %7552 = vst.msk [vmem:[#allocation5 + $0x70] sm:$0xff] %vm577, %v7520
      %7553 = vst.msk [vmem:[#allocation5 + $0x78] sm:$0xff] %vm577, %v7521
      %7554 = vst.msk [vmem:[#allocation5 + $0x80] sm:$0xff] %vm577, %v7522
      %7555 = vst.msk [vmem:[#allocation5 + $0x88] sm:$0xff] %vm577, %v7523
      %7556 = vst.msk [vmem:[#allocation5 + $0x90] sm:$0xff] %vm577, %v7524
      %7557 = vst.msk [vmem:[#allocation5 + $0x98] sm:$0xff] %vm577, %v7525
      %7558 = vst.msk [vmem:[#allocation5 + $0xa0] sm:$0xff] %vm577, %v7526
      %7559 = vst.msk [vmem:[#allocation5 + $0xa8] sm:$0xff] %vm577, %v7527
      %7560 = vst.msk [vmem:[#allocation5 + $0xb0] sm:$0xff] %vm577, %v7528
      %7561 = vst.msk [vmem:[#allocation5 + $0xb8] sm:$0xff] %vm577, %v7529
      %7562 = vst.msk [vmem:[#allocation5 + $0xc0] sm:$0xff] %vm577, %v7530
      %7563 = vst.msk [vmem:[#allocation5 + $0xc8] sm:$0xff] %vm577, %v7531
      %7564 = vst.msk [vmem:[#allocation5 + $0xd0] sm:$0xff] %vm577, %v7532
      %7565 = vst.msk [vmem:[#allocation5 + $0xd8] sm:$0xff] %vm577, %v7533
      %7566 = vst.msk [vmem:[#allocation5 + $0xe0] sm:$0xff] %vm577, %v7534
      %7567 = vst.msk [vmem:[#allocation5 + $0xe8] sm:$0xff] %vm577, %v7535
      %7568 = vst.msk [vmem:[#allocation5 + $0xf0] sm:$0xff] %vm577, %v7536
      %7569 = vst.msk [vmem:[#allocation5 + $0xf8] sm:$0xff] %vm577, %v7537
      %v7570 = vld [vmem:[#allocation5] sm:$0xff]
      %v7571 = vld [vmem:[#allocation5 + $0x8] sm:$0xff]
      %v7572 = vld [vmem:[#allocation5 + $0x10] sm:$0xff]
      %v7573 = vld [vmem:[#allocation5 + $0x18] sm:$0xff]
      %v7574 = vld [vmem:[#allocation5 + $0x20] sm:$0xff]
      %v7575 = vld [vmem:[#allocation5 + $0x28] sm:$0xff]
      %v7576 = vld [vmem:[#allocation5 + $0x30] sm:$0xff]
      %v7577 = vld [vmem:[#allocation5 + $0x38] sm:$0xff]
      %v7578 = vld [vmem:[#allocation5 + $0x40] sm:$0xff]
      %v7579 = vld [vmem:[#allocation5 + $0x48] sm:$0xff]
      %v7580 = vld [vmem:[#allocation5 + $0x50] sm:$0xff]
      %v7581 = vld [vmem:[#allocation5 + $0x58] sm:$0xff]
      %v7582 = vld [vmem:[#allocation5 + $0x60] sm:$0xff]
      %v7583 = vld [vmem:[#allocation5 + $0x68] sm:$0xff]
      %v7584 = vld [vmem:[#allocation5 + $0x70] sm:$0xff]
      %v7585 = vld [vmem:[#allocation5 + $0x78] sm:$0xff]
      %v7586 = vld [vmem:[#allocation5 + $0x80] sm:$0xff]
      %v7587 = vld [vmem:[#allocation5 + $0x88] sm:$0xff]
      %v7588 = vld [vmem:[#allocation5 + $0x90] sm:$0xff]
      %v7589 = vld [vmem:[#allocation5 + $0x98] sm:$0xff]
      %v7590 = vld [vmem:[#allocation5 + $0xa0] sm:$0xff]
      %v7591 = vld [vmem:[#allocation5 + $0xa8] sm:$0xff]
      %v7592 = vld [vmem:[#allocation5 + $0xb0] sm:$0xff]
      %v7593 = vld [vmem:[#allocation5 + $0xb8] sm:$0xff]
      %v7594 = vld [vmem:[#allocation5 + $0xc0] sm:$0xff]
      %v7595 = vld [vmem:[#allocation5 + $0xc8] sm:$0xff]
      %v7596 = vld [vmem:[#allocation5 + $0xd0] sm:$0xff]
      %v7597 = vld [vmem:[#allocation5 + $0xd8] sm:$0xff]
      %v7598 = vld [vmem:[#allocation5 + $0xe0] sm:$0xff]
      %v7599 = vld [vmem:[#allocation5 + $0xe8] sm:$0xff]
      %v7600 = vld [vmem:[#allocation5 + $0xf0] sm:$0xff]
      %v7601 = vld [vmem:[#allocation5 + $0xf8] sm:$0xff]
      %v7603 = vperm.slane %v4457, 0
      %v7605 = vmul.f32 %v7570, %v7603
      %v7606 = vmul.f32 %v7571, %v7603
      %v7607 = vmul.f32 %v7572, %v7603
      %v7608 = vmul.f32 %v7573, %v7603
      %v7609 = vmul.f32 %v7574, %v7603
      %v7610 = vmul.f32 %v7575, %v7603
      %v7611 = vmul.f32 %v7576, %v7603
      %v7612 = vmul.f32 %v7577, %v7603
      %v7613 = vmul.f32 %v7578, %v7603
      %v7614 = vmul.f32 %v7579, %v7603
      %v7615 = vmul.f32 %v7580, %v7603
      %v7616 = vmul.f32 %v7581, %v7603
      %v7617 = vmul.f32 %v7582, %v7603
      %v7618 = vmul.f32 %v7583, %v7603
      %v7619 = vmul.f32 %v7584, %v7603
      %v7620 = vmul.f32 %v7585, %v7603
      %v7621 = vmul.f32 %v7586, %v7603
      %v7622 = vmul.f32 %v7587, %v7603
      %v7623 = vmul.f32 %v7588, %v7603
      %v7624 = vmul.f32 %v7589, %v7603
      %v7625 = vmul.f32 %v7590, %v7603
      %v7626 = vmul.f32 %v7591, %v7603
      %v7627 = vmul.f32 %v7592, %v7603
      %v7628 = vmul.f32 %v7593, %v7603
      %v7629 = vmul.f32 %v7594, %v7603
      %v7630 = vmul.f32 %v7595, %v7603
      %v7631 = vmul.f32 %v7596, %v7603
      %v7632 = vmul.f32 %v7597, %v7603
      %v7633 = vmul.f32 %v7598, %v7603
      %v7634 = vmul.f32 %v7599, %v7603
      %v7635 = vmul.f32 %v7600, %v7603
      %v7636 = vmul.f32 %v7601, %v7603
      %v7638 = vperm.slane %v4458, 0
      %v7640 = vadd.f32 %v7605, %v7638
      %v7641 = vadd.f32 %v7606, %v7638
      %v7642 = vadd.f32 %v7607, %v7638
      %v7643 = vadd.f32 %v7608, %v7638
      %v7644 = vadd.f32 %v7609, %v7638
      %v7645 = vadd.f32 %v7610, %v7638
      %v7646 = vadd.f32 %v7611, %v7638
      %v7647 = vadd.f32 %v7612, %v7638
      %v7648 = vadd.f32 %v7613, %v7638
      %v7649 = vadd.f32 %v7614, %v7638
      %v7650 = vadd.f32 %v7615, %v7638
      %v7651 = vadd.f32 %v7616, %v7638
      %v7652 = vadd.f32 %v7617, %v7638
      %v7653 = vadd.f32 %v7618, %v7638
      %v7654 = vadd.f32 %v7619, %v7638
      %v7655 = vadd.f32 %v7620, %v7638
      %v7656 = vadd.f32 %v7621, %v7638
      %v7657 = vadd.f32 %v7622, %v7638
      %v7658 = vadd.f32 %v7623, %v7638
      %v7659 = vadd.f32 %v7624, %v7638
      %v7660 = vadd.f32 %v7625, %v7638
      %v7661 = vadd.f32 %v7626, %v7638
      %v7662 = vadd.f32 %v7627, %v7638
      %v7663 = vadd.f32 %v7628, %v7638
      %v7664 = vadd.f32 %v7629, %v7638
      %v7665 = vadd.f32 %v7630, %v7638
      %v7666 = vadd.f32 %v7631, %v7638
      %v7667 = vadd.f32 %v7632, %v7638
      %v7668 = vadd.f32 %v7633, %v7638
      %v7669 = vadd.f32 %v7634, %v7638
      %v7670 = vadd.f32 %v7635, %v7638
      %v7671 = vadd.f32 %v7636, %v7638
      %v7672 = vld [vmem:[%s564] sm:$0xff]
      %v7673 = vld [vmem:[%s564 + $0x8] sm:$0xff]
      %v7674 = vld [vmem:[%s564 + $0x10] sm:$0xff]
      %v7675 = vld [vmem:[%s564 + $0x18] sm:$0xff]
      %v7676 = vld [vmem:[%s564 + $0x20] sm:$0xff]
      %v7677 = vld [vmem:[%s564 + $0x28] sm:$0xff]
      %v7678 = vld [vmem:[%s564 + $0x30] sm:$0xff]
      %v7679 = vld [vmem:[%s564 + $0x38] sm:$0xff]
      %v7680 = vld [vmem:[%s564 + $0x40] sm:$0xff]
      %v7681 = vld [vmem:[%s564 + $0x48] sm:$0xff]
      %v7682 = vld [vmem:[%s564 + $0x50] sm:$0xff]
      %v7683 = vld [vmem:[%s564 + $0x58] sm:$0xff]
      %v7684 = vld [vmem:[%s564 + $0x60] sm:$0xff]
      %v7685 = vld [vmem:[%s564 + $0x68] sm:$0xff]
      %v7686 = vld [vmem:[%s564 + $0x70] sm:$0xff]
      %v7687 = vld [vmem:[%s564 + $0x78] sm:$0xff]
      %v7688 = vld [vmem:[%s564 + $0x80] sm:$0xff]
      %v7689 = vld [vmem:[%s564 + $0x88] sm:$0xff]
      %v7690 = vld [vmem:[%s564 + $0x90] sm:$0xff]
      %v7691 = vld [vmem:[%s564 + $0x98] sm:$0xff]
      %v7692 = vld [vmem:[%s564 + $0xa0] sm:$0xff]
      %v7693 = vld [vmem:[%s564 + $0xa8] sm:$0xff]
      %v7694 = vld [vmem:[%s564 + $0xb0] sm:$0xff]
      %v7695 = vld [vmem:[%s564 + $0xb8] sm:$0xff]
      %v7696 = vld [vmem:[%s564 + $0xc0] sm:$0xff]
      %v7697 = vld [vmem:[%s564 + $0xc8] sm:$0xff]
      %v7698 = vld [vmem:[%s564 + $0xd0] sm:$0xff]
      %v7699 = vld [vmem:[%s564 + $0xd8] sm:$0xff]
      %v7700 = vld [vmem:[%s564 + $0xe0] sm:$0xff]
      %v7701 = vld [vmem:[%s564 + $0xe8] sm:$0xff]
      %v7702 = vld [vmem:[%s564 + $0xf0] sm:$0xff]
      %v7703 = vld [vmem:[%s564 + $0xf8] sm:$0xff]
      %v7704 = vadd.f32 %v7640, %v7672
      %v7705 = vadd.f32 %v7641, %v7673
      %v7706 = vadd.f32 %v7642, %v7674
      %v7707 = vadd.f32 %v7643, %v7675
      %v7708 = vadd.f32 %v7644, %v7676
      %v7709 = vadd.f32 %v7645, %v7677
      %v7710 = vadd.f32 %v7646, %v7678
      %v7711 = vadd.f32 %v7647, %v7679
      %v7712 = vadd.f32 %v7648, %v7680
      %v7713 = vadd.f32 %v7649, %v7681
      %v7714 = vadd.f32 %v7650, %v7682
      %v7715 = vadd.f32 %v7651, %v7683
      %v7716 = vadd.f32 %v7652, %v7684
      %v7717 = vadd.f32 %v7653, %v7685
      %v7718 = vadd.f32 %v7654, %v7686
      %v7719 = vadd.f32 %v7655, %v7687
      %v7720 = vadd.f32 %v7656, %v7688
      %v7721 = vadd.f32 %v7657, %v7689
      %v7722 = vadd.f32 %v7658, %v7690
      %v7723 = vadd.f32 %v7659, %v7691
      %v7724 = vadd.f32 %v7660, %v7692
      %v7725 = vadd.f32 %v7661, %v7693
      %v7726 = vadd.f32 %v7662, %v7694
      %v7727 = vadd.f32 %v7663, %v7695
      %v7728 = vadd.f32 %v7664, %v7696
      %v7729 = vadd.f32 %v7665, %v7697
      %v7730 = vadd.f32 %v7666, %v7698
      %v7731 = vadd.f32 %v7667, %v7699
      %v7732 = vadd.f32 %v7668, %v7700
      %v7733 = vadd.f32 %v7669, %v7701
      %v7734 = vadd.f32 %v7670, %v7702
      %v7735 = vadd.f32 %v7671, %v7703
      %v7736 = vmax.f32 %v7704, 0.0
      %v7737 = vmax.f32 %v7705, 0.0
      %v7738 = vmax.f32 %v7706, 0.0
      %v7739 = vmax.f32 %v7707, 0.0
      %v7740 = vmax.f32 %v7708, 0.0
      %v7741 = vmax.f32 %v7709, 0.0
      %v7742 = vmax.f32 %v7710, 0.0
      %v7743 = vmax.f32 %v7711, 0.0
      %v7744 = vmax.f32 %v7712, 0.0
      %v7745 = vmax.f32 %v7713, 0.0
      %v7746 = vmax.f32 %v7714, 0.0
      %v7747 = vmax.f32 %v7715, 0.0
      %v7748 = vmax.f32 %v7716, 0.0
      %v7749 = vmax.f32 %v7717, 0.0
      %v7750 = vmax.f32 %v7718, 0.0
      %v7751 = vmax.f32 %v7719, 0.0
      %v7752 = vmax.f32 %v7720, 0.0
      %v7753 = vmax.f32 %v7721, 0.0
      %v7754 = vmax.f32 %v7722, 0.0
      %v7755 = vmax.f32 %v7723, 0.0
      %v7756 = vmax.f32 %v7724, 0.0
      %v7757 = vmax.f32 %v7725, 0.0
      %v7758 = vmax.f32 %v7726, 0.0
      %v7759 = vmax.f32 %v7727, 0.0
      %v7760 = vmax.f32 %v7728, 0.0
      %v7761 = vmax.f32 %v7729, 0.0
      %v7762 = vmax.f32 %v7730, 0.0
      %v7763 = vmax.f32 %v7731, 0.0
      %v7764 = vmax.f32 %v7732, 0.0
      %v7765 = vmax.f32 %v7733, 0.0
      %v7766 = vmax.f32 %v7734, 0.0
      %v7767 = vmax.f32 %v7735, 0.0
      %7768 = vst.msk [vmem:[%s575] sm:$0xff] %vm577, %v7736
      %7769 = vst.msk [vmem:[%s575 + $0x8] sm:$0xff] %vm577, %v7737
      %7770 = vst.msk [vmem:[%s575 + $0x10] sm:$0xff] %vm577, %v7738
      %7771 = vst.msk [vmem:[%s575 + $0x18] sm:$0xff] %vm577, %v7739
      %7772 = vst.msk [vmem:[%s575 + $0x20] sm:$0xff] %vm577, %v7740
      %7773 = vst.msk [vmem:[%s575 + $0x28] sm:$0xff] %vm577, %v7741
      %7774 = vst.msk [vmem:[%s575 + $0x30] sm:$0xff] %vm577, %v7742
      %7775 = vst.msk [vmem:[%s575 + $0x38] sm:$0xff] %vm577, %v7743
      %7776 = vst.msk [vmem:[%s575 + $0x40] sm:$0xff] %vm577, %v7744
      %7777 = vst.msk [vmem:[%s575 + $0x48] sm:$0xff] %vm577, %v7745
      %7778 = vst.msk [vmem:[%s575 + $0x50] sm:$0xff] %vm577, %v7746
      %7779 = vst.msk [vmem:[%s575 + $0x58] sm:$0xff] %vm577, %v7747
      %7780 = vst.msk [vmem:[%s575 + $0x60] sm:$0xff] %vm577, %v7748
      %7781 = vst.msk [vmem:[%s575 + $0x68] sm:$0xff] %vm577, %v7749
      %7782 = vst.msk [vmem:[%s575 + $0x70] sm:$0xff] %vm577, %v7750
      %7783 = vst.msk [vmem:[%s575 + $0x78] sm:$0xff] %vm577, %v7751
      %7784 = vst.msk [vmem:[%s575 + $0x80] sm:$0xff] %vm577, %v7752
      %7785 = vst.msk [vmem:[%s575 + $0x88] sm:$0xff] %vm577, %v7753
      %7786 = vst.msk [vmem:[%s575 + $0x90] sm:$0xff] %vm577, %v7754
      %7787 = vst.msk [vmem:[%s575 + $0x98] sm:$0xff] %vm577, %v7755
      %7788 = vst.msk [vmem:[%s575 + $0xa0] sm:$0xff] %vm577, %v7756
      %7789 = vst.msk [vmem:[%s575 + $0xa8] sm:$0xff] %vm577, %v7757
      %7790 = vst.msk [vmem:[%s575 + $0xb0] sm:$0xff] %vm577, %v7758
      %7791 = vst.msk [vmem:[%s575 + $0xb8] sm:$0xff] %vm577, %v7759
      %7792 = vst.msk [vmem:[%s575 + $0xc0] sm:$0xff] %vm577, %v7760
      %7793 = vst.msk [vmem:[%s575 + $0xc8] sm:$0xff] %vm577, %v7761
      %7794 = vst.msk [vmem:[%s575 + $0xd0] sm:$0xff] %vm577, %v7762
      %7795 = vst.msk [vmem:[%s575 + $0xd8] sm:$0xff] %vm577, %v7763
      %7796 = vst.msk [vmem:[%s575 + $0xe0] sm:$0xff] %vm577, %v7764
      %7797 = vst.msk [vmem:[%s575 + $0xe8] sm:$0xff] %vm577, %v7765
      %7798 = vst.msk [vmem:[%s575 + $0xf0] sm:$0xff] %vm577, %v7766
      %7799 = vst.msk [vmem:[%s575 + $0xf8] sm:$0xff] %vm577, %v7767
      %s7800 = smul.u32 16, %s26
      %p7801 = scmp.lt.s32.totalorder %s25, 1
      %s7802 = scalar_select %p7801, %s25, 1
      %p7803 = scmp.lt.s32.totalorder %s7800, 15
      %s7804 = scalar_select %p7803, %s7800, 15
      %s7805 = smul.addr %s7804, 2
      %s7806 = smul.addr %s7802, 32
      %s7807 = sadd.s32 %s7805, %s7806
      %s7808 = smul.addr %s7807, 8
      %s7809 = scalar_lea.vmem %s10, %s7808
      // Predicated region
      $region73: #{tpu_custom_call.1} parent=59 // pred_check
        %p7810 = pneg %p307
      $region74: #{tpu_custom_call.1} parent=59 // pred_check_branch
        %7812 = sbr.rel (%p7810) target = $region76
      $region75: #{tpu_custom_call.1} parent=59 // pred_region
        %s7813 = smul.u32 16, %s26
      $region76: #{tpu_custom_call.1} parent=59 // pred_fallthru
        _
    $region60: #{tpu_custom_call.1} parent=5 // pred_fallthru
      _
    %p7814 = scmp.le.s32.totalorder 2, %s16
    // Predicated region
    $region77: #{tpu_custom_call.1} parent=5 // pred_check
      %p7815 = pneg %p7814
    $region78: #{tpu_custom_call.1} parent=5 // pred_check_branch
      %7817 = sbr.rel (%p7815) target = $region80
    $region79: #{tpu_custom_call.1} parent=5 // pred_region
      %s7818 = ssub.s32 %s16, 2
      // Predicated region
      $region81: #{tpu_custom_call.1} parent=79 // pred_check
        %p7819 = pneg %p313
      $region82: #{tpu_custom_call.1} parent=79 // pred_check_branch
        %7821 = sbr.rel (%p7819) target = $region84
      $region83: #{tpu_custom_call.1} parent=79 // pred_region
        %s7822 = smul.u32 16, %s28
        %p7823 = scmp.lt.s32.totalorder %s27, 1
        %s7824 = scalar_select %p7823, %s27, 1
        %p7825 = scmp.lt.s32.totalorder %s7822, 15
        %s7826 = scalar_select %p7825, %s7822, 15
        %s7827 = smul.addr %s7826, 2
        %s7828 = smul.addr %s7824, 32
        %s7829 = sadd.s32 %s7827, %s7828
        %s7830 = smul.addr %s7829, 8
        %s7831 = scalar_lea.vmem %s10, %s7830
      $region84: #{tpu_custom_call.1} parent=79 // pred_fallthru
        _
    $region80: #{tpu_custom_call.1} parent=5 // pred_fallthru
      _
  $region6: #{tpu_custom_call.1} parent=0 // loop_footer
    %s20 = sadd.s32 1, %s16
  $region7: #{tpu_custom_call.1} parent=0 // loop_footer_branch
    %15 = sbr.rel target = $region3
  $region8: #{tpu_custom_call.1} parent=0 // loop_exit
    _

</llo_original>
